<compile_context>
chip_gen: v7x
topology: tpu7x:2x2x1
jax: 0.10.0
libtpu: 0.0.40
codegen_flags: <defaults>
</compile_context>

<pallas_src>
import functools

import jax
import jax.numpy as jnp
import numpy as np
from jax.experimental import pallas as pl
from jax.experimental.pallas import tpu as pltpu

LEAKY_SLOPE = 0.2
BN_EPS = 1e-5
KW = 4            # conv kernel size
PADW = 1          # conv padding
PRM_LANES = 128   # lane width of the packed bias/gamma/beta operand
OUT_LANES = 128   # lane width of the padded kernel output block


def _conv_out(size, stride):
    return (size + 2 * PADW - KW) // stride + 1


# ----------------------------------------------------------------------- fused Pallas kernel
def _fused_disc_kernel(*refs, n_batch, c_first, bn_channels):
    """Whole NLayerDiscriminator forward in a single kernel invocation.

    refs = (p0, w0blk, prm, g1, w1, g2, w2, ..., gL, wL, out)

      p0   : (S0, N*16*Cin)            bf16       layer-0 im2col patches (lanes batch-major)
      w0blk: (N*16*Cin, N*C0)          bf16       layer-0 weight, block-diagonal over batch
      prm  : (8, 128)                  f32        packed bias / gamma / beta rows
      g_l  : (16, S_l, S_{l-1})        i8 or bf16 per-tap 0/1 row-gather (zero rows = pad)
      w_l  : (N*Cin_l, 16*N*Cout_l)    bf16       tap-concatenated block-diagonal weights
      out  : (8, 128)                  f32        padded block; logits in [:S_L, :N]
    """
    p0_ref, w0_ref, prm_ref = refs[0], refs[1], refs[2]
    out_ref = refs[-1]
    gw = refs[3:-1]
    g_refs = gw[0::2]
    w_refs = gw[1::2]

    prm = prm_ref[...]                                     # (8, 128) f32

    def leaky(v):
        return jnp.where(v >= 0, v, LEAKY_SLOPE * v)

    def conv_wide(x_bf16, g_ref, w_ref):
        """Reassociated conv: one lane-dense weight matmul + 16 tap-gather matmuls (f32 acc)."""
        n_taps = g_ref.shape[0]
        s_out = g_ref.shape[1]
        ncout = w_ref.shape[1] // n_taps                   # = N * Cout lanes per tap block
        # weight stage: (S_in, N*Cin) @ (N*Cin, 16*N*Cout) -- full-lane MXU op, one bf16 cast
        y = jnp.dot(x_bf16, w_ref[...],
                    preferred_element_type=jnp.float32).astype(jnp.bfloat16)
        acc = jnp.zeros((s_out, ncout), jnp.float32)
        for t in range(n_taps):
            g_t = g_ref[t]                                 # (s_out, s_in) 0/1
            if g_t.dtype == jnp.int8:
                g_t = g_t.astype(jnp.float32).astype(jnp.bfloat16)   # exact 0/1
            acc = acc + jnp.dot(g_t, y[:, t * ncout:(t + 1) * ncout],
                                preferred_element_type=jnp.float32)
        return acc

    def bn_leaky(acc, gamma, beta, c):
        """Training-mode BatchNorm (two-pass stats over rows + batch lane-blocks) + LeakyReLU."""
        cnt = float(acc.shape[0] * n_batch)
        s1 = jnp.sum(acc, axis=0, keepdims=True)           # (1, N*c)
        s1c = s1[:, 0:c]
        for i in range(1, n_batch):
            s1c = s1c + s1[:, i * c:(i + 1) * c]
        mean = s1c / cnt                                   # (1, c)
        mean_f = jnp.concatenate([mean] * n_batch, axis=1)
        d = acc - mean_f
        s2 = jnp.sum(d * d, axis=0, keepdims=True)         # second pass: centered moments
        s2c = s2[:, 0:c]
        for i in range(1, n_batch):
            s2c = s2c + s2[:, i * c:(i + 1) * c]
        var = s2c / cnt                                    # biased variance (PyTorch norm)
        inv = jax.lax.rsqrt(var + BN_EPS)
        scale = gamma * inv                                # (1, c)
        shift = beta - mean * scale
        scale_f = jnp.concatenate([scale] * n_batch, axis=1)
        shift_f = jnp.concatenate([shift] * n_batch, axis=1)
        return leaky(acc * scale_f + shift_f)

    # ---- layer 0: conv(stride 2) + bias + LeakyReLU (patches precomputed outside) --------
    a = jnp.dot(p0_ref[...], w0_ref[...], preferred_element_type=jnp.float32)
    a = leaky(a + prm[0:1, 0:n_batch * c_first])
    x = a.astype(jnp.bfloat16)

    # ---- middle layers: conv (no bias) + BatchNorm + LeakyReLU ----------------------------
    row = 1
    for i, c in enumerate(bn_channels):
        acc = conv_wide(x, g_refs[i], w_refs[i])
        y = bn_leaky(acc, prm[row:row + 1, 0:c], prm[row + 1:row + 2, 0:c], c)
        x = y.astype(jnp.bfloat16)
        row += 2

    # ---- head: conv -> 1 channel + bias (no norm / activation) ---------------------------
    acc = conv_wide(x, g_refs[-1], w_refs[-1])
    logits = acc + prm[row:row + 1, 0:acc.shape[1]]        # (S_final, N)

    # pad to the full (8, 128) output tile so the final store is unmasked & lane-dense
    s_f, n_l = logits.shape
    out_rows, out_lanes = out_ref.shape
    padded = logits
    if out_lanes > n_l:
        padded = jnp.concatenate(
            [padded, jnp.zeros((s_f, out_lanes - n_l), jnp.float32)], axis=1)
    if out_rows > s_f:
        padded = jnp.concatenate(
            [padded, jnp.zeros((out_rows - s_f, out_lanes), jnp.float32)], axis=0)
    out_ref[...] = padded


# ----------------------------------------------------------------------- host-side helpers
def _make_gather(h, w, stride):
    """0/1 row-gather matrices, one per (kh, kw) tap: (16, Ho*Wo, H*W); zero rows = padding."""
    ho = _conv_out(h, stride)
    wo = _conv_out(w, stride)
    g = np.zeros((KW * KW, ho * wo, h * w), np.float32)
    for kh in range(KW):
        for kw in range(KW):
            t = kh * KW + kw
            for o in range(ho):
                ih = stride * o + kh - PADW
                if ih < 0 or ih >= h:
                    continue
                for p in range(wo):
                    iw = stride * p + kw - PADW
                    if iw < 0 or iw >= w:
                        continue
                    g[t, o * wo + p, ih * w + iw] = 1.0
    return g, ho, wo


def _im2col_layer0(x_nhwc, stride):
    """(N, H, W, C) -> (Ho*Wo, N*16*C) patches, lanes batch-major (matches kron(I_N, W0))."""
    n, h, w, c = x_nhwc.shape
    xp = jnp.pad(x_nhwc, ((0, 0), (PADW, PADW), (PADW, PADW), (0, 0)))
    ho = _conv_out(h, stride)
    wo = _conv_out(w, stride)
    cols = []
    for i in range(KW):
        for j in range(KW):
            cols.append(xp[:, i:i + stride * ho:stride, j:j + stride * wo:stride, :])
    p = jnp.stack(cols, axis=3)                            # (N, Ho, Wo, 16, C)
    p = p.reshape(n, ho * wo, KW * KW * c)                 # (N, S0, 16*C)
    return jnp.transpose(p, (1, 0, 2)).reshape(ho * wo, n * KW * KW * c)


def init_params(key, input_nc, ndf=8, n_layers=3, n_batch=2, height=32, width=32):
    """Mirror NLayerDiscriminator.__init__ and pre-arrange everything the fused kernel needs."""
    # layer table, identical to the torch module (BatchNorm2d => no bias on middle convs)
    specs = [dict(cin=input_nc, cout=ndf, stride=2, kind="bias_leaky")]
    nf_mult = 1
    for n in range(1, n_layers):
        nf_prev, nf_mult = nf_mult, min(2 ** n, 8)
        specs.append(dict(cin=ndf * nf_prev, cout=ndf * nf_mult, stride=2, kind="bn_leaky"))
    nf_prev, nf_mult = nf_mult, min(2 ** n_layers, 8)
    specs.append(dict(cin=ndf * nf_prev, cout=ndf * nf_mult, stride=1, kind="bn_leaky"))
    specs.append(dict(cin=ndf * nf_mult, cout=1, stride=1, kind="bias"))

    assert n_batch * specs[0]["cout"] <= PRM_LANES
    assert max(sp["cout"] for sp in specs) <= PRM_LANES

    # raw parameters (PyTorch layouts), deterministic from `key`
    raw = []
    for sp in specs:
        key, kw_, kb_, kg_, kbt_ = jax.random.split(key, 5)
        raw.append(dict(
            w=np.asarray(jax.random.normal(kw_, (sp["cout"], sp["cin"], KW, KW),
                                           jnp.float32)) * 0.02,
            b=np.asarray(jax.random.normal(kb_, (sp["cout"],), jnp.float32)) * 0.02,
            gamma=1.0 + 0.1 * np.asarray(jax.random.normal(kg_, (sp["cout"],), jnp.float32)),
            beta=0.1 * np.asarray(jax.random.normal(kbt_, (sp["cout"],), jnp.float32)),
        ))

    eye_n = np.eye(n_batch, dtype=np.float32)

    # layer 0 as a single patches @ weight matmul; weight block-diagonal over batch
    w0mat = np.transpose(raw[0]["w"], (2, 3, 1, 0)).reshape(KW * KW * specs[0]["cin"],
                                                            specs[0]["cout"])
    w0blk = np.kron(eye_n, w0mat)                          # (N*16*Cin, N*C0)

    h = _conv_out(height, specs[0]["stride"])
    w = _conv_out(width, specs[0]["stride"])

    # layers 1.. : per-tap gather matrices + tap-concatenated block-diagonal weights
    g_list, w_list = [], []
    for sp, rw in zip(specs[1:], raw[1:]):
        gmat, ho, wo = _make_gather(h, w, sp["stride"])
        blocks = []
        for kh in range(KW):
            for kw2 in range(KW):
                wt = rw["w"][:, :, kh, kw2].T              # (Cin, Cout)
                blocks.append(np.kron(eye_n, wt))          # (N*Cin, N*Cout)
        wcat = np.concatenate(blocks, axis=1)              # (N*Cin, 16*N*Cout), tap-major
        # big, (32,128)-aligned gathers ship as int8 (half the bytes); small ones stay bf16
        use_i8 = (gmat.shape[1] % 32 == 0) and (gmat.shape[2] % 128 == 0)
        g_list.append(jnp.asarray(gmat, jnp.int8 if use_i8 else jnp.bfloat16))
        w_list.append(jnp.asarray(wcat, jnp.bfloat16))
        h, w = ho, wo

    # packed epilogue parameters: one small f32 operand for all biases / gammas / betas
    n_rows = max(8, 2 + 2 * (len(specs) - 2))
    prm = np.zeros((n_rows, PRM_LANES), np.float32)
    prm[0, :n_batch * specs[0]["cout"]] = np.tile(raw[0]["b"], n_batch)
    row = 1
    for sp, rw in zip(specs[1:-1], raw[1:-1]):
        prm[row, :sp["cout"]] = rw["gamma"]
        prm[row + 1, :sp["cout"]] = rw["beta"]
        row += 2
    prm[row, :n_batch] = np.tile(raw[-1]["b"], n_batch)

    return dict(
        w0blk=jnp.asarray(w0blk, jnp.bfloat16),
        g=g_list,
        w=w_list,
        prm=jnp.asarray(prm, jnp.float32),
        n_batch=n_batch,
        c_first=specs[0]["cout"],
        bn_channels=tuple(sp["cout"] for sp in specs[1:-1]),
        out_hw=(h, w),
        stride0=specs[0]["stride"],
    )


def _full_spec(a):
    nd = a.ndim
    return pl.BlockSpec(a.shape, lambda i, _nd=nd: (0,) * _nd)


def _estimate_cost(operands, out_elems):
    p0, w0blk = operands[0], operands[1]
    flops = 2 * p0.shape[0] * p0.shape[1] * w0blk.shape[1]
    gw = operands[3:]
    for g_, w_ in zip(gw[0::2], gw[1::2]):
        t, s_out, s_in = g_.shape
        k_in, n_wide = w_.shape
        nc_out = n_wide // t
        flops += 2 * s_in * k_in * n_wide                  # weight stage
        flops += 2 * t * s_out * s_in * nc_out             # gather stage
    bytes_accessed = sum(int(np.prod(a.shape)) * a.dtype.itemsize for a in operands)
    bytes_accessed += out_elems * 4
    return int(flops), int(bytes_accessed)


def n_layer_discriminator(x_nchw, params):
    """Forward pass; input/output in NCHW (PyTorch convention)."""
    n_batch = params["n_batch"]
    ho_f, wo_f = params["out_hw"]
    s_final = ho_f * wo_f
    out_rows = max(8, ((s_final + 7) // 8) * 8)

    x = jnp.transpose(x_nchw, (0, 2, 3, 1)).astype(jnp.float32)       # -> NHWC
    p0 = _im2col_layer0(x, params["stride0"]).astype(jnp.bfloat16)    # (S0, N*16*Cin)

    operands = [p0, params["w0blk"], params["prm"]]
    for g_, w_ in zip(params["g"], params["w"]):
        operands += [g_, w_]

    kernel = functools.partial(
        _fused_disc_kernel,
        n_batch=n_batch,
        c_first=params["c_first"],
        bn_channels=params["bn_channels"],
    )
    flops, bytes_accessed = _estimate_cost(operands, out_rows * OUT_LANES)

    out = pl.pallas_call(
        kernel,
        out_shape=jax.ShapeDtypeStruct((out_rows, OUT_LANES), jnp.float32),
        grid=(1,),
        in_specs=[_full_spec(a) for a in operands],
        out_specs=pl.BlockSpec((out_rows, OUT_LANES), lambda i: (0, 0)),
        compiler_params=pltpu.CompilerParams(dimension_semantics=("arbitrary",)),
        cost_estimate=pl.CostEstimate(
            flops=flops, transcendentals=0, bytes_accessed=bytes_accessed),
    )(*operands)

    # rows are per-sample (ho, wo) positions, lanes are the batch -> back to NCHW
    logits = out[:s_final, :n_batch]
    return jnp.transpose(logits, (1, 0)).reshape(n_batch, 1, ho_f, wo_f)


# ----------------------------------------------------------------------------- main
if __name__ == "__main__":
    key = jax.random.PRNGKey(0)
    k_in, k_param = jax.random.split(key)

    # Small shapes consistent with the module: batch=2, input_nc=4, 32x32 spatial
    # (32 is the smallest power of two for which all 5 convs keep a positive extent),
    # ndf=8, n_layers=3.
    N, input_nc, H, W = 2, 4, 32, 32
    ndf, n_layers = 8, 3

    x = jax.random.normal(k_in, (N, input_nc, H, W), jnp.float32)
    params = init_params(k_param, input_nc, ndf=ndf, n_layers=n_layers,
                         n_batch=N, height=H, width=W)

    fwd = jax.jit(lambda inp: n_layer_discriminator(inp, params))
    out = fwd(x)
    jax.block_until_ready(out)

    # PatchGAN head: 1-channel patch logits; for 32x32 input this is (2, 1, 2, 2).
    assert out.shape == (N, 1, 2, 2), out.shape
    assert bool(jnp.all(jnp.isfinite(out)))
    print("KERNEL_OK")
</pallas_src>

<mosaic_0001>
module attributes {stable_mosaic.version = 11 : i64} {
  func.func @_fused_disc_kernel(%arg0: i32, %arg1: memref<256x128xbf16, #tpu.memory_space<vmem>>, %arg2: memref<128x16xbf16, #tpu.memory_space<vmem>>, %arg3: memref<8x128xf32, #tpu.memory_space<vmem>>, %arg4: memref<16x64x256xi8, #tpu.memory_space<vmem>>, %arg5: memref<16x512xbf16, #tpu.memory_space<vmem>>, %arg6: memref<16x16x64xbf16, #tpu.memory_space<vmem>>, %arg7: memref<32x1024xbf16, #tpu.memory_space<vmem>>, %arg8: memref<16x9x16xbf16, #tpu.memory_space<vmem>>, %arg9: memref<64x2048xbf16, #tpu.memory_space<vmem>>, %arg10: memref<16x4x9xbf16, #tpu.memory_space<vmem>>, %arg11: memref<128x32xbf16, #tpu.memory_space<vmem>>, %arg12: memref<8x128xf32, #tpu.memory_space<vmem>>) attributes {dimension_semantics = [#tpu.dimension_semantics<arbitrary>], iteration_bounds = array<i64: 1>, scalar_prefetch = 0 : i64, scratch_operands = 0 : i64, tpu.core_type = #tpu.core_type<tc>, window_params = [{pipeline_mode = #tpu.pipeline_mode<synchronous>, transform_indices = @transform_0, window_bounds = array<i64: 256, 128>}, {pipeline_mode = #tpu.pipeline_mode<synchronous>, transform_indices = @transform_1, window_bounds = array<i64: 128, 16>}, {pipeline_mode = #tpu.pipeline_mode<synchronous>, transform_indices = @transform_2, window_bounds = array<i64: 8, 128>}, {pipeline_mode = #tpu.pipeline_mode<synchronous>, transform_indices = @transform_3, window_bounds = array<i64: 16, 64, 256>}, {pipeline_mode = #tpu.pipeline_mode<synchronous>, transform_indices = @transform_4, window_bounds = array<i64: 16, 512>}, {pipeline_mode = #tpu.pipeline_mode<synchronous>, transform_indices = @transform_5, window_bounds = array<i64: 16, 16, 64>}, {pipeline_mode = #tpu.pipeline_mode<synchronous>, transform_indices = @transform_6, window_bounds = array<i64: 32, 1024>}, {pipeline_mode = #tpu.pipeline_mode<synchronous>, transform_indices = @transform_7, window_bounds = array<i64: 16, 9, 16>}, {pipeline_mode = #tpu.pipeline_mode<synchronous>, transform_indices = @transform_8, window_bounds = array<i64: 64, 2048>}, {pipeline_mode = #tpu.pipeline_mode<synchronous>, transform_indices = @transform_9, window_bounds = array<i64: 16, 4, 9>}, {pipeline_mode = #tpu.pipeline_mode<synchronous>, transform_indices = @transform_10, window_bounds = array<i64: 128, 32>}, {pipeline_mode = #tpu.pipeline_mode<synchronous>, transform_indices = @transform_11, window_bounds = array<i64: 8, 128>}]} {
    %c0 = arith.constant 0 : index
    %c0_0 = arith.constant 0 : index
    %0 = vector.load %arg3[%c0, %c0_0] : memref<8x128xf32, #tpu.memory_space<vmem>>, vector<8x128xf32>
    %c0_1 = arith.constant 0 : index
    %c0_2 = arith.constant 0 : index
    %1 = vector.load %arg1[%c0_1, %c0_2] : memref<256x128xbf16, #tpu.memory_space<vmem>>, vector<256x128xbf16>
    %c0_3 = arith.constant 0 : index
    %c0_4 = arith.constant 0 : index
    %2 = vector.load %arg2[%c0_3, %c0_4] : memref<128x16xbf16, #tpu.memory_space<vmem>>, vector<128x16xbf16>
    %cst = arith.constant dense<0.000000e+00> : vector<256x16xf32>
    %3 = tpu.matmul %1, %2, %cst {dimension_numbers = #tpu.dot_dimension_numbers<[1], [0], [0], [1], [0, 0, 1, 1], [], []>} : vector<256x128xbf16>, vector<128x16xbf16>, vector<256x16xf32> -> vector<256x16xf32>
    %4 = vector.extract_strided_slice %0 {offsets = [0, 0], sizes = [1, 16], strides = [1, 1]} : vector<8x128xf32> to vector<1x16xf32>
    %5 = vector.broadcast %4 : vector<1x16xf32> to vector<256x16xf32>
    %6 = arith.addf %3, %5 : vector<256x16xf32>
    %cst_5 = arith.constant 0.000000e+00 : f32
    %7 = vector.broadcast %cst_5 : f32 to vector<256x16xf32>
    %8 = arith.cmpf oge, %6, %7 : vector<256x16xf32>
    %cst_6 = arith.constant 2.000000e-01 : f32
    %9 = vector.broadcast %cst_6 : f32 to vector<256x16xf32>
    %10 = arith.mulf %9, %6 : vector<256x16xf32>
    %11 = arith.select %8, %6, %10 : vector<256x16xi1>, vector<256x16xf32>
    %12 = arith.truncf %11 : vector<256x16xf32> to vector<256x16xbf16>
    %c0_7 = arith.constant 0 : index
    %c0_8 = arith.constant 0 : index
    %13 = vector.load %arg5[%c0_7, %c0_8] : memref<16x512xbf16, #tpu.memory_space<vmem>>, vector<16x512xbf16>
    %cst_9 = arith.constant dense<0.000000e+00> : vector<256x512xf32>
    %14 = tpu.matmul %12, %13, %cst_9 {dimension_numbers = #tpu.dot_dimension_numbers<[1], [0], [0], [1], [0, 0, 1, 1], [], []>} : vector<256x16xbf16>, vector<16x512xbf16>, vector<256x512xf32> -> vector<256x512xf32>
    %15 = arith.truncf %14 : vector<256x512xf32> to vector<256x512xbf16>
    %cst_10 = arith.constant 0.000000e+00 : f32
    %16 = vector.broadcast %cst_10 : f32 to vector<64x32xf32>
    %c0_11 = arith.constant 0 : index
    %c0_12 = arith.constant 0 : index
    %c0_13 = arith.constant 0 : index
    %17 = vector.load %arg4[%c0_11, %c0_12, %c0_13] : memref<16x64x256xi8, #tpu.memory_space<vmem>>, vector<1x64x256xi8>
    %18 = vector.shape_cast %17 : vector<1x64x256xi8> to vector<64x256xi8>
    %19 = arith.sitofp %18 : vector<64x256xi8> to vector<64x256xf32>
    %20 = arith.truncf %19 : vector<64x256xf32> to vector<64x256xbf16>
    %21 = vector.extract_strided_slice %15 {offsets = [0, 0], sizes = [256, 32], strides = [1, 1]} : vector<256x512xbf16> to vector<256x32xbf16>
    %cst_14 = arith.constant dense<0.000000e+00> : vector<64x32xf32>
    %22 = tpu.matmul %20, %21, %cst_14 {dimension_numbers = #tpu.dot_dimension_numbers<[1], [0], [0], [1], [0, 0, 1, 1], [], []>} : vector<64x256xbf16>, vector<256x32xbf16>, vector<64x32xf32> -> vector<64x32xf32>
    %23 = arith.addf %16, %22 : vector<64x32xf32>
    %c1 = arith.constant 1 : index
    %c0_15 = arith.constant 0 : index
    %c0_16 = arith.constant 0 : index
    %24 = vector.load %arg4[%c1, %c0_15, %c0_16] : memref<16x64x256xi8, #tpu.memory_space<vmem>>, vector<1x64x256xi8>
    %25 = vector.shape_cast %24 : vector<1x64x256xi8> to vector<64x256xi8>
    %26 = arith.sitofp %25 : vector<64x256xi8> to vector<64x256xf32>
    %27 = arith.truncf %26 : vector<64x256xf32> to vector<64x256xbf16>
    %28 = vector.extract_strided_slice %15 {offsets = [0, 32], sizes = [256, 32], strides = [1, 1]} : vector<256x512xbf16> to vector<256x32xbf16>
    %cst_17 = arith.constant dense<0.000000e+00> : vector<64x32xf32>
    %29 = tpu.matmul %27, %28, %cst_17 {dimension_numbers = #tpu.dot_dimension_numbers<[1], [0], [0], [1], [0, 0, 1, 1], [], []>} : vector<64x256xbf16>, vector<256x32xbf16>, vector<64x32xf32> -> vector<64x32xf32>
    %30 = arith.addf %23, %29 : vector<64x32xf32>
    %c2 = arith.constant 2 : index
    %c0_18 = arith.constant 0 : index
    %c0_19 = arith.constant 0 : index
    %31 = vector.load %arg4[%c2, %c0_18, %c0_19] : memref<16x64x256xi8, #tpu.memory_space<vmem>>, vector<1x64x256xi8>
    %32 = vector.shape_cast %31 : vector<1x64x256xi8> to vector<64x256xi8>
    %33 = arith.sitofp %32 : vector<64x256xi8> to vector<64x256xf32>
    %34 = arith.truncf %33 : vector<64x256xf32> to vector<64x256xbf16>
    %35 = vector.extract_strided_slice %15 {offsets = [0, 64], sizes = [256, 32], strides = [1, 1]} : vector<256x512xbf16> to vector<256x32xbf16>
    %cst_20 = arith.constant dense<0.000000e+00> : vector<64x32xf32>
    %36 = tpu.matmul %34, %35, %cst_20 {dimension_numbers = #tpu.dot_dimension_numbers<[1], [0], [0], [1], [0, 0, 1, 1], [], []>} : vector<64x256xbf16>, vector<256x32xbf16>, vector<64x32xf32> -> vector<64x32xf32>
    %37 = arith.addf %30, %36 : vector<64x32xf32>
    %c3 = arith.constant 3 : index
    %c0_21 = arith.constant 0 : index
    %c0_22 = arith.constant 0 : index
    %38 = vector.load %arg4[%c3, %c0_21, %c0_22] : memref<16x64x256xi8, #tpu.memory_space<vmem>>, vector<1x64x256xi8>
    %39 = vector.shape_cast %38 : vector<1x64x256xi8> to vector<64x256xi8>
    %40 = arith.sitofp %39 : vector<64x256xi8> to vector<64x256xf32>
    %41 = arith.truncf %40 : vector<64x256xf32> to vector<64x256xbf16>
    %42 = vector.extract_strided_slice %15 {offsets = [0, 96], sizes = [256, 32], strides = [1, 1]} : vector<256x512xbf16> to vector<256x32xbf16>
    %cst_23 = arith.constant dense<0.000000e+00> : vector<64x32xf32>
    %43 = tpu.matmul %41, %42, %cst_23 {dimension_numbers = #tpu.dot_dimension_numbers<[1], [0], [0], [1], [0, 0, 1, 1], [], []>} : vector<64x256xbf16>, vector<256x32xbf16>, vector<64x32xf32> -> vector<64x32xf32>
    %44 = arith.addf %37, %43 : vector<64x32xf32>
    %c4 = arith.constant 4 : index
    %c0_24 = arith.constant 0 : index
    %c0_25 = arith.constant 0 : index
    %45 = vector.load %arg4[%c4, %c0_24, %c0_25] : memref<16x64x256xi8, #tpu.memory_space<vmem>>, vector<1x64x256xi8>
    %46 = vector.shape_cast %45 : vector<1x64x256xi8> to vector<64x256xi8>
    %47 = arith.sitofp %46 : vector<64x256xi8> to vector<64x256xf32>
    %48 = arith.truncf %47 : vector<64x256xf32> to vector<64x256xbf16>
    %49 = vector.extract_strided_slice %15 {offsets = [0, 128], sizes = [256, 32], strides = [1, 1]} : vector<256x512xbf16> to vector<256x32xbf16>
    %cst_26 = arith.constant dense<0.000000e+00> : vector<64x32xf32>
    %50 = tpu.matmul %48, %49, %cst_26 {dimension_numbers = #tpu.dot_dimension_numbers<[1], [0], [0], [1], [0, 0, 1, 1], [], []>} : vector<64x256xbf16>, vector<256x32xbf16>, vector<64x32xf32> -> vector<64x32xf32>
    %51 = arith.addf %44, %50 : vector<64x32xf32>
    %c5 = arith.constant 5 : index
    %c0_27 = arith.constant 0 : index
    %c0_28 = arith.constant 0 : index
    %52 = vector.load %arg4[%c5, %c0_27, %c0_28] : memref<16x64x256xi8, #tpu.memory_space<vmem>>, vector<1x64x256xi8>
    %53 = vector.shape_cast %52 : vector<1x64x256xi8> to vector<64x256xi8>
    %54 = arith.sitofp %53 : vector<64x256xi8> to vector<64x256xf32>
    %55 = arith.truncf %54 : vector<64x256xf32> to vector<64x256xbf16>
    %56 = vector.extract_strided_slice %15 {offsets = [0, 160], sizes = [256, 32], strides = [1, 1]} : vector<256x512xbf16> to vector<256x32xbf16>
    %cst_29 = arith.constant dense<0.000000e+00> : vector<64x32xf32>
    %57 = tpu.matmul %55, %56, %cst_29 {dimension_numbers = #tpu.dot_dimension_numbers<[1], [0], [0], [1], [0, 0, 1, 1], [], []>} : vector<64x256xbf16>, vector<256x32xbf16>, vector<64x32xf32> -> vector<64x32xf32>
    %58 = arith.addf %51, %57 : vector<64x32xf32>
    %c6 = arith.constant 6 : index
    %c0_30 = arith.constant 0 : index
    %c0_31 = arith.constant 0 : index
    %59 = vector.load %arg4[%c6, %c0_30, %c0_31] : memref<16x64x256xi8, #tpu.memory_space<vmem>>, vector<1x64x256xi8>
    %60 = vector.shape_cast %59 : vector<1x64x256xi8> to vector<64x256xi8>
    %61 = arith.sitofp %60 : vector<64x256xi8> to vector<64x256xf32>
    %62 = arith.truncf %61 : vector<64x256xf32> to vector<64x256xbf16>
    %63 = vector.extract_strided_slice %15 {offsets = [0, 192], sizes = [256, 32], strides = [1, 1]} : vector<256x512xbf16> to vector<256x32xbf16>
    %cst_32 = arith.constant dense<0.000000e+00> : vector<64x32xf32>
    %64 = tpu.matmul %62, %63, %cst_32 {dimension_numbers = #tpu.dot_dimension_numbers<[1], [0], [0], [1], [0, 0, 1, 1], [], []>} : vector<64x256xbf16>, vector<256x32xbf16>, vector<64x32xf32> -> vector<64x32xf32>
    %65 = arith.addf %58, %64 : vector<64x32xf32>
    %c7 = arith.constant 7 : index
    %c0_33 = arith.constant 0 : index
    %c0_34 = arith.constant 0 : index
    %66 = vector.load %arg4[%c7, %c0_33, %c0_34] : memref<16x64x256xi8, #tpu.memory_space<vmem>>, vector<1x64x256xi8>
    %67 = vector.shape_cast %66 : vector<1x64x256xi8> to vector<64x256xi8>
    %68 = arith.sitofp %67 : vector<64x256xi8> to vector<64x256xf32>
    %69 = arith.truncf %68 : vector<64x256xf32> to vector<64x256xbf16>
    %70 = vector.extract_strided_slice %15 {offsets = [0, 224], sizes = [256, 32], strides = [1, 1]} : vector<256x512xbf16> to vector<256x32xbf16>
    %cst_35 = arith.constant dense<0.000000e+00> : vector<64x32xf32>
    %71 = tpu.matmul %69, %70, %cst_35 {dimension_numbers = #tpu.dot_dimension_numbers<[1], [0], [0], [1], [0, 0, 1, 1], [], []>} : vector<64x256xbf16>, vector<256x32xbf16>, vector<64x32xf32> -> vector<64x32xf32>
    %72 = arith.addf %65, %71 : vector<64x32xf32>
    %c8 = arith.constant 8 : index
    %c0_36 = arith.constant 0 : index
    %c0_37 = arith.constant 0 : index
    %73 = vector.load %arg4[%c8, %c0_36, %c0_37] : memref<16x64x256xi8, #tpu.memory_space<vmem>>, vector<1x64x256xi8>
    %74 = vector.shape_cast %73 : vector<1x64x256xi8> to vector<64x256xi8>
    %75 = arith.sitofp %74 : vector<64x256xi8> to vector<64x256xf32>
    %76 = arith.truncf %75 : vector<64x256xf32> to vector<64x256xbf16>
    %77 = vector.extract_strided_slice %15 {offsets = [0, 256], sizes = [256, 32], strides = [1, 1]} : vector<256x512xbf16> to vector<256x32xbf16>
    %cst_38 = arith.constant dense<0.000000e+00> : vector<64x32xf32>
    %78 = tpu.matmul %76, %77, %cst_38 {dimension_numbers = #tpu.dot_dimension_numbers<[1], [0], [0], [1], [0, 0, 1, 1], [], []>} : vector<64x256xbf16>, vector<256x32xbf16>, vector<64x32xf32> -> vector<64x32xf32>
    %79 = arith.addf %72, %78 : vector<64x32xf32>
    %c9 = arith.constant 9 : index
    %c0_39 = arith.constant 0 : index
    %c0_40 = arith.constant 0 : index
    %80 = vector.load %arg4[%c9, %c0_39, %c0_40] : memref<16x64x256xi8, #tpu.memory_space<vmem>>, vector<1x64x256xi8>
    %81 = vector.shape_cast %80 : vector<1x64x256xi8> to vector<64x256xi8>
    %82 = arith.sitofp %81 : vector<64x256xi8> to vector<64x256xf32>
    %83 = arith.truncf %82 : vector<64x256xf32> to vector<64x256xbf16>
    %84 = vector.extract_strided_slice %15 {offsets = [0, 288], sizes = [256, 32], strides = [1, 1]} : vector<256x512xbf16> to vector<256x32xbf16>
    %cst_41 = arith.constant dense<0.000000e+00> : vector<64x32xf32>
    %85 = tpu.matmul %83, %84, %cst_41 {dimension_numbers = #tpu.dot_dimension_numbers<[1], [0], [0], [1], [0, 0, 1, 1], [], []>} : vector<64x256xbf16>, vector<256x32xbf16>, vector<64x32xf32> -> vector<64x32xf32>
    %86 = arith.addf %79, %85 : vector<64x32xf32>
    %c10 = arith.constant 10 : index
    %c0_42 = arith.constant 0 : index
    %c0_43 = arith.constant 0 : index
    %87 = vector.load %arg4[%c10, %c0_42, %c0_43] : memref<16x64x256xi8, #tpu.memory_space<vmem>>, vector<1x64x256xi8>
    %88 = vector.shape_cast %87 : vector<1x64x256xi8> to vector<64x256xi8>
    %89 = arith.sitofp %88 : vector<64x256xi8> to vector<64x256xf32>
    %90 = arith.truncf %89 : vector<64x256xf32> to vector<64x256xbf16>
    %91 = vector.extract_strided_slice %15 {offsets = [0, 320], sizes = [256, 32], strides = [1, 1]} : vector<256x512xbf16> to vector<256x32xbf16>
    %cst_44 = arith.constant dense<0.000000e+00> : vector<64x32xf32>
    %92 = tpu.matmul %90, %91, %cst_44 {dimension_numbers = #tpu.dot_dimension_numbers<[1], [0], [0], [1], [0, 0, 1, 1], [], []>} : vector<64x256xbf16>, vector<256x32xbf16>, vector<64x32xf32> -> vector<64x32xf32>
    %93 = arith.addf %86, %92 : vector<64x32xf32>
    %c11 = arith.constant 11 : index
    %c0_45 = arith.constant 0 : index
    %c0_46 = arith.constant 0 : index
    %94 = vector.load %arg4[%c11, %c0_45, %c0_46] : memref<16x64x256xi8, #tpu.memory_space<vmem>>, vector<1x64x256xi8>
    %95 = vector.shape_cast %94 : vector<1x64x256xi8> to vector<64x256xi8>
    %96 = arith.sitofp %95 : vector<64x256xi8> to vector<64x256xf32>
    %97 = arith.truncf %96 : vector<64x256xf32> to vector<64x256xbf16>
    %98 = vector.extract_strided_slice %15 {offsets = [0, 352], sizes = [256, 32], strides = [1, 1]} : vector<256x512xbf16> to vector<256x32xbf16>
    %cst_47 = arith.constant dense<0.000000e+00> : vector<64x32xf32>
    %99 = tpu.matmul %97, %98, %cst_47 {dimension_numbers = #tpu.dot_dimension_numbers<[1], [0], [0], [1], [0, 0, 1, 1], [], []>} : vector<64x256xbf16>, vector<256x32xbf16>, vector<64x32xf32> -> vector<64x32xf32>
    %100 = arith.addf %93, %99 : vector<64x32xf32>
    %c12 = arith.constant 12 : index
    %c0_48 = arith.constant 0 : index
    %c0_49 = arith.constant 0 : index
    %101 = vector.load %arg4[%c12, %c0_48, %c0_49] : memref<16x64x256xi8, #tpu.memory_space<vmem>>, vector<1x64x256xi8>
    %102 = vector.shape_cast %101 : vector<1x64x256xi8> to vector<64x256xi8>
    %103 = arith.sitofp %102 : vector<64x256xi8> to vector<64x256xf32>
    %104 = arith.truncf %103 : vector<64x256xf32> to vector<64x256xbf16>
    %105 = vector.extract_strided_slice %15 {offsets = [0, 384], sizes = [256, 32], strides = [1, 1]} : vector<256x512xbf16> to vector<256x32xbf16>
    %cst_50 = arith.constant dense<0.000000e+00> : vector<64x32xf32>
    %106 = tpu.matmul %104, %105, %cst_50 {dimension_numbers = #tpu.dot_dimension_numbers<[1], [0], [0], [1], [0, 0, 1, 1], [], []>} : vector<64x256xbf16>, vector<256x32xbf16>, vector<64x32xf32> -> vector<64x32xf32>
    %107 = arith.addf %100, %106 : vector<64x32xf32>
    %c13 = arith.constant 13 : index
    %c0_51 = arith.constant 0 : index
    %c0_52 = arith.constant 0 : index
    %108 = vector.load %arg4[%c13, %c0_51, %c0_52] : memref<16x64x256xi8, #tpu.memory_space<vmem>>, vector<1x64x256xi8>
    %109 = vector.shape_cast %108 : vector<1x64x256xi8> to vector<64x256xi8>
    %110 = arith.sitofp %109 : vector<64x256xi8> to vector<64x256xf32>
    %111 = arith.truncf %110 : vector<64x256xf32> to vector<64x256xbf16>
    %112 = vector.extract_strided_slice %15 {offsets = [0, 416], sizes = [256, 32], strides = [1, 1]} : vector<256x512xbf16> to vector<256x32xbf16>
    %cst_53 = arith.constant dense<0.000000e+00> : vector<64x32xf32>
    %113 = tpu.matmul %111, %112, %cst_53 {dimension_numbers = #tpu.dot_dimension_numbers<[1], [0], [0], [1], [0, 0, 1, 1], [], []>} : vector<64x256xbf16>, vector<256x32xbf16>, vector<64x32xf32> -> vector<64x32xf32>
    %114 = arith.addf %107, %113 : vector<64x32xf32>
    %c14 = arith.constant 14 : index
    %c0_54 = arith.constant 0 : index
    %c0_55 = arith.constant 0 : index
    %115 = vector.load %arg4[%c14, %c0_54, %c0_55] : memref<16x64x256xi8, #tpu.memory_space<vmem>>, vector<1x64x256xi8>
    %116 = vector.shape_cast %115 : vector<1x64x256xi8> to vector<64x256xi8>
    %117 = arith.sitofp %116 : vector<64x256xi8> to vector<64x256xf32>
    %118 = arith.truncf %117 : vector<64x256xf32> to vector<64x256xbf16>
    %119 = vector.extract_strided_slice %15 {offsets = [0, 448], sizes = [256, 32], strides = [1, 1]} : vector<256x512xbf16> to vector<256x32xbf16>
    %cst_56 = arith.constant dense<0.000000e+00> : vector<64x32xf32>
    %120 = tpu.matmul %118, %119, %cst_56 {dimension_numbers = #tpu.dot_dimension_numbers<[1], [0], [0], [1], [0, 0, 1, 1], [], []>} : vector<64x256xbf16>, vector<256x32xbf16>, vector<64x32xf32> -> vector<64x32xf32>
    %121 = arith.addf %114, %120 : vector<64x32xf32>
    %c15 = arith.constant 15 : index
    %c0_57 = arith.constant 0 : index
    %c0_58 = arith.constant 0 : index
    %122 = vector.load %arg4[%c15, %c0_57, %c0_58] : memref<16x64x256xi8, #tpu.memory_space<vmem>>, vector<1x64x256xi8>
    %123 = vector.shape_cast %122 : vector<1x64x256xi8> to vector<64x256xi8>
    %124 = arith.sitofp %123 : vector<64x256xi8> to vector<64x256xf32>
    %125 = arith.truncf %124 : vector<64x256xf32> to vector<64x256xbf16>
    %126 = vector.extract_strided_slice %15 {offsets = [0, 480], sizes = [256, 32], strides = [1, 1]} : vector<256x512xbf16> to vector<256x32xbf16>
    %cst_59 = arith.constant dense<0.000000e+00> : vector<64x32xf32>
    %127 = tpu.matmul %125, %126, %cst_59 {dimension_numbers = #tpu.dot_dimension_numbers<[1], [0], [0], [1], [0, 0, 1, 1], [], []>} : vector<64x256xbf16>, vector<256x32xbf16>, vector<64x32xf32> -> vector<64x32xf32>
    %128 = arith.addf %121, %127 : vector<64x32xf32>
    %129 = vector.extract_strided_slice %0 {offsets = [1, 0], sizes = [1, 16], strides = [1, 1]} : vector<8x128xf32> to vector<1x16xf32>
    %130 = vector.extract_strided_slice %0 {offsets = [2, 0], sizes = [1, 16], strides = [1, 1]} : vector<8x128xf32> to vector<1x16xf32>
    %cst_60 = arith.constant dense<0.000000e+00> : vector<32xf32>
    %131 = vector.multi_reduction <add>, %128, %cst_60 [0] : vector<64x32xf32> to vector<32xf32>
    %132 = vector.shape_cast %131 : vector<32xf32> to vector<1x32xf32>
    %133 = vector.extract_strided_slice %132 {offsets = [0, 0], sizes = [1, 16], strides = [1, 1]} : vector<1x32xf32> to vector<1x16xf32>
    %134 = vector.extract_strided_slice %132 {offsets = [0, 16], sizes = [1, 16], strides = [1, 1]} : vector<1x32xf32> to vector<1x16xf32>
    %135 = arith.addf %133, %134 : vector<1x16xf32>
    %cst_61 = arith.constant 1.280000e+02 : f32
    %136 = vector.broadcast %cst_61 : f32 to vector<1x16xf32>
    %137 = arith.divf %135, %136 : vector<1x16xf32>
    %138 = tpu.concatenate %137, %137 in 1 : vector<1x16xf32>, vector<1x16xf32> -> vector<1x32xf32>
    %139 = vector.broadcast %138 : vector<1x32xf32> to vector<64x32xf32>
    %140 = arith.subf %128, %139 : vector<64x32xf32>
    %141 = arith.mulf %140, %140 : vector<64x32xf32>
    %cst_62 = arith.constant dense<0.000000e+00> : vector<32xf32>
    %142 = vector.multi_reduction <add>, %141, %cst_62 [0] : vector<64x32xf32> to vector<32xf32>
    %143 = vector.shape_cast %142 : vector<32xf32> to vector<1x32xf32>
    %144 = vector.extract_strided_slice %143 {offsets = [0, 0], sizes = [1, 16], strides = [1, 1]} : vector<1x32xf32> to vector<1x16xf32>
    %145 = vector.extract_strided_slice %143 {offsets = [0, 16], sizes = [1, 16], strides = [1, 1]} : vector<1x32xf32> to vector<1x16xf32>
    %146 = arith.addf %144, %145 : vector<1x16xf32>
    %cst_63 = arith.constant 1.280000e+02 : f32
    %147 = vector.broadcast %cst_63 : f32 to vector<1x16xf32>
    %148 = arith.divf %146, %147 : vector<1x16xf32>
    %cst_64 = arith.constant 9.99999974E-6 : f32
    %149 = vector.broadcast %cst_64 : f32 to vector<1x16xf32>
    %150 = arith.addf %148, %149 : vector<1x16xf32>
    %151 = math.rsqrt %150 : vector<1x16xf32>
    %152 = arith.mulf %129, %151 : vector<1x16xf32>
    %153 = arith.mulf %137, %152 : vector<1x16xf32>
    %154 = arith.subf %130, %153 : vector<1x16xf32>
    %155 = tpu.concatenate %152, %152 in 1 : vector<1x16xf32>, vector<1x16xf32> -> vector<1x32xf32>
    %156 = tpu.concatenate %154, %154 in 1 : vector<1x16xf32>, vector<1x16xf32> -> vector<1x32xf32>
    %157 = vector.broadcast %155 : vector<1x32xf32> to vector<64x32xf32>
    %158 = arith.mulf %128, %157 : vector<64x32xf32>
    %159 = vector.broadcast %156 : vector<1x32xf32> to vector<64x32xf32>
    %160 = arith.addf %158, %159 : vector<64x32xf32>
    %cst_65 = arith.constant 0.000000e+00 : f32
    %161 = vector.broadcast %cst_65 : f32 to vector<64x32xf32>
    %162 = arith.cmpf oge, %160, %161 : vector<64x32xf32>
    %cst_66 = arith.constant 2.000000e-01 : f32
    %163 = vector.broadcast %cst_66 : f32 to vector<64x32xf32>
    %164 = arith.mulf %163, %160 : vector<64x32xf32>
    %165 = arith.select %162, %160, %164 : vector<64x32xi1>, vector<64x32xf32>
    %166 = arith.truncf %165 : vector<64x32xf32> to vector<64x32xbf16>
    %c0_67 = arith.constant 0 : index
    %c0_68 = arith.constant 0 : index
    %167 = vector.load %arg7[%c0_67, %c0_68] : memref<32x1024xbf16, #tpu.memory_space<vmem>>, vector<32x1024xbf16>
    %cst_69 = arith.constant dense<0.000000e+00> : vector<64x1024xf32>
    %168 = tpu.matmul %166, %167, %cst_69 {dimension_numbers = #tpu.dot_dimension_numbers<[1], [0], [0], [1], [0, 0, 1, 1], [], []>} : vector<64x32xbf16>, vector<32x1024xbf16>, vector<64x1024xf32> -> vector<64x1024xf32>
    %169 = arith.truncf %168 : vector<64x1024xf32> to vector<64x1024xbf16>
    %cst_70 = arith.constant 0.000000e+00 : f32
    %170 = vector.broadcast %cst_70 : f32 to vector<16x64xf32>
    %c0_71 = arith.constant 0 : index
    %c0_72 = arith.constant 0 : index
    %c0_73 = arith.constant 0 : index
    %171 = vector.load %arg6[%c0_71, %c0_72, %c0_73] : memref<16x16x64xbf16, #tpu.memory_space<vmem>>, vector<1x16x64xbf16>
    %172 = vector.shape_cast %171 : vector<1x16x64xbf16> to vector<16x64xbf16>
    %173 = vector.extract_strided_slice %169 {offsets = [0, 0], sizes = [64, 64], strides = [1, 1]} : vector<64x1024xbf16> to vector<64x64xbf16>
    %cst_74 = arith.constant dense<0.000000e+00> : vector<16x64xf32>
    %174 = tpu.matmul %172, %173, %cst_74 {dimension_numbers = #tpu.dot_dimension_numbers<[1], [0], [0], [1], [0, 0, 1, 1], [], []>} : vector<16x64xbf16>, vector<64x64xbf16>, vector<16x64xf32> -> vector<16x64xf32>
    %175 = arith.addf %170, %174 : vector<16x64xf32>
    %c1_75 = arith.constant 1 : index
    %c0_76 = arith.constant 0 : index
    %c0_77 = arith.constant 0 : index
    %176 = vector.load %arg6[%c1_75, %c0_76, %c0_77] : memref<16x16x64xbf16, #tpu.memory_space<vmem>>, vector<1x16x64xbf16>
    %177 = vector.shape_cast %176 : vector<1x16x64xbf16> to vector<16x64xbf16>
    %178 = vector.extract_strided_slice %169 {offsets = [0, 64], sizes = [64, 64], strides = [1, 1]} : vector<64x1024xbf16> to vector<64x64xbf16>
    %cst_78 = arith.constant dense<0.000000e+00> : vector<16x64xf32>
    %179 = tpu.matmul %177, %178, %cst_78 {dimension_numbers = #tpu.dot_dimension_numbers<[1], [0], [0], [1], [0, 0, 1, 1], [], []>} : vector<16x64xbf16>, vector<64x64xbf16>, vector<16x64xf32> -> vector<16x64xf32>
    %180 = arith.addf %175, %179 : vector<16x64xf32>
    %c2_79 = arith.constant 2 : index
    %c0_80 = arith.constant 0 : index
    %c0_81 = arith.constant 0 : index
    %181 = vector.load %arg6[%c2_79, %c0_80, %c0_81] : memref<16x16x64xbf16, #tpu.memory_space<vmem>>, vector<1x16x64xbf16>
    %182 = vector.shape_cast %181 : vector<1x16x64xbf16> to vector<16x64xbf16>
    %183 = vector.extract_strided_slice %169 {offsets = [0, 128], sizes = [64, 64], strides = [1, 1]} : vector<64x1024xbf16> to vector<64x64xbf16>
    %cst_82 = arith.constant dense<0.000000e+00> : vector<16x64xf32>
    %184 = tpu.matmul %182, %183, %cst_82 {dimension_numbers = #tpu.dot_dimension_numbers<[1], [0], [0], [1], [0, 0, 1, 1], [], []>} : vector<16x64xbf16>, vector<64x64xbf16>, vector<16x64xf32> -> vector<16x64xf32>
    %185 = arith.addf %180, %184 : vector<16x64xf32>
    %c3_83 = arith.constant 3 : index
    %c0_84 = arith.constant 0 : index
    %c0_85 = arith.constant 0 : index
    %186 = vector.load %arg6[%c3_83, %c0_84, %c0_85] : memref<16x16x64xbf16, #tpu.memory_space<vmem>>, vector<1x16x64xbf16>
    %187 = vector.shape_cast %186 : vector<1x16x64xbf16> to vector<16x64xbf16>
    %188 = vector.extract_strided_slice %169 {offsets = [0, 192], sizes = [64, 64], strides = [1, 1]} : vector<64x1024xbf16> to vector<64x64xbf16>
    %cst_86 = arith.constant dense<0.000000e+00> : vector<16x64xf32>
    %189 = tpu.matmul %187, %188, %cst_86 {dimension_numbers = #tpu.dot_dimension_numbers<[1], [0], [0], [1], [0, 0, 1, 1], [], []>} : vector<16x64xbf16>, vector<64x64xbf16>, vector<16x64xf32> -> vector<16x64xf32>
    %190 = arith.addf %185, %189 : vector<16x64xf32>
    %c4_87 = arith.constant 4 : index
    %c0_88 = arith.constant 0 : index
    %c0_89 = arith.constant 0 : index
    %191 = vector.load %arg6[%c4_87, %c0_88, %c0_89] : memref<16x16x64xbf16, #tpu.memory_space<vmem>>, vector<1x16x64xbf16>
    %192 = vector.shape_cast %191 : vector<1x16x64xbf16> to vector<16x64xbf16>
    %193 = vector.extract_strided_slice %169 {offsets = [0, 256], sizes = [64, 64], strides = [1, 1]} : vector<64x1024xbf16> to vector<64x64xbf16>
    %cst_90 = arith.constant dense<0.000000e+00> : vector<16x64xf32>
    %194 = tpu.matmul %192, %193, %cst_90 {dimension_numbers = #tpu.dot_dimension_numbers<[1], [0], [0], [1], [0, 0, 1, 1], [], []>} : vector<16x64xbf16>, vector<64x64xbf16>, vector<16x64xf32> -> vector<16x64xf32>
    %195 = arith.addf %190, %194 : vector<16x64xf32>
    %c5_91 = arith.constant 5 : index
    %c0_92 = arith.constant 0 : index
    %c0_93 = arith.constant 0 : index
    %196 = vector.load %arg6[%c5_91, %c0_92, %c0_93] : memref<16x16x64xbf16, #tpu.memory_space<vmem>>, vector<1x16x64xbf16>
    %197 = vector.shape_cast %196 : vector<1x16x64xbf16> to vector<16x64xbf16>
    %198 = vector.extract_strided_slice %169 {offsets = [0, 320], sizes = [64, 64], strides = [1, 1]} : vector<64x1024xbf16> to vector<64x64xbf16>
    %cst_94 = arith.constant dense<0.000000e+00> : vector<16x64xf32>
    %199 = tpu.matmul %197, %198, %cst_94 {dimension_numbers = #tpu.dot_dimension_numbers<[1], [0], [0], [1], [0, 0, 1, 1], [], []>} : vector<16x64xbf16>, vector<64x64xbf16>, vector<16x64xf32> -> vector<16x64xf32>
    %200 = arith.addf %195, %199 : vector<16x64xf32>
    %c6_95 = arith.constant 6 : index
    %c0_96 = arith.constant 0 : index
    %c0_97 = arith.constant 0 : index
    %201 = vector.load %arg6[%c6_95, %c0_96, %c0_97] : memref<16x16x64xbf16, #tpu.memory_space<vmem>>, vector<1x16x64xbf16>
    %202 = vector.shape_cast %201 : vector<1x16x64xbf16> to vector<16x64xbf16>
    %203 = vector.extract_strided_slice %169 {offsets = [0, 384], sizes = [64, 64], strides = [1, 1]} : vector<64x1024xbf16> to vector<64x64xbf16>
    %cst_98 = arith.constant dense<0.000000e+00> : vector<16x64xf32>
    %204 = tpu.matmul %202, %203, %cst_98 {dimension_numbers = #tpu.dot_dimension_numbers<[1], [0], [0], [1], [0, 0, 1, 1], [], []>} : vector<16x64xbf16>, vector<64x64xbf16>, vector<16x64xf32> -> vector<16x64xf32>
    %205 = arith.addf %200, %204 : vector<16x64xf32>
    %c7_99 = arith.constant 7 : index
    %c0_100 = arith.constant 0 : index
    %c0_101 = arith.constant 0 : index
    %206 = vector.load %arg6[%c7_99, %c0_100, %c0_101] : memref<16x16x64xbf16, #tpu.memory_space<vmem>>, vector<1x16x64xbf16>
    %207 = vector.shape_cast %206 : vector<1x16x64xbf16> to vector<16x64xbf16>
    %208 = vector.extract_strided_slice %169 {offsets = [0, 448], sizes = [64, 64], strides = [1, 1]} : vector<64x1024xbf16> to vector<64x64xbf16>
    %cst_102 = arith.constant dense<0.000000e+00> : vector<16x64xf32>
    %209 = tpu.matmul %207, %208, %cst_102 {dimension_numbers = #tpu.dot_dimension_numbers<[1], [0], [0], [1], [0, 0, 1, 1], [], []>} : vector<16x64xbf16>, vector<64x64xbf16>, vector<16x64xf32> -> vector<16x64xf32>
    %210 = arith.addf %205, %209 : vector<16x64xf32>
    %c8_103 = arith.constant 8 : index
    %c0_104 = arith.constant 0 : index
    %c0_105 = arith.constant 0 : index
    %211 = vector.load %arg6[%c8_103, %c0_104, %c0_105] : memref<16x16x64xbf16, #tpu.memory_space<vmem>>, vector<1x16x64xbf16>
    %212 = vector.shape_cast %211 : vector<1x16x64xbf16> to vector<16x64xbf16>
    %213 = vector.extract_strided_slice %169 {offsets = [0, 512], sizes = [64, 64], strides = [1, 1]} : vector<64x1024xbf16> to vector<64x64xbf16>
    %cst_106 = arith.constant dense<0.000000e+00> : vector<16x64xf32>
    %214 = tpu.matmul %212, %213, %cst_106 {dimension_numbers = #tpu.dot_dimension_numbers<[1], [0], [0], [1], [0, 0, 1, 1], [], []>} : vector<16x64xbf16>, vector<64x64xbf16>, vector<16x64xf32> -> vector<16x64xf32>
    %215 = arith.addf %210, %214 : vector<16x64xf32>
    %c9_107 = arith.constant 9 : index
    %c0_108 = arith.constant 0 : index
    %c0_109 = arith.constant 0 : index
    %216 = vector.load %arg6[%c9_107, %c0_108, %c0_109] : memref<16x16x64xbf16, #tpu.memory_space<vmem>>, vector<1x16x64xbf16>
    %217 = vector.shape_cast %216 : vector<1x16x64xbf16> to vector<16x64xbf16>
    %218 = vector.extract_strided_slice %169 {offsets = [0, 576], sizes = [64, 64], strides = [1, 1]} : vector<64x1024xbf16> to vector<64x64xbf16>
    %cst_110 = arith.constant dense<0.000000e+00> : vector<16x64xf32>
    %219 = tpu.matmul %217, %218, %cst_110 {dimension_numbers = #tpu.dot_dimension_numbers<[1], [0], [0], [1], [0, 0, 1, 1], [], []>} : vector<16x64xbf16>, vector<64x64xbf16>, vector<16x64xf32> -> vector<16x64xf32>
    %220 = arith.addf %215, %219 : vector<16x64xf32>
    %c10_111 = arith.constant 10 : index
    %c0_112 = arith.constant 0 : index
    %c0_113 = arith.constant 0 : index
    %221 = vector.load %arg6[%c10_111, %c0_112, %c0_113] : memref<16x16x64xbf16, #tpu.memory_space<vmem>>, vector<1x16x64xbf16>
    %222 = vector.shape_cast %221 : vector<1x16x64xbf16> to vector<16x64xbf16>
    %223 = vector.extract_strided_slice %169 {offsets = [0, 640], sizes = [64, 64], strides = [1, 1]} : vector<64x1024xbf16> to vector<64x64xbf16>
    %cst_114 = arith.constant dense<0.000000e+00> : vector<16x64xf32>
    %224 = tpu.matmul %222, %223, %cst_114 {dimension_numbers = #tpu.dot_dimension_numbers<[1], [0], [0], [1], [0, 0, 1, 1], [], []>} : vector<16x64xbf16>, vector<64x64xbf16>, vector<16x64xf32> -> vector<16x64xf32>
    %225 = arith.addf %220, %224 : vector<16x64xf32>
    %c11_115 = arith.constant 11 : index
    %c0_116 = arith.constant 0 : index
    %c0_117 = arith.constant 0 : index
    %226 = vector.load %arg6[%c11_115, %c0_116, %c0_117] : memref<16x16x64xbf16, #tpu.memory_space<vmem>>, vector<1x16x64xbf16>
    %227 = vector.shape_cast %226 : vector<1x16x64xbf16> to vector<16x64xbf16>
    %228 = vector.extract_strided_slice %169 {offsets = [0, 704], sizes = [64, 64], strides = [1, 1]} : vector<64x1024xbf16> to vector<64x64xbf16>
    %cst_118 = arith.constant dense<0.000000e+00> : vector<16x64xf32>
    %229 = tpu.matmul %227, %228, %cst_118 {dimension_numbers = #tpu.dot_dimension_numbers<[1], [0], [0], [1], [0, 0, 1, 1], [], []>} : vector<16x64xbf16>, vector<64x64xbf16>, vector<16x64xf32> -> vector<16x64xf32>
    %230 = arith.addf %225, %229 : vector<16x64xf32>
    %c12_119 = arith.constant 12 : index
    %c0_120 = arith.constant 0 : index
    %c0_121 = arith.constant 0 : index
    %231 = vector.load %arg6[%c12_119, %c0_120, %c0_121] : memref<16x16x64xbf16, #tpu.memory_space<vmem>>, vector<1x16x64xbf16>
    %232 = vector.shape_cast %231 : vector<1x16x64xbf16> to vector<16x64xbf16>
    %233 = vector.extract_strided_slice %169 {offsets = [0, 768], sizes = [64, 64], strides = [1, 1]} : vector<64x1024xbf16> to vector<64x64xbf16>
    %cst_122 = arith.constant dense<0.000000e+00> : vector<16x64xf32>
    %234 = tpu.matmul %232, %233, %cst_122 {dimension_numbers = #tpu.dot_dimension_numbers<[1], [0], [0], [1], [0, 0, 1, 1], [], []>} : vector<16x64xbf16>, vector<64x64xbf16>, vector<16x64xf32> -> vector<16x64xf32>
    %235 = arith.addf %230, %234 : vector<16x64xf32>
    %c13_123 = arith.constant 13 : index
    %c0_124 = arith.constant 0 : index
    %c0_125 = arith.constant 0 : index
    %236 = vector.load %arg6[%c13_123, %c0_124, %c0_125] : memref<16x16x64xbf16, #tpu.memory_space<vmem>>, vector<1x16x64xbf16>
    %237 = vector.shape_cast %236 : vector<1x16x64xbf16> to vector<16x64xbf16>
    %238 = vector.extract_strided_slice %169 {offsets = [0, 832], sizes = [64, 64], strides = [1, 1]} : vector<64x1024xbf16> to vector<64x64xbf16>
    %cst_126 = arith.constant dense<0.000000e+00> : vector<16x64xf32>
    %239 = tpu.matmul %237, %238, %cst_126 {dimension_numbers = #tpu.dot_dimension_numbers<[1], [0], [0], [1], [0, 0, 1, 1], [], []>} : vector<16x64xbf16>, vector<64x64xbf16>, vector<16x64xf32> -> vector<16x64xf32>
    %240 = arith.addf %235, %239 : vector<16x64xf32>
    %c14_127 = arith.constant 14 : index
    %c0_128 = arith.constant 0 : index
    %c0_129 = arith.constant 0 : index
    %241 = vector.load %arg6[%c14_127, %c0_128, %c0_129] : memref<16x16x64xbf16, #tpu.memory_space<vmem>>, vector<1x16x64xbf16>
    %242 = vector.shape_cast %241 : vector<1x16x64xbf16> to vector<16x64xbf16>
    %243 = vector.extract_strided_slice %169 {offsets = [0, 896], sizes = [64, 64], strides = [1, 1]} : vector<64x1024xbf16> to vector<64x64xbf16>
    %cst_130 = arith.constant dense<0.000000e+00> : vector<16x64xf32>
    %244 = tpu.matmul %242, %243, %cst_130 {dimension_numbers = #tpu.dot_dimension_numbers<[1], [0], [0], [1], [0, 0, 1, 1], [], []>} : vector<16x64xbf16>, vector<64x64xbf16>, vector<16x64xf32> -> vector<16x64xf32>
    %245 = arith.addf %240, %244 : vector<16x64xf32>
    %c15_131 = arith.constant 15 : index
    %c0_132 = arith.constant 0 : index
    %c0_133 = arith.constant 0 : index
    %246 = vector.load %arg6[%c15_131, %c0_132, %c0_133] : memref<16x16x64xbf16, #tpu.memory_space<vmem>>, vector<1x16x64xbf16>
    %247 = vector.shape_cast %246 : vector<1x16x64xbf16> to vector<16x64xbf16>
    %248 = vector.extract_strided_slice %169 {offsets = [0, 960], sizes = [64, 64], strides = [1, 1]} : vector<64x1024xbf16> to vector<64x64xbf16>
    %cst_134 = arith.constant dense<0.000000e+00> : vector<16x64xf32>
    %249 = tpu.matmul %247, %248, %cst_134 {dimension_numbers = #tpu.dot_dimension_numbers<[1], [0], [0], [1], [0, 0, 1, 1], [], []>} : vector<16x64xbf16>, vector<64x64xbf16>, vector<16x64xf32> -> vector<16x64xf32>
    %250 = arith.addf %245, %249 : vector<16x64xf32>
    %251 = vector.extract_strided_slice %0 {offsets = [3, 0], sizes = [1, 32], strides = [1, 1]} : vector<8x128xf32> to vector<1x32xf32>
    %252 = vector.extract_strided_slice %0 {offsets = [4, 0], sizes = [1, 32], strides = [1, 1]} : vector<8x128xf32> to vector<1x32xf32>
    %cst_135 = arith.constant dense<0.000000e+00> : vector<64xf32>
    %253 = vector.multi_reduction <add>, %250, %cst_135 [0] : vector<16x64xf32> to vector<64xf32>
    %254 = vector.shape_cast %253 : vector<64xf32> to vector<1x64xf32>
    %255 = vector.extract_strided_slice %254 {offsets = [0, 0], sizes = [1, 32], strides = [1, 1]} : vector<1x64xf32> to vector<1x32xf32>
    %256 = vector.extract_strided_slice %254 {offsets = [0, 32], sizes = [1, 32], strides = [1, 1]} : vector<1x64xf32> to vector<1x32xf32>
    %257 = arith.addf %255, %256 : vector<1x32xf32>
    %cst_136 = arith.constant 3.200000e+01 : f32
    %258 = vector.broadcast %cst_136 : f32 to vector<1x32xf32>
    %259 = arith.divf %257, %258 : vector<1x32xf32>
    %260 = tpu.concatenate %259, %259 in 1 : vector<1x32xf32>, vector<1x32xf32> -> vector<1x64xf32>
    %261 = vector.broadcast %260 : vector<1x64xf32> to vector<16x64xf32>
    %262 = arith.subf %250, %261 : vector<16x64xf32>
    %263 = arith.mulf %262, %262 : vector<16x64xf32>
    %cst_137 = arith.constant dense<0.000000e+00> : vector<64xf32>
    %264 = vector.multi_reduction <add>, %263, %cst_137 [0] : vector<16x64xf32> to vector<64xf32>
    %265 = vector.shape_cast %264 : vector<64xf32> to vector<1x64xf32>
    %266 = vector.extract_strided_slice %265 {offsets = [0, 0], sizes = [1, 32], strides = [1, 1]} : vector<1x64xf32> to vector<1x32xf32>
    %267 = vector.extract_strided_slice %265 {offsets = [0, 32], sizes = [1, 32], strides = [1, 1]} : vector<1x64xf32> to vector<1x32xf32>
    %268 = arith.addf %266, %267 : vector<1x32xf32>
    %cst_138 = arith.constant 3.200000e+01 : f32
    %269 = vector.broadcast %cst_138 : f32 to vector<1x32xf32>
    %270 = arith.divf %268, %269 : vector<1x32xf32>
    %cst_139 = arith.constant 9.99999974E-6 : f32
    %271 = vector.broadcast %cst_139 : f32 to vector<1x32xf32>
    %272 = arith.addf %270, %271 : vector<1x32xf32>
    %273 = math.rsqrt %272 : vector<1x32xf32>
    %274 = arith.mulf %251, %273 : vector<1x32xf32>
    %275 = arith.mulf %259, %274 : vector<1x32xf32>
    %276 = arith.subf %252, %275 : vector<1x32xf32>
    %277 = tpu.concatenate %274, %274 in 1 : vector<1x32xf32>, vector<1x32xf32> -> vector<1x64xf32>
    %278 = tpu.concatenate %276, %276 in 1 : vector<1x32xf32>, vector<1x32xf32> -> vector<1x64xf32>
    %279 = vector.broadcast %277 : vector<1x64xf32> to vector<16x64xf32>
    %280 = arith.mulf %250, %279 : vector<16x64xf32>
    %281 = vector.broadcast %278 : vector<1x64xf32> to vector<16x64xf32>
    %282 = arith.addf %280, %281 : vector<16x64xf32>
    %cst_140 = arith.constant 0.000000e+00 : f32
    %283 = vector.broadcast %cst_140 : f32 to vector<16x64xf32>
    %284 = arith.cmpf oge, %282, %283 : vector<16x64xf32>
    %cst_141 = arith.constant 2.000000e-01 : f32
    %285 = vector.broadcast %cst_141 : f32 to vector<16x64xf32>
    %286 = arith.mulf %285, %282 : vector<16x64xf32>
    %287 = arith.select %284, %282, %286 : vector<16x64xi1>, vector<16x64xf32>
    %288 = arith.truncf %287 : vector<16x64xf32> to vector<16x64xbf16>
    %c0_142 = arith.constant 0 : index
    %c0_143 = arith.constant 0 : index
    %289 = vector.load %arg9[%c0_142, %c0_143] : memref<64x2048xbf16, #tpu.memory_space<vmem>>, vector<64x2048xbf16>
    %cst_144 = arith.constant dense<0.000000e+00> : vector<16x2048xf32>
    %290 = tpu.matmul %288, %289, %cst_144 {dimension_numbers = #tpu.dot_dimension_numbers<[1], [0], [0], [1], [0, 0, 1, 1], [], []>} : vector<16x64xbf16>, vector<64x2048xbf16>, vector<16x2048xf32> -> vector<16x2048xf32>
    %291 = arith.truncf %290 : vector<16x2048xf32> to vector<16x2048xbf16>
    %cst_145 = arith.constant 0.000000e+00 : f32
    %292 = vector.broadcast %cst_145 : f32 to vector<9x128xf32>
    %c0_146 = arith.constant 0 : index
    %c0_147 = arith.constant 0 : index
    %c0_148 = arith.constant 0 : index
    %293 = vector.load %arg8[%c0_146, %c0_147, %c0_148] : memref<16x9x16xbf16, #tpu.memory_space<vmem>>, vector<1x9x16xbf16>
    %294 = vector.shape_cast %293 : vector<1x9x16xbf16> to vector<9x16xbf16>
    %295 = vector.extract_strided_slice %291 {offsets = [0, 0], sizes = [16, 128], strides = [1, 1]} : vector<16x2048xbf16> to vector<16x128xbf16>
    %cst_149 = arith.constant dense<0.000000e+00> : vector<9x128xf32>
    %296 = tpu.matmul %294, %295, %cst_149 {dimension_numbers = #tpu.dot_dimension_numbers<[1], [0], [0], [1], [0, 0, 1, 1], [], []>} : vector<9x16xbf16>, vector<16x128xbf16>, vector<9x128xf32> -> vector<9x128xf32>
    %297 = arith.addf %292, %296 : vector<9x128xf32>
    %c1_150 = arith.constant 1 : index
    %c0_151 = arith.constant 0 : index
    %c0_152 = arith.constant 0 : index
    %298 = vector.load %arg8[%c1_150, %c0_151, %c0_152] : memref<16x9x16xbf16, #tpu.memory_space<vmem>>, vector<1x9x16xbf16>
    %299 = vector.shape_cast %298 : vector<1x9x16xbf16> to vector<9x16xbf16>
    %300 = vector.extract_strided_slice %291 {offsets = [0, 128], sizes = [16, 128], strides = [1, 1]} : vector<16x2048xbf16> to vector<16x128xbf16>
    %cst_153 = arith.constant dense<0.000000e+00> : vector<9x128xf32>
    %301 = tpu.matmul %299, %300, %cst_153 {dimension_numbers = #tpu.dot_dimension_numbers<[1], [0], [0], [1], [0, 0, 1, 1], [], []>} : vector<9x16xbf16>, vector<16x128xbf16>, vector<9x128xf32> -> vector<9x128xf32>
    %302 = arith.addf %297, %301 : vector<9x128xf32>
    %c2_154 = arith.constant 2 : index
    %c0_155 = arith.constant 0 : index
    %c0_156 = arith.constant 0 : index
    %303 = vector.load %arg8[%c2_154, %c0_155, %c0_156] : memref<16x9x16xbf16, #tpu.memory_space<vmem>>, vector<1x9x16xbf16>
    %304 = vector.shape_cast %303 : vector<1x9x16xbf16> to vector<9x16xbf16>
    %305 = vector.extract_strided_slice %291 {offsets = [0, 256], sizes = [16, 128], strides = [1, 1]} : vector<16x2048xbf16> to vector<16x128xbf16>
    %cst_157 = arith.constant dense<0.000000e+00> : vector<9x128xf32>
    %306 = tpu.matmul %304, %305, %cst_157 {dimension_numbers = #tpu.dot_dimension_numbers<[1], [0], [0], [1], [0, 0, 1, 1], [], []>} : vector<9x16xbf16>, vector<16x128xbf16>, vector<9x128xf32> -> vector<9x128xf32>
    %307 = arith.addf %302, %306 : vector<9x128xf32>
    %c3_158 = arith.constant 3 : index
    %c0_159 = arith.constant 0 : index
    %c0_160 = arith.constant 0 : index
    %308 = vector.load %arg8[%c3_158, %c0_159, %c0_160] : memref<16x9x16xbf16, #tpu.memory_space<vmem>>, vector<1x9x16xbf16>
    %309 = vector.shape_cast %308 : vector<1x9x16xbf16> to vector<9x16xbf16>
    %310 = vector.extract_strided_slice %291 {offsets = [0, 384], sizes = [16, 128], strides = [1, 1]} : vector<16x2048xbf16> to vector<16x128xbf16>
    %cst_161 = arith.constant dense<0.000000e+00> : vector<9x128xf32>
    %311 = tpu.matmul %309, %310, %cst_161 {dimension_numbers = #tpu.dot_dimension_numbers<[1], [0], [0], [1], [0, 0, 1, 1], [], []>} : vector<9x16xbf16>, vector<16x128xbf16>, vector<9x128xf32> -> vector<9x128xf32>
    %312 = arith.addf %307, %311 : vector<9x128xf32>
    %c4_162 = arith.constant 4 : index
    %c0_163 = arith.constant 0 : index
    %c0_164 = arith.constant 0 : index
    %313 = vector.load %arg8[%c4_162, %c0_163, %c0_164] : memref<16x9x16xbf16, #tpu.memory_space<vmem>>, vector<1x9x16xbf16>
    %314 = vector.shape_cast %313 : vector<1x9x16xbf16> to vector<9x16xbf16>
    %315 = vector.extract_strided_slice %291 {offsets = [0, 512], sizes = [16, 128], strides = [1, 1]} : vector<16x2048xbf16> to vector<16x128xbf16>
    %cst_165 = arith.constant dense<0.000000e+00> : vector<9x128xf32>
    %316 = tpu.matmul %314, %315, %cst_165 {dimension_numbers = #tpu.dot_dimension_numbers<[1], [0], [0], [1], [0, 0, 1, 1], [], []>} : vector<9x16xbf16>, vector<16x128xbf16>, vector<9x128xf32> -> vector<9x128xf32>
    %317 = arith.addf %312, %316 : vector<9x128xf32>
    %c5_166 = arith.constant 5 : index
    %c0_167 = arith.constant 0 : index
    %c0_168 = arith.constant 0 : index
    %318 = vector.load %arg8[%c5_166, %c0_167, %c0_168] : memref<16x9x16xbf16, #tpu.memory_space<vmem>>, vector<1x9x16xbf16>
    %319 = vector.shape_cast %318 : vector<1x9x16xbf16> to vector<9x16xbf16>
    %320 = vector.extract_strided_slice %291 {offsets = [0, 640], sizes = [16, 128], strides = [1, 1]} : vector<16x2048xbf16> to vector<16x128xbf16>
    %cst_169 = arith.constant dense<0.000000e+00> : vector<9x128xf32>
    %321 = tpu.matmul %319, %320, %cst_169 {dimension_numbers = #tpu.dot_dimension_numbers<[1], [0], [0], [1], [0, 0, 1, 1], [], []>} : vector<9x16xbf16>, vector<16x128xbf16>, vector<9x128xf32> -> vector<9x128xf32>
    %322 = arith.addf %317, %321 : vector<9x128xf32>
    %c6_170 = arith.constant 6 : index
    %c0_171 = arith.constant 0 : index
    %c0_172 = arith.constant 0 : index
    %323 = vector.load %arg8[%c6_170, %c0_171, %c0_172] : memref<16x9x16xbf16, #tpu.memory_space<vmem>>, vector<1x9x16xbf16>
    %324 = vector.shape_cast %323 : vector<1x9x16xbf16> to vector<9x16xbf16>
    %325 = vector.extract_strided_slice %291 {offsets = [0, 768], sizes = [16, 128], strides = [1, 1]} : vector<16x2048xbf16> to vector<16x128xbf16>
    %cst_173 = arith.constant dense<0.000000e+00> : vector<9x128xf32>
    %326 = tpu.matmul %324, %325, %cst_173 {dimension_numbers = #tpu.dot_dimension_numbers<[1], [0], [0], [1], [0, 0, 1, 1], [], []>} : vector<9x16xbf16>, vector<16x128xbf16>, vector<9x128xf32> -> vector<9x128xf32>
    %327 = arith.addf %322, %326 : vector<9x128xf32>
    %c7_174 = arith.constant 7 : index
    %c0_175 = arith.constant 0 : index
    %c0_176 = arith.constant 0 : index
    %328 = vector.load %arg8[%c7_174, %c0_175, %c0_176] : memref<16x9x16xbf16, #tpu.memory_space<vmem>>, vector<1x9x16xbf16>
    %329 = vector.shape_cast %328 : vector<1x9x16xbf16> to vector<9x16xbf16>
    %330 = vector.extract_strided_slice %291 {offsets = [0, 896], sizes = [16, 128], strides = [1, 1]} : vector<16x2048xbf16> to vector<16x128xbf16>
    %cst_177 = arith.constant dense<0.000000e+00> : vector<9x128xf32>
    %331 = tpu.matmul %329, %330, %cst_177 {dimension_numbers = #tpu.dot_dimension_numbers<[1], [0], [0], [1], [0, 0, 1, 1], [], []>} : vector<9x16xbf16>, vector<16x128xbf16>, vector<9x128xf32> -> vector<9x128xf32>
    %332 = arith.addf %327, %331 : vector<9x128xf32>
    %c8_178 = arith.constant 8 : index
    %c0_179 = arith.constant 0 : index
    %c0_180 = arith.constant 0 : index
    %333 = vector.load %arg8[%c8_178, %c0_179, %c0_180] : memref<16x9x16xbf16, #tpu.memory_space<vmem>>, vector<1x9x16xbf16>
    %334 = vector.shape_cast %333 : vector<1x9x16xbf16> to vector<9x16xbf16>
    %335 = vector.extract_strided_slice %291 {offsets = [0, 1024], sizes = [16, 128], strides = [1, 1]} : vector<16x2048xbf16> to vector<16x128xbf16>
    %cst_181 = arith.constant dense<0.000000e+00> : vector<9x128xf32>
    %336 = tpu.matmul %334, %335, %cst_181 {dimension_numbers = #tpu.dot_dimension_numbers<[1], [0], [0], [1], [0, 0, 1, 1], [], []>} : vector<9x16xbf16>, vector<16x128xbf16>, vector<9x128xf32> -> vector<9x128xf32>
    %337 = arith.addf %332, %336 : vector<9x128xf32>
    %c9_182 = arith.constant 9 : index
    %c0_183 = arith.constant 0 : index
    %c0_184 = arith.constant 0 : index
    %338 = vector.load %arg8[%c9_182, %c0_183, %c0_184] : memref<16x9x16xbf16, #tpu.memory_space<vmem>>, vector<1x9x16xbf16>
    %339 = vector.shape_cast %338 : vector<1x9x16xbf16> to vector<9x16xbf16>
    %340 = vector.extract_strided_slice %291 {offsets = [0, 1152], sizes = [16, 128], strides = [1, 1]} : vector<16x2048xbf16> to vector<16x128xbf16>
    %cst_185 = arith.constant dense<0.000000e+00> : vector<9x128xf32>
    %341 = tpu.matmul %339, %340, %cst_185 {dimension_numbers = #tpu.dot_dimension_numbers<[1], [0], [0], [1], [0, 0, 1, 1], [], []>} : vector<9x16xbf16>, vector<16x128xbf16>, vector<9x128xf32> -> vector<9x128xf32>
    %342 = arith.addf %337, %341 : vector<9x128xf32>
    %c10_186 = arith.constant 10 : index
    %c0_187 = arith.constant 0 : index
    %c0_188 = arith.constant 0 : index
    %343 = vector.load %arg8[%c10_186, %c0_187, %c0_188] : memref<16x9x16xbf16, #tpu.memory_space<vmem>>, vector<1x9x16xbf16>
    %344 = vector.shape_cast %343 : vector<1x9x16xbf16> to vector<9x16xbf16>
    %345 = vector.extract_strided_slice %291 {offsets = [0, 1280], sizes = [16, 128], strides = [1, 1]} : vector<16x2048xbf16> to vector<16x128xbf16>
    %cst_189 = arith.constant dense<0.000000e+00> : vector<9x128xf32>
    %346 = tpu.matmul %344, %345, %cst_189 {dimension_numbers = #tpu.dot_dimension_numbers<[1], [0], [0], [1], [0, 0, 1, 1], [], []>} : vector<9x16xbf16>, vector<16x128xbf16>, vector<9x128xf32> -> vector<9x128xf32>
    %347 = arith.addf %342, %346 : vector<9x128xf32>
    %c11_190 = arith.constant 11 : index
    %c0_191 = arith.constant 0 : index
    %c0_192 = arith.constant 0 : index
    %348 = vector.load %arg8[%c11_190, %c0_191, %c0_192] : memref<16x9x16xbf16, #tpu.memory_space<vmem>>, vector<1x9x16xbf16>
    %349 = vector.shape_cast %348 : vector<1x9x16xbf16> to vector<9x16xbf16>
    %350 = vector.extract_strided_slice %291 {offsets = [0, 1408], sizes = [16, 128], strides = [1, 1]} : vector<16x2048xbf16> to vector<16x128xbf16>
    %cst_193 = arith.constant dense<0.000000e+00> : vector<9x128xf32>
    %351 = tpu.matmul %349, %350, %cst_193 {dimension_numbers = #tpu.dot_dimension_numbers<[1], [0], [0], [1], [0, 0, 1, 1], [], []>} : vector<9x16xbf16>, vector<16x128xbf16>, vector<9x128xf32> -> vector<9x128xf32>
    %352 = arith.addf %347, %351 : vector<9x128xf32>
    %c12_194 = arith.constant 12 : index
    %c0_195 = arith.constant 0 : index
    %c0_196 = arith.constant 0 : index
    %353 = vector.load %arg8[%c12_194, %c0_195, %c0_196] : memref<16x9x16xbf16, #tpu.memory_space<vmem>>, vector<1x9x16xbf16>
    %354 = vector.shape_cast %353 : vector<1x9x16xbf16> to vector<9x16xbf16>
    %355 = vector.extract_strided_slice %291 {offsets = [0, 1536], sizes = [16, 128], strides = [1, 1]} : vector<16x2048xbf16> to vector<16x128xbf16>
    %cst_197 = arith.constant dense<0.000000e+00> : vector<9x128xf32>
    %356 = tpu.matmul %354, %355, %cst_197 {dimension_numbers = #tpu.dot_dimension_numbers<[1], [0], [0], [1], [0, 0, 1, 1], [], []>} : vector<9x16xbf16>, vector<16x128xbf16>, vector<9x128xf32> -> vector<9x128xf32>
    %357 = arith.addf %352, %356 : vector<9x128xf32>
    %c13_198 = arith.constant 13 : index
    %c0_199 = arith.constant 0 : index
    %c0_200 = arith.constant 0 : index
    %358 = vector.load %arg8[%c13_198, %c0_199, %c0_200] : memref<16x9x16xbf16, #tpu.memory_space<vmem>>, vector<1x9x16xbf16>
    %359 = vector.shape_cast %358 : vector<1x9x16xbf16> to vector<9x16xbf16>
    %360 = vector.extract_strided_slice %291 {offsets = [0, 1664], sizes = [16, 128], strides = [1, 1]} : vector<16x2048xbf16> to vector<16x128xbf16>
    %cst_201 = arith.constant dense<0.000000e+00> : vector<9x128xf32>
    %361 = tpu.matmul %359, %360, %cst_201 {dimension_numbers = #tpu.dot_dimension_numbers<[1], [0], [0], [1], [0, 0, 1, 1], [], []>} : vector<9x16xbf16>, vector<16x128xbf16>, vector<9x128xf32> -> vector<9x128xf32>
    %362 = arith.addf %357, %361 : vector<9x128xf32>
    %c14_202 = arith.constant 14 : index
    %c0_203 = arith.constant 0 : index
    %c0_204 = arith.constant 0 : index
    %363 = vector.load %arg8[%c14_202, %c0_203, %c0_204] : memref<16x9x16xbf16, #tpu.memory_space<vmem>>, vector<1x9x16xbf16>
    %364 = vector.shape_cast %363 : vector<1x9x16xbf16> to vector<9x16xbf16>
    %365 = vector.extract_strided_slice %291 {offsets = [0, 1792], sizes = [16, 128], strides = [1, 1]} : vector<16x2048xbf16> to vector<16x128xbf16>
    %cst_205 = arith.constant dense<0.000000e+00> : vector<9x128xf32>
    %366 = tpu.matmul %364, %365, %cst_205 {dimension_numbers = #tpu.dot_dimension_numbers<[1], [0], [0], [1], [0, 0, 1, 1], [], []>} : vector<9x16xbf16>, vector<16x128xbf16>, vector<9x128xf32> -> vector<9x128xf32>
    %367 = arith.addf %362, %366 : vector<9x128xf32>
    %c15_206 = arith.constant 15 : index
    %c0_207 = arith.constant 0 : index
    %c0_208 = arith.constant 0 : index
    %368 = vector.load %arg8[%c15_206, %c0_207, %c0_208] : memref<16x9x16xbf16, #tpu.memory_space<vmem>>, vector<1x9x16xbf16>
    %369 = vector.shape_cast %368 : vector<1x9x16xbf16> to vector<9x16xbf16>
    %370 = vector.extract_strided_slice %291 {offsets = [0, 1920], sizes = [16, 128], strides = [1, 1]} : vector<16x2048xbf16> to vector<16x128xbf16>
    %cst_209 = arith.constant dense<0.000000e+00> : vector<9x128xf32>
    %371 = tpu.matmul %369, %370, %cst_209 {dimension_numbers = #tpu.dot_dimension_numbers<[1], [0], [0], [1], [0, 0, 1, 1], [], []>} : vector<9x16xbf16>, vector<16x128xbf16>, vector<9x128xf32> -> vector<9x128xf32>
    %372 = arith.addf %367, %371 : vector<9x128xf32>
    %373 = vector.extract_strided_slice %0 {offsets = [5, 0], sizes = [1, 64], strides = [1, 1]} : vector<8x128xf32> to vector<1x64xf32>
    %374 = vector.extract_strided_slice %0 {offsets = [6, 0], sizes = [1, 64], strides = [1, 1]} : vector<8x128xf32> to vector<1x64xf32>
    %cst_210 = arith.constant dense<0.000000e+00> : vector<128xf32>
    %375 = vector.multi_reduction <add>, %372, %cst_210 [0] : vector<9x128xf32> to vector<128xf32>
    %376 = vector.shape_cast %375 : vector<128xf32> to vector<1x128xf32>
    %377 = vector.extract_strided_slice %376 {offsets = [0, 0], sizes = [1, 64], strides = [1, 1]} : vector<1x128xf32> to vector<1x64xf32>
    %378 = vector.extract_strided_slice %376 {offsets = [0, 64], sizes = [1, 64], strides = [1, 1]} : vector<1x128xf32> to vector<1x64xf32>
    %379 = arith.addf %377, %378 : vector<1x64xf32>
    %cst_211 = arith.constant 1.800000e+01 : f32
    %380 = vector.broadcast %cst_211 : f32 to vector<1x64xf32>
    %381 = arith.divf %379, %380 : vector<1x64xf32>
    %382 = tpu.concatenate %381, %381 in 1 : vector<1x64xf32>, vector<1x64xf32> -> vector<1x128xf32>
    %383 = vector.broadcast %382 : vector<1x128xf32> to vector<9x128xf32>
    %384 = arith.subf %372, %383 : vector<9x128xf32>
    %385 = arith.mulf %384, %384 : vector<9x128xf32>
    %cst_212 = arith.constant dense<0.000000e+00> : vector<128xf32>
    %386 = vector.multi_reduction <add>, %385, %cst_212 [0] : vector<9x128xf32> to vector<128xf32>
    %387 = vector.shape_cast %386 : vector<128xf32> to vector<1x128xf32>
    %388 = vector.extract_strided_slice %387 {offsets = [0, 0], sizes = [1, 64], strides = [1, 1]} : vector<1x128xf32> to vector<1x64xf32>
    %389 = vector.extract_strided_slice %387 {offsets = [0, 64], sizes = [1, 64], strides = [1, 1]} : vector<1x128xf32> to vector<1x64xf32>
    %390 = arith.addf %388, %389 : vector<1x64xf32>
    %cst_213 = arith.constant 1.800000e+01 : f32
    %391 = vector.broadcast %cst_213 : f32 to vector<1x64xf32>
    %392 = arith.divf %390, %391 : vector<1x64xf32>
    %cst_214 = arith.constant 9.99999974E-6 : f32
    %393 = vector.broadcast %cst_214 : f32 to vector<1x64xf32>
    %394 = arith.addf %392, %393 : vector<1x64xf32>
    %395 = math.rsqrt %394 : vector<1x64xf32>
    %396 = arith.mulf %373, %395 : vector<1x64xf32>
    %397 = arith.mulf %381, %396 : vector<1x64xf32>
    %398 = arith.subf %374, %397 : vector<1x64xf32>
    %399 = tpu.concatenate %396, %396 in 1 : vector<1x64xf32>, vector<1x64xf32> -> vector<1x128xf32>
    %400 = tpu.concatenate %398, %398 in 1 : vector<1x64xf32>, vector<1x64xf32> -> vector<1x128xf32>
    %401 = vector.broadcast %399 : vector<1x128xf32> to vector<9x128xf32>
    %402 = arith.mulf %372, %401 : vector<9x128xf32>
    %403 = vector.broadcast %400 : vector<1x128xf32> to vector<9x128xf32>
    %404 = arith.addf %402, %403 : vector<9x128xf32>
    %cst_215 = arith.constant 0.000000e+00 : f32
    %405 = vector.broadcast %cst_215 : f32 to vector<9x128xf32>
    %406 = arith.cmpf oge, %404, %405 : vector<9x128xf32>
    %cst_216 = arith.constant 2.000000e-01 : f32
    %407 = vector.broadcast %cst_216 : f32 to vector<9x128xf32>
    %408 = arith.mulf %407, %404 : vector<9x128xf32>
    %409 = arith.select %406, %404, %408 : vector<9x128xi1>, vector<9x128xf32>
    %410 = arith.truncf %409 : vector<9x128xf32> to vector<9x128xbf16>
    %c0_217 = arith.constant 0 : index
    %c0_218 = arith.constant 0 : index
    %411 = vector.load %arg11[%c0_217, %c0_218] : memref<128x32xbf16, #tpu.memory_space<vmem>>, vector<128x32xbf16>
    %cst_219 = arith.constant dense<0.000000e+00> : vector<9x32xf32>
    %412 = tpu.matmul %410, %411, %cst_219 {dimension_numbers = #tpu.dot_dimension_numbers<[1], [0], [0], [1], [0, 0, 1, 1], [], []>} : vector<9x128xbf16>, vector<128x32xbf16>, vector<9x32xf32> -> vector<9x32xf32>
    %413 = arith.truncf %412 : vector<9x32xf32> to vector<9x32xbf16>
    %cst_220 = arith.constant 0.000000e+00 : f32
    %414 = vector.broadcast %cst_220 : f32 to vector<4x2xf32>
    %c0_221 = arith.constant 0 : index
    %c0_222 = arith.constant 0 : index
    %c0_223 = arith.constant 0 : index
    %415 = vector.load %arg10[%c0_221, %c0_222, %c0_223] : memref<16x4x9xbf16, #tpu.memory_space<vmem>>, vector<1x4x9xbf16>
    %416 = vector.shape_cast %415 : vector<1x4x9xbf16> to vector<4x9xbf16>
    %417 = vector.extract_strided_slice %413 {offsets = [0, 0], sizes = [9, 2], strides = [1, 1]} : vector<9x32xbf16> to vector<9x2xbf16>
    %cst_224 = arith.constant dense<0.000000e+00> : vector<4x2xf32>
    %418 = tpu.matmul %416, %417, %cst_224 {dimension_numbers = #tpu.dot_dimension_numbers<[1], [0], [0], [1], [0, 0, 1, 1], [], []>} : vector<4x9xbf16>, vector<9x2xbf16>, vector<4x2xf32> -> vector<4x2xf32>
    %419 = arith.addf %414, %418 : vector<4x2xf32>
    %c1_225 = arith.constant 1 : index
    %c0_226 = arith.constant 0 : index
    %c0_227 = arith.constant 0 : index
    %420 = vector.load %arg10[%c1_225, %c0_226, %c0_227] : memref<16x4x9xbf16, #tpu.memory_space<vmem>>, vector<1x4x9xbf16>
    %421 = vector.shape_cast %420 : vector<1x4x9xbf16> to vector<4x9xbf16>
    %422 = vector.extract_strided_slice %413 {offsets = [0, 2], sizes = [9, 2], strides = [1, 1]} : vector<9x32xbf16> to vector<9x2xbf16>
    %cst_228 = arith.constant dense<0.000000e+00> : vector<4x2xf32>
    %423 = tpu.matmul %421, %422, %cst_228 {dimension_numbers = #tpu.dot_dimension_numbers<[1], [0], [0], [1], [0, 0, 1, 1], [], []>} : vector<4x9xbf16>, vector<9x2xbf16>, vector<4x2xf32> -> vector<4x2xf32>
    %424 = arith.addf %419, %423 : vector<4x2xf32>
    %c2_229 = arith.constant 2 : index
    %c0_230 = arith.constant 0 : index
    %c0_231 = arith.constant 0 : index
    %425 = vector.load %arg10[%c2_229, %c0_230, %c0_231] : memref<16x4x9xbf16, #tpu.memory_space<vmem>>, vector<1x4x9xbf16>
    %426 = vector.shape_cast %425 : vector<1x4x9xbf16> to vector<4x9xbf16>
    %427 = vector.extract_strided_slice %413 {offsets = [0, 4], sizes = [9, 2], strides = [1, 1]} : vector<9x32xbf16> to vector<9x2xbf16>
    %cst_232 = arith.constant dense<0.000000e+00> : vector<4x2xf32>
    %428 = tpu.matmul %426, %427, %cst_232 {dimension_numbers = #tpu.dot_dimension_numbers<[1], [0], [0], [1], [0, 0, 1, 1], [], []>} : vector<4x9xbf16>, vector<9x2xbf16>, vector<4x2xf32> -> vector<4x2xf32>
    %429 = arith.addf %424, %428 : vector<4x2xf32>
    %c3_233 = arith.constant 3 : index
    %c0_234 = arith.constant 0 : index
    %c0_235 = arith.constant 0 : index
    %430 = vector.load %arg10[%c3_233, %c0_234, %c0_235] : memref<16x4x9xbf16, #tpu.memory_space<vmem>>, vector<1x4x9xbf16>
    %431 = vector.shape_cast %430 : vector<1x4x9xbf16> to vector<4x9xbf16>
    %432 = vector.extract_strided_slice %413 {offsets = [0, 6], sizes = [9, 2], strides = [1, 1]} : vector<9x32xbf16> to vector<9x2xbf16>
    %cst_236 = arith.constant dense<0.000000e+00> : vector<4x2xf32>
    %433 = tpu.matmul %431, %432, %cst_236 {dimension_numbers = #tpu.dot_dimension_numbers<[1], [0], [0], [1], [0, 0, 1, 1], [], []>} : vector<4x9xbf16>, vector<9x2xbf16>, vector<4x2xf32> -> vector<4x2xf32>
    %434 = arith.addf %429, %433 : vector<4x2xf32>
    %c4_237 = arith.constant 4 : index
    %c0_238 = arith.constant 0 : index
    %c0_239 = arith.constant 0 : index
    %435 = vector.load %arg10[%c4_237, %c0_238, %c0_239] : memref<16x4x9xbf16, #tpu.memory_space<vmem>>, vector<1x4x9xbf16>
    %436 = vector.shape_cast %435 : vector<1x4x9xbf16> to vector<4x9xbf16>
    %437 = vector.extract_strided_slice %413 {offsets = [0, 8], sizes = [9, 2], strides = [1, 1]} : vector<9x32xbf16> to vector<9x2xbf16>
    %cst_240 = arith.constant dense<0.000000e+00> : vector<4x2xf32>
    %438 = tpu.matmul %436, %437, %cst_240 {dimension_numbers = #tpu.dot_dimension_numbers<[1], [0], [0], [1], [0, 0, 1, 1], [], []>} : vector<4x9xbf16>, vector<9x2xbf16>, vector<4x2xf32> -> vector<4x2xf32>
    %439 = arith.addf %434, %438 : vector<4x2xf32>
    %c5_241 = arith.constant 5 : index
    %c0_242 = arith.constant 0 : index
    %c0_243 = arith.constant 0 : index
    %440 = vector.load %arg10[%c5_241, %c0_242, %c0_243] : memref<16x4x9xbf16, #tpu.memory_space<vmem>>, vector<1x4x9xbf16>
    %441 = vector.shape_cast %440 : vector<1x4x9xbf16> to vector<4x9xbf16>
    %442 = vector.extract_strided_slice %413 {offsets = [0, 10], sizes = [9, 2], strides = [1, 1]} : vector<9x32xbf16> to vector<9x2xbf16>
    %cst_244 = arith.constant dense<0.000000e+00> : vector<4x2xf32>
    %443 = tpu.matmul %441, %442, %cst_244 {dimension_numbers = #tpu.dot_dimension_numbers<[1], [0], [0], [1], [0, 0, 1, 1], [], []>} : vector<4x9xbf16>, vector<9x2xbf16>, vector<4x2xf32> -> vector<4x2xf32>
    %444 = arith.addf %439, %443 : vector<4x2xf32>
    %c6_245 = arith.constant 6 : index
    %c0_246 = arith.constant 0 : index
    %c0_247 = arith.constant 0 : index
    %445 = vector.load %arg10[%c6_245, %c0_246, %c0_247] : memref<16x4x9xbf16, #tpu.memory_space<vmem>>, vector<1x4x9xbf16>
    %446 = vector.shape_cast %445 : vector<1x4x9xbf16> to vector<4x9xbf16>
    %447 = vector.extract_strided_slice %413 {offsets = [0, 12], sizes = [9, 2], strides = [1, 1]} : vector<9x32xbf16> to vector<9x2xbf16>
    %cst_248 = arith.constant dense<0.000000e+00> : vector<4x2xf32>
    %448 = tpu.matmul %446, %447, %cst_248 {dimension_numbers = #tpu.dot_dimension_numbers<[1], [0], [0], [1], [0, 0, 1, 1], [], []>} : vector<4x9xbf16>, vector<9x2xbf16>, vector<4x2xf32> -> vector<4x2xf32>
    %449 = arith.addf %444, %448 : vector<4x2xf32>
    %c7_249 = arith.constant 7 : index
    %c0_250 = arith.constant 0 : index
    %c0_251 = arith.constant 0 : index
    %450 = vector.load %arg10[%c7_249, %c0_250, %c0_251] : memref<16x4x9xbf16, #tpu.memory_space<vmem>>, vector<1x4x9xbf16>
    %451 = vector.shape_cast %450 : vector<1x4x9xbf16> to vector<4x9xbf16>
    %452 = vector.extract_strided_slice %413 {offsets = [0, 14], sizes = [9, 2], strides = [1, 1]} : vector<9x32xbf16> to vector<9x2xbf16>
    %cst_252 = arith.constant dense<0.000000e+00> : vector<4x2xf32>
    %453 = tpu.matmul %451, %452, %cst_252 {dimension_numbers = #tpu.dot_dimension_numbers<[1], [0], [0], [1], [0, 0, 1, 1], [], []>} : vector<4x9xbf16>, vector<9x2xbf16>, vector<4x2xf32> -> vector<4x2xf32>
    %454 = arith.addf %449, %453 : vector<4x2xf32>
    %c8_253 = arith.constant 8 : index
    %c0_254 = arith.constant 0 : index
    %c0_255 = arith.constant 0 : index
    %455 = vector.load %arg10[%c8_253, %c0_254, %c0_255] : memref<16x4x9xbf16, #tpu.memory_space<vmem>>, vector<1x4x9xbf16>
    %456 = vector.shape_cast %455 : vector<1x4x9xbf16> to vector<4x9xbf16>
    %457 = vector.extract_strided_slice %413 {offsets = [0, 16], sizes = [9, 2], strides = [1, 1]} : vector<9x32xbf16> to vector<9x2xbf16>
    %cst_256 = arith.constant dense<0.000000e+00> : vector<4x2xf32>
    %458 = tpu.matmul %456, %457, %cst_256 {dimension_numbers = #tpu.dot_dimension_numbers<[1], [0], [0], [1], [0, 0, 1, 1], [], []>} : vector<4x9xbf16>, vector<9x2xbf16>, vector<4x2xf32> -> vector<4x2xf32>
    %459 = arith.addf %454, %458 : vector<4x2xf32>
    %c9_257 = arith.constant 9 : index
    %c0_258 = arith.constant 0 : index
    %c0_259 = arith.constant 0 : index
    %460 = vector.load %arg10[%c9_257, %c0_258, %c0_259] : memref<16x4x9xbf16, #tpu.memory_space<vmem>>, vector<1x4x9xbf16>
    %461 = vector.shape_cast %460 : vector<1x4x9xbf16> to vector<4x9xbf16>
    %462 = vector.extract_strided_slice %413 {offsets = [0, 18], sizes = [9, 2], strides = [1, 1]} : vector<9x32xbf16> to vector<9x2xbf16>
    %cst_260 = arith.constant dense<0.000000e+00> : vector<4x2xf32>
    %463 = tpu.matmul %461, %462, %cst_260 {dimension_numbers = #tpu.dot_dimension_numbers<[1], [0], [0], [1], [0, 0, 1, 1], [], []>} : vector<4x9xbf16>, vector<9x2xbf16>, vector<4x2xf32> -> vector<4x2xf32>
    %464 = arith.addf %459, %463 : vector<4x2xf32>
    %c10_261 = arith.constant 10 : index
    %c0_262 = arith.constant 0 : index
    %c0_263 = arith.constant 0 : index
    %465 = vector.load %arg10[%c10_261, %c0_262, %c0_263] : memref<16x4x9xbf16, #tpu.memory_space<vmem>>, vector<1x4x9xbf16>
    %466 = vector.shape_cast %465 : vector<1x4x9xbf16> to vector<4x9xbf16>
    %467 = vector.extract_strided_slice %413 {offsets = [0, 20], sizes = [9, 2], strides = [1, 1]} : vector<9x32xbf16> to vector<9x2xbf16>
    %cst_264 = arith.constant dense<0.000000e+00> : vector<4x2xf32>
    %468 = tpu.matmul %466, %467, %cst_264 {dimension_numbers = #tpu.dot_dimension_numbers<[1], [0], [0], [1], [0, 0, 1, 1], [], []>} : vector<4x9xbf16>, vector<9x2xbf16>, vector<4x2xf32> -> vector<4x2xf32>
    %469 = arith.addf %464, %468 : vector<4x2xf32>
    %c11_265 = arith.constant 11 : index
    %c0_266 = arith.constant 0 : index
    %c0_267 = arith.constant 0 : index
    %470 = vector.load %arg10[%c11_265, %c0_266, %c0_267] : memref<16x4x9xbf16, #tpu.memory_space<vmem>>, vector<1x4x9xbf16>
    %471 = vector.shape_cast %470 : vector<1x4x9xbf16> to vector<4x9xbf16>
    %472 = vector.extract_strided_slice %413 {offsets = [0, 22], sizes = [9, 2], strides = [1, 1]} : vector<9x32xbf16> to vector<9x2xbf16>
    %cst_268 = arith.constant dense<0.000000e+00> : vector<4x2xf32>
    %473 = tpu.matmul %471, %472, %cst_268 {dimension_numbers = #tpu.dot_dimension_numbers<[1], [0], [0], [1], [0, 0, 1, 1], [], []>} : vector<4x9xbf16>, vector<9x2xbf16>, vector<4x2xf32> -> vector<4x2xf32>
    %474 = arith.addf %469, %473 : vector<4x2xf32>
    %c12_269 = arith.constant 12 : index
    %c0_270 = arith.constant 0 : index
    %c0_271 = arith.constant 0 : index
    %475 = vector.load %arg10[%c12_269, %c0_270, %c0_271] : memref<16x4x9xbf16, #tpu.memory_space<vmem>>, vector<1x4x9xbf16>
    %476 = vector.shape_cast %475 : vector<1x4x9xbf16> to vector<4x9xbf16>
    %477 = vector.extract_strided_slice %413 {offsets = [0, 24], sizes = [9, 2], strides = [1, 1]} : vector<9x32xbf16> to vector<9x2xbf16>
    %cst_272 = arith.constant dense<0.000000e+00> : vector<4x2xf32>
    %478 = tpu.matmul %476, %477, %cst_272 {dimension_numbers = #tpu.dot_dimension_numbers<[1], [0], [0], [1], [0, 0, 1, 1], [], []>} : vector<4x9xbf16>, vector<9x2xbf16>, vector<4x2xf32> -> vector<4x2xf32>
    %479 = arith.addf %474, %478 : vector<4x2xf32>
    %c13_273 = arith.constant 13 : index
    %c0_274 = arith.constant 0 : index
    %c0_275 = arith.constant 0 : index
    %480 = vector.load %arg10[%c13_273, %c0_274, %c0_275] : memref<16x4x9xbf16, #tpu.memory_space<vmem>>, vector<1x4x9xbf16>
    %481 = vector.shape_cast %480 : vector<1x4x9xbf16> to vector<4x9xbf16>
    %482 = vector.extract_strided_slice %413 {offsets = [0, 26], sizes = [9, 2], strides = [1, 1]} : vector<9x32xbf16> to vector<9x2xbf16>
    %cst_276 = arith.constant dense<0.000000e+00> : vector<4x2xf32>
    %483 = tpu.matmul %481, %482, %cst_276 {dimension_numbers = #tpu.dot_dimension_numbers<[1], [0], [0], [1], [0, 0, 1, 1], [], []>} : vector<4x9xbf16>, vector<9x2xbf16>, vector<4x2xf32> -> vector<4x2xf32>
    %484 = arith.addf %479, %483 : vector<4x2xf32>
    %c14_277 = arith.constant 14 : index
    %c0_278 = arith.constant 0 : index
    %c0_279 = arith.constant 0 : index
    %485 = vector.load %arg10[%c14_277, %c0_278, %c0_279] : memref<16x4x9xbf16, #tpu.memory_space<vmem>>, vector<1x4x9xbf16>
    %486 = vector.shape_cast %485 : vector<1x4x9xbf16> to vector<4x9xbf16>
    %487 = vector.extract_strided_slice %413 {offsets = [0, 28], sizes = [9, 2], strides = [1, 1]} : vector<9x32xbf16> to vector<9x2xbf16>
    %cst_280 = arith.constant dense<0.000000e+00> : vector<4x2xf32>
    %488 = tpu.matmul %486, %487, %cst_280 {dimension_numbers = #tpu.dot_dimension_numbers<[1], [0], [0], [1], [0, 0, 1, 1], [], []>} : vector<4x9xbf16>, vector<9x2xbf16>, vector<4x2xf32> -> vector<4x2xf32>
    %489 = arith.addf %484, %488 : vector<4x2xf32>
    %c15_281 = arith.constant 15 : index
    %c0_282 = arith.constant 0 : index
    %c0_283 = arith.constant 0 : index
    %490 = vector.load %arg10[%c15_281, %c0_282, %c0_283] : memref<16x4x9xbf16, #tpu.memory_space<vmem>>, vector<1x4x9xbf16>
    %491 = vector.shape_cast %490 : vector<1x4x9xbf16> to vector<4x9xbf16>
    %492 = vector.extract_strided_slice %413 {offsets = [0, 30], sizes = [9, 2], strides = [1, 1]} : vector<9x32xbf16> to vector<9x2xbf16>
    %cst_284 = arith.constant dense<0.000000e+00> : vector<4x2xf32>
    %493 = tpu.matmul %491, %492, %cst_284 {dimension_numbers = #tpu.dot_dimension_numbers<[1], [0], [0], [1], [0, 0, 1, 1], [], []>} : vector<4x9xbf16>, vector<9x2xbf16>, vector<4x2xf32> -> vector<4x2xf32>
    %494 = arith.addf %489, %493 : vector<4x2xf32>
    %495 = vector.extract_strided_slice %0 {offsets = [7, 0], sizes = [1, 2], strides = [1, 1]} : vector<8x128xf32> to vector<1x2xf32>
    %496 = vector.broadcast %495 : vector<1x2xf32> to vector<4x2xf32>
    %497 = arith.addf %494, %496 : vector<4x2xf32>
    %cst_285 = arith.constant 0.000000e+00 : f32
    %498 = vector.broadcast %cst_285 : f32 to vector<4x126xf32>
    %499 = tpu.concatenate %497, %498 in 1 : vector<4x2xf32>, vector<4x126xf32> -> vector<4x128xf32>
    %cst_286 = arith.constant 0.000000e+00 : f32
    %500 = vector.broadcast %cst_286 : f32 to vector<4x128xf32>
    %501 = tpu.concatenate %499, %500 in 0 : vector<4x128xf32>, vector<4x128xf32> -> vector<8x128xf32>
    %c0_287 = arith.constant 0 : index
    %c0_288 = arith.constant 0 : index
    %502 = vector.load %arg12[%c0_287, %c0_288] : memref<8x128xf32, #tpu.memory_space<vmem>>, vector<8x128xf32>
    tpu.vector_store %arg12[%c0_287, %c0_288], %501 {strides = array<i32>} : memref<8x128xf32, #tpu.memory_space<vmem>>, vector<8x128xf32>,
    return
  }
  func.func @transform_0(%arg0: i32) -> (i32, i32) {
    %c0_i32 = arith.constant 0 : i32
    %c0_i32_0 = arith.constant 0 : i32
    %c0_i32_1 = arith.constant 0 : i32
    return %c0_i32, %c0_i32_0 : i32, i32
  }
  func.func @transform_1(%arg0: i32) -> (i32, i32) {
    %c0_i32 = arith.constant 0 : i32
    %c0_i32_0 = arith.constant 0 : i32
    %c0_i32_1 = arith.constant 0 : i32
    return %c0_i32, %c0_i32_0 : i32, i32
  }
  func.func @transform_2(%arg0: i32) -> (i32, i32) {
    %c0_i32 = arith.constant 0 : i32
    %c0_i32_0 = arith.constant 0 : i32
    %c0_i32_1 = arith.constant 0 : i32
    return %c0_i32, %c0_i32_0 : i32, i32
  }
  func.func @transform_3(%arg0: i32) -> (i32, i32, i32) {
    %c0_i32 = arith.constant 0 : i32
    %c0_i32_0 = arith.constant 0 : i32
    %c0_i32_1 = arith.constant 0 : i32
    %c0_i32_2 = arith.constant 0 : i32
    return %c0_i32, %c0_i32_0, %c0_i32_1 : i32, i32, i32
  }
  func.func @transform_4(%arg0: i32) -> (i32, i32) {
    %c0_i32 = arith.constant 0 : i32
    %c0_i32_0 = arith.constant 0 : i32
    %c0_i32_1 = arith.constant 0 : i32
    return %c0_i32, %c0_i32_0 : i32, i32
  }
  func.func @transform_5(%arg0: i32) -> (i32, i32, i32) {
    %c0_i32 = arith.constant 0 : i32
    %c0_i32_0 = arith.constant 0 : i32
    %c0_i32_1 = arith.constant 0 : i32
    %c0_i32_2 = arith.constant 0 : i32
    return %c0_i32, %c0_i32_0, %c0_i32_1 : i32, i32, i32
  }
  func.func @transform_6(%arg0: i32) -> (i32, i32) {
    %c0_i32 = arith.constant 0 : i32
    %c0_i32_0 = arith.constant 0 : i32
    %c0_i32_1 = arith.constant 0 : i32
    return %c0_i32, %c0_i32_0 : i32, i32
  }
  func.func @transform_7(%arg0: i32) -> (i32, i32, i32) {
    %c0_i32 = arith.constant 0 : i32
    %c0_i32_0 = arith.constant 0 : i32
    %c0_i32_1 = arith.constant 0 : i32
    %c0_i32_2 = arith.constant 0 : i32
    return %c0_i32, %c0_i32_0, %c0_i32_1 : i32, i32, i32
  }
  func.func @transform_8(%arg0: i32) -> (i32, i32) {
    %c0_i32 = arith.constant 0 : i32
    %c0_i32_0 = arith.constant 0 : i32
    %c0_i32_1 = arith.constant 0 : i32
    return %c0_i32, %c0_i32_0 : i32, i32
  }
  func.func @transform_9(%arg0: i32) -> (i32, i32, i32) {
    %c0_i32 = arith.constant 0 : i32
    %c0_i32_0 = arith.constant 0 : i32
    %c0_i32_1 = arith.constant 0 : i32
    %c0_i32_2 = arith.constant 0 : i32
    return %c0_i32, %c0_i32_0, %c0_i32_1 : i32, i32, i32
  }
  func.func @transform_10(%arg0: i32) -> (i32, i32) {
    %c0_i32 = arith.constant 0 : i32
    %c0_i32_0 = arith.constant 0 : i32
    %c0_i32_1 = arith.constant 0 : i32
    return %c0_i32, %c0_i32_0 : i32, i32
  }
  func.func @transform_11(%arg0: i32) -> (i32, i32) {
    %c0_i32 = arith.constant 0 : i32
    %c0_i32_0 = arith.constant 0 : i32
    %c0_i32_1 = arith.constant 0 : i32
    return %c0_i32, %c0_i32_0 : i32, i32
  }
}

</mosaic_0001>

<llo_original>
// kernel: _lambda_.1
$region0: #{_lambda_.1}
  #allocation0 [shape = 'u32[]', space=smem, size = 0x4, offset = 0x4, fixed_abs, tag = 'smem constant byte address 0x4 - core index']
  #allocation1 [shape = 'u32[144,128]{1,0:T(1,128)}', space=vmem, size = 0x12000, scoped, tag = 'internal scratch']
  %s0 = inlined_call_operand.vmem [shape: bf16[256,128], index: 0, kind: input, shape index: {}]
  %s1 = inlined_call_operand.vmem [shape: bf16[128,16], index: 1, kind: input, shape index: {}]
  %s2 = inlined_call_operand.vmem [shape: f32[8,128], index: 2, kind: input, shape index: {}]
  %s3 = inlined_call_operand.vmem [shape: s8[16,64,256], index: 3, kind: input, shape index: {}]
  %s4 = inlined_call_operand.vmem [shape: bf16[16,512], index: 4, kind: input, shape index: {}]
  %s5 = inlined_call_operand.vmem [shape: bf16[16,16,64], index: 5, kind: input, shape index: {}]
  %s6 = inlined_call_operand.vmem [shape: bf16[32,1024], index: 6, kind: input, shape index: {}]
  %s7 = inlined_call_operand.vmem [shape: bf16[16,9,16], index: 7, kind: input, shape index: {}]
  %s8 = inlined_call_operand.vmem [shape: bf16[64,2048], index: 8, kind: input, shape index: {}]
  %s9 = inlined_call_operand.vmem [shape: bf16[16,4,9], index: 9, kind: input, shape index: {}]
  %s10 = inlined_call_operand.vmem [shape: bf16[128,32], index: 10, kind: input, shape index: {}]
  %s11 = inlined_call_operand.vmem [shape: f32[8,128], index: 11, kind: output, shape index: {}]
  %s12 = sld [smem:[#allocation0]]
  $region54: #{_lambda_.1} parent=0
    _
  %s14 = ssub.s32 1, %s12
  %s15 = scalar_select 0, %s14, %s12
  // Predicated region
  $region2: #{_lambda_.1} parent=0 // pred_check
    _
  $region3: #{_lambda_.1} parent=0 // pred_check_branch
    %17 = sbr.rel (0) target = $region5
  $region4: #{_lambda_.1} parent=0 // pred_region
    _
  $region5: #{_lambda_.1} parent=0 // pred_fallthru
    _
  // Predicated region
  $region6: #{_lambda_.1} parent=0 // pred_check
    _
  $region7: #{_lambda_.1} parent=0 // pred_check_branch
    %19 = sbr.rel (0) target = $region9
  $region8: #{_lambda_.1} parent=0 // pred_region
    _
  $region9: #{_lambda_.1} parent=0 // pred_fallthru
    _
  // Predicated region
  $region10: #{_lambda_.1} parent=0 // pred_check
    _
  $region11: #{_lambda_.1} parent=0 // pred_check_branch
    %21 = sbr.rel (0) target = $region13
  $region12: #{_lambda_.1} parent=0 // pred_region
    _
  $region13: #{_lambda_.1} parent=0 // pred_fallthru
    _
  // Predicated region
  $region14: #{_lambda_.1} parent=0 // pred_check
    _
  $region15: #{_lambda_.1} parent=0 // pred_check_branch
    %23 = sbr.rel (0) target = $region17
  $region16: #{_lambda_.1} parent=0 // pred_region
    _
  $region17: #{_lambda_.1} parent=0 // pred_fallthru
    _
  // Predicated region
  $region18: #{_lambda_.1} parent=0 // pred_check
    _
  $region19: #{_lambda_.1} parent=0 // pred_check_branch
    %25 = sbr.rel (0) target = $region21
  $region20: #{_lambda_.1} parent=0 // pred_region
    _
  $region21: #{_lambda_.1} parent=0 // pred_fallthru
    _
  // Predicated region
  $region22: #{_lambda_.1} parent=0 // pred_check
    _
  $region23: #{_lambda_.1} parent=0 // pred_check_branch
    %27 = sbr.rel (0) target = $region25
  $region24: #{_lambda_.1} parent=0 // pred_region
    _
  $region25: #{_lambda_.1} parent=0 // pred_fallthru
    _
  // Predicated region
  $region26: #{_lambda_.1} parent=0 // pred_check
    _
  $region27: #{_lambda_.1} parent=0 // pred_check_branch
    %29 = sbr.rel (0) target = $region29
  $region28: #{_lambda_.1} parent=0 // pred_region
    _
  $region29: #{_lambda_.1} parent=0 // pred_fallthru
    _
  // Predicated region
  $region30: #{_lambda_.1} parent=0 // pred_check
    _
  $region31: #{_lambda_.1} parent=0 // pred_check_branch
    %31 = sbr.rel (0) target = $region33
  $region32: #{_lambda_.1} parent=0 // pred_region
    _
  $region33: #{_lambda_.1} parent=0 // pred_fallthru
    _
  // Predicated region
  $region34: #{_lambda_.1} parent=0 // pred_check
    _
  $region35: #{_lambda_.1} parent=0 // pred_check_branch
    %33 = sbr.rel (0) target = $region37
  $region36: #{_lambda_.1} parent=0 // pred_region
    _
  $region37: #{_lambda_.1} parent=0 // pred_fallthru
    _
  // Predicated region
  $region38: #{_lambda_.1} parent=0 // pred_check
    _
  $region39: #{_lambda_.1} parent=0 // pred_check_branch
    %35 = sbr.rel (0) target = $region41
  $region40: #{_lambda_.1} parent=0 // pred_region
    _
  $region41: #{_lambda_.1} parent=0 // pred_fallthru
    _
  // Predicated region
  $region42: #{_lambda_.1} parent=0 // pred_check
    _
  $region43: #{_lambda_.1} parent=0 // pred_check_branch
    %37 = sbr.rel (0) target = $region45
  $region44: #{_lambda_.1} parent=0 // pred_region
    _
  $region45: #{_lambda_.1} parent=0 // pred_fallthru
    _
  %v39 = vld [vmem:[%s2] sm:$0xff]
  %v40 = vld [vmem:[%s0] sm:$0xf]
  %v41 = vld [vmem:[%s0 + $0x4] sm:$0xf]
  %v42 = vld [vmem:[%s0 + $0x8] sm:$0xf]
  %v43 = vld [vmem:[%s0 + $0xc] sm:$0xf]
  %v44 = vld [vmem:[%s0 + $0x10] sm:$0xf]
  %v45 = vld [vmem:[%s0 + $0x14] sm:$0xf]
  %v46 = vld [vmem:[%s0 + $0x18] sm:$0xf]
  %v47 = vld [vmem:[%s0 + $0x1c] sm:$0xf]
  %v48 = vld [vmem:[%s0 + $0x20] sm:$0xf]
  %v49 = vld [vmem:[%s0 + $0x24] sm:$0xf]
  %v50 = vld [vmem:[%s0 + $0x28] sm:$0xf]
  %v51 = vld [vmem:[%s0 + $0x2c] sm:$0xf]
  %v52 = vld [vmem:[%s0 + $0x30] sm:$0xf]
  %v53 = vld [vmem:[%s0 + $0x34] sm:$0xf]
  %v54 = vld [vmem:[%s0 + $0x38] sm:$0xf]
  %v55 = vld [vmem:[%s0 + $0x3c] sm:$0xf]
  %v56 = vld [vmem:[%s0 + $0x40] sm:$0xf]
  %v57 = vld [vmem:[%s0 + $0x44] sm:$0xf]
  %v58 = vld [vmem:[%s0 + $0x48] sm:$0xf]
  %v59 = vld [vmem:[%s0 + $0x4c] sm:$0xf]
  %v60 = vld [vmem:[%s0 + $0x50] sm:$0xf]
  %v61 = vld [vmem:[%s0 + $0x54] sm:$0xf]
  %v62 = vld [vmem:[%s0 + $0x58] sm:$0xf]
  %v63 = vld [vmem:[%s0 + $0x5c] sm:$0xf]
  %v64 = vld [vmem:[%s0 + $0x60] sm:$0xf]
  %v65 = vld [vmem:[%s0 + $0x64] sm:$0xf]
  %v66 = vld [vmem:[%s0 + $0x68] sm:$0xf]
  %v67 = vld [vmem:[%s0 + $0x6c] sm:$0xf]
  %v68 = vld [vmem:[%s0 + $0x70] sm:$0xf]
  %v69 = vld [vmem:[%s0 + $0x74] sm:$0xf]
  %v70 = vld [vmem:[%s0 + $0x78] sm:$0xf]
  %v71 = vld [vmem:[%s0 + $0x7c] sm:$0xf]
  %v72 = vld [vmem:[%s1] sm:$0xf]
  %v73 = vld [vmem:[%s1 + $0x4] sm:$0xf]
  %v74 = vld [vmem:[%s1 + $0x8] sm:$0xf]
  %v75 = vld [vmem:[%s1 + $0xc] sm:$0xf]
  %v76 = vld [vmem:[%s1 + $0x10] sm:$0xf]
  %v77 = vld [vmem:[%s1 + $0x14] sm:$0xf]
  %v78 = vld [vmem:[%s1 + $0x18] sm:$0xf]
  %v79 = vld [vmem:[%s1 + $0x1c] sm:$0xf]
  %v80 = vld [vmem:[%s1 + $0x20] sm:$0xf]
  %v81 = vld [vmem:[%s1 + $0x24] sm:$0xf]
  %v82 = vld [vmem:[%s1 + $0x28] sm:$0xf]
  %v83 = vld [vmem:[%s1 + $0x2c] sm:$0xf]
  %v84 = vld [vmem:[%s1 + $0x30] sm:$0xf]
  %v85 = vld [vmem:[%s1 + $0x34] sm:$0xf]
  %v86 = vld [vmem:[%s1 + $0x38] sm:$0xf]
  %v87 = vld [vmem:[%s1 + $0x3c] sm:$0xf]
  %v88 = vlaneseq
  %v89 = vshrl.u32 %v88, 7
  %v90 = vsub.s32 0, %v89
  %v91 = vrot.slane %v39, %v90
  %v124 = vunpack.c.l.b16 %v40
  %v125 = vunpack.c.l.b16 %v41
  %v126 = vunpack.c.l.b16 %v42
  %v127 = vunpack.c.l.b16 %v43
  %v128 = vunpack.c.l.b16 %v44
  %v129 = vunpack.c.l.b16 %v45
  %v130 = vunpack.c.l.b16 %v46
  %v131 = vunpack.c.l.b16 %v47
  %v132 = vunpack.c.l.b16 %v48
  %v133 = vunpack.c.l.b16 %v49
  %v134 = vunpack.c.l.b16 %v50
  %v135 = vunpack.c.l.b16 %v51
  %v136 = vunpack.c.l.b16 %v52
  %v137 = vunpack.c.l.b16 %v53
  %v138 = vunpack.c.l.b16 %v54
  %v139 = vunpack.c.l.b16 %v55
  %v140 = vunpack.c.l.b16 %v56
  %v141 = vunpack.c.l.b16 %v57
  %v142 = vunpack.c.l.b16 %v58
  %v143 = vunpack.c.l.b16 %v59
  %v144 = vunpack.c.l.b16 %v60
  %v145 = vunpack.c.l.b16 %v61
  %v146 = vunpack.c.l.b16 %v62
  %v147 = vunpack.c.l.b16 %v63
  %v148 = vunpack.c.l.b16 %v64
  %v149 = vunpack.c.l.b16 %v65
  %v150 = vunpack.c.l.b16 %v66
  %v151 = vunpack.c.l.b16 %v67
  %v152 = vunpack.c.l.b16 %v68
  %v153 = vunpack.c.l.b16 %v69
  %v154 = vunpack.c.l.b16 %v70
  %v155 = vunpack.c.l.b16 %v71
  %v156 = vpack.c.b16 %v125, %v124
  %v157 = vpack.c.b16 %v127, %v126
  %v158 = vpack.c.b16 %v129, %v128
  %v159 = vpack.c.b16 %v131, %v130
  %v160 = vpack.c.b16 %v133, %v132
  %v161 = vpack.c.b16 %v135, %v134
  %v162 = vpack.c.b16 %v137, %v136
  %v163 = vpack.c.b16 %v139, %v138
  %v164 = vpack.c.b16 %v141, %v140
  %v165 = vpack.c.b16 %v143, %v142
  %v166 = vpack.c.b16 %v145, %v144
  %v167 = vpack.c.b16 %v147, %v146
  %v168 = vpack.c.b16 %v149, %v148
  %v169 = vpack.c.b16 %v151, %v150
  %v170 = vpack.c.b16 %v153, %v152
  %v171 = vpack.c.b16 %v155, %v154
  %v204 = vunpack.c.l.b16 %v72
  %v205 = vunpack.c.l.b16 %v73
  %v206 = vunpack.c.l.b16 %v74
  %v207 = vunpack.c.l.b16 %v75
  %v208 = vunpack.c.l.b16 %v76
  %v209 = vunpack.c.l.b16 %v77
  %v210 = vunpack.c.l.b16 %v78
  %v211 = vunpack.c.l.b16 %v79
  %v212 = vunpack.c.l.b16 %v80
  %v213 = vunpack.c.l.b16 %v81
  %v214 = vunpack.c.l.b16 %v82
  %v215 = vunpack.c.l.b16 %v83
  %v216 = vunpack.c.l.b16 %v84
  %v217 = vunpack.c.l.b16 %v85
  %v218 = vunpack.c.l.b16 %v86
  %v219 = vunpack.c.l.b16 %v87
  %v220 = vpack.c.b16 %v205, %v204
  %v221 = vpack.c.b16 %v207, %v206
  %v222 = vpack.c.b16 %v209, %v208
  %v223 = vpack.c.b16 %v211, %v210
  %v224 = vpack.c.b16 %v213, %v212
  %v225 = vpack.c.b16 %v215, %v214
  %v226 = vpack.c.b16 %v217, %v216
  %v227 = vpack.c.b16 %v219, %v218
  %236 = vmatprep.subr.bf16.mxu0 0
  %237 = vmatpush1.bf16.msra.mxu0 %v220
  %238 = vmatprep.subr.bf16.mxu0 0
  %239 = vmatpush1.bf16.msra.mxu0 %v221
  %240 = vmatprep.subr.bf16.mxu0 0
  %241 = vmatpush1.bf16.msra.mxu0 %v222
  %242 = vmatprep.subr.bf16.mxu0 0
  %243 = vmatpush1.bf16.msra.mxu0 %v223
  %244 = vmatprep.subr.bf16.mxu0 0
  %245 = vmatpush1.bf16.msra.mxu0 %v224
  %246 = vmatprep.subr.bf16.mxu0 0
  %247 = vmatpush1.bf16.msra.mxu0 %v225
  %248 = vmatprep.subr.bf16.mxu0 0
  %249 = vmatpush1.bf16.msra.mxu0 %v226
  %250 = vmatprep.subr.bf16.mxu0 0
  %251 = vmatpush1.bf16.msra.mxu0 %v227
  %252 = vmatprep.subr.bf16.mxu0 0
  %253 = vmatpush1.bf16.msra.mxu0 0
  %254 = vmatprep.subr.bf16.mxu0 0
  %255 = vmatpush1.bf16.msra.mxu0 0
  %256 = vmatprep.subr.bf16.mxu0 0
  %257 = vmatpush1.bf16.msra.mxu0 0
  %258 = vmatprep.subr.bf16.mxu0 0
  %259 = vmatpush1.bf16.msra.mxu0 0
  %260 = vmatprep.subr.bf16.mxu0 0
  %261 = vmatpush1.bf16.msra.mxu0 0
  %262 = vmatprep.subr.bf16.mxu0 0
  %263 = vmatpush1.bf16.msra.mxu0 0
  %264 = vmatprep.subr.bf16.mxu0 0
  %265 = vmatpush1.bf16.msra.mxu0 0
  %266 = vmatprep.subr.bf16.mxu0 0
  %267 = vmatpush1.bf16.msra.mxu0 0
  %268 = vmatprep.mubr.bf16.mxu0 0
  %269 = vmatmul.mubr.bf16.gmra.mrb[0].mxu0 %v156
  %v270 = vpop.f32.mrb[0].mxu0
  %v271 = vadd.f32 %v91, %v270
  %v272 = vpop.f32.mrb[0].mxu0
  %v273 = vpop.f32.mrb[0].mxu0
  %v274 = vadd.f32 %v91, %v273
  %v275 = vpop.f32.mrb[0].mxu0
  %276 = vmatprep.mubr.bf16.mxu0 0
  %277 = vmatmul.mubr.bf16.gmra.mrb[0].mxu0 %v157
  %v278 = vpop.f32.mrb[0].mxu0
  %v279 = vadd.f32 %v91, %v278
  %v280 = vpop.f32.mrb[0].mxu0
  %v281 = vpop.f32.mrb[0].mxu0
  %v282 = vadd.f32 %v91, %v281
  %v283 = vpop.f32.mrb[0].mxu0
  %284 = vmatprep.mubr.bf16.mxu0 0
  %285 = vmatmul.mubr.bf16.gmra.mrb[0].mxu0 %v158
  %v286 = vpop.f32.mrb[0].mxu0
  %v287 = vadd.f32 %v91, %v286
  %v288 = vpop.f32.mrb[0].mxu0
  %v289 = vpop.f32.mrb[0].mxu0
  %v290 = vadd.f32 %v91, %v289
  %v291 = vpop.f32.mrb[0].mxu0
  %292 = vmatprep.mubr.bf16.mxu0 0
  %293 = vmatmul.mubr.bf16.gmra.mrb[0].mxu0 %v159
  %v294 = vpop.f32.mrb[0].mxu0
  %v295 = vadd.f32 %v91, %v294
  %v296 = vpop.f32.mrb[0].mxu0
  %v297 = vpop.f32.mrb[0].mxu0
  %v298 = vadd.f32 %v91, %v297
  %v299 = vpop.f32.mrb[0].mxu0
  %300 = vmatprep.mubr.bf16.mxu0 0
  %301 = vmatmul.mubr.bf16.gmra.mrb[0].mxu0 %v160
  %v302 = vpop.f32.mrb[0].mxu0
  %v303 = vadd.f32 %v91, %v302
  %v304 = vpop.f32.mrb[0].mxu0
  %v305 = vpop.f32.mrb[0].mxu0
  %v306 = vadd.f32 %v91, %v305
  %v307 = vpop.f32.mrb[0].mxu0
  %308 = vmatprep.mubr.bf16.mxu0 0
  %309 = vmatmul.mubr.bf16.gmra.mrb[0].mxu0 %v161
  %v310 = vpop.f32.mrb[0].mxu0
  %v311 = vadd.f32 %v91, %v310
  %v312 = vpop.f32.mrb[0].mxu0
  %v313 = vpop.f32.mrb[0].mxu0
  %v314 = vadd.f32 %v91, %v313
  %v315 = vpop.f32.mrb[0].mxu0
  %316 = vmatprep.mubr.bf16.mxu0 0
  %317 = vmatmul.mubr.bf16.gmra.mrb[0].mxu0 %v162
  %v318 = vpop.f32.mrb[0].mxu0
  %v319 = vadd.f32 %v91, %v318
  %v320 = vpop.f32.mrb[0].mxu0
  %v321 = vpop.f32.mrb[0].mxu0
  %v322 = vadd.f32 %v91, %v321
  %v323 = vpop.f32.mrb[0].mxu0
  %324 = vmatprep.mubr.bf16.mxu0 0
  %325 = vmatmul.mubr.bf16.gmra.mrb[0].mxu0 %v163
  %v326 = vpop.f32.mrb[0].mxu0
  %v327 = vadd.f32 %v91, %v326
  %v328 = vpop.f32.mrb[0].mxu0
  %v329 = vpop.f32.mrb[0].mxu0
  %v330 = vadd.f32 %v91, %v329
  %v331 = vpop.f32.mrb[0].mxu0
  %332 = vmatprep.mubr.bf16.mxu0 0
  %333 = vmatmul.mubr.bf16.gmra.mrb[0].mxu0 %v164
  %v334 = vpop.f32.mrb[0].mxu0
  %v335 = vadd.f32 %v91, %v334
  %v336 = vpop.f32.mrb[0].mxu0
  %v337 = vpop.f32.mrb[0].mxu0
  %v338 = vadd.f32 %v91, %v337
  %v339 = vpop.f32.mrb[0].mxu0
  %340 = vmatprep.mubr.bf16.mxu0 0
  %341 = vmatmul.mubr.bf16.gmra.mrb[0].mxu0 %v165
  %v342 = vpop.f32.mrb[0].mxu0
  %v343 = vadd.f32 %v91, %v342
  %v344 = vpop.f32.mrb[0].mxu0
  %v345 = vpop.f32.mrb[0].mxu0
  %v346 = vadd.f32 %v91, %v345
  %v347 = vpop.f32.mrb[0].mxu0
  %348 = vmatprep.mubr.bf16.mxu0 0
  %349 = vmatmul.mubr.bf16.gmra.mrb[0].mxu0 %v166
  %v350 = vpop.f32.mrb[0].mxu0
  %v351 = vadd.f32 %v91, %v350
  %v352 = vpop.f32.mrb[0].mxu0
  %v353 = vpop.f32.mrb[0].mxu0
  %v354 = vadd.f32 %v91, %v353
  %v355 = vpop.f32.mrb[0].mxu0
  %356 = vmatprep.mubr.bf16.mxu0 0
  %357 = vmatmul.mubr.bf16.gmra.mrb[0].mxu0 %v167
  %v358 = vpop.f32.mrb[0].mxu0
  %v359 = vadd.f32 %v91, %v358
  %v360 = vpop.f32.mrb[0].mxu0
  %v361 = vpop.f32.mrb[0].mxu0
  %v362 = vadd.f32 %v91, %v361
  %v363 = vpop.f32.mrb[0].mxu0
  %364 = vmatprep.mubr.bf16.mxu0 0
  %365 = vmatmul.mubr.bf16.gmra.mrb[0].mxu0 %v168
  %v366 = vpop.f32.mrb[0].mxu0
  %v367 = vadd.f32 %v91, %v366
  %v368 = vpop.f32.mrb[0].mxu0
  %v369 = vpop.f32.mrb[0].mxu0
  %v370 = vadd.f32 %v91, %v369
  %v371 = vpop.f32.mrb[0].mxu0
  %372 = vmatprep.mubr.bf16.mxu0 0
  %373 = vmatmul.mubr.bf16.gmra.mrb[0].mxu0 %v169
  %v374 = vpop.f32.mrb[0].mxu0
  %v375 = vadd.f32 %v91, %v374
  %v376 = vpop.f32.mrb[0].mxu0
  %v377 = vpop.f32.mrb[0].mxu0
  %v378 = vadd.f32 %v91, %v377
  %v379 = vpop.f32.mrb[0].mxu0
  %380 = vmatprep.mubr.bf16.mxu0 0
  %381 = vmatmul.mubr.bf16.gmra.mrb[0].mxu0 %v170
  %v382 = vpop.f32.mrb[0].mxu0
  %v383 = vadd.f32 %v91, %v382
  %v384 = vpop.f32.mrb[0].mxu0
  %v385 = vpop.f32.mrb[0].mxu0
  %v386 = vadd.f32 %v91, %v385
  %v387 = vpop.f32.mrb[0].mxu0
  %388 = vmatprep.mubr.bf16.mxu0 0
  %389 = vmatmul.mubr.bf16.gmra.mrb[0].mxu0 %v171
  %v390 = vpop.f32.mrb[0].mxu0
  %v391 = vadd.f32 %v91, %v390
  %v392 = vpop.f32.mrb[0].mxu0
  %v393 = vpop.f32.mrb[0].mxu0
  %v394 = vadd.f32 %v91, %v393
  %v395 = vpop.f32.mrb[0].mxu0
  %396 = vdwg.mxu0
  %vm397 = vcmp.ge.f32.partialorder %v271, 0.0
  %vm398 = vcmp.ge.f32.partialorder %v274, 0.0
  %vm399 = vcmp.ge.f32.partialorder %v279, 0.0
  %vm400 = vcmp.ge.f32.partialorder %v282, 0.0
  %vm401 = vcmp.ge.f32.partialorder %v287, 0.0
  %vm402 = vcmp.ge.f32.partialorder %v290, 0.0
  %vm403 = vcmp.ge.f32.partialorder %v295, 0.0
  %vm404 = vcmp.ge.f32.partialorder %v298, 0.0
  %vm405 = vcmp.ge.f32.partialorder %v303, 0.0
  %vm406 = vcmp.ge.f32.partialorder %v306, 0.0
  %vm407 = vcmp.ge.f32.partialorder %v311, 0.0
  %vm408 = vcmp.ge.f32.partialorder %v314, 0.0
  %vm409 = vcmp.ge.f32.partialorder %v319, 0.0
  %vm410 = vcmp.ge.f32.partialorder %v322, 0.0
  %vm411 = vcmp.ge.f32.partialorder %v327, 0.0
  %vm412 = vcmp.ge.f32.partialorder %v330, 0.0
  %vm413 = vcmp.ge.f32.partialorder %v335, 0.0
  %vm414 = vcmp.ge.f32.partialorder %v338, 0.0
  %vm415 = vcmp.ge.f32.partialorder %v343, 0.0
  %vm416 = vcmp.ge.f32.partialorder %v346, 0.0
  %vm417 = vcmp.ge.f32.partialorder %v351, 0.0
  %vm418 = vcmp.ge.f32.partialorder %v354, 0.0
  %vm419 = vcmp.ge.f32.partialorder %v359, 0.0
  %vm420 = vcmp.ge.f32.partialorder %v362, 0.0
  %vm421 = vcmp.ge.f32.partialorder %v367, 0.0
  %vm422 = vcmp.ge.f32.partialorder %v370, 0.0
  %vm423 = vcmp.ge.f32.partialorder %v375, 0.0
  %vm424 = vcmp.ge.f32.partialorder %v378, 0.0
  %vm425 = vcmp.ge.f32.partialorder %v383, 0.0
  %vm426 = vcmp.ge.f32.partialorder %v386, 0.0
  %vm427 = vcmp.ge.f32.partialorder %v391, 0.0
  %vm428 = vcmp.ge.f32.partialorder %v394, 0.0
  %v429 = vmul.f32 %v271, 0.2
  %v430 = vmul.f32 %v274, 0.2
  %v431 = vmul.f32 %v279, 0.2
  %v432 = vmul.f32 %v282, 0.2
  %v433 = vmul.f32 %v287, 0.2
  %v434 = vmul.f32 %v290, 0.2
  %v435 = vmul.f32 %v295, 0.2
  %v436 = vmul.f32 %v298, 0.2
  %v437 = vmul.f32 %v303, 0.2
  %v438 = vmul.f32 %v306, 0.2
  %v439 = vmul.f32 %v311, 0.2
  %v440 = vmul.f32 %v314, 0.2
  %v441 = vmul.f32 %v319, 0.2
  %v442 = vmul.f32 %v322, 0.2
  %v443 = vmul.f32 %v327, 0.2
  %v444 = vmul.f32 %v330, 0.2
  %v445 = vmul.f32 %v335, 0.2
  %v446 = vmul.f32 %v338, 0.2
  %v447 = vmul.f32 %v343, 0.2
  %v448 = vmul.f32 %v346, 0.2
  %v449 = vmul.f32 %v351, 0.2
  %v450 = vmul.f32 %v354, 0.2
  %v451 = vmul.f32 %v359, 0.2
  %v452 = vmul.f32 %v362, 0.2
  %v453 = vmul.f32 %v367, 0.2
  %v454 = vmul.f32 %v370, 0.2
  %v455 = vmul.f32 %v375, 0.2
  %v456 = vmul.f32 %v378, 0.2
  %v457 = vmul.f32 %v383, 0.2
  %v458 = vmul.f32 %v386, 0.2
  %v459 = vmul.f32 %v391, 0.2
  %v460 = vmul.f32 %v394, 0.2
  %v461 = vsel %vm397, %v271, %v429
  %v462 = vsel %vm398, %v274, %v430
  %v463 = vsel %vm399, %v279, %v431
  %v464 = vsel %vm400, %v282, %v432
  %v465 = vsel %vm401, %v287, %v433
  %v466 = vsel %vm402, %v290, %v434
  %v467 = vsel %vm403, %v295, %v435
  %v468 = vsel %vm404, %v298, %v436
  %v469 = vsel %vm405, %v303, %v437
  %v470 = vsel %vm406, %v306, %v438
  %v471 = vsel %vm407, %v311, %v439
  %v472 = vsel %vm408, %v314, %v440
  %v473 = vsel %vm409, %v319, %v441
  %v474 = vsel %vm410, %v322, %v442
  %v475 = vsel %vm411, %v327, %v443
  %v476 = vsel %vm412, %v330, %v444
  %v477 = vsel %vm413, %v335, %v445
  %v478 = vsel %vm414, %v338, %v446
  %v479 = vsel %vm415, %v343, %v447
  %v480 = vsel %vm416, %v346, %v448
  %v481 = vsel %vm417, %v351, %v449
  %v482 = vsel %vm418, %v354, %v450
  %v483 = vsel %vm419, %v359, %v451
  %v484 = vsel %vm420, %v362, %v452
  %v485 = vsel %vm421, %v367, %v453
  %v486 = vsel %vm422, %v370, %v454
  %v487 = vsel %vm423, %v375, %v455
  %v488 = vsel %vm424, %v378, %v456
  %v489 = vsel %vm425, %v383, %v457
  %v490 = vsel %vm426, %v386, %v458
  %v491 = vsel %vm427, %v391, %v459
  %v492 = vsel %vm428, %v394, %v460
  %v493 = vpack.c.bf16 %v462, %v461
  %v494 = vpack.c.bf16 %v464, %v463
  %v495 = vpack.c.bf16 %v466, %v465
  %v496 = vpack.c.bf16 %v468, %v467
  %v497 = vpack.c.bf16 %v470, %v469
  %v498 = vpack.c.bf16 %v472, %v471
  %v499 = vpack.c.bf16 %v474, %v473
  %v500 = vpack.c.bf16 %v476, %v475
  %v501 = vpack.c.bf16 %v478, %v477
  %v502 = vpack.c.bf16 %v480, %v479
  %v503 = vpack.c.bf16 %v482, %v481
  %v504 = vpack.c.bf16 %v484, %v483
  %v505 = vpack.c.bf16 %v486, %v485
  %v506 = vpack.c.bf16 %v488, %v487
  %v507 = vpack.c.bf16 %v490, %v489
  %v508 = vpack.c.bf16 %v492, %v491
  %v509 = vld [vmem:[%s4] sm:$0xff]
  %v510 = vld [vmem:[%s4 + $0x8] sm:$0xff]
  %v511 = vld [vmem:[%s4 + $0x10] sm:$0xff]
  %v512 = vld [vmem:[%s4 + $0x18] sm:$0xff]
  %v517 = vunpack.c.l.b16 %v509
  %v518 = vunpack.c.h.b16 %v509
  %v519 = vunpack.c.l.b16 %v510
  %v520 = vunpack.c.h.b16 %v510
  %v521 = vunpack.c.l.b16 %v511
  %v522 = vunpack.c.h.b16 %v511
  %v523 = vunpack.c.l.b16 %v512
  %v524 = vunpack.c.h.b16 %v512
  %v525 = vpack.c.b16 %v521, %v517
  %v526 = vpack.c.b16 %v522, %v518
  %v527 = vpack.c.b16 %v523, %v519
  %v528 = vpack.c.b16 %v524, %v520
  %vm533 = vcmask 130048
  %v535 = vsel %vm533, %v493, 0
  %v538 = vsel %vm533, %v494, 0
  %v541 = vsel %vm533, %v495, 0
  %v544 = vsel %vm533, %v496, 0
  %v547 = vsel %vm533, %v497, 0
  %v550 = vsel %vm533, %v498, 0
  %v553 = vsel %vm533, %v499, 0
  %v556 = vsel %vm533, %v500, 0
  %v559 = vsel %vm533, %v501, 0
  %v562 = vsel %vm533, %v502, 0
  %v565 = vsel %vm533, %v503, 0
  %v568 = vsel %vm533, %v504, 0
  %v571 = vsel %vm533, %v505, 0
  %v574 = vsel %vm533, %v506, 0
  %v577 = vsel %vm533, %v507, 0
  %v580 = vsel %vm533, %v508, 0
  %582 = vmatprep.subr.bf16.mxu0 %v526
  %583 = vmatpush1.bf16.msra.mxu0 %v525
  %584 = vmatprep.subr.bf16.mxu0 0
  %585 = vmatpush1.bf16.msra.mxu0 0
  %586 = vmatprep.subr.bf16.mxu0 0
  %587 = vmatpush1.bf16.msra.mxu0 0
  %588 = vmatprep.subr.bf16.mxu0 0
  %589 = vmatpush1.bf16.msra.mxu0 0
  %590 = vmatprep.subr.bf16.mxu0 0
  %591 = vmatpush1.bf16.msra.mxu0 0
  %592 = vmatprep.subr.bf16.mxu0 0
  %593 = vmatpush1.bf16.msra.mxu0 0
  %594 = vmatprep.subr.bf16.mxu0 0
  %595 = vmatpush1.bf16.msra.mxu0 0
  %596 = vmatprep.subr.bf16.mxu0 0
  %597 = vmatpush1.bf16.msra.mxu0 0
  %598 = vmatprep.subr.bf16.mxu0 0
  %599 = vmatpush1.bf16.msra.mxu0 0
  %600 = vmatprep.subr.bf16.mxu0 0
  %601 = vmatpush1.bf16.msra.mxu0 0
  %602 = vmatprep.subr.bf16.mxu0 0
  %603 = vmatpush1.bf16.msra.mxu0 0
  %604 = vmatprep.subr.bf16.mxu0 0
  %605 = vmatpush1.bf16.msra.mxu0 0
  %606 = vmatprep.subr.bf16.mxu0 0
  %607 = vmatpush1.bf16.msra.mxu0 0
  %608 = vmatprep.subr.bf16.mxu0 0
  %609 = vmatpush1.bf16.msra.mxu0 0
  %610 = vmatprep.subr.bf16.mxu0 0
  %611 = vmatpush1.bf16.msra.mxu0 0
  %612 = vmatprep.subr.bf16.mxu0 0
  %613 = vmatpush1.bf16.msra.mxu0 0
  %614 = vmatprep.mubr.bf16.mxu0 0
  %615 = vmatmul.mubr.bf16.gmra.mrb[0].mxu0 %v535
  %v616 = vpop.f32.mrb[0].mxu0
  %v617 = vadd.f32 0.0, %v616
  %v618 = vpop.f32.mrb[0].mxu0
  %v619 = vadd.f32 0.0, %v618
  %v620 = vpop.f32.mrb[0].mxu0
  %v621 = vadd.f32 0.0, %v620
  %v622 = vpop.f32.mrb[0].mxu0
  %v623 = vadd.f32 0.0, %v622
  %624 = vmatprep.mubr.bf16.mxu0 0
  %625 = vmatmul.mubr.bf16.gmra.mrb[0].mxu0 %v538
  %v626 = vpop.f32.mrb[0].mxu0
  %v627 = vadd.f32 0.0, %v626
  %v628 = vpop.f32.mrb[0].mxu0
  %v629 = vadd.f32 0.0, %v628
  %v630 = vpop.f32.mrb[0].mxu0
  %v631 = vadd.f32 0.0, %v630
  %v632 = vpop.f32.mrb[0].mxu0
  %v633 = vadd.f32 0.0, %v632
  %634 = vmatprep.mubr.bf16.mxu0 0
  %635 = vmatmul.mubr.bf16.gmra.mrb[0].mxu0 %v541
  %v636 = vpop.f32.mrb[0].mxu0
  %v637 = vadd.f32 0.0, %v636
  %v638 = vpop.f32.mrb[0].mxu0
  %v639 = vadd.f32 0.0, %v638
  %v640 = vpop.f32.mrb[0].mxu0
  %v641 = vadd.f32 0.0, %v640
  %v642 = vpop.f32.mrb[0].mxu0
  %v643 = vadd.f32 0.0, %v642
  %644 = vmatprep.mubr.bf16.mxu0 0
  %645 = vmatmul.mubr.bf16.gmra.mrb[0].mxu0 %v544
  %v646 = vpop.f32.mrb[0].mxu0
  %v647 = vadd.f32 0.0, %v646
  %v648 = vpop.f32.mrb[0].mxu0
  %v649 = vadd.f32 0.0, %v648
  %v650 = vpop.f32.mrb[0].mxu0
  %v651 = vadd.f32 0.0, %v650
  %v652 = vpop.f32.mrb[0].mxu0
  %v653 = vadd.f32 0.0, %v652
  %654 = vmatprep.mubr.bf16.mxu0 0
  %655 = vmatmul.mubr.bf16.gmra.mrb[0].mxu0 %v547
  %v656 = vpop.f32.mrb[0].mxu0
  %v657 = vadd.f32 0.0, %v656
  %v658 = vpop.f32.mrb[0].mxu0
  %v659 = vadd.f32 0.0, %v658
  %v660 = vpop.f32.mrb[0].mxu0
  %v661 = vadd.f32 0.0, %v660
  %v662 = vpop.f32.mrb[0].mxu0
  %v663 = vadd.f32 0.0, %v662
  %664 = vmatprep.mubr.bf16.mxu0 0
  %665 = vmatmul.mubr.bf16.gmra.mrb[0].mxu0 %v550
  %v666 = vpop.f32.mrb[0].mxu0
  %v667 = vadd.f32 0.0, %v666
  %v668 = vpop.f32.mrb[0].mxu0
  %v669 = vadd.f32 0.0, %v668
  %v670 = vpop.f32.mrb[0].mxu0
  %v671 = vadd.f32 0.0, %v670
  %v672 = vpop.f32.mrb[0].mxu0
  %v673 = vadd.f32 0.0, %v672
  %674 = vmatprep.mubr.bf16.mxu0 0
  %675 = vmatmul.mubr.bf16.gmra.mrb[0].mxu0 %v553
  %v676 = vpop.f32.mrb[0].mxu0
  %v677 = vadd.f32 0.0, %v676
  %v678 = vpop.f32.mrb[0].mxu0
  %v679 = vadd.f32 0.0, %v678
  %v680 = vpop.f32.mrb[0].mxu0
  %v681 = vadd.f32 0.0, %v680
  %v682 = vpop.f32.mrb[0].mxu0
  %v683 = vadd.f32 0.0, %v682
  %684 = vmatprep.mubr.bf16.mxu0 0
  %685 = vmatmul.mubr.bf16.gmra.mrb[0].mxu0 %v556
  %v686 = vpop.f32.mrb[0].mxu0
  %v687 = vadd.f32 0.0, %v686
  %v688 = vpop.f32.mrb[0].mxu0
  %v689 = vadd.f32 0.0, %v688
  %v690 = vpop.f32.mrb[0].mxu0
  %v691 = vadd.f32 0.0, %v690
  %v692 = vpop.f32.mrb[0].mxu0
  %v693 = vadd.f32 0.0, %v692
  %694 = vmatprep.mubr.bf16.mxu0 0
  %695 = vmatmul.mubr.bf16.gmra.mrb[0].mxu0 %v559
  %v696 = vpop.f32.mrb[0].mxu0
  %v697 = vadd.f32 0.0, %v696
  %v698 = vpop.f32.mrb[0].mxu0
  %v699 = vadd.f32 0.0, %v698
  %v700 = vpop.f32.mrb[0].mxu0
  %v701 = vadd.f32 0.0, %v700
  %v702 = vpop.f32.mrb[0].mxu0
  %v703 = vadd.f32 0.0, %v702
  %704 = vmatprep.mubr.bf16.mxu0 0
  %705 = vmatmul.mubr.bf16.gmra.mrb[0].mxu0 %v562
  %v706 = vpop.f32.mrb[0].mxu0
  %v707 = vadd.f32 0.0, %v706
  %v708 = vpop.f32.mrb[0].mxu0
  %v709 = vadd.f32 0.0, %v708
  %v710 = vpop.f32.mrb[0].mxu0
  %v711 = vadd.f32 0.0, %v710
  %v712 = vpop.f32.mrb[0].mxu0
  %v713 = vadd.f32 0.0, %v712
  %714 = vmatprep.mubr.bf16.mxu0 0
  %715 = vmatmul.mubr.bf16.gmra.mrb[0].mxu0 %v565
  %v716 = vpop.f32.mrb[0].mxu0
  %v717 = vadd.f32 0.0, %v716
  %v718 = vpop.f32.mrb[0].mxu0
  %v719 = vadd.f32 0.0, %v718
  %v720 = vpop.f32.mrb[0].mxu0
  %v721 = vadd.f32 0.0, %v720
  %v722 = vpop.f32.mrb[0].mxu0
  %v723 = vadd.f32 0.0, %v722
  %724 = vmatprep.mubr.bf16.mxu0 0
  %725 = vmatmul.mubr.bf16.gmra.mrb[0].mxu0 %v568
  %v726 = vpop.f32.mrb[0].mxu0
  %v727 = vadd.f32 0.0, %v726
  %v728 = vpop.f32.mrb[0].mxu0
  %v729 = vadd.f32 0.0, %v728
  %v730 = vpop.f32.mrb[0].mxu0
  %v731 = vadd.f32 0.0, %v730
  %v732 = vpop.f32.mrb[0].mxu0
  %v733 = vadd.f32 0.0, %v732
  %734 = vmatprep.mubr.bf16.mxu0 0
  %735 = vmatmul.mubr.bf16.gmra.mrb[0].mxu0 %v571
  %v736 = vpop.f32.mrb[0].mxu0
  %v737 = vadd.f32 0.0, %v736
  %v738 = vpop.f32.mrb[0].mxu0
  %v739 = vadd.f32 0.0, %v738
  %v740 = vpop.f32.mrb[0].mxu0
  %v741 = vadd.f32 0.0, %v740
  %v742 = vpop.f32.mrb[0].mxu0
  %v743 = vadd.f32 0.0, %v742
  %744 = vmatprep.mubr.bf16.mxu0 0
  %745 = vmatmul.mubr.bf16.gmra.mrb[0].mxu0 %v574
  %v746 = vpop.f32.mrb[0].mxu0
  %v747 = vadd.f32 0.0, %v746
  %v748 = vpop.f32.mrb[0].mxu0
  %v749 = vadd.f32 0.0, %v748
  %v750 = vpop.f32.mrb[0].mxu0
  %v751 = vadd.f32 0.0, %v750
  %v752 = vpop.f32.mrb[0].mxu0
  %v753 = vadd.f32 0.0, %v752
  %754 = vmatprep.mubr.bf16.mxu0 0
  %755 = vmatmul.mubr.bf16.gmra.mrb[0].mxu0 %v577
  %v756 = vpop.f32.mrb[0].mxu0
  %v757 = vadd.f32 0.0, %v756
  %v758 = vpop.f32.mrb[0].mxu0
  %v759 = vadd.f32 0.0, %v758
  %v760 = vpop.f32.mrb[0].mxu0
  %v761 = vadd.f32 0.0, %v760
  %v762 = vpop.f32.mrb[0].mxu0
  %v763 = vadd.f32 0.0, %v762
  %764 = vmatprep.mubr.bf16.mxu0 0
  %765 = vmatmul.mubr.bf16.gmra.mrb[0].mxu0 %v580
  %v766 = vpop.f32.mrb[0].mxu0
  %v767 = vadd.f32 0.0, %v766
  %v768 = vpop.f32.mrb[0].mxu0
  %v769 = vadd.f32 0.0, %v768
  %v770 = vpop.f32.mrb[0].mxu0
  %v771 = vadd.f32 0.0, %v770
  %v772 = vpop.f32.mrb[0].mxu0
  %v773 = vadd.f32 0.0, %v772
  %774 = vdwg.mxu0
  %775 = vmatprep.subr.bf16.mxu0 %v528
  %776 = vmatpush1.bf16.msra.mxu0 %v527
  %777 = vmatprep.subr.bf16.mxu0 0
  %778 = vmatpush1.bf16.msra.mxu0 0
  %779 = vmatprep.subr.bf16.mxu0 0
  %780 = vmatpush1.bf16.msra.mxu0 0
  %781 = vmatprep.subr.bf16.mxu0 0
  %782 = vmatpush1.bf16.msra.mxu0 0
  %783 = vmatprep.subr.bf16.mxu0 0
  %784 = vmatpush1.bf16.msra.mxu0 0
  %785 = vmatprep.subr.bf16.mxu0 0
  %786 = vmatpush1.bf16.msra.mxu0 0
  %787 = vmatprep.subr.bf16.mxu0 0
  %788 = vmatpush1.bf16.msra.mxu0 0
  %789 = vmatprep.subr.bf16.mxu0 0
  %790 = vmatpush1.bf16.msra.mxu0 0
  %791 = vmatprep.subr.bf16.mxu0 0
  %792 = vmatpush1.bf16.msra.mxu0 0
  %793 = vmatprep.subr.bf16.mxu0 0
  %794 = vmatpush1.bf16.msra.mxu0 0
  %795 = vmatprep.subr.bf16.mxu0 0
  %796 = vmatpush1.bf16.msra.mxu0 0
  %797 = vmatprep.subr.bf16.mxu0 0
  %798 = vmatpush1.bf16.msra.mxu0 0
  %799 = vmatprep.subr.bf16.mxu0 0
  %800 = vmatpush1.bf16.msra.mxu0 0
  %801 = vmatprep.subr.bf16.mxu0 0
  %802 = vmatpush1.bf16.msra.mxu0 0
  %803 = vmatprep.subr.bf16.mxu0 0
  %804 = vmatpush1.bf16.msra.mxu0 0
  %805 = vmatprep.subr.bf16.mxu0 0
  %806 = vmatpush1.bf16.msra.mxu0 0
  %807 = vmatprep.mubr.bf16.mxu0 0
  %808 = vmatmul.mubr.bf16.gmra.mrb[0].mxu0 %v535
  %v809 = vpop.f32.mrb[0].mxu0
  %v810 = vadd.f32 0.0, %v809
  %v811 = vpop.f32.mrb[0].mxu0
  %v812 = vadd.f32 0.0, %v811
  %v813 = vpop.f32.mrb[0].mxu0
  %v814 = vadd.f32 0.0, %v813
  %v815 = vpop.f32.mrb[0].mxu0
  %v816 = vadd.f32 0.0, %v815
  %817 = vmatprep.mubr.bf16.mxu0 0
  %818 = vmatmul.mubr.bf16.gmra.mrb[0].mxu0 %v538
  %v819 = vpop.f32.mrb[0].mxu0
  %v820 = vadd.f32 0.0, %v819
  %v821 = vpop.f32.mrb[0].mxu0
  %v822 = vadd.f32 0.0, %v821
  %v823 = vpop.f32.mrb[0].mxu0
  %v824 = vadd.f32 0.0, %v823
  %v825 = vpop.f32.mrb[0].mxu0
  %v826 = vadd.f32 0.0, %v825
  %827 = vmatprep.mubr.bf16.mxu0 0
  %828 = vmatmul.mubr.bf16.gmra.mrb[0].mxu0 %v541
  %v829 = vpop.f32.mrb[0].mxu0
  %v830 = vadd.f32 0.0, %v829
  %v831 = vpop.f32.mrb[0].mxu0
  %v832 = vadd.f32 0.0, %v831
  %v833 = vpop.f32.mrb[0].mxu0
  %v834 = vadd.f32 0.0, %v833
  %v835 = vpop.f32.mrb[0].mxu0
  %v836 = vadd.f32 0.0, %v835
  %837 = vmatprep.mubr.bf16.mxu0 0
  %838 = vmatmul.mubr.bf16.gmra.mrb[0].mxu0 %v544
  %v839 = vpop.f32.mrb[0].mxu0
  %v840 = vadd.f32 0.0, %v839
  %v841 = vpop.f32.mrb[0].mxu0
  %v842 = vadd.f32 0.0, %v841
  %v843 = vpop.f32.mrb[0].mxu0
  %v844 = vadd.f32 0.0, %v843
  %v845 = vpop.f32.mrb[0].mxu0
  %v846 = vadd.f32 0.0, %v845
  %847 = vmatprep.mubr.bf16.mxu0 0
  %848 = vmatmul.mubr.bf16.gmra.mrb[0].mxu0 %v547
  %v849 = vpop.f32.mrb[0].mxu0
  %v850 = vadd.f32 0.0, %v849
  %v851 = vpop.f32.mrb[0].mxu0
  %v852 = vadd.f32 0.0, %v851
  %v853 = vpop.f32.mrb[0].mxu0
  %v854 = vadd.f32 0.0, %v853
  %v855 = vpop.f32.mrb[0].mxu0
  %v856 = vadd.f32 0.0, %v855
  %857 = vmatprep.mubr.bf16.mxu0 0
  %858 = vmatmul.mubr.bf16.gmra.mrb[0].mxu0 %v550
  %v859 = vpop.f32.mrb[0].mxu0
  %v860 = vadd.f32 0.0, %v859
  %v861 = vpop.f32.mrb[0].mxu0
  %v862 = vadd.f32 0.0, %v861
  %v863 = vpop.f32.mrb[0].mxu0
  %v864 = vadd.f32 0.0, %v863
  %v865 = vpop.f32.mrb[0].mxu0
  %v866 = vadd.f32 0.0, %v865
  %867 = vmatprep.mubr.bf16.mxu0 0
  %868 = vmatmul.mubr.bf16.gmra.mrb[0].mxu0 %v553
  %v869 = vpop.f32.mrb[0].mxu0
  %v870 = vadd.f32 0.0, %v869
  %v871 = vpop.f32.mrb[0].mxu0
  %v872 = vadd.f32 0.0, %v871
  %v873 = vpop.f32.mrb[0].mxu0
  %v874 = vadd.f32 0.0, %v873
  %v875 = vpop.f32.mrb[0].mxu0
  %v876 = vadd.f32 0.0, %v875
  %877 = vmatprep.mubr.bf16.mxu0 0
  %878 = vmatmul.mubr.bf16.gmra.mrb[0].mxu0 %v556
  %v879 = vpop.f32.mrb[0].mxu0
  %v880 = vadd.f32 0.0, %v879
  %v881 = vpop.f32.mrb[0].mxu0
  %v882 = vadd.f32 0.0, %v881
  %v883 = vpop.f32.mrb[0].mxu0
  %v884 = vadd.f32 0.0, %v883
  %v885 = vpop.f32.mrb[0].mxu0
  %v886 = vadd.f32 0.0, %v885
  %887 = vmatprep.mubr.bf16.mxu0 0
  %888 = vmatmul.mubr.bf16.gmra.mrb[0].mxu0 %v559
  %v889 = vpop.f32.mrb[0].mxu0
  %v890 = vadd.f32 0.0, %v889
  %v891 = vpop.f32.mrb[0].mxu0
  %v892 = vadd.f32 0.0, %v891
  %v893 = vpop.f32.mrb[0].mxu0
  %v894 = vadd.f32 0.0, %v893
  %v895 = vpop.f32.mrb[0].mxu0
  %v896 = vadd.f32 0.0, %v895
  %897 = vmatprep.mubr.bf16.mxu0 0
  %898 = vmatmul.mubr.bf16.gmra.mrb[0].mxu0 %v562
  %v899 = vpop.f32.mrb[0].mxu0
  %v900 = vadd.f32 0.0, %v899
  %v901 = vpop.f32.mrb[0].mxu0
  %v902 = vadd.f32 0.0, %v901
  %v903 = vpop.f32.mrb[0].mxu0
  %v904 = vadd.f32 0.0, %v903
  %v905 = vpop.f32.mrb[0].mxu0
  %v906 = vadd.f32 0.0, %v905
  %907 = vmatprep.mubr.bf16.mxu0 0
  %908 = vmatmul.mubr.bf16.gmra.mrb[0].mxu0 %v565
  %v909 = vpop.f32.mrb[0].mxu0
  %v910 = vadd.f32 0.0, %v909
  %v911 = vpop.f32.mrb[0].mxu0
  %v912 = vadd.f32 0.0, %v911
  %v913 = vpop.f32.mrb[0].mxu0
  %v914 = vadd.f32 0.0, %v913
  %v915 = vpop.f32.mrb[0].mxu0
  %v916 = vadd.f32 0.0, %v915
  %917 = vmatprep.mubr.bf16.mxu0 0
  %918 = vmatmul.mubr.bf16.gmra.mrb[0].mxu0 %v568
  %v919 = vpop.f32.mrb[0].mxu0
  %v920 = vadd.f32 0.0, %v919
  %v921 = vpop.f32.mrb[0].mxu0
  %v922 = vadd.f32 0.0, %v921
  %v923 = vpop.f32.mrb[0].mxu0
  %v924 = vadd.f32 0.0, %v923
  %v925 = vpop.f32.mrb[0].mxu0
  %v926 = vadd.f32 0.0, %v925
  %927 = vmatprep.mubr.bf16.mxu0 0
  %928 = vmatmul.mubr.bf16.gmra.mrb[0].mxu0 %v571
  %v929 = vpop.f32.mrb[0].mxu0
  %v930 = vadd.f32 0.0, %v929
  %v931 = vpop.f32.mrb[0].mxu0
  %v932 = vadd.f32 0.0, %v931
  %v933 = vpop.f32.mrb[0].mxu0
  %v934 = vadd.f32 0.0, %v933
  %v935 = vpop.f32.mrb[0].mxu0
  %v936 = vadd.f32 0.0, %v935
  %937 = vmatprep.mubr.bf16.mxu0 0
  %938 = vmatmul.mubr.bf16.gmra.mrb[0].mxu0 %v574
  %v939 = vpop.f32.mrb[0].mxu0
  %v940 = vadd.f32 0.0, %v939
  %v941 = vpop.f32.mrb[0].mxu0
  %v942 = vadd.f32 0.0, %v941
  %v943 = vpop.f32.mrb[0].mxu0
  %v944 = vadd.f32 0.0, %v943
  %v945 = vpop.f32.mrb[0].mxu0
  %v946 = vadd.f32 0.0, %v945
  %947 = vmatprep.mubr.bf16.mxu0 0
  %948 = vmatmul.mubr.bf16.gmra.mrb[0].mxu0 %v577
  %v949 = vpop.f32.mrb[0].mxu0
  %v950 = vadd.f32 0.0, %v949
  %v951 = vpop.f32.mrb[0].mxu0
  %v952 = vadd.f32 0.0, %v951
  %v953 = vpop.f32.mrb[0].mxu0
  %v954 = vadd.f32 0.0, %v953
  %v955 = vpop.f32.mrb[0].mxu0
  %v956 = vadd.f32 0.0, %v955
  %957 = vmatprep.mubr.bf16.mxu0 0
  %958 = vmatmul.mubr.bf16.gmra.mrb[0].mxu0 %v580
  %v959 = vpop.f32.mrb[0].mxu0
  %v960 = vadd.f32 0.0, %v959
  %v961 = vpop.f32.mrb[0].mxu0
  %v962 = vadd.f32 0.0, %v961
  %v963 = vpop.f32.mrb[0].mxu0
  %v964 = vadd.f32 0.0, %v963
  %v965 = vpop.f32.mrb[0].mxu0
  %v966 = vadd.f32 0.0, %v965
  %967 = vdwg.mxu0
  %v968 = vpack.c.bf16 %v621, %v617
  %v969 = vpack.c.bf16 %v623, %v619
  %v970 = vpack.c.bf16 %v814, %v810
  %v971 = vpack.c.bf16 %v816, %v812
  %v972 = vpack.c.bf16 %v631, %v627
  %v973 = vpack.c.bf16 %v633, %v629
  %v974 = vpack.c.bf16 %v824, %v820
  %v975 = vpack.c.bf16 %v826, %v822
  %v976 = vpack.c.bf16 %v641, %v637
  %v977 = vpack.c.bf16 %v643, %v639
  %v978 = vpack.c.bf16 %v834, %v830
  %v979 = vpack.c.bf16 %v836, %v832
  %v980 = vpack.c.bf16 %v651, %v647
  %v981 = vpack.c.bf16 %v653, %v649
  %v982 = vpack.c.bf16 %v844, %v840
  %v983 = vpack.c.bf16 %v846, %v842
  %v984 = vpack.c.bf16 %v661, %v657
  %v985 = vpack.c.bf16 %v663, %v659
  %v986 = vpack.c.bf16 %v854, %v850
  %v987 = vpack.c.bf16 %v856, %v852
  %v988 = vpack.c.bf16 %v671, %v667
  %v989 = vpack.c.bf16 %v673, %v669
  %v990 = vpack.c.bf16 %v864, %v860
  %v991 = vpack.c.bf16 %v866, %v862
  %v992 = vpack.c.bf16 %v681, %v677
  %v993 = vpack.c.bf16 %v683, %v679
  %v994 = vpack.c.bf16 %v874, %v870
  %v995 = vpack.c.bf16 %v876, %v872
  %v996 = vpack.c.bf16 %v691, %v687
  %v997 = vpack.c.bf16 %v693, %v689
  %v998 = vpack.c.bf16 %v884, %v880
  %v999 = vpack.c.bf16 %v886, %v882
  %v1000 = vpack.c.bf16 %v701, %v697
  %v1001 = vpack.c.bf16 %v703, %v699
  %v1002 = vpack.c.bf16 %v894, %v890
  %v1003 = vpack.c.bf16 %v896, %v892
  %v1004 = vpack.c.bf16 %v711, %v707
  %v1005 = vpack.c.bf16 %v713, %v709
  %v1006 = vpack.c.bf16 %v904, %v900
  %v1007 = vpack.c.bf16 %v906, %v902
  %v1008 = vpack.c.bf16 %v721, %v717
  %v1009 = vpack.c.bf16 %v723, %v719
  %v1010 = vpack.c.bf16 %v914, %v910
  %v1011 = vpack.c.bf16 %v916, %v912
  %v1012 = vpack.c.bf16 %v731, %v727
  %v1013 = vpack.c.bf16 %v733, %v729
  %v1014 = vpack.c.bf16 %v924, %v920
  %v1015 = vpack.c.bf16 %v926, %v922
  %v1016 = vpack.c.bf16 %v741, %v737
  %v1017 = vpack.c.bf16 %v743, %v739
  %v1018 = vpack.c.bf16 %v934, %v930
  %v1019 = vpack.c.bf16 %v936, %v932
  %v1020 = vpack.c.bf16 %v751, %v747
  %v1021 = vpack.c.bf16 %v753, %v749
  %v1022 = vpack.c.bf16 %v944, %v940
  %v1023 = vpack.c.bf16 %v946, %v942
  %v1024 = vpack.c.bf16 %v761, %v757
  %v1025 = vpack.c.bf16 %v763, %v759
  %v1026 = vpack.c.bf16 %v954, %v950
  %v1027 = vpack.c.bf16 %v956, %v952
  %v1028 = vpack.c.bf16 %v771, %v767
  %v1029 = vpack.c.bf16 %v773, %v769
  %v1030 = vpack.c.bf16 %v964, %v960
  %v1031 = vpack.c.bf16 %v966, %v962
  %v1032 = vld [vmem:[%s3] sm:$0xff]
  %v1033 = vld [vmem:[%s3 + $0x8] sm:$0xff]
  %v1034 = vld [vmem:[%s3 + $0x10] sm:$0xff]
  %v1035 = vld [vmem:[%s3 + $0x18] sm:$0xff]
  %v1036 = vunpack.c.l.s8.bf16 %v1032
  %v1037 = vunpack.c.l.s8.bf16 %v1033
  %v1038 = vunpack.c.h.s8.bf16 %v1032
  %v1039 = vunpack.c.h.s8.bf16 %v1033
  %v1040 = vunpack.c.l.s8.bf16 %v1034
  %v1041 = vunpack.c.l.s8.bf16 %v1035
  %v1042 = vunpack.c.h.s8.bf16 %v1034
  %v1043 = vunpack.c.h.s8.bf16 %v1035
  %s1044 = scalar_lea.vmem %s3, 32
  %v1045 = vld [vmem:[%s1044] sm:$0xff]
  %v1046 = vld [vmem:[%s1044 + $0x8] sm:$0xff]
  %v1047 = vld [vmem:[%s1044 + $0x10] sm:$0xff]
  %v1048 = vld [vmem:[%s1044 + $0x18] sm:$0xff]
  %v1049 = vunpack.c.l.s8.bf16 %v1045
  %v1050 = vunpack.c.l.s8.bf16 %v1046
  %v1051 = vunpack.c.h.s8.bf16 %v1045
  %v1052 = vunpack.c.h.s8.bf16 %v1046
  %v1053 = vunpack.c.l.s8.bf16 %v1047
  %v1054 = vunpack.c.l.s8.bf16 %v1048
  %v1055 = vunpack.c.h.s8.bf16 %v1047
  %v1056 = vunpack.c.h.s8.bf16 %v1048
  %1073 = vrot.lane.b32.xlu0 %v968, 96
  %v1074 = vpop.permute.xlu0 %1073
  %1075 = vrot.lane.b32.xlu0 %v972, 96
  %v1076 = vpop.permute.xlu0 %1075
  %1077 = vrot.lane.b32.xlu0 %v976, 96
  %v1078 = vpop.permute.xlu0 %1077
  %1079 = vrot.lane.b32.xlu0 %v980, 96
  %v1080 = vpop.permute.xlu0 %1079
  %1081 = vrot.lane.b32.xlu0 %v984, 96
  %v1082 = vpop.permute.xlu0 %1081
  %1083 = vrot.lane.b32.xlu0 %v988, 96
  %v1084 = vpop.permute.xlu0 %1083
  %1085 = vrot.lane.b32.xlu0 %v992, 96
  %v1086 = vpop.permute.xlu0 %1085
  %1087 = vrot.lane.b32.xlu0 %v996, 96
  %v1088 = vpop.permute.xlu0 %1087
  %1089 = vrot.lane.b32.xlu0 %v1000, 96
  %v1090 = vpop.permute.xlu0 %1089
  %1091 = vrot.lane.b32.xlu0 %v1004, 96
  %v1092 = vpop.permute.xlu0 %1091
  %1093 = vrot.lane.b32.xlu0 %v1008, 96
  %v1094 = vpop.permute.xlu0 %1093
  %1095 = vrot.lane.b32.xlu0 %v1012, 96
  %v1096 = vpop.permute.xlu0 %1095
  %1097 = vrot.lane.b32.xlu0 %v1016, 96
  %v1098 = vpop.permute.xlu0 %1097
  %1099 = vrot.lane.b32.xlu0 %v1020, 96
  %v1100 = vpop.permute.xlu0 %1099
  %1101 = vrot.lane.b32.xlu0 %v1024, 96
  %v1102 = vpop.permute.xlu0 %1101
  %1103 = vrot.lane.b32.xlu0 %v1028, 96
  %v1104 = vpop.permute.xlu0 %1103
  %1121 = vmatprep.subr.bf16.mxu0 0
  %1122 = vmatpush1.bf16.msra.mxu0 %v1074
  %1123 = vmatprep.subr.bf16.mxu0 0
  %1124 = vmatpush1.bf16.msra.mxu0 %v1076
  %1125 = vmatprep.subr.bf16.mxu0 0
  %1126 = vmatpush1.bf16.msra.mxu0 %v1078
  %1127 = vmatprep.subr.bf16.mxu0 0
  %1128 = vmatpush1.bf16.msra.mxu0 %v1080
  %1129 = vmatprep.subr.bf16.mxu0 0
  %1130 = vmatpush1.bf16.msra.mxu0 %v1082
  %1131 = vmatprep.subr.bf16.mxu0 0
  %1132 = vmatpush1.bf16.msra.mxu0 %v1084
  %1133 = vmatprep.subr.bf16.mxu0 0
  %1134 = vmatpush1.bf16.msra.mxu0 %v1086
  %1135 = vmatprep.subr.bf16.mxu0 0
  %1136 = vmatpush1.bf16.msra.mxu0 %v1088
  %1137 = vmatprep.subr.bf16.mxu0 0
  %1138 = vmatpush1.bf16.msra.mxu0 %v1090
  %1139 = vmatprep.subr.bf16.mxu0 0
  %1140 = vmatpush1.bf16.msra.mxu0 %v1092
  %1141 = vmatprep.subr.bf16.mxu0 0
  %1142 = vmatpush1.bf16.msra.mxu0 %v1094
  %1143 = vmatprep.subr.bf16.mxu0 0
  %1144 = vmatpush1.bf16.msra.mxu0 %v1096
  %1145 = vmatprep.subr.bf16.mxu0 0
  %1146 = vmatpush1.bf16.msra.mxu0 %v1098
  %1147 = vmatprep.subr.bf16.mxu0 0
  %1148 = vmatpush1.bf16.msra.mxu0 %v1100
  %1149 = vmatprep.subr.bf16.mxu0 0
  %1150 = vmatpush1.bf16.msra.mxu0 %v1102
  %1151 = vmatprep.subr.bf16.mxu0 0
  %1152 = vmatpush1.bf16.msra.mxu0 %v1104
  %1153 = vmatprep.mubr.bf16.mxu0 %v1050
  %1154 = vmatmul.mubr.bf16.gmra.mrb[0].mxu0 %v1049
  %v1155 = vpop.f32.mrb[0].mxu0
  %v1156 = vadd.f32 0.0, %v1155
  %v1157 = vpop.f32.mrb[0].mxu0
  %v1158 = vpop.f32.mrb[0].mxu0
  %v1159 = vadd.f32 0.0, %v1158
  %v1160 = vpop.f32.mrb[0].mxu0
  %1161 = vmatprep.mubr.bf16.mxu0 %v1052
  %1162 = vmatmul.mubr.bf16.gmra.mrb[0].mxu0 %v1051
  %v1163 = vpop.f32.mrb[0].mxu0
  %v1164 = vadd.f32 0.0, %v1163
  %v1165 = vpop.f32.mrb[0].mxu0
  %v1166 = vpop.f32.mrb[0].mxu0
  %v1167 = vadd.f32 0.0, %v1166
  %v1168 = vpop.f32.mrb[0].mxu0
  %1169 = vmatprep.mubr.bf16.mxu0 %v1054
  %1170 = vmatmul.mubr.bf16.gmra.mrb[0].mxu0 %v1053
  %v1171 = vpop.f32.mrb[0].mxu0
  %v1172 = vadd.f32 0.0, %v1171
  %v1173 = vpop.f32.mrb[0].mxu0
  %v1174 = vpop.f32.mrb[0].mxu0
  %v1175 = vadd.f32 0.0, %v1174
  %v1176 = vpop.f32.mrb[0].mxu0
  %1177 = vmatprep.mubr.bf16.mxu0 %v1056
  %1178 = vmatmul.mubr.bf16.gmra.mrb[0].mxu0 %v1055
  %v1179 = vpop.f32.mrb[0].mxu0
  %v1180 = vadd.f32 0.0, %v1179
  %v1181 = vpop.f32.mrb[0].mxu0
  %v1182 = vpop.f32.mrb[0].mxu0
  %v1183 = vadd.f32 0.0, %v1182
  %v1184 = vpop.f32.mrb[0].mxu0
  %1185 = vdwg.mxu0
  %1186 = vmatprep.subr.bf16.mxu0 0
  %1187 = vmatpush1.bf16.msra.mxu0 %v968
  %1188 = vmatprep.subr.bf16.mxu0 0
  %1189 = vmatpush1.bf16.msra.mxu0 %v972
  %1190 = vmatprep.subr.bf16.mxu0 0
  %1191 = vmatpush1.bf16.msra.mxu0 %v976
  %1192 = vmatprep.subr.bf16.mxu0 0
  %1193 = vmatpush1.bf16.msra.mxu0 %v980
  %1194 = vmatprep.subr.bf16.mxu0 0
  %1195 = vmatpush1.bf16.msra.mxu0 %v984
  %1196 = vmatprep.subr.bf16.mxu0 0
  %1197 = vmatpush1.bf16.msra.mxu0 %v988
  %1198 = vmatprep.subr.bf16.mxu0 0
  %1199 = vmatpush1.bf16.msra.mxu0 %v992
  %1200 = vmatprep.subr.bf16.mxu0 0
  %1201 = vmatpush1.bf16.msra.mxu0 %v996
  %1202 = vmatprep.subr.bf16.mxu0 0
  %1203 = vmatpush1.bf16.msra.mxu0 %v1000
  %1204 = vmatprep.subr.bf16.mxu0 0
  %1205 = vmatpush1.bf16.msra.mxu0 %v1004
  %1206 = vmatprep.subr.bf16.mxu0 0
  %1207 = vmatpush1.bf16.msra.mxu0 %v1008
  %1208 = vmatprep.subr.bf16.mxu0 0
  %1209 = vmatpush1.bf16.msra.mxu0 %v1012
  %1210 = vmatprep.subr.bf16.mxu0 0
  %1211 = vmatpush1.bf16.msra.mxu0 %v1016
  %1212 = vmatprep.subr.bf16.mxu0 0
  %1213 = vmatpush1.bf16.msra.mxu0 %v1020
  %1214 = vmatprep.subr.bf16.mxu0 0
  %1215 = vmatpush1.bf16.msra.mxu0 %v1024
  %1216 = vmatprep.subr.bf16.mxu0 0
  %1217 = vmatpush1.bf16.msra.mxu0 %v1028
  %1218 = vmatprep.mubr.bf16.mxu0 %v1037
  %1219 = vmatmul.mubr.bf16.gmra.mrb[0].mxu0 %v1036
  %v1220 = vpop.f32.mrb[0].mxu0
  %v1221 = vadd.f32 %v1156, %v1220
  %v1222 = vpop.f32.mrb[0].mxu0
  %v1223 = vpop.f32.mrb[0].mxu0
  %v1224 = vadd.f32 %v1159, %v1223
  %v1225 = vpop.f32.mrb[0].mxu0
  %1226 = vmatprep.mubr.bf16.mxu0 %v1039
  %1227 = vmatmul.mubr.bf16.gmra.mrb[0].mxu0 %v1038
  %v1228 = vpop.f32.mrb[0].mxu0
  %v1229 = vadd.f32 %v1164, %v1228
  %v1230 = vpop.f32.mrb[0].mxu0
  %v1231 = vpop.f32.mrb[0].mxu0
  %v1232 = vadd.f32 %v1167, %v1231
  %v1233 = vpop.f32.mrb[0].mxu0
  %1234 = vmatprep.mubr.bf16.mxu0 %v1041
  %1235 = vmatmul.mubr.bf16.gmra.mrb[0].mxu0 %v1040
  %v1236 = vpop.f32.mrb[0].mxu0
  %v1237 = vadd.f32 %v1172, %v1236
  %v1238 = vpop.f32.mrb[0].mxu0
  %v1239 = vpop.f32.mrb[0].mxu0
  %v1240 = vadd.f32 %v1175, %v1239
  %v1241 = vpop.f32.mrb[0].mxu0
  %1242 = vmatprep.mubr.bf16.mxu0 %v1043
  %1243 = vmatmul.mubr.bf16.gmra.mrb[0].mxu0 %v1042
  %v1244 = vpop.f32.mrb[0].mxu0
  %v1245 = vadd.f32 %v1180, %v1244
  %v1246 = vpop.f32.mrb[0].mxu0
  %v1247 = vpop.f32.mrb[0].mxu0
  %v1248 = vadd.f32 %v1183, %v1247
  %v1249 = vpop.f32.mrb[0].mxu0
  %1250 = vdwg.mxu0
  %s1251 = scalar_lea.vmem %s3, 64
  %v1252 = vld [vmem:[%s1251] sm:$0xff]
  %v1253 = vld [vmem:[%s1251 + $0x8] sm:$0xff]
  %v1254 = vld [vmem:[%s1251 + $0x10] sm:$0xff]
  %v1255 = vld [vmem:[%s1251 + $0x18] sm:$0xff]
  %v1256 = vunpack.c.l.s8.bf16 %v1252
  %v1257 = vunpack.c.l.s8.bf16 %v1253
  %v1258 = vunpack.c.h.s8.bf16 %v1252
  %v1259 = vunpack.c.h.s8.bf16 %v1253
  %v1260 = vunpack.c.l.s8.bf16 %v1254
  %v1261 = vunpack.c.l.s8.bf16 %v1255
  %v1262 = vunpack.c.h.s8.bf16 %v1254
  %v1263 = vunpack.c.h.s8.bf16 %v1255
  %1264 = vrot.lane.b32.xlu0 %v968, 64
  %v1265 = vpop.permute.xlu0 %1264
  %1266 = vrot.lane.b32.xlu0 %v972, 64
  %v1267 = vpop.permute.xlu0 %1266
  %1268 = vrot.lane.b32.xlu0 %v976, 64
  %v1269 = vpop.permute.xlu0 %1268
  %1270 = vrot.lane.b32.xlu0 %v980, 64
  %v1271 = vpop.permute.xlu0 %1270
  %1272 = vrot.lane.b32.xlu0 %v984, 64
  %v1273 = vpop.permute.xlu0 %1272
  %1274 = vrot.lane.b32.xlu0 %v988, 64
  %v1275 = vpop.permute.xlu0 %1274
  %1276 = vrot.lane.b32.xlu0 %v992, 64
  %v1277 = vpop.permute.xlu0 %1276
  %1278 = vrot.lane.b32.xlu0 %v996, 64
  %v1279 = vpop.permute.xlu0 %1278
  %1280 = vrot.lane.b32.xlu0 %v1000, 64
  %v1281 = vpop.permute.xlu0 %1280
  %1282 = vrot.lane.b32.xlu0 %v1004, 64
  %v1283 = vpop.permute.xlu0 %1282
  %1284 = vrot.lane.b32.xlu0 %v1008, 64
  %v1285 = vpop.permute.xlu0 %1284
  %1286 = vrot.lane.b32.xlu0 %v1012, 64
  %v1287 = vpop.permute.xlu0 %1286
  %1288 = vrot.lane.b32.xlu0 %v1016, 64
  %v1289 = vpop.permute.xlu0 %1288
  %1290 = vrot.lane.b32.xlu0 %v1020, 64
  %v1291 = vpop.permute.xlu0 %1290
  %1292 = vrot.lane.b32.xlu0 %v1024, 64
  %v1293 = vpop.permute.xlu0 %1292
  %1294 = vrot.lane.b32.xlu0 %v1028, 64
  %v1295 = vpop.permute.xlu0 %1294
  %1312 = vmatprep.subr.bf16.mxu0 0
  %1313 = vmatpush1.bf16.msra.mxu0 %v1265
  %1314 = vmatprep.subr.bf16.mxu0 0
  %1315 = vmatpush1.bf16.msra.mxu0 %v1267
  %1316 = vmatprep.subr.bf16.mxu0 0
  %1317 = vmatpush1.bf16.msra.mxu0 %v1269
  %1318 = vmatprep.subr.bf16.mxu0 0
  %1319 = vmatpush1.bf16.msra.mxu0 %v1271
  %1320 = vmatprep.subr.bf16.mxu0 0
  %1321 = vmatpush1.bf16.msra.mxu0 %v1273
  %1322 = vmatprep.subr.bf16.mxu0 0
  %1323 = vmatpush1.bf16.msra.mxu0 %v1275
  %1324 = vmatprep.subr.bf16.mxu0 0
  %1325 = vmatpush1.bf16.msra.mxu0 %v1277
  %1326 = vmatprep.subr.bf16.mxu0 0
  %1327 = vmatpush1.bf16.msra.mxu0 %v1279
  %1328 = vmatprep.subr.bf16.mxu0 0
  %1329 = vmatpush1.bf16.msra.mxu0 %v1281
  %1330 = vmatprep.subr.bf16.mxu0 0
  %1331 = vmatpush1.bf16.msra.mxu0 %v1283
  %1332 = vmatprep.subr.bf16.mxu0 0
  %1333 = vmatpush1.bf16.msra.mxu0 %v1285
  %1334 = vmatprep.subr.bf16.mxu0 0
  %1335 = vmatpush1.bf16.msra.mxu0 %v1287
  %1336 = vmatprep.subr.bf16.mxu0 0
  %1337 = vmatpush1.bf16.msra.mxu0 %v1289
  %1338 = vmatprep.subr.bf16.mxu0 0
  %1339 = vmatpush1.bf16.msra.mxu0 %v1291
  %1340 = vmatprep.subr.bf16.mxu0 0
  %1341 = vmatpush1.bf16.msra.mxu0 %v1293
  %1342 = vmatprep.subr.bf16.mxu0 0
  %1343 = vmatpush1.bf16.msra.mxu0 %v1295
  %1344 = vmatprep.mubr.bf16.mxu0 %v1257
  %1345 = vmatmul.mubr.bf16.gmra.mrb[0].mxu0 %v1256
  %v1346 = vpop.f32.mrb[0].mxu0
  %v1347 = vadd.f32 0.0, %v1346
  %v1348 = vpop.f32.mrb[0].mxu0
  %v1349 = vpop.f32.mrb[0].mxu0
  %v1350 = vadd.f32 0.0, %v1349
  %v1351 = vpop.f32.mrb[0].mxu0
  %1352 = vmatprep.mubr.bf16.mxu0 %v1259
  %1353 = vmatmul.mubr.bf16.gmra.mrb[0].mxu0 %v1258
  %v1354 = vpop.f32.mrb[0].mxu0
  %v1355 = vadd.f32 0.0, %v1354
  %v1356 = vpop.f32.mrb[0].mxu0
  %v1357 = vpop.f32.mrb[0].mxu0
  %v1358 = vadd.f32 0.0, %v1357
  %v1359 = vpop.f32.mrb[0].mxu0
  %1360 = vmatprep.mubr.bf16.mxu0 %v1261
  %1361 = vmatmul.mubr.bf16.gmra.mrb[0].mxu0 %v1260
  %v1362 = vpop.f32.mrb[0].mxu0
  %v1363 = vadd.f32 0.0, %v1362
  %v1364 = vpop.f32.mrb[0].mxu0
  %v1365 = vpop.f32.mrb[0].mxu0
  %v1366 = vadd.f32 0.0, %v1365
  %v1367 = vpop.f32.mrb[0].mxu0
  %1368 = vmatprep.mubr.bf16.mxu0 %v1263
  %1369 = vmatmul.mubr.bf16.gmra.mrb[0].mxu0 %v1262
  %v1370 = vpop.f32.mrb[0].mxu0
  %v1371 = vadd.f32 0.0, %v1370
  %v1372 = vpop.f32.mrb[0].mxu0
  %v1373 = vpop.f32.mrb[0].mxu0
  %v1374 = vadd.f32 0.0, %v1373
  %v1375 = vpop.f32.mrb[0].mxu0
  %1376 = vdwg.mxu0
  %v1377 = vadd.f32 %v1221, %v1347
  %v1378 = vadd.f32 %v1224, %v1350
  %v1379 = vadd.f32 %v1229, %v1355
  %v1380 = vadd.f32 %v1232, %v1358
  %v1381 = vadd.f32 %v1237, %v1363
  %v1382 = vadd.f32 %v1240, %v1366
  %v1383 = vadd.f32 %v1245, %v1371
  %v1384 = vadd.f32 %v1248, %v1374
  %s1385 = scalar_lea.vmem %s3, 96
  %v1386 = vld [vmem:[%s1385] sm:$0xff]
  %v1387 = vld [vmem:[%s1385 + $0x8] sm:$0xff]
  %v1388 = vld [vmem:[%s1385 + $0x10] sm:$0xff]
  %v1389 = vld [vmem:[%s1385 + $0x18] sm:$0xff]
  %v1390 = vunpack.c.l.s8.bf16 %v1386
  %v1391 = vunpack.c.l.s8.bf16 %v1387
  %v1392 = vunpack.c.h.s8.bf16 %v1386
  %v1393 = vunpack.c.h.s8.bf16 %v1387
  %v1394 = vunpack.c.l.s8.bf16 %v1388
  %v1395 = vunpack.c.l.s8.bf16 %v1389
  %v1396 = vunpack.c.h.s8.bf16 %v1388
  %v1397 = vunpack.c.h.s8.bf16 %v1389
  %1398 = vrot.lane.b32.xlu0 %v968, 32
  %v1399 = vpop.permute.xlu0 %1398
  %1400 = vrot.lane.b32.xlu0 %v972, 32
  %v1401 = vpop.permute.xlu0 %1400
  %1402 = vrot.lane.b32.xlu0 %v976, 32
  %v1403 = vpop.permute.xlu0 %1402
  %1404 = vrot.lane.b32.xlu0 %v980, 32
  %v1405 = vpop.permute.xlu0 %1404
  %1406 = vrot.lane.b32.xlu0 %v984, 32
  %v1407 = vpop.permute.xlu0 %1406
  %1408 = vrot.lane.b32.xlu0 %v988, 32
  %v1409 = vpop.permute.xlu0 %1408
  %1410 = vrot.lane.b32.xlu0 %v992, 32
  %v1411 = vpop.permute.xlu0 %1410
  %1412 = vrot.lane.b32.xlu0 %v996, 32
  %v1413 = vpop.permute.xlu0 %1412
  %1414 = vrot.lane.b32.xlu0 %v1000, 32
  %v1415 = vpop.permute.xlu0 %1414
  %1416 = vrot.lane.b32.xlu0 %v1004, 32
  %v1417 = vpop.permute.xlu0 %1416
  %1418 = vrot.lane.b32.xlu0 %v1008, 32
  %v1419 = vpop.permute.xlu0 %1418
  %1420 = vrot.lane.b32.xlu0 %v1012, 32
  %v1421 = vpop.permute.xlu0 %1420
  %1422 = vrot.lane.b32.xlu0 %v1016, 32
  %v1423 = vpop.permute.xlu0 %1422
  %1424 = vrot.lane.b32.xlu0 %v1020, 32
  %v1425 = vpop.permute.xlu0 %1424
  %1426 = vrot.lane.b32.xlu0 %v1024, 32
  %v1427 = vpop.permute.xlu0 %1426
  %1428 = vrot.lane.b32.xlu0 %v1028, 32
  %v1429 = vpop.permute.xlu0 %1428
  %1446 = vmatprep.subr.bf16.mxu0 0
  %1447 = vmatpush1.bf16.msra.mxu0 %v1399
  %1448 = vmatprep.subr.bf16.mxu0 0
  %1449 = vmatpush1.bf16.msra.mxu0 %v1401
  %1450 = vmatprep.subr.bf16.mxu0 0
  %1451 = vmatpush1.bf16.msra.mxu0 %v1403
  %1452 = vmatprep.subr.bf16.mxu0 0
  %1453 = vmatpush1.bf16.msra.mxu0 %v1405
  %1454 = vmatprep.subr.bf16.mxu0 0
  %1455 = vmatpush1.bf16.msra.mxu0 %v1407
  %1456 = vmatprep.subr.bf16.mxu0 0
  %1457 = vmatpush1.bf16.msra.mxu0 %v1409
  %1458 = vmatprep.subr.bf16.mxu0 0
  %1459 = vmatpush1.bf16.msra.mxu0 %v1411
  %1460 = vmatprep.subr.bf16.mxu0 0
  %1461 = vmatpush1.bf16.msra.mxu0 %v1413
  %1462 = vmatprep.subr.bf16.mxu0 0
  %1463 = vmatpush1.bf16.msra.mxu0 %v1415
  %1464 = vmatprep.subr.bf16.mxu0 0
  %1465 = vmatpush1.bf16.msra.mxu0 %v1417
  %1466 = vmatprep.subr.bf16.mxu0 0
  %1467 = vmatpush1.bf16.msra.mxu0 %v1419
  %1468 = vmatprep.subr.bf16.mxu0 0
  %1469 = vmatpush1.bf16.msra.mxu0 %v1421
  %1470 = vmatprep.subr.bf16.mxu0 0
  %1471 = vmatpush1.bf16.msra.mxu0 %v1423
  %1472 = vmatprep.subr.bf16.mxu0 0
  %1473 = vmatpush1.bf16.msra.mxu0 %v1425
  %1474 = vmatprep.subr.bf16.mxu0 0
  %1475 = vmatpush1.bf16.msra.mxu0 %v1427
  %1476 = vmatprep.subr.bf16.mxu0 0
  %1477 = vmatpush1.bf16.msra.mxu0 %v1429
  %1478 = vmatprep.mubr.bf16.mxu0 %v1391
  %1479 = vmatmul.mubr.bf16.gmra.mrb[0].mxu0 %v1390
  %v1480 = vpop.f32.mrb[0].mxu0
  %v1481 = vadd.f32 0.0, %v1480
  %v1482 = vpop.f32.mrb[0].mxu0
  %v1483 = vpop.f32.mrb[0].mxu0
  %v1484 = vadd.f32 0.0, %v1483
  %v1485 = vpop.f32.mrb[0].mxu0
  %1486 = vmatprep.mubr.bf16.mxu0 %v1393
  %1487 = vmatmul.mubr.bf16.gmra.mrb[0].mxu0 %v1392
  %v1488 = vpop.f32.mrb[0].mxu0
  %v1489 = vadd.f32 0.0, %v1488
  %v1490 = vpop.f32.mrb[0].mxu0
  %v1491 = vpop.f32.mrb[0].mxu0
  %v1492 = vadd.f32 0.0, %v1491
  %v1493 = vpop.f32.mrb[0].mxu0
  %1494 = vmatprep.mubr.bf16.mxu0 %v1395
  %1495 = vmatmul.mubr.bf16.gmra.mrb[0].mxu0 %v1394
  %v1496 = vpop.f32.mrb[0].mxu0
  %v1497 = vadd.f32 0.0, %v1496
  %v1498 = vpop.f32.mrb[0].mxu0
  %v1499 = vpop.f32.mrb[0].mxu0
  %v1500 = vadd.f32 0.0, %v1499
  %v1501 = vpop.f32.mrb[0].mxu0
  %1502 = vmatprep.mubr.bf16.mxu0 %v1397
  %1503 = vmatmul.mubr.bf16.gmra.mrb[0].mxu0 %v1396
  %v1504 = vpop.f32.mrb[0].mxu0
  %v1505 = vadd.f32 0.0, %v1504
  %v1506 = vpop.f32.mrb[0].mxu0
  %v1507 = vpop.f32.mrb[0].mxu0
  %v1508 = vadd.f32 0.0, %v1507
  %v1509 = vpop.f32.mrb[0].mxu0
  %1510 = vdwg.mxu0
  %v1511 = vadd.f32 %v1377, %v1481
  %v1512 = vadd.f32 %v1378, %v1484
  %v1513 = vadd.f32 %v1379, %v1489
  %v1514 = vadd.f32 %v1380, %v1492
  %v1515 = vadd.f32 %v1381, %v1497
  %v1516 = vadd.f32 %v1382, %v1500
  %v1517 = vadd.f32 %v1383, %v1505
  %v1518 = vadd.f32 %v1384, %v1508
  %s1519 = scalar_lea.vmem %s3, 128
  %v1520 = vld [vmem:[%s1519] sm:$0xff]
  %v1521 = vld [vmem:[%s1519 + $0x8] sm:$0xff]
  %v1522 = vld [vmem:[%s1519 + $0x10] sm:$0xff]
  %v1523 = vld [vmem:[%s1519 + $0x18] sm:$0xff]
  %v1524 = vunpack.c.l.s8.bf16 %v1520
  %v1525 = vunpack.c.l.s8.bf16 %v1521
  %v1526 = vunpack.c.h.s8.bf16 %v1520
  %v1527 = vunpack.c.h.s8.bf16 %v1521
  %v1528 = vunpack.c.l.s8.bf16 %v1522
  %v1529 = vunpack.c.l.s8.bf16 %v1523
  %v1530 = vunpack.c.h.s8.bf16 %v1522
  %v1531 = vunpack.c.h.s8.bf16 %v1523
  %1532 = vmatprep.subr.bf16.mxu0 0
  %1533 = vmatpush1.bf16.msra.mxu0 %v969
  %1534 = vmatprep.subr.bf16.mxu0 0
  %1535 = vmatpush1.bf16.msra.mxu0 %v973
  %1536 = vmatprep.subr.bf16.mxu0 0
  %1537 = vmatpush1.bf16.msra.mxu0 %v977
  %1538 = vmatprep.subr.bf16.mxu0 0
  %1539 = vmatpush1.bf16.msra.mxu0 %v981
  %1540 = vmatprep.subr.bf16.mxu0 0
  %1541 = vmatpush1.bf16.msra.mxu0 %v985
  %1542 = vmatprep.subr.bf16.mxu0 0
  %1543 = vmatpush1.bf16.msra.mxu0 %v989
  %1544 = vmatprep.subr.bf16.mxu0 0
  %1545 = vmatpush1.bf16.msra.mxu0 %v993
  %1546 = vmatprep.subr.bf16.mxu0 0
  %1547 = vmatpush1.bf16.msra.mxu0 %v997
  %1548 = vmatprep.subr.bf16.mxu0 0
  %1549 = vmatpush1.bf16.msra.mxu0 %v1001
  %1550 = vmatprep.subr.bf16.mxu0 0
  %1551 = vmatpush1.bf16.msra.mxu0 %v1005
  %1552 = vmatprep.subr.bf16.mxu0 0
  %1553 = vmatpush1.bf16.msra.mxu0 %v1009
  %1554 = vmatprep.subr.bf16.mxu0 0
  %1555 = vmatpush1.bf16.msra.mxu0 %v1013
  %1556 = vmatprep.subr.bf16.mxu0 0
  %1557 = vmatpush1.bf16.msra.mxu0 %v1017
  %1558 = vmatprep.subr.bf16.mxu0 0
  %1559 = vmatpush1.bf16.msra.mxu0 %v1021
  %1560 = vmatprep.subr.bf16.mxu0 0
  %1561 = vmatpush1.bf16.msra.mxu0 %v1025
  %1562 = vmatprep.subr.bf16.mxu0 0
  %1563 = vmatpush1.bf16.msra.mxu0 %v1029
  %1564 = vmatprep.mubr.bf16.mxu0 %v1525
  %1565 = vmatmul.mubr.bf16.gmra.mrb[0].mxu0 %v1524
  %v1566 = vpop.f32.mrb[0].mxu0
  %v1567 = vadd.f32 0.0, %v1566
  %v1568 = vpop.f32.mrb[0].mxu0
  %v1569 = vpop.f32.mrb[0].mxu0
  %v1570 = vadd.f32 0.0, %v1569
  %v1571 = vpop.f32.mrb[0].mxu0
  %1572 = vmatprep.mubr.bf16.mxu0 %v1527
  %1573 = vmatmul.mubr.bf16.gmra.mrb[0].mxu0 %v1526
  %v1574 = vpop.f32.mrb[0].mxu0
  %v1575 = vadd.f32 0.0, %v1574
  %v1576 = vpop.f32.mrb[0].mxu0
  %v1577 = vpop.f32.mrb[0].mxu0
  %v1578 = vadd.f32 0.0, %v1577
  %v1579 = vpop.f32.mrb[0].mxu0
  %1580 = vmatprep.mubr.bf16.mxu0 %v1529
  %1581 = vmatmul.mubr.bf16.gmra.mrb[0].mxu0 %v1528
  %v1582 = vpop.f32.mrb[0].mxu0
  %v1583 = vadd.f32 0.0, %v1582
  %v1584 = vpop.f32.mrb[0].mxu0
  %v1585 = vpop.f32.mrb[0].mxu0
  %v1586 = vadd.f32 0.0, %v1585
  %v1587 = vpop.f32.mrb[0].mxu0
  %1588 = vmatprep.mubr.bf16.mxu0 %v1531
  %1589 = vmatmul.mubr.bf16.gmra.mrb[0].mxu0 %v1530
  %v1590 = vpop.f32.mrb[0].mxu0
  %v1591 = vadd.f32 0.0, %v1590
  %v1592 = vpop.f32.mrb[0].mxu0
  %v1593 = vpop.f32.mrb[0].mxu0
  %v1594 = vadd.f32 0.0, %v1593
  %v1595 = vpop.f32.mrb[0].mxu0
  %1596 = vdwg.mxu0
  %v1597 = vadd.f32 %v1511, %v1567
  %v1598 = vadd.f32 %v1512, %v1570
  %v1599 = vadd.f32 %v1513, %v1575
  %v1600 = vadd.f32 %v1514, %v1578
  %v1601 = vadd.f32 %v1515, %v1583
  %v1602 = vadd.f32 %v1516, %v1586
  %v1603 = vadd.f32 %v1517, %v1591
  %v1604 = vadd.f32 %v1518, %v1594
  %s1605 = scalar_lea.vmem %s3, 160
  %v1606 = vld [vmem:[%s1605] sm:$0xff]
  %v1607 = vld [vmem:[%s1605 + $0x8] sm:$0xff]
  %v1608 = vld [vmem:[%s1605 + $0x10] sm:$0xff]
  %v1609 = vld [vmem:[%s1605 + $0x18] sm:$0xff]
  %v1610 = vunpack.c.l.s8.bf16 %v1606
  %v1611 = vunpack.c.l.s8.bf16 %v1607
  %v1612 = vunpack.c.h.s8.bf16 %v1606
  %v1613 = vunpack.c.h.s8.bf16 %v1607
  %v1614 = vunpack.c.l.s8.bf16 %v1608
  %v1615 = vunpack.c.l.s8.bf16 %v1609
  %v1616 = vunpack.c.h.s8.bf16 %v1608
  %v1617 = vunpack.c.h.s8.bf16 %v1609
  %1634 = vrot.lane.b32.xlu0 %v969, 96
  %v1635 = vpop.permute.xlu0 %1634
  %1636 = vrot.lane.b32.xlu0 %v973, 96
  %v1637 = vpop.permute.xlu0 %1636
  %1638 = vrot.lane.b32.xlu0 %v977, 96
  %v1639 = vpop.permute.xlu0 %1638
  %1640 = vrot.lane.b32.xlu0 %v981, 96
  %v1641 = vpop.permute.xlu0 %1640
  %1642 = vrot.lane.b32.xlu0 %v985, 96
  %v1643 = vpop.permute.xlu0 %1642
  %1644 = vrot.lane.b32.xlu0 %v989, 96
  %v1645 = vpop.permute.xlu0 %1644
  %1646 = vrot.lane.b32.xlu0 %v993, 96
  %v1647 = vpop.permute.xlu0 %1646
  %1648 = vrot.lane.b32.xlu0 %v997, 96
  %v1649 = vpop.permute.xlu0 %1648
  %1650 = vrot.lane.b32.xlu0 %v1001, 96
  %v1651 = vpop.permute.xlu0 %1650
  %1652 = vrot.lane.b32.xlu0 %v1005, 96
  %v1653 = vpop.permute.xlu0 %1652
  %1654 = vrot.lane.b32.xlu0 %v1009, 96
  %v1655 = vpop.permute.xlu0 %1654
  %1656 = vrot.lane.b32.xlu0 %v1013, 96
  %v1657 = vpop.permute.xlu0 %1656
  %1658 = vrot.lane.b32.xlu0 %v1017, 96
  %v1659 = vpop.permute.xlu0 %1658
  %1660 = vrot.lane.b32.xlu0 %v1021, 96
  %v1661 = vpop.permute.xlu0 %1660
  %1662 = vrot.lane.b32.xlu0 %v1025, 96
  %v1663 = vpop.permute.xlu0 %1662
  %1664 = vrot.lane.b32.xlu0 %v1029, 96
  %v1665 = vpop.permute.xlu0 %1664
  %1682 = vmatprep.subr.bf16.mxu0 0
  %1683 = vmatpush1.bf16.msra.mxu0 %v1635
  %1684 = vmatprep.subr.bf16.mxu0 0
  %1685 = vmatpush1.bf16.msra.mxu0 %v1637
  %1686 = vmatprep.subr.bf16.mxu0 0
  %1687 = vmatpush1.bf16.msra.mxu0 %v1639
  %1688 = vmatprep.subr.bf16.mxu0 0
  %1689 = vmatpush1.bf16.msra.mxu0 %v1641
  %1690 = vmatprep.subr.bf16.mxu0 0
  %1691 = vmatpush1.bf16.msra.mxu0 %v1643
  %1692 = vmatprep.subr.bf16.mxu0 0
  %1693 = vmatpush1.bf16.msra.mxu0 %v1645
  %1694 = vmatprep.subr.bf16.mxu0 0
  %1695 = vmatpush1.bf16.msra.mxu0 %v1647
  %1696 = vmatprep.subr.bf16.mxu0 0
  %1697 = vmatpush1.bf16.msra.mxu0 %v1649
  %1698 = vmatprep.subr.bf16.mxu0 0
  %1699 = vmatpush1.bf16.msra.mxu0 %v1651
  %1700 = vmatprep.subr.bf16.mxu0 0
  %1701 = vmatpush1.bf16.msra.mxu0 %v1653
  %1702 = vmatprep.subr.bf16.mxu0 0
  %1703 = vmatpush1.bf16.msra.mxu0 %v1655
  %1704 = vmatprep.subr.bf16.mxu0 0
  %1705 = vmatpush1.bf16.msra.mxu0 %v1657
  %1706 = vmatprep.subr.bf16.mxu0 0
  %1707 = vmatpush1.bf16.msra.mxu0 %v1659
  %1708 = vmatprep.subr.bf16.mxu0 0
  %1709 = vmatpush1.bf16.msra.mxu0 %v1661
  %1710 = vmatprep.subr.bf16.mxu0 0
  %1711 = vmatpush1.bf16.msra.mxu0 %v1663
  %1712 = vmatprep.subr.bf16.mxu0 0
  %1713 = vmatpush1.bf16.msra.mxu0 %v1665
  %1714 = vmatprep.mubr.bf16.mxu0 %v1611
  %1715 = vmatmul.mubr.bf16.gmra.mrb[0].mxu0 %v1610
  %v1716 = vpop.f32.mrb[0].mxu0
  %v1717 = vadd.f32 0.0, %v1716
  %v1718 = vpop.f32.mrb[0].mxu0
  %v1719 = vpop.f32.mrb[0].mxu0
  %v1720 = vadd.f32 0.0, %v1719
  %v1721 = vpop.f32.mrb[0].mxu0
  %1722 = vmatprep.mubr.bf16.mxu0 %v1613
  %1723 = vmatmul.mubr.bf16.gmra.mrb[0].mxu0 %v1612
  %v1724 = vpop.f32.mrb[0].mxu0
  %v1725 = vadd.f32 0.0, %v1724
  %v1726 = vpop.f32.mrb[0].mxu0
  %v1727 = vpop.f32.mrb[0].mxu0
  %v1728 = vadd.f32 0.0, %v1727
  %v1729 = vpop.f32.mrb[0].mxu0
  %1730 = vmatprep.mubr.bf16.mxu0 %v1615
  %1731 = vmatmul.mubr.bf16.gmra.mrb[0].mxu0 %v1614
  %v1732 = vpop.f32.mrb[0].mxu0
  %v1733 = vadd.f32 0.0, %v1732
  %v1734 = vpop.f32.mrb[0].mxu0
  %v1735 = vpop.f32.mrb[0].mxu0
  %v1736 = vadd.f32 0.0, %v1735
  %v1737 = vpop.f32.mrb[0].mxu0
  %1738 = vmatprep.mubr.bf16.mxu0 %v1617
  %1739 = vmatmul.mubr.bf16.gmra.mrb[0].mxu0 %v1616
  %v1740 = vpop.f32.mrb[0].mxu0
  %v1741 = vadd.f32 0.0, %v1740
  %v1742 = vpop.f32.mrb[0].mxu0
  %v1743 = vpop.f32.mrb[0].mxu0
  %v1744 = vadd.f32 0.0, %v1743
  %v1745 = vpop.f32.mrb[0].mxu0
  %1746 = vdwg.mxu0
  %v1747 = vadd.f32 %v1597, %v1717
  %v1748 = vadd.f32 %v1598, %v1720
  %v1749 = vadd.f32 %v1599, %v1725
  %v1750 = vadd.f32 %v1600, %v1728
  %v1751 = vadd.f32 %v1601, %v1733
  %v1752 = vadd.f32 %v1602, %v1736
  %v1753 = vadd.f32 %v1603, %v1741
  %v1754 = vadd.f32 %v1604, %v1744
  %s1755 = scalar_lea.vmem %s3, 192
  %v1756 = vld [vmem:[%s1755] sm:$0xff]
  %v1757 = vld [vmem:[%s1755 + $0x8] sm:$0xff]
  %v1758 = vld [vmem:[%s1755 + $0x10] sm:$0xff]
  %v1759 = vld [vmem:[%s1755 + $0x18] sm:$0xff]
  %v1760 = vunpack.c.l.s8.bf16 %v1756
  %v1761 = vunpack.c.l.s8.bf16 %v1757
  %v1762 = vunpack.c.h.s8.bf16 %v1756
  %v1763 = vunpack.c.h.s8.bf16 %v1757
  %v1764 = vunpack.c.l.s8.bf16 %v1758
  %v1765 = vunpack.c.l.s8.bf16 %v1759
  %v1766 = vunpack.c.h.s8.bf16 %v1758
  %v1767 = vunpack.c.h.s8.bf16 %v1759
  %1768 = vrot.lane.b32.xlu0 %v969, 64
  %v1769 = vpop.permute.xlu0 %1768
  %1770 = vrot.lane.b32.xlu0 %v973, 64
  %v1771 = vpop.permute.xlu0 %1770
  %1772 = vrot.lane.b32.xlu0 %v977, 64
  %v1773 = vpop.permute.xlu0 %1772
  %1774 = vrot.lane.b32.xlu0 %v981, 64
  %v1775 = vpop.permute.xlu0 %1774
  %1776 = vrot.lane.b32.xlu0 %v985, 64
  %v1777 = vpop.permute.xlu0 %1776
  %1778 = vrot.lane.b32.xlu0 %v989, 64
  %v1779 = vpop.permute.xlu0 %1778
  %1780 = vrot.lane.b32.xlu0 %v993, 64
  %v1781 = vpop.permute.xlu0 %1780
  %1782 = vrot.lane.b32.xlu0 %v997, 64
  %v1783 = vpop.permute.xlu0 %1782
  %1784 = vrot.lane.b32.xlu0 %v1001, 64
  %v1785 = vpop.permute.xlu0 %1784
  %1786 = vrot.lane.b32.xlu0 %v1005, 64
  %v1787 = vpop.permute.xlu0 %1786
  %1788 = vrot.lane.b32.xlu0 %v1009, 64
  %v1789 = vpop.permute.xlu0 %1788
  %1790 = vrot.lane.b32.xlu0 %v1013, 64
  %v1791 = vpop.permute.xlu0 %1790
  %1792 = vrot.lane.b32.xlu0 %v1017, 64
  %v1793 = vpop.permute.xlu0 %1792
  %1794 = vrot.lane.b32.xlu0 %v1021, 64
  %v1795 = vpop.permute.xlu0 %1794
  %1796 = vrot.lane.b32.xlu0 %v1025, 64
  %v1797 = vpop.permute.xlu0 %1796
  %1798 = vrot.lane.b32.xlu0 %v1029, 64
  %v1799 = vpop.permute.xlu0 %1798
  %1816 = vmatprep.subr.bf16.mxu0 0
  %1817 = vmatpush1.bf16.msra.mxu0 %v1769
  %1818 = vmatprep.subr.bf16.mxu0 0
  %1819 = vmatpush1.bf16.msra.mxu0 %v1771
  %1820 = vmatprep.subr.bf16.mxu0 0
  %1821 = vmatpush1.bf16.msra.mxu0 %v1773
  %1822 = vmatprep.subr.bf16.mxu0 0
  %1823 = vmatpush1.bf16.msra.mxu0 %v1775
  %1824 = vmatprep.subr.bf16.mxu0 0
  %1825 = vmatpush1.bf16.msra.mxu0 %v1777
  %1826 = vmatprep.subr.bf16.mxu0 0
  %1827 = vmatpush1.bf16.msra.mxu0 %v1779
  %1828 = vmatprep.subr.bf16.mxu0 0
  %1829 = vmatpush1.bf16.msra.mxu0 %v1781
  %1830 = vmatprep.subr.bf16.mxu0 0
  %1831 = vmatpush1.bf16.msra.mxu0 %v1783
  %1832 = vmatprep.subr.bf16.mxu0 0
  %1833 = vmatpush1.bf16.msra.mxu0 %v1785
  %1834 = vmatprep.subr.bf16.mxu0 0
  %1835 = vmatpush1.bf16.msra.mxu0 %v1787
  %1836 = vmatprep.subr.bf16.mxu0 0
  %1837 = vmatpush1.bf16.msra.mxu0 %v1789
  %1838 = vmatprep.subr.bf16.mxu0 0
  %1839 = vmatpush1.bf16.msra.mxu0 %v1791
  %1840 = vmatprep.subr.bf16.mxu0 0
  %1841 = vmatpush1.bf16.msra.mxu0 %v1793
  %1842 = vmatprep.subr.bf16.mxu0 0
  %1843 = vmatpush1.bf16.msra.mxu0 %v1795
  %1844 = vmatprep.subr.bf16.mxu0 0
  %1845 = vmatpush1.bf16.msra.mxu0 %v1797
  %1846 = vmatprep.subr.bf16.mxu0 0
  %1847 = vmatpush1.bf16.msra.mxu0 %v1799
  %1848 = vmatprep.mubr.bf16.mxu0 %v1761
  %1849 = vmatmul.mubr.bf16.gmra.mrb[0].mxu0 %v1760
  %v1850 = vpop.f32.mrb[0].mxu0
  %v1851 = vadd.f32 0.0, %v1850
  %v1852 = vpop.f32.mrb[0].mxu0
  %v1853 = vpop.f32.mrb[0].mxu0
  %v1854 = vadd.f32 0.0, %v1853
  %v1855 = vpop.f32.mrb[0].mxu0
  %1856 = vmatprep.mubr.bf16.mxu0 %v1763
  %1857 = vmatmul.mubr.bf16.gmra.mrb[0].mxu0 %v1762
  %v1858 = vpop.f32.mrb[0].mxu0
  %v1859 = vadd.f32 0.0, %v1858
  %v1860 = vpop.f32.mrb[0].mxu0
  %v1861 = vpop.f32.mrb[0].mxu0
  %v1862 = vadd.f32 0.0, %v1861
  %v1863 = vpop.f32.mrb[0].mxu0
  %1864 = vmatprep.mubr.bf16.mxu0 %v1765
  %1865 = vmatmul.mubr.bf16.gmra.mrb[0].mxu0 %v1764
  %v1866 = vpop.f32.mrb[0].mxu0
  %v1867 = vadd.f32 0.0, %v1866
  %v1868 = vpop.f32.mrb[0].mxu0
  %v1869 = vpop.f32.mrb[0].mxu0
  %v1870 = vadd.f32 0.0, %v1869
  %v1871 = vpop.f32.mrb[0].mxu0
  %1872 = vmatprep.mubr.bf16.mxu0 %v1767
  %1873 = vmatmul.mubr.bf16.gmra.mrb[0].mxu0 %v1766
  %v1874 = vpop.f32.mrb[0].mxu0
  %v1875 = vadd.f32 0.0, %v1874
  %v1876 = vpop.f32.mrb[0].mxu0
  %v1877 = vpop.f32.mrb[0].mxu0
  %v1878 = vadd.f32 0.0, %v1877
  %v1879 = vpop.f32.mrb[0].mxu0
  %1880 = vdwg.mxu0
  %v1881 = vadd.f32 %v1747, %v1851
  %v1882 = vadd.f32 %v1748, %v1854
  %v1883 = vadd.f32 %v1749, %v1859
  %v1884 = vadd.f32 %v1750, %v1862
  %v1885 = vadd.f32 %v1751, %v1867
  %v1886 = vadd.f32 %v1752, %v1870
  %v1887 = vadd.f32 %v1753, %v1875
  %v1888 = vadd.f32 %v1754, %v1878
  %s1889 = scalar_lea.vmem %s3, 224
  %v1890 = vld [vmem:[%s1889] sm:$0xff]
  %v1891 = vld [vmem:[%s1889 + $0x8] sm:$0xff]
  %v1892 = vld [vmem:[%s1889 + $0x10] sm:$0xff]
  %v1893 = vld [vmem:[%s1889 + $0x18] sm:$0xff]
  %v1894 = vunpack.c.l.s8.bf16 %v1890
  %v1895 = vunpack.c.l.s8.bf16 %v1891
  %v1896 = vunpack.c.h.s8.bf16 %v1890
  %v1897 = vunpack.c.h.s8.bf16 %v1891
  %v1898 = vunpack.c.l.s8.bf16 %v1892
  %v1899 = vunpack.c.l.s8.bf16 %v1893
  %v1900 = vunpack.c.h.s8.bf16 %v1892
  %v1901 = vunpack.c.h.s8.bf16 %v1893
  %1902 = vrot.lane.b32.xlu0 %v969, 32
  %v1903 = vpop.permute.xlu0 %1902
  %1904 = vrot.lane.b32.xlu0 %v973, 32
  %v1905 = vpop.permute.xlu0 %1904
  %1906 = vrot.lane.b32.xlu0 %v977, 32
  %v1907 = vpop.permute.xlu0 %1906
  %1908 = vrot.lane.b32.xlu0 %v981, 32
  %v1909 = vpop.permute.xlu0 %1908
  %1910 = vrot.lane.b32.xlu0 %v985, 32
  %v1911 = vpop.permute.xlu0 %1910
  %1912 = vrot.lane.b32.xlu0 %v989, 32
  %v1913 = vpop.permute.xlu0 %1912
  %1914 = vrot.lane.b32.xlu0 %v993, 32
  %v1915 = vpop.permute.xlu0 %1914
  %1916 = vrot.lane.b32.xlu0 %v997, 32
  %v1917 = vpop.permute.xlu0 %1916
  %1918 = vrot.lane.b32.xlu0 %v1001, 32
  %v1919 = vpop.permute.xlu0 %1918
  %1920 = vrot.lane.b32.xlu0 %v1005, 32
  %v1921 = vpop.permute.xlu0 %1920
  %1922 = vrot.lane.b32.xlu0 %v1009, 32
  %v1923 = vpop.permute.xlu0 %1922
  %1924 = vrot.lane.b32.xlu0 %v1013, 32
  %v1925 = vpop.permute.xlu0 %1924
  %1926 = vrot.lane.b32.xlu0 %v1017, 32
  %v1927 = vpop.permute.xlu0 %1926
  %1928 = vrot.lane.b32.xlu0 %v1021, 32
  %v1929 = vpop.permute.xlu0 %1928
  %1930 = vrot.lane.b32.xlu0 %v1025, 32
  %v1931 = vpop.permute.xlu0 %1930
  %1932 = vrot.lane.b32.xlu0 %v1029, 32
  %v1933 = vpop.permute.xlu0 %1932
  %1950 = vmatprep.subr.bf16.mxu0 0
  %1951 = vmatpush1.bf16.msra.mxu0 %v1903
  %1952 = vmatprep.subr.bf16.mxu0 0
  %1953 = vmatpush1.bf16.msra.mxu0 %v1905
  %1954 = vmatprep.subr.bf16.mxu0 0
  %1955 = vmatpush1.bf16.msra.mxu0 %v1907
  %1956 = vmatprep.subr.bf16.mxu0 0
  %1957 = vmatpush1.bf16.msra.mxu0 %v1909
  %1958 = vmatprep.subr.bf16.mxu0 0
  %1959 = vmatpush1.bf16.msra.mxu0 %v1911
  %1960 = vmatprep.subr.bf16.mxu0 0
  %1961 = vmatpush1.bf16.msra.mxu0 %v1913
  %1962 = vmatprep.subr.bf16.mxu0 0
  %1963 = vmatpush1.bf16.msra.mxu0 %v1915
  %1964 = vmatprep.subr.bf16.mxu0 0
  %1965 = vmatpush1.bf16.msra.mxu0 %v1917
  %1966 = vmatprep.subr.bf16.mxu0 0
  %1967 = vmatpush1.bf16.msra.mxu0 %v1919
  %1968 = vmatprep.subr.bf16.mxu0 0
  %1969 = vmatpush1.bf16.msra.mxu0 %v1921
  %1970 = vmatprep.subr.bf16.mxu0 0
  %1971 = vmatpush1.bf16.msra.mxu0 %v1923
  %1972 = vmatprep.subr.bf16.mxu0 0
  %1973 = vmatpush1.bf16.msra.mxu0 %v1925
  %1974 = vmatprep.subr.bf16.mxu0 0
  %1975 = vmatpush1.bf16.msra.mxu0 %v1927
  %1976 = vmatprep.subr.bf16.mxu0 0
  %1977 = vmatpush1.bf16.msra.mxu0 %v1929
  %1978 = vmatprep.subr.bf16.mxu0 0
  %1979 = vmatpush1.bf16.msra.mxu0 %v1931
  %1980 = vmatprep.subr.bf16.mxu0 0
  %1981 = vmatpush1.bf16.msra.mxu0 %v1933
  %1982 = vmatprep.mubr.bf16.mxu0 %v1895
  %1983 = vmatmul.mubr.bf16.gmra.mrb[0].mxu0 %v1894
  %v1984 = vpop.f32.mrb[0].mxu0
  %v1985 = vadd.f32 0.0, %v1984
  %v1986 = vpop.f32.mrb[0].mxu0
  %v1987 = vpop.f32.mrb[0].mxu0
  %v1988 = vadd.f32 0.0, %v1987
  %v1989 = vpop.f32.mrb[0].mxu0
  %1990 = vmatprep.mubr.bf16.mxu0 %v1897
  %1991 = vmatmul.mubr.bf16.gmra.mrb[0].mxu0 %v1896
  %v1992 = vpop.f32.mrb[0].mxu0
  %v1993 = vadd.f32 0.0, %v1992
  %v1994 = vpop.f32.mrb[0].mxu0
  %v1995 = vpop.f32.mrb[0].mxu0
  %v1996 = vadd.f32 0.0, %v1995
  %v1997 = vpop.f32.mrb[0].mxu0
  %1998 = vmatprep.mubr.bf16.mxu0 %v1899
  %1999 = vmatmul.mubr.bf16.gmra.mrb[0].mxu0 %v1898
  %v2000 = vpop.f32.mrb[0].mxu0
  %v2001 = vadd.f32 0.0, %v2000
  %v2002 = vpop.f32.mrb[0].mxu0
  %v2003 = vpop.f32.mrb[0].mxu0
  %v2004 = vadd.f32 0.0, %v2003
  %v2005 = vpop.f32.mrb[0].mxu0
  %2006 = vmatprep.mubr.bf16.mxu0 %v1901
  %2007 = vmatmul.mubr.bf16.gmra.mrb[0].mxu0 %v1900
  %v2008 = vpop.f32.mrb[0].mxu0
  %v2009 = vadd.f32 0.0, %v2008
  %v2010 = vpop.f32.mrb[0].mxu0
  %v2011 = vpop.f32.mrb[0].mxu0
  %v2012 = vadd.f32 0.0, %v2011
  %v2013 = vpop.f32.mrb[0].mxu0
  %2014 = vdwg.mxu0
  %v2015 = vadd.f32 %v1881, %v1985
  %v2016 = vadd.f32 %v1882, %v1988
  %v2017 = vadd.f32 %v1883, %v1993
  %v2018 = vadd.f32 %v1884, %v1996
  %v2019 = vadd.f32 %v1885, %v2001
  %v2020 = vadd.f32 %v1886, %v2004
  %v2021 = vadd.f32 %v1887, %v2009
  %v2022 = vadd.f32 %v1888, %v2012
  %s2023 = scalar_lea.vmem %s3, 256
  %v2024 = vld [vmem:[%s2023] sm:$0xff]
  %v2025 = vld [vmem:[%s2023 + $0x8] sm:$0xff]
  %v2026 = vld [vmem:[%s2023 + $0x10] sm:$0xff]
  %v2027 = vld [vmem:[%s2023 + $0x18] sm:$0xff]
  %v2028 = vunpack.c.l.s8.bf16 %v2024
  %v2029 = vunpack.c.l.s8.bf16 %v2025
  %v2030 = vunpack.c.h.s8.bf16 %v2024
  %v2031 = vunpack.c.h.s8.bf16 %v2025
  %v2032 = vunpack.c.l.s8.bf16 %v2026
  %v2033 = vunpack.c.l.s8.bf16 %v2027
  %v2034 = vunpack.c.h.s8.bf16 %v2026
  %v2035 = vunpack.c.h.s8.bf16 %v2027
  %2036 = vmatprep.subr.bf16.mxu0 0
  %2037 = vmatpush1.bf16.msra.mxu0 %v970
  %2038 = vmatprep.subr.bf16.mxu0 0
  %2039 = vmatpush1.bf16.msra.mxu0 %v974
  %2040 = vmatprep.subr.bf16.mxu0 0
  %2041 = vmatpush1.bf16.msra.mxu0 %v978
  %2042 = vmatprep.subr.bf16.mxu0 0
  %2043 = vmatpush1.bf16.msra.mxu0 %v982
  %2044 = vmatprep.subr.bf16.mxu0 0
  %2045 = vmatpush1.bf16.msra.mxu0 %v986
  %2046 = vmatprep.subr.bf16.mxu0 0
  %2047 = vmatpush1.bf16.msra.mxu0 %v990
  %2048 = vmatprep.subr.bf16.mxu0 0
  %2049 = vmatpush1.bf16.msra.mxu0 %v994
  %2050 = vmatprep.subr.bf16.mxu0 0
  %2051 = vmatpush1.bf16.msra.mxu0 %v998
  %2052 = vmatprep.subr.bf16.mxu0 0
  %2053 = vmatpush1.bf16.msra.mxu0 %v1002
  %2054 = vmatprep.subr.bf16.mxu0 0
  %2055 = vmatpush1.bf16.msra.mxu0 %v1006
  %2056 = vmatprep.subr.bf16.mxu0 0
  %2057 = vmatpush1.bf16.msra.mxu0 %v1010
  %2058 = vmatprep.subr.bf16.mxu0 0
  %2059 = vmatpush1.bf16.msra.mxu0 %v1014
  %2060 = vmatprep.subr.bf16.mxu0 0
  %2061 = vmatpush1.bf16.msra.mxu0 %v1018
  %2062 = vmatprep.subr.bf16.mxu0 0
  %2063 = vmatpush1.bf16.msra.mxu0 %v1022
  %2064 = vmatprep.subr.bf16.mxu0 0
  %2065 = vmatpush1.bf16.msra.mxu0 %v1026
  %2066 = vmatprep.subr.bf16.mxu0 0
  %2067 = vmatpush1.bf16.msra.mxu0 %v1030
  %2068 = vmatprep.mubr.bf16.mxu0 %v2029
  %2069 = vmatmul.mubr.bf16.gmra.mrb[0].mxu0 %v2028
  %v2070 = vpop.f32.mrb[0].mxu0
  %v2071 = vadd.f32 0.0, %v2070
  %v2072 = vpop.f32.mrb[0].mxu0
  %v2073 = vpop.f32.mrb[0].mxu0
  %v2074 = vadd.f32 0.0, %v2073
  %v2075 = vpop.f32.mrb[0].mxu0
  %2076 = vmatprep.mubr.bf16.mxu0 %v2031
  %2077 = vmatmul.mubr.bf16.gmra.mrb[0].mxu0 %v2030
  %v2078 = vpop.f32.mrb[0].mxu0
  %v2079 = vadd.f32 0.0, %v2078
  %v2080 = vpop.f32.mrb[0].mxu0
  %v2081 = vpop.f32.mrb[0].mxu0
  %v2082 = vadd.f32 0.0, %v2081
  %v2083 = vpop.f32.mrb[0].mxu0
  %2084 = vmatprep.mubr.bf16.mxu0 %v2033
  %2085 = vmatmul.mubr.bf16.gmra.mrb[0].mxu0 %v2032
  %v2086 = vpop.f32.mrb[0].mxu0
  %v2087 = vadd.f32 0.0, %v2086
  %v2088 = vpop.f32.mrb[0].mxu0
  %v2089 = vpop.f32.mrb[0].mxu0
  %v2090 = vadd.f32 0.0, %v2089
  %v2091 = vpop.f32.mrb[0].mxu0
  %2092 = vmatprep.mubr.bf16.mxu0 %v2035
  %2093 = vmatmul.mubr.bf16.gmra.mrb[0].mxu0 %v2034
  %v2094 = vpop.f32.mrb[0].mxu0
  %v2095 = vadd.f32 0.0, %v2094
  %v2096 = vpop.f32.mrb[0].mxu0
  %v2097 = vpop.f32.mrb[0].mxu0
  %v2098 = vadd.f32 0.0, %v2097
  %v2099 = vpop.f32.mrb[0].mxu0
  %2100 = vdwg.mxu0
  %v2101 = vadd.f32 %v2015, %v2071
  %v2102 = vadd.f32 %v2016, %v2074
  %v2103 = vadd.f32 %v2017, %v2079
  %v2104 = vadd.f32 %v2018, %v2082
  %v2105 = vadd.f32 %v2019, %v2087
  %v2106 = vadd.f32 %v2020, %v2090
  %v2107 = vadd.f32 %v2021, %v2095
  %v2108 = vadd.f32 %v2022, %v2098
  %s2109 = scalar_lea.vmem %s3, 288
  %v2110 = vld [vmem:[%s2109] sm:$0xff]
  %v2111 = vld [vmem:[%s2109 + $0x8] sm:$0xff]
  %v2112 = vld [vmem:[%s2109 + $0x10] sm:$0xff]
  %v2113 = vld [vmem:[%s2109 + $0x18] sm:$0xff]
  %v2114 = vunpack.c.l.s8.bf16 %v2110
  %v2115 = vunpack.c.l.s8.bf16 %v2111
  %v2116 = vunpack.c.h.s8.bf16 %v2110
  %v2117 = vunpack.c.h.s8.bf16 %v2111
  %v2118 = vunpack.c.l.s8.bf16 %v2112
  %v2119 = vunpack.c.l.s8.bf16 %v2113
  %v2120 = vunpack.c.h.s8.bf16 %v2112
  %v2121 = vunpack.c.h.s8.bf16 %v2113
  %2138 = vrot.lane.b32.xlu0 %v970, 96
  %v2139 = vpop.permute.xlu0 %2138
  %2140 = vrot.lane.b32.xlu0 %v974, 96
  %v2141 = vpop.permute.xlu0 %2140
  %2142 = vrot.lane.b32.xlu0 %v978, 96
  %v2143 = vpop.permute.xlu0 %2142
  %2144 = vrot.lane.b32.xlu0 %v982, 96
  %v2145 = vpop.permute.xlu0 %2144
  %2146 = vrot.lane.b32.xlu0 %v986, 96
  %v2147 = vpop.permute.xlu0 %2146
  %2148 = vrot.lane.b32.xlu0 %v990, 96
  %v2149 = vpop.permute.xlu0 %2148
  %2150 = vrot.lane.b32.xlu0 %v994, 96
  %v2151 = vpop.permute.xlu0 %2150
  %2152 = vrot.lane.b32.xlu0 %v998, 96
  %v2153 = vpop.permute.xlu0 %2152
  %2154 = vrot.lane.b32.xlu0 %v1002, 96
  %v2155 = vpop.permute.xlu0 %2154
  %2156 = vrot.lane.b32.xlu0 %v1006, 96
  %v2157 = vpop.permute.xlu0 %2156
  %2158 = vrot.lane.b32.xlu0 %v1010, 96
  %v2159 = vpop.permute.xlu0 %2158
  %2160 = vrot.lane.b32.xlu0 %v1014, 96
  %v2161 = vpop.permute.xlu0 %2160
  %2162 = vrot.lane.b32.xlu0 %v1018, 96
  %v2163 = vpop.permute.xlu0 %2162
  %2164 = vrot.lane.b32.xlu0 %v1022, 96
  %v2165 = vpop.permute.xlu0 %2164
  %2166 = vrot.lane.b32.xlu0 %v1026, 96
  %v2167 = vpop.permute.xlu0 %2166
  %2168 = vrot.lane.b32.xlu0 %v1030, 96
  %v2169 = vpop.permute.xlu0 %2168
  %2186 = vmatprep.subr.bf16.mxu0 0
  %2187 = vmatpush1.bf16.msra.mxu0 %v2139
  %2188 = vmatprep.subr.bf16.mxu0 0
  %2189 = vmatpush1.bf16.msra.mxu0 %v2141
  %2190 = vmatprep.subr.bf16.mxu0 0
  %2191 = vmatpush1.bf16.msra.mxu0 %v2143
  %2192 = vmatprep.subr.bf16.mxu0 0
  %2193 = vmatpush1.bf16.msra.mxu0 %v2145
  %2194 = vmatprep.subr.bf16.mxu0 0
  %2195 = vmatpush1.bf16.msra.mxu0 %v2147
  %2196 = vmatprep.subr.bf16.mxu0 0
  %2197 = vmatpush1.bf16.msra.mxu0 %v2149
  %2198 = vmatprep.subr.bf16.mxu0 0
  %2199 = vmatpush1.bf16.msra.mxu0 %v2151
  %2200 = vmatprep.subr.bf16.mxu0 0
  %2201 = vmatpush1.bf16.msra.mxu0 %v2153
  %2202 = vmatprep.subr.bf16.mxu0 0
  %2203 = vmatpush1.bf16.msra.mxu0 %v2155
  %2204 = vmatprep.subr.bf16.mxu0 0
  %2205 = vmatpush1.bf16.msra.mxu0 %v2157
  %2206 = vmatprep.subr.bf16.mxu0 0
  %2207 = vmatpush1.bf16.msra.mxu0 %v2159
  %2208 = vmatprep.subr.bf16.mxu0 0
  %2209 = vmatpush1.bf16.msra.mxu0 %v2161
  %2210 = vmatprep.subr.bf16.mxu0 0
  %2211 = vmatpush1.bf16.msra.mxu0 %v2163
  %2212 = vmatprep.subr.bf16.mxu0 0
  %2213 = vmatpush1.bf16.msra.mxu0 %v2165
  %2214 = vmatprep.subr.bf16.mxu0 0
  %2215 = vmatpush1.bf16.msra.mxu0 %v2167
  %2216 = vmatprep.subr.bf16.mxu0 0
  %2217 = vmatpush1.bf16.msra.mxu0 %v2169
  %2218 = vmatprep.mubr.bf16.mxu0 %v2115
  %2219 = vmatmul.mubr.bf16.gmra.mrb[0].mxu0 %v2114
  %v2220 = vpop.f32.mrb[0].mxu0
  %v2221 = vadd.f32 0.0, %v2220
  %v2222 = vpop.f32.mrb[0].mxu0
  %v2223 = vpop.f32.mrb[0].mxu0
  %v2224 = vadd.f32 0.0, %v2223
  %v2225 = vpop.f32.mrb[0].mxu0
  %2226 = vmatprep.mubr.bf16.mxu0 %v2117
  %2227 = vmatmul.mubr.bf16.gmra.mrb[0].mxu0 %v2116
  %v2228 = vpop.f32.mrb[0].mxu0
  %v2229 = vadd.f32 0.0, %v2228
  %v2230 = vpop.f32.mrb[0].mxu0
  %v2231 = vpop.f32.mrb[0].mxu0
  %v2232 = vadd.f32 0.0, %v2231
  %v2233 = vpop.f32.mrb[0].mxu0
  %2234 = vmatprep.mubr.bf16.mxu0 %v2119
  %2235 = vmatmul.mubr.bf16.gmra.mrb[0].mxu0 %v2118
  %v2236 = vpop.f32.mrb[0].mxu0
  %v2237 = vadd.f32 0.0, %v2236
  %v2238 = vpop.f32.mrb[0].mxu0
  %v2239 = vpop.f32.mrb[0].mxu0
  %v2240 = vadd.f32 0.0, %v2239
  %v2241 = vpop.f32.mrb[0].mxu0
  %2242 = vmatprep.mubr.bf16.mxu0 %v2121
  %2243 = vmatmul.mubr.bf16.gmra.mrb[0].mxu0 %v2120
  %v2244 = vpop.f32.mrb[0].mxu0
  %v2245 = vadd.f32 0.0, %v2244
  %v2246 = vpop.f32.mrb[0].mxu0
  %v2247 = vpop.f32.mrb[0].mxu0
  %v2248 = vadd.f32 0.0, %v2247
  %v2249 = vpop.f32.mrb[0].mxu0
  %2250 = vdwg.mxu0
  %v2251 = vadd.f32 %v2101, %v2221
  %v2252 = vadd.f32 %v2102, %v2224
  %v2253 = vadd.f32 %v2103, %v2229
  %v2254 = vadd.f32 %v2104, %v2232
  %v2255 = vadd.f32 %v2105, %v2237
  %v2256 = vadd.f32 %v2106, %v2240
  %v2257 = vadd.f32 %v2107, %v2245
  %v2258 = vadd.f32 %v2108, %v2248
  %s2259 = scalar_lea.vmem %s3, 320
  %v2260 = vld [vmem:[%s2259] sm:$0xff]
  %v2261 = vld [vmem:[%s2259 + $0x8] sm:$0xff]
  %v2262 = vld [vmem:[%s2259 + $0x10] sm:$0xff]
  %v2263 = vld [vmem:[%s2259 + $0x18] sm:$0xff]
  %v2264 = vunpack.c.l.s8.bf16 %v2260
  %v2265 = vunpack.c.l.s8.bf16 %v2261
  %v2266 = vunpack.c.h.s8.bf16 %v2260
  %v2267 = vunpack.c.h.s8.bf16 %v2261
  %v2268 = vunpack.c.l.s8.bf16 %v2262
  %v2269 = vunpack.c.l.s8.bf16 %v2263
  %v2270 = vunpack.c.h.s8.bf16 %v2262
  %v2271 = vunpack.c.h.s8.bf16 %v2263
  %2272 = vrot.lane.b32.xlu0 %v970, 64
  %v2273 = vpop.permute.xlu0 %2272
  %2274 = vrot.lane.b32.xlu0 %v974, 64
  %v2275 = vpop.permute.xlu0 %2274
  %2276 = vrot.lane.b32.xlu0 %v978, 64
  %v2277 = vpop.permute.xlu0 %2276
  %2278 = vrot.lane.b32.xlu0 %v982, 64
  %v2279 = vpop.permute.xlu0 %2278
  %2280 = vrot.lane.b32.xlu0 %v986, 64
  %v2281 = vpop.permute.xlu0 %2280
  %2282 = vrot.lane.b32.xlu0 %v990, 64
  %v2283 = vpop.permute.xlu0 %2282
  %2284 = vrot.lane.b32.xlu0 %v994, 64
  %v2285 = vpop.permute.xlu0 %2284
  %2286 = vrot.lane.b32.xlu0 %v998, 64
  %v2287 = vpop.permute.xlu0 %2286
  %2288 = vrot.lane.b32.xlu0 %v1002, 64
  %v2289 = vpop.permute.xlu0 %2288
  %2290 = vrot.lane.b32.xlu0 %v1006, 64
  %v2291 = vpop.permute.xlu0 %2290
  %2292 = vrot.lane.b32.xlu0 %v1010, 64
  %v2293 = vpop.permute.xlu0 %2292
  %2294 = vrot.lane.b32.xlu0 %v1014, 64
  %v2295 = vpop.permute.xlu0 %2294
  %2296 = vrot.lane.b32.xlu0 %v1018, 64
  %v2297 = vpop.permute.xlu0 %2296
  %2298 = vrot.lane.b32.xlu0 %v1022, 64
  %v2299 = vpop.permute.xlu0 %2298
  %2300 = vrot.lane.b32.xlu0 %v1026, 64
  %v2301 = vpop.permute.xlu0 %2300
  %2302 = vrot.lane.b32.xlu0 %v1030, 64
  %v2303 = vpop.permute.xlu0 %2302
  %2320 = vmatprep.subr.bf16.mxu0 0
  %2321 = vmatpush1.bf16.msra.mxu0 %v2273
  %2322 = vmatprep.subr.bf16.mxu0 0
  %2323 = vmatpush1.bf16.msra.mxu0 %v2275
  %2324 = vmatprep.subr.bf16.mxu0 0
  %2325 = vmatpush1.bf16.msra.mxu0 %v2277
  %2326 = vmatprep.subr.bf16.mxu0 0
  %2327 = vmatpush1.bf16.msra.mxu0 %v2279
  %2328 = vmatprep.subr.bf16.mxu0 0
  %2329 = vmatpush1.bf16.msra.mxu0 %v2281
  %2330 = vmatprep.subr.bf16.mxu0 0
  %2331 = vmatpush1.bf16.msra.mxu0 %v2283
  %2332 = vmatprep.subr.bf16.mxu0 0
  %2333 = vmatpush1.bf16.msra.mxu0 %v2285
  %2334 = vmatprep.subr.bf16.mxu0 0
  %2335 = vmatpush1.bf16.msra.mxu0 %v2287
  %2336 = vmatprep.subr.bf16.mxu0 0
  %2337 = vmatpush1.bf16.msra.mxu0 %v2289
  %2338 = vmatprep.subr.bf16.mxu0 0
  %2339 = vmatpush1.bf16.msra.mxu0 %v2291
  %2340 = vmatprep.subr.bf16.mxu0 0
  %2341 = vmatpush1.bf16.msra.mxu0 %v2293
  %2342 = vmatprep.subr.bf16.mxu0 0
  %2343 = vmatpush1.bf16.msra.mxu0 %v2295
  %2344 = vmatprep.subr.bf16.mxu0 0
  %2345 = vmatpush1.bf16.msra.mxu0 %v2297
  %2346 = vmatprep.subr.bf16.mxu0 0
  %2347 = vmatpush1.bf16.msra.mxu0 %v2299
  %2348 = vmatprep.subr.bf16.mxu0 0
  %2349 = vmatpush1.bf16.msra.mxu0 %v2301
  %2350 = vmatprep.subr.bf16.mxu0 0
  %2351 = vmatpush1.bf16.msra.mxu0 %v2303
  %2352 = vmatprep.mubr.bf16.mxu0 %v2265
  %2353 = vmatmul.mubr.bf16.gmra.mrb[0].mxu0 %v2264
  %v2354 = vpop.f32.mrb[0].mxu0
  %v2355 = vadd.f32 0.0, %v2354
  %v2356 = vpop.f32.mrb[0].mxu0
  %v2357 = vpop.f32.mrb[0].mxu0
  %v2358 = vadd.f32 0.0, %v2357
  %v2359 = vpop.f32.mrb[0].mxu0
  %2360 = vmatprep.mubr.bf16.mxu0 %v2267
  %2361 = vmatmul.mubr.bf16.gmra.mrb[0].mxu0 %v2266
  %v2362 = vpop.f32.mrb[0].mxu0
  %v2363 = vadd.f32 0.0, %v2362
  %v2364 = vpop.f32.mrb[0].mxu0
  %v2365 = vpop.f32.mrb[0].mxu0
  %v2366 = vadd.f32 0.0, %v2365
  %v2367 = vpop.f32.mrb[0].mxu0
  %2368 = vmatprep.mubr.bf16.mxu0 %v2269
  %2369 = vmatmul.mubr.bf16.gmra.mrb[0].mxu0 %v2268
  %v2370 = vpop.f32.mrb[0].mxu0
  %v2371 = vadd.f32 0.0, %v2370
  %v2372 = vpop.f32.mrb[0].mxu0
  %v2373 = vpop.f32.mrb[0].mxu0
  %v2374 = vadd.f32 0.0, %v2373
  %v2375 = vpop.f32.mrb[0].mxu0
  %2376 = vmatprep.mubr.bf16.mxu0 %v2271
  %2377 = vmatmul.mubr.bf16.gmra.mrb[0].mxu0 %v2270
  %v2378 = vpop.f32.mrb[0].mxu0
  %v2379 = vadd.f32 0.0, %v2378
  %v2380 = vpop.f32.mrb[0].mxu0
  %v2381 = vpop.f32.mrb[0].mxu0
  %v2382 = vadd.f32 0.0, %v2381
  %v2383 = vpop.f32.mrb[0].mxu0
  %2384 = vdwg.mxu0
  %v2385 = vadd.f32 %v2251, %v2355
  %v2386 = vadd.f32 %v2252, %v2358
  %v2387 = vadd.f32 %v2253, %v2363
  %v2388 = vadd.f32 %v2254, %v2366
  %v2389 = vadd.f32 %v2255, %v2371
  %v2390 = vadd.f32 %v2256, %v2374
  %v2391 = vadd.f32 %v2257, %v2379
  %v2392 = vadd.f32 %v2258, %v2382
  %s2393 = scalar_lea.vmem %s3, 352
  %v2394 = vld [vmem:[%s2393] sm:$0xff]
  %v2395 = vld [vmem:[%s2393 + $0x8] sm:$0xff]
  %v2396 = vld [vmem:[%s2393 + $0x10] sm:$0xff]
  %v2397 = vld [vmem:[%s2393 + $0x18] sm:$0xff]
  %v2398 = vunpack.c.l.s8.bf16 %v2394
  %v2399 = vunpack.c.l.s8.bf16 %v2395
  %v2400 = vunpack.c.h.s8.bf16 %v2394
  %v2401 = vunpack.c.h.s8.bf16 %v2395
  %v2402 = vunpack.c.l.s8.bf16 %v2396
  %v2403 = vunpack.c.l.s8.bf16 %v2397
  %v2404 = vunpack.c.h.s8.bf16 %v2396
  %v2405 = vunpack.c.h.s8.bf16 %v2397
  %2406 = vrot.lane.b32.xlu0 %v970, 32
  %v2407 = vpop.permute.xlu0 %2406
  %2408 = vrot.lane.b32.xlu0 %v974, 32
  %v2409 = vpop.permute.xlu0 %2408
  %2410 = vrot.lane.b32.xlu0 %v978, 32
  %v2411 = vpop.permute.xlu0 %2410
  %2412 = vrot.lane.b32.xlu0 %v982, 32
  %v2413 = vpop.permute.xlu0 %2412
  %2414 = vrot.lane.b32.xlu0 %v986, 32
  %v2415 = vpop.permute.xlu0 %2414
  %2416 = vrot.lane.b32.xlu0 %v990, 32
  %v2417 = vpop.permute.xlu0 %2416
  %2418 = vrot.lane.b32.xlu0 %v994, 32
  %v2419 = vpop.permute.xlu0 %2418
  %2420 = vrot.lane.b32.xlu0 %v998, 32
  %v2421 = vpop.permute.xlu0 %2420
  %2422 = vrot.lane.b32.xlu0 %v1002, 32
  %v2423 = vpop.permute.xlu0 %2422
  %2424 = vrot.lane.b32.xlu0 %v1006, 32
  %v2425 = vpop.permute.xlu0 %2424
  %2426 = vrot.lane.b32.xlu0 %v1010, 32
  %v2427 = vpop.permute.xlu0 %2426
  %2428 = vrot.lane.b32.xlu0 %v1014, 32
  %v2429 = vpop.permute.xlu0 %2428
  %2430 = vrot.lane.b32.xlu0 %v1018, 32
  %v2431 = vpop.permute.xlu0 %2430
  %2432 = vrot.lane.b32.xlu0 %v1022, 32
  %v2433 = vpop.permute.xlu0 %2432
  %2434 = vrot.lane.b32.xlu0 %v1026, 32
  %v2435 = vpop.permute.xlu0 %2434
  %2436 = vrot.lane.b32.xlu0 %v1030, 32
  %v2437 = vpop.permute.xlu0 %2436
  %2454 = vmatprep.subr.bf16.mxu0 0
  %2455 = vmatpush1.bf16.msra.mxu0 %v2407
  %2456 = vmatprep.subr.bf16.mxu0 0
  %2457 = vmatpush1.bf16.msra.mxu0 %v2409
  %2458 = vmatprep.subr.bf16.mxu0 0
  %2459 = vmatpush1.bf16.msra.mxu0 %v2411
  %2460 = vmatprep.subr.bf16.mxu0 0
  %2461 = vmatpush1.bf16.msra.mxu0 %v2413
  %2462 = vmatprep.subr.bf16.mxu0 0
  %2463 = vmatpush1.bf16.msra.mxu0 %v2415
  %2464 = vmatprep.subr.bf16.mxu0 0
  %2465 = vmatpush1.bf16.msra.mxu0 %v2417
  %2466 = vmatprep.subr.bf16.mxu0 0
  %2467 = vmatpush1.bf16.msra.mxu0 %v2419
  %2468 = vmatprep.subr.bf16.mxu0 0
  %2469 = vmatpush1.bf16.msra.mxu0 %v2421
  %2470 = vmatprep.subr.bf16.mxu0 0
  %2471 = vmatpush1.bf16.msra.mxu0 %v2423
  %2472 = vmatprep.subr.bf16.mxu0 0
  %2473 = vmatpush1.bf16.msra.mxu0 %v2425
  %2474 = vmatprep.subr.bf16.mxu0 0
  %2475 = vmatpush1.bf16.msra.mxu0 %v2427
  %2476 = vmatprep.subr.bf16.mxu0 0
  %2477 = vmatpush1.bf16.msra.mxu0 %v2429
  %2478 = vmatprep.subr.bf16.mxu0 0
  %2479 = vmatpush1.bf16.msra.mxu0 %v2431
  %2480 = vmatprep.subr.bf16.mxu0 0
  %2481 = vmatpush1.bf16.msra.mxu0 %v2433
  %2482 = vmatprep.subr.bf16.mxu0 0
  %2483 = vmatpush1.bf16.msra.mxu0 %v2435
  %2484 = vmatprep.subr.bf16.mxu0 0
  %2485 = vmatpush1.bf16.msra.mxu0 %v2437
  %2486 = vmatprep.mubr.bf16.mxu0 %v2399
  %2487 = vmatmul.mubr.bf16.gmra.mrb[0].mxu0 %v2398
  %v2488 = vpop.f32.mrb[0].mxu0
  %v2489 = vadd.f32 0.0, %v2488
  %v2490 = vpop.f32.mrb[0].mxu0
  %v2491 = vpop.f32.mrb[0].mxu0
  %v2492 = vadd.f32 0.0, %v2491
  %v2493 = vpop.f32.mrb[0].mxu0
  %2494 = vmatprep.mubr.bf16.mxu0 %v2401
  %2495 = vmatmul.mubr.bf16.gmra.mrb[0].mxu0 %v2400
  %v2496 = vpop.f32.mrb[0].mxu0
  %v2497 = vadd.f32 0.0, %v2496
  %v2498 = vpop.f32.mrb[0].mxu0
  %v2499 = vpop.f32.mrb[0].mxu0
  %v2500 = vadd.f32 0.0, %v2499
  %v2501 = vpop.f32.mrb[0].mxu0
  %2502 = vmatprep.mubr.bf16.mxu0 %v2403
  %2503 = vmatmul.mubr.bf16.gmra.mrb[0].mxu0 %v2402
  %v2504 = vpop.f32.mrb[0].mxu0
  %v2505 = vadd.f32 0.0, %v2504
  %v2506 = vpop.f32.mrb[0].mxu0
  %v2507 = vpop.f32.mrb[0].mxu0
  %v2508 = vadd.f32 0.0, %v2507
  %v2509 = vpop.f32.mrb[0].mxu0
  %2510 = vmatprep.mubr.bf16.mxu0 %v2405
  %2511 = vmatmul.mubr.bf16.gmra.mrb[0].mxu0 %v2404
  %v2512 = vpop.f32.mrb[0].mxu0
  %v2513 = vadd.f32 0.0, %v2512
  %v2514 = vpop.f32.mrb[0].mxu0
  %v2515 = vpop.f32.mrb[0].mxu0
  %v2516 = vadd.f32 0.0, %v2515
  %v2517 = vpop.f32.mrb[0].mxu0
  %2518 = vdwg.mxu0
  %v2519 = vadd.f32 %v2385, %v2489
  %v2520 = vadd.f32 %v2386, %v2492
  %v2521 = vadd.f32 %v2387, %v2497
  %v2522 = vadd.f32 %v2388, %v2500
  %v2523 = vadd.f32 %v2389, %v2505
  %v2524 = vadd.f32 %v2390, %v2508
  %v2525 = vadd.f32 %v2391, %v2513
  %v2526 = vadd.f32 %v2392, %v2516
  %s2527 = scalar_lea.vmem %s3, 384
  %v2528 = vld [vmem:[%s2527] sm:$0xff]
  %v2529 = vld [vmem:[%s2527 + $0x8] sm:$0xff]
  %v2530 = vld [vmem:[%s2527 + $0x10] sm:$0xff]
  %v2531 = vld [vmem:[%s2527 + $0x18] sm:$0xff]
  %v2532 = vunpack.c.l.s8.bf16 %v2528
  %v2533 = vunpack.c.l.s8.bf16 %v2529
  %v2534 = vunpack.c.h.s8.bf16 %v2528
  %v2535 = vunpack.c.h.s8.bf16 %v2529
  %v2536 = vunpack.c.l.s8.bf16 %v2530
  %v2537 = vunpack.c.l.s8.bf16 %v2531
  %v2538 = vunpack.c.h.s8.bf16 %v2530
  %v2539 = vunpack.c.h.s8.bf16 %v2531
  %2540 = vmatprep.subr.bf16.mxu0 0
  %2541 = vmatpush1.bf16.msra.mxu0 %v971
  %2542 = vmatprep.subr.bf16.mxu0 0
  %2543 = vmatpush1.bf16.msra.mxu0 %v975
  %2544 = vmatprep.subr.bf16.mxu0 0
  %2545 = vmatpush1.bf16.msra.mxu0 %v979
  %2546 = vmatprep.subr.bf16.mxu0 0
  %2547 = vmatpush1.bf16.msra.mxu0 %v983
  %2548 = vmatprep.subr.bf16.mxu0 0
  %2549 = vmatpush1.bf16.msra.mxu0 %v987
  %2550 = vmatprep.subr.bf16.mxu0 0
  %2551 = vmatpush1.bf16.msra.mxu0 %v991
  %2552 = vmatprep.subr.bf16.mxu0 0
  %2553 = vmatpush1.bf16.msra.mxu0 %v995
  %2554 = vmatprep.subr.bf16.mxu0 0
  %2555 = vmatpush1.bf16.msra.mxu0 %v999
  %2556 = vmatprep.subr.bf16.mxu0 0
  %2557 = vmatpush1.bf16.msra.mxu0 %v1003
  %2558 = vmatprep.subr.bf16.mxu0 0
  %2559 = vmatpush1.bf16.msra.mxu0 %v1007
  %2560 = vmatprep.subr.bf16.mxu0 0
  %2561 = vmatpush1.bf16.msra.mxu0 %v1011
  %2562 = vmatprep.subr.bf16.mxu0 0
  %2563 = vmatpush1.bf16.msra.mxu0 %v1015
  %2564 = vmatprep.subr.bf16.mxu0 0
  %2565 = vmatpush1.bf16.msra.mxu0 %v1019
  %2566 = vmatprep.subr.bf16.mxu0 0
  %2567 = vmatpush1.bf16.msra.mxu0 %v1023
  %2568 = vmatprep.subr.bf16.mxu0 0
  %2569 = vmatpush1.bf16.msra.mxu0 %v1027
  %2570 = vmatprep.subr.bf16.mxu0 0
  %2571 = vmatpush1.bf16.msra.mxu0 %v1031
  %2572 = vmatprep.mubr.bf16.mxu0 %v2533
  %2573 = vmatmul.mubr.bf16.gmra.mrb[0].mxu0 %v2532
  %v2574 = vpop.f32.mrb[0].mxu0
  %v2575 = vadd.f32 0.0, %v2574
  %v2576 = vpop.f32.mrb[0].mxu0
  %v2577 = vpop.f32.mrb[0].mxu0
  %v2578 = vadd.f32 0.0, %v2577
  %v2579 = vpop.f32.mrb[0].mxu0
  %2580 = vmatprep.mubr.bf16.mxu0 %v2535
  %2581 = vmatmul.mubr.bf16.gmra.mrb[0].mxu0 %v2534
  %v2582 = vpop.f32.mrb[0].mxu0
  %v2583 = vadd.f32 0.0, %v2582
  %v2584 = vpop.f32.mrb[0].mxu0
  %v2585 = vpop.f32.mrb[0].mxu0
  %v2586 = vadd.f32 0.0, %v2585
  %v2587 = vpop.f32.mrb[0].mxu0
  %2588 = vmatprep.mubr.bf16.mxu0 %v2537
  %2589 = vmatmul.mubr.bf16.gmra.mrb[0].mxu0 %v2536
  %v2590 = vpop.f32.mrb[0].mxu0
  %v2591 = vadd.f32 0.0, %v2590
  %v2592 = vpop.f32.mrb[0].mxu0
  %v2593 = vpop.f32.mrb[0].mxu0
  %v2594 = vadd.f32 0.0, %v2593
  %v2595 = vpop.f32.mrb[0].mxu0
  %2596 = vmatprep.mubr.bf16.mxu0 %v2539
  %2597 = vmatmul.mubr.bf16.gmra.mrb[0].mxu0 %v2538
  %v2598 = vpop.f32.mrb[0].mxu0
  %v2599 = vadd.f32 0.0, %v2598
  %v2600 = vpop.f32.mrb[0].mxu0
  %v2601 = vpop.f32.mrb[0].mxu0
  %v2602 = vadd.f32 0.0, %v2601
  %v2603 = vpop.f32.mrb[0].mxu0
  %2604 = vdwg.mxu0
  %v2605 = vadd.f32 %v2519, %v2575
  %v2606 = vadd.f32 %v2520, %v2578
  %v2607 = vadd.f32 %v2521, %v2583
  %v2608 = vadd.f32 %v2522, %v2586
  %v2609 = vadd.f32 %v2523, %v2591
  %v2610 = vadd.f32 %v2524, %v2594
  %v2611 = vadd.f32 %v2525, %v2599
  %v2612 = vadd.f32 %v2526, %v2602
  %s2613 = scalar_lea.vmem %s3, 416
  %v2614 = vld [vmem:[%s2613] sm:$0xff]
  %v2615 = vld [vmem:[%s2613 + $0x8] sm:$0xff]
  %v2616 = vld [vmem:[%s2613 + $0x10] sm:$0xff]
  %v2617 = vld [vmem:[%s2613 + $0x18] sm:$0xff]
  %v2618 = vunpack.c.l.s8.bf16 %v2614
  %v2619 = vunpack.c.l.s8.bf16 %v2615
  %v2620 = vunpack.c.h.s8.bf16 %v2614
  %v2621 = vunpack.c.h.s8.bf16 %v2615
  %v2622 = vunpack.c.l.s8.bf16 %v2616
  %v2623 = vunpack.c.l.s8.bf16 %v2617
  %v2624 = vunpack.c.h.s8.bf16 %v2616
  %v2625 = vunpack.c.h.s8.bf16 %v2617
  %2642 = vrot.lane.b32.xlu0 %v971, 96
  %v2643 = vpop.permute.xlu0 %2642
  %2644 = vrot.lane.b32.xlu0 %v975, 96
  %v2645 = vpop.permute.xlu0 %2644
  %2646 = vrot.lane.b32.xlu0 %v979, 96
  %v2647 = vpop.permute.xlu0 %2646
  %2648 = vrot.lane.b32.xlu0 %v983, 96
  %v2649 = vpop.permute.xlu0 %2648
  %2650 = vrot.lane.b32.xlu0 %v987, 96
  %v2651 = vpop.permute.xlu0 %2650
  %2652 = vrot.lane.b32.xlu0 %v991, 96
  %v2653 = vpop.permute.xlu0 %2652
  %2654 = vrot.lane.b32.xlu0 %v995, 96
  %v2655 = vpop.permute.xlu0 %2654
  %2656 = vrot.lane.b32.xlu0 %v999, 96
  %v2657 = vpop.permute.xlu0 %2656
  %2658 = vrot.lane.b32.xlu0 %v1003, 96
  %v2659 = vpop.permute.xlu0 %2658
  %2660 = vrot.lane.b32.xlu0 %v1007, 96
  %v2661 = vpop.permute.xlu0 %2660
  %2662 = vrot.lane.b32.xlu0 %v1011, 96
  %v2663 = vpop.permute.xlu0 %2662
  %2664 = vrot.lane.b32.xlu0 %v1015, 96
  %v2665 = vpop.permute.xlu0 %2664
  %2666 = vrot.lane.b32.xlu0 %v1019, 96
  %v2667 = vpop.permute.xlu0 %2666
  %2668 = vrot.lane.b32.xlu0 %v1023, 96
  %v2669 = vpop.permute.xlu0 %2668
  %2670 = vrot.lane.b32.xlu0 %v1027, 96
  %v2671 = vpop.permute.xlu0 %2670
  %2672 = vrot.lane.b32.xlu0 %v1031, 96
  %v2673 = vpop.permute.xlu0 %2672
  %2690 = vmatprep.subr.bf16.mxu0 0
  %2691 = vmatpush1.bf16.msra.mxu0 %v2643
  %2692 = vmatprep.subr.bf16.mxu0 0
  %2693 = vmatpush1.bf16.msra.mxu0 %v2645
  %2694 = vmatprep.subr.bf16.mxu0 0
  %2695 = vmatpush1.bf16.msra.mxu0 %v2647
  %2696 = vmatprep.subr.bf16.mxu0 0
  %2697 = vmatpush1.bf16.msra.mxu0 %v2649
  %2698 = vmatprep.subr.bf16.mxu0 0
  %2699 = vmatpush1.bf16.msra.mxu0 %v2651
  %2700 = vmatprep.subr.bf16.mxu0 0
  %2701 = vmatpush1.bf16.msra.mxu0 %v2653
  %2702 = vmatprep.subr.bf16.mxu0 0
  %2703 = vmatpush1.bf16.msra.mxu0 %v2655
  %2704 = vmatprep.subr.bf16.mxu0 0
  %2705 = vmatpush1.bf16.msra.mxu0 %v2657
  %2706 = vmatprep.subr.bf16.mxu0 0
  %2707 = vmatpush1.bf16.msra.mxu0 %v2659
  %2708 = vmatprep.subr.bf16.mxu0 0
  %2709 = vmatpush1.bf16.msra.mxu0 %v2661
  %2710 = vmatprep.subr.bf16.mxu0 0
  %2711 = vmatpush1.bf16.msra.mxu0 %v2663
  %2712 = vmatprep.subr.bf16.mxu0 0
  %2713 = vmatpush1.bf16.msra.mxu0 %v2665
  %2714 = vmatprep.subr.bf16.mxu0 0
  %2715 = vmatpush1.bf16.msra.mxu0 %v2667
  %2716 = vmatprep.subr.bf16.mxu0 0
  %2717 = vmatpush1.bf16.msra.mxu0 %v2669
  %2718 = vmatprep.subr.bf16.mxu0 0
  %2719 = vmatpush1.bf16.msra.mxu0 %v2671
  %2720 = vmatprep.subr.bf16.mxu0 0
  %2721 = vmatpush1.bf16.msra.mxu0 %v2673
  %2722 = vmatprep.mubr.bf16.mxu0 %v2619
  %2723 = vmatmul.mubr.bf16.gmra.mrb[0].mxu0 %v2618
  %v2724 = vpop.f32.mrb[0].mxu0
  %v2725 = vadd.f32 0.0, %v2724
  %v2726 = vpop.f32.mrb[0].mxu0
  %v2727 = vpop.f32.mrb[0].mxu0
  %v2728 = vadd.f32 0.0, %v2727
  %v2729 = vpop.f32.mrb[0].mxu0
  %2730 = vmatprep.mubr.bf16.mxu0 %v2621
  %2731 = vmatmul.mubr.bf16.gmra.mrb[0].mxu0 %v2620
  %v2732 = vpop.f32.mrb[0].mxu0
  %v2733 = vadd.f32 0.0, %v2732
  %v2734 = vpop.f32.mrb[0].mxu0
  %v2735 = vpop.f32.mrb[0].mxu0
  %v2736 = vadd.f32 0.0, %v2735
  %v2737 = vpop.f32.mrb[0].mxu0
  %2738 = vmatprep.mubr.bf16.mxu0 %v2623
  %2739 = vmatmul.mubr.bf16.gmra.mrb[0].mxu0 %v2622
  %v2740 = vpop.f32.mrb[0].mxu0
  %v2741 = vadd.f32 0.0, %v2740
  %v2742 = vpop.f32.mrb[0].mxu0
  %v2743 = vpop.f32.mrb[0].mxu0
  %v2744 = vadd.f32 0.0, %v2743
  %v2745 = vpop.f32.mrb[0].mxu0
  %2746 = vmatprep.mubr.bf16.mxu0 %v2625
  %2747 = vmatmul.mubr.bf16.gmra.mrb[0].mxu0 %v2624
  %v2748 = vpop.f32.mrb[0].mxu0
  %v2749 = vadd.f32 0.0, %v2748
  %v2750 = vpop.f32.mrb[0].mxu0
  %v2751 = vpop.f32.mrb[0].mxu0
  %v2752 = vadd.f32 0.0, %v2751
  %v2753 = vpop.f32.mrb[0].mxu0
  %2754 = vdwg.mxu0
  %v2755 = vadd.f32 %v2605, %v2725
  %v2756 = vadd.f32 %v2606, %v2728
  %v2757 = vadd.f32 %v2607, %v2733
  %v2758 = vadd.f32 %v2608, %v2736
  %v2759 = vadd.f32 %v2609, %v2741
  %v2760 = vadd.f32 %v2610, %v2744
  %v2761 = vadd.f32 %v2611, %v2749
  %v2762 = vadd.f32 %v2612, %v2752
  %s2763 = scalar_lea.vmem %s3, 448
  %v2764 = vld [vmem:[%s2763] sm:$0xff]
  %v2765 = vld [vmem:[%s2763 + $0x8] sm:$0xff]
  %v2766 = vld [vmem:[%s2763 + $0x10] sm:$0xff]
  %v2767 = vld [vmem:[%s2763 + $0x18] sm:$0xff]
  %v2768 = vunpack.c.l.s8.bf16 %v2764
  %v2769 = vunpack.c.l.s8.bf16 %v2765
  %v2770 = vunpack.c.h.s8.bf16 %v2764
  %v2771 = vunpack.c.h.s8.bf16 %v2765
  %v2772 = vunpack.c.l.s8.bf16 %v2766
  %v2773 = vunpack.c.l.s8.bf16 %v2767
  %v2774 = vunpack.c.h.s8.bf16 %v2766
  %v2775 = vunpack.c.h.s8.bf16 %v2767
  %2776 = vrot.lane.b32.xlu0 %v971, 64
  %v2777 = vpop.permute.xlu0 %2776
  %2778 = vrot.lane.b32.xlu0 %v975, 64
  %v2779 = vpop.permute.xlu0 %2778
  %2780 = vrot.lane.b32.xlu0 %v979, 64
  %v2781 = vpop.permute.xlu0 %2780
  %2782 = vrot.lane.b32.xlu0 %v983, 64
  %v2783 = vpop.permute.xlu0 %2782
  %2784 = vrot.lane.b32.xlu0 %v987, 64
  %v2785 = vpop.permute.xlu0 %2784
  %2786 = vrot.lane.b32.xlu0 %v991, 64
  %v2787 = vpop.permute.xlu0 %2786
  %2788 = vrot.lane.b32.xlu0 %v995, 64
  %v2789 = vpop.permute.xlu0 %2788
  %2790 = vrot.lane.b32.xlu0 %v999, 64
  %v2791 = vpop.permute.xlu0 %2790
  %2792 = vrot.lane.b32.xlu0 %v1003, 64
  %v2793 = vpop.permute.xlu0 %2792
  %2794 = vrot.lane.b32.xlu0 %v1007, 64
  %v2795 = vpop.permute.xlu0 %2794
  %2796 = vrot.lane.b32.xlu0 %v1011, 64
  %v2797 = vpop.permute.xlu0 %2796
  %2798 = vrot.lane.b32.xlu0 %v1015, 64
  %v2799 = vpop.permute.xlu0 %2798
  %2800 = vrot.lane.b32.xlu0 %v1019, 64
  %v2801 = vpop.permute.xlu0 %2800
  %2802 = vrot.lane.b32.xlu0 %v1023, 64
  %v2803 = vpop.permute.xlu0 %2802
  %2804 = vrot.lane.b32.xlu0 %v1027, 64
  %v2805 = vpop.permute.xlu0 %2804
  %2806 = vrot.lane.b32.xlu0 %v1031, 64
  %v2807 = vpop.permute.xlu0 %2806
  %2824 = vmatprep.subr.bf16.mxu0 0
  %2825 = vmatpush1.bf16.msra.mxu0 %v2777
  %2826 = vmatprep.subr.bf16.mxu0 0
  %2827 = vmatpush1.bf16.msra.mxu0 %v2779
  %2828 = vmatprep.subr.bf16.mxu0 0
  %2829 = vmatpush1.bf16.msra.mxu0 %v2781
  %2830 = vmatprep.subr.bf16.mxu0 0
  %2831 = vmatpush1.bf16.msra.mxu0 %v2783
  %2832 = vmatprep.subr.bf16.mxu0 0
  %2833 = vmatpush1.bf16.msra.mxu0 %v2785
  %2834 = vmatprep.subr.bf16.mxu0 0
  %2835 = vmatpush1.bf16.msra.mxu0 %v2787
  %2836 = vmatprep.subr.bf16.mxu0 0
  %2837 = vmatpush1.bf16.msra.mxu0 %v2789
  %2838 = vmatprep.subr.bf16.mxu0 0
  %2839 = vmatpush1.bf16.msra.mxu0 %v2791
  %2840 = vmatprep.subr.bf16.mxu0 0
  %2841 = vmatpush1.bf16.msra.mxu0 %v2793
  %2842 = vmatprep.subr.bf16.mxu0 0
  %2843 = vmatpush1.bf16.msra.mxu0 %v2795
  %2844 = vmatprep.subr.bf16.mxu0 0
  %2845 = vmatpush1.bf16.msra.mxu0 %v2797
  %2846 = vmatprep.subr.bf16.mxu0 0
  %2847 = vmatpush1.bf16.msra.mxu0 %v2799
  %2848 = vmatprep.subr.bf16.mxu0 0
  %2849 = vmatpush1.bf16.msra.mxu0 %v2801
  %2850 = vmatprep.subr.bf16.mxu0 0
  %2851 = vmatpush1.bf16.msra.mxu0 %v2803
  %2852 = vmatprep.subr.bf16.mxu0 0
  %2853 = vmatpush1.bf16.msra.mxu0 %v2805
  %2854 = vmatprep.subr.bf16.mxu0 0
  %2855 = vmatpush1.bf16.msra.mxu0 %v2807
  %2856 = vmatprep.mubr.bf16.mxu0 %v2769
  %2857 = vmatmul.mubr.bf16.gmra.mrb[0].mxu0 %v2768
  %v2858 = vpop.f32.mrb[0].mxu0
  %v2859 = vadd.f32 0.0, %v2858
  %v2860 = vpop.f32.mrb[0].mxu0
  %v2861 = vpop.f32.mrb[0].mxu0
  %v2862 = vadd.f32 0.0, %v2861
  %v2863 = vpop.f32.mrb[0].mxu0
  %2864 = vmatprep.mubr.bf16.mxu0 %v2771
  %2865 = vmatmul.mubr.bf16.gmra.mrb[0].mxu0 %v2770
  %v2866 = vpop.f32.mrb[0].mxu0
  %v2867 = vadd.f32 0.0, %v2866
  %v2868 = vpop.f32.mrb[0].mxu0
  %v2869 = vpop.f32.mrb[0].mxu0
  %v2870 = vadd.f32 0.0, %v2869
  %v2871 = vpop.f32.mrb[0].mxu0
  %2872 = vmatprep.mubr.bf16.mxu0 %v2773
  %2873 = vmatmul.mubr.bf16.gmra.mrb[0].mxu0 %v2772
  %v2874 = vpop.f32.mrb[0].mxu0
  %v2875 = vadd.f32 0.0, %v2874
  %v2876 = vpop.f32.mrb[0].mxu0
  %v2877 = vpop.f32.mrb[0].mxu0
  %v2878 = vadd.f32 0.0, %v2877
  %v2879 = vpop.f32.mrb[0].mxu0
  %2880 = vmatprep.mubr.bf16.mxu0 %v2775
  %2881 = vmatmul.mubr.bf16.gmra.mrb[0].mxu0 %v2774
  %v2882 = vpop.f32.mrb[0].mxu0
  %v2883 = vadd.f32 0.0, %v2882
  %v2884 = vpop.f32.mrb[0].mxu0
  %v2885 = vpop.f32.mrb[0].mxu0
  %v2886 = vadd.f32 0.0, %v2885
  %v2887 = vpop.f32.mrb[0].mxu0
  %2888 = vdwg.mxu0
  %v2889 = vadd.f32 %v2755, %v2859
  %v2890 = vadd.f32 %v2756, %v2862
  %v2891 = vadd.f32 %v2757, %v2867
  %v2892 = vadd.f32 %v2758, %v2870
  %v2893 = vadd.f32 %v2759, %v2875
  %v2894 = vadd.f32 %v2760, %v2878
  %v2895 = vadd.f32 %v2761, %v2883
  %v2896 = vadd.f32 %v2762, %v2886
  %s2897 = scalar_lea.vmem %s3, 480
  %v2898 = vld [vmem:[%s2897] sm:$0xff]
  %v2899 = vld [vmem:[%s2897 + $0x8] sm:$0xff]
  %v2900 = vld [vmem:[%s2897 + $0x10] sm:$0xff]
  %v2901 = vld [vmem:[%s2897 + $0x18] sm:$0xff]
  %v2902 = vunpack.c.l.s8.bf16 %v2898
  %v2903 = vunpack.c.l.s8.bf16 %v2899
  %v2904 = vunpack.c.h.s8.bf16 %v2898
  %v2905 = vunpack.c.h.s8.bf16 %v2899
  %v2906 = vunpack.c.l.s8.bf16 %v2900
  %v2907 = vunpack.c.l.s8.bf16 %v2901
  %v2908 = vunpack.c.h.s8.bf16 %v2900
  %v2909 = vunpack.c.h.s8.bf16 %v2901
  %2910 = vrot.lane.b32.xlu0 %v971, 32
  %v2911 = vpop.permute.xlu0 %2910
  %2912 = vrot.lane.b32.xlu0 %v975, 32
  %v2913 = vpop.permute.xlu0 %2912
  %2914 = vrot.lane.b32.xlu0 %v979, 32
  %v2915 = vpop.permute.xlu0 %2914
  %2916 = vrot.lane.b32.xlu0 %v983, 32
  %v2917 = vpop.permute.xlu0 %2916
  %2918 = vrot.lane.b32.xlu0 %v987, 32
  %v2919 = vpop.permute.xlu0 %2918
  %2920 = vrot.lane.b32.xlu0 %v991, 32
  %v2921 = vpop.permute.xlu0 %2920
  %2922 = vrot.lane.b32.xlu0 %v995, 32
  %v2923 = vpop.permute.xlu0 %2922
  %2924 = vrot.lane.b32.xlu0 %v999, 32
  %v2925 = vpop.permute.xlu0 %2924
  %2926 = vrot.lane.b32.xlu0 %v1003, 32
  %v2927 = vpop.permute.xlu0 %2926
  %2928 = vrot.lane.b32.xlu0 %v1007, 32
  %v2929 = vpop.permute.xlu0 %2928
  %2930 = vrot.lane.b32.xlu0 %v1011, 32
  %v2931 = vpop.permute.xlu0 %2930
  %2932 = vrot.lane.b32.xlu0 %v1015, 32
  %v2933 = vpop.permute.xlu0 %2932
  %2934 = vrot.lane.b32.xlu0 %v1019, 32
  %v2935 = vpop.permute.xlu0 %2934
  %2936 = vrot.lane.b32.xlu0 %v1023, 32
  %v2937 = vpop.permute.xlu0 %2936
  %2938 = vrot.lane.b32.xlu0 %v1027, 32
  %v2939 = vpop.permute.xlu0 %2938
  %2940 = vrot.lane.b32.xlu0 %v1031, 32
  %v2941 = vpop.permute.xlu0 %2940
  %2958 = vmatprep.subr.bf16.mxu0 0
  %2959 = vmatpush1.bf16.msra.mxu0 %v2911
  %2960 = vmatprep.subr.bf16.mxu0 0
  %2961 = vmatpush1.bf16.msra.mxu0 %v2913
  %2962 = vmatprep.subr.bf16.mxu0 0
  %2963 = vmatpush1.bf16.msra.mxu0 %v2915
  %2964 = vmatprep.subr.bf16.mxu0 0
  %2965 = vmatpush1.bf16.msra.mxu0 %v2917
  %2966 = vmatprep.subr.bf16.mxu0 0
  %2967 = vmatpush1.bf16.msra.mxu0 %v2919
  %2968 = vmatprep.subr.bf16.mxu0 0
  %2969 = vmatpush1.bf16.msra.mxu0 %v2921
  %2970 = vmatprep.subr.bf16.mxu0 0
  %2971 = vmatpush1.bf16.msra.mxu0 %v2923
  %2972 = vmatprep.subr.bf16.mxu0 0
  %2973 = vmatpush1.bf16.msra.mxu0 %v2925
  %2974 = vmatprep.subr.bf16.mxu0 0
  %2975 = vmatpush1.bf16.msra.mxu0 %v2927
  %2976 = vmatprep.subr.bf16.mxu0 0
  %2977 = vmatpush1.bf16.msra.mxu0 %v2929
  %2978 = vmatprep.subr.bf16.mxu0 0
  %2979 = vmatpush1.bf16.msra.mxu0 %v2931
  %2980 = vmatprep.subr.bf16.mxu0 0
  %2981 = vmatpush1.bf16.msra.mxu0 %v2933
  %2982 = vmatprep.subr.bf16.mxu0 0
  %2983 = vmatpush1.bf16.msra.mxu0 %v2935
  %2984 = vmatprep.subr.bf16.mxu0 0
  %2985 = vmatpush1.bf16.msra.mxu0 %v2937
  %2986 = vmatprep.subr.bf16.mxu0 0
  %2987 = vmatpush1.bf16.msra.mxu0 %v2939
  %2988 = vmatprep.subr.bf16.mxu0 0
  %2989 = vmatpush1.bf16.msra.mxu0 %v2941
  %2990 = vmatprep.mubr.bf16.mxu0 %v2903
  %2991 = vmatmul.mubr.bf16.gmra.mrb[0].mxu0 %v2902
  %v2992 = vpop.f32.mrb[0].mxu0
  %v2993 = vadd.f32 0.0, %v2992
  %v2994 = vpop.f32.mrb[0].mxu0
  %v2995 = vpop.f32.mrb[0].mxu0
  %v2996 = vadd.f32 0.0, %v2995
  %v2997 = vpop.f32.mrb[0].mxu0
  %2998 = vmatprep.mubr.bf16.mxu0 %v2905
  %2999 = vmatmul.mubr.bf16.gmra.mrb[0].mxu0 %v2904
  %v3000 = vpop.f32.mrb[0].mxu0
  %v3001 = vadd.f32 0.0, %v3000
  %v3002 = vpop.f32.mrb[0].mxu0
  %v3003 = vpop.f32.mrb[0].mxu0
  %v3004 = vadd.f32 0.0, %v3003
  %v3005 = vpop.f32.mrb[0].mxu0
  %3006 = vmatprep.mubr.bf16.mxu0 %v2907
  %3007 = vmatmul.mubr.bf16.gmra.mrb[0].mxu0 %v2906
  %v3008 = vpop.f32.mrb[0].mxu0
  %v3009 = vadd.f32 0.0, %v3008
  %v3010 = vpop.f32.mrb[0].mxu0
  %v3011 = vpop.f32.mrb[0].mxu0
  %v3012 = vadd.f32 0.0, %v3011
  %v3013 = vpop.f32.mrb[0].mxu0
  %3014 = vmatprep.mubr.bf16.mxu0 %v2909
  %3015 = vmatmul.mubr.bf16.gmra.mrb[0].mxu0 %v2908
  %v3016 = vpop.f32.mrb[0].mxu0
  %v3017 = vadd.f32 0.0, %v3016
  %v3018 = vpop.f32.mrb[0].mxu0
  %v3019 = vpop.f32.mrb[0].mxu0
  %v3020 = vadd.f32 0.0, %v3019
  %v3021 = vpop.f32.mrb[0].mxu0
  %3022 = vdwg.mxu0
  %v3023 = vadd.f32 %v2889, %v2993
  %v3024 = vadd.f32 %v2890, %v2996
  %v3025 = vadd.f32 %v2891, %v3001
  %v3026 = vadd.f32 %v2892, %v3004
  %v3027 = vadd.f32 %v2893, %v3009
  %v3028 = vadd.f32 %v2894, %v3012
  %v3029 = vadd.f32 %v2895, %v3017
  %v3030 = vadd.f32 %v2896, %v3020
  %vm3031 = vcmask 261120
  %v3032 = vsel %vm3031, %v3023, 0.0
  %v3033 = vsel %vm3031, %v3024, 0.0
  %v3034 = vadd.f32 %v3032, %v3033
  %v3035 = vsel %vm3031, %v3025, 0.0
  %v3036 = vadd.f32 %v3034, %v3035
  %v3037 = vsel %vm3031, %v3026, 0.0
  %v3038 = vadd.f32 %v3036, %v3037
  %v3039 = vsel %vm3031, %v3027, 0.0
  %v3040 = vadd.f32 %v3038, %v3039
  %v3041 = vsel %vm3031, %v3028, 0.0
  %v3042 = vadd.f32 %v3040, %v3041
  %v3043 = vsel %vm3031, %v3029, 0.0
  %v3044 = vadd.f32 %v3042, %v3043
  %v3045 = vsel %vm3031, %v3030, 0.0
  %v3046 = vadd.f32 %v3044, %v3045
  %v3047 = vrot.slane %v3046, 4
  %v3048 = vadd.f32 %v3046, %v3047
  %v3049 = vrot.slane %v3048, 2
  %v3050 = vadd.f32 %v3048, %v3049
  %v3051 = vrot.slane %v3050, 1
  %v3052 = vadd.f32 %v3050, %v3051
  %3054 = vrot.lane.b32.xlu0 %v3052, 112
  %v3055 = vpop.permute.xlu0 %3054
  %v3057 = vadd.f32 %v3052, %v3055
  %v3058 = vrcp.pop 128.0
  %v3059 = vmul.f32 %v3057, %v3058
  %3061 = vrot.lane.b32.xlu0 %v3059, 16
  %v3062 = vpop.permute.xlu0 %3061
  %v3064 = vsel %vm533, %v3059, %v3062
  %v3065 = vlaneseq
  %v3066 = vshrl.u32 %v3065, 7
  %v3067 = vsub.s32 0, %v3066
  %v3068 = vrot.slane %v3064, %v3067
  %v3069 = vsub.f32 %v3023, %v3068
  %v3070 = vsub.f32 %v3024, %v3068
  %v3071 = vsub.f32 %v3025, %v3068
  %v3072 = vsub.f32 %v3026, %v3068
  %v3073 = vsub.f32 %v3027, %v3068
  %v3074 = vsub.f32 %v3028, %v3068
  %v3075 = vsub.f32 %v3029, %v3068
  %v3076 = vsub.f32 %v3030, %v3068
  %v3077 = vmul.f32 %v3069, %v3069
  %v3078 = vmul.f32 %v3070, %v3070
  %v3079 = vmul.f32 %v3071, %v3071
  %v3080 = vmul.f32 %v3072, %v3072
  %v3081 = vmul.f32 %v3073, %v3073
  %v3082 = vmul.f32 %v3074, %v3074
  %v3083 = vmul.f32 %v3075, %v3075
  %v3084 = vmul.f32 %v3076, %v3076
  %v3085 = vsel %vm3031, %v3077, 0.0
  %v3086 = vsel %vm3031, %v3078, 0.0
  %v3087 = vadd.f32 %v3085, %v3086
  %v3088 = vsel %vm3031, %v3079, 0.0
  %v3089 = vadd.f32 %v3087, %v3088
  %v3090 = vsel %vm3031, %v3080, 0.0
  %v3091 = vadd.f32 %v3089, %v3090
  %v3092 = vsel %vm3031, %v3081, 0.0
  %v3093 = vadd.f32 %v3091, %v3092
  %v3094 = vsel %vm3031, %v3082, 0.0
  %v3095 = vadd.f32 %v3093, %v3094
  %v3096 = vsel %vm3031, %v3083, 0.0
  %v3097 = vadd.f32 %v3095, %v3096
  %v3098 = vsel %vm3031, %v3084, 0.0
  %v3099 = vadd.f32 %v3097, %v3098
  %v3100 = vrot.slane %v3099, 4
  %v3101 = vadd.f32 %v3099, %v3100
  %v3102 = vrot.slane %v3101, 2
  %v3103 = vadd.f32 %v3101, %v3102
  %v3104 = vrot.slane %v3103, 1
  %v3105 = vadd.f32 %v3103, %v3104
  %3107 = vrot.lane.b32.xlu0 %v3105, 112
  %v3108 = vpop.permute.xlu0 %3107
  %v3110 = vadd.f32 %v3105, %v3108
  %v3111 = vmul.f32 %v3110, %v3058
  %v3112 = vadd.f32 %v3111, 1e-05
  %v3113 = vrsqrt.pop %v3112
  %v3115 = vrot.slane %v3113, 7
  %v3117 = vmul.f32 %v39, %v3115
  %v3119 = vrot.slane %v3117, 1
  %v3121 = vmul.f32 %v3059, %v3119
  %v3123 = vrot.slane %v3121, 6
  %v3125 = vsub.f32 %v39, %v3123
  %3126 = vrot.lane.b32.xlu0 %v3117, 16
  %v3127 = vpop.permute.xlu0 %3126
  %v3129 = vsel %vm533, %v3117, %v3127
  %3131 = vrot.lane.b32.xlu0 %v3125, 16
  %v3132 = vpop.permute.xlu0 %3131
  %v3134 = vsel %vm533, %v3125, %v3132
  %v3135 = vlaneseq
  %v3136 = vshrl.u32 %v3135, 7
  %v3137 = vsub.s32 1, %v3136
  %v3138 = vrot.slane %v3129, %v3137
  %v3139 = vmul.f32 %v3023, %v3138
  %v3140 = vmul.f32 %v3024, %v3138
  %v3141 = vmul.f32 %v3025, %v3138
  %v3142 = vmul.f32 %v3026, %v3138
  %v3143 = vmul.f32 %v3027, %v3138
  %v3144 = vmul.f32 %v3028, %v3138
  %v3145 = vmul.f32 %v3029, %v3138
  %v3146 = vmul.f32 %v3030, %v3138
  %v3147 = vlaneseq
  %v3148 = vshrl.u32 %v3147, 7
  %v3149 = vsub.s32 2, %v3148
  %v3150 = vrot.slane %v3134, %v3149
  %v3151 = vadd.f32 %v3139, %v3150
  %v3152 = vadd.f32 %v3140, %v3150
  %v3153 = vadd.f32 %v3141, %v3150
  %v3154 = vadd.f32 %v3142, %v3150
  %v3155 = vadd.f32 %v3143, %v3150
  %v3156 = vadd.f32 %v3144, %v3150
  %v3157 = vadd.f32 %v3145, %v3150
  %v3158 = vadd.f32 %v3146, %v3150
  %vm3159 = vcmp.ge.f32.partialorder %v3151, 0.0
  %vm3160 = vcmp.ge.f32.partialorder %v3152, 0.0
  %vm3161 = vcmp.ge.f32.partialorder %v3153, 0.0
  %vm3162 = vcmp.ge.f32.partialorder %v3154, 0.0
  %vm3163 = vcmp.ge.f32.partialorder %v3155, 0.0
  %vm3164 = vcmp.ge.f32.partialorder %v3156, 0.0
  %vm3165 = vcmp.ge.f32.partialorder %v3157, 0.0
  %vm3166 = vcmp.ge.f32.partialorder %v3158, 0.0
  %v3167 = vmul.f32 %v3151, 0.2
  %v3168 = vmul.f32 %v3152, 0.2
  %v3169 = vmul.f32 %v3153, 0.2
  %v3170 = vmul.f32 %v3154, 0.2
  %v3171 = vmul.f32 %v3155, 0.2
  %v3172 = vmul.f32 %v3156, 0.2
  %v3173 = vmul.f32 %v3157, 0.2
  %v3174 = vmul.f32 %v3158, 0.2
  %v3175 = vsel %vm3159, %v3151, %v3167
  %v3176 = vsel %vm3160, %v3152, %v3168
  %v3177 = vsel %vm3161, %v3153, %v3169
  %v3178 = vsel %vm3162, %v3154, %v3170
  %v3179 = vsel %vm3163, %v3155, %v3171
  %v3180 = vsel %vm3164, %v3156, %v3172
  %v3181 = vsel %vm3165, %v3157, %v3173
  %v3182 = vsel %vm3166, %v3158, %v3174
  %v3183 = vpack.c.bf16 %v3176, %v3175
  %v3184 = vpack.c.bf16 %v3178, %v3177
  %v3185 = vpack.c.bf16 %v3180, %v3179
  %v3186 = vpack.c.bf16 %v3182, %v3181
  %v3187 = vld [vmem:[%s6] sm:$0xff]
  %v3188 = vld [vmem:[%s6 + $0x8] sm:$0xff]
  %v3189 = vld [vmem:[%s6 + $0x10] sm:$0xff]
  %v3190 = vld [vmem:[%s6 + $0x18] sm:$0xff]
  %v3191 = vld [vmem:[%s6 + $0x20] sm:$0xff]
  %v3192 = vld [vmem:[%s6 + $0x28] sm:$0xff]
  %v3193 = vld [vmem:[%s6 + $0x30] sm:$0xff]
  %v3194 = vld [vmem:[%s6 + $0x38] sm:$0xff]
  %v3195 = vld [vmem:[%s6 + $0x40] sm:$0xff]
  %v3196 = vld [vmem:[%s6 + $0x48] sm:$0xff]
  %v3197 = vld [vmem:[%s6 + $0x50] sm:$0xff]
  %v3198 = vld [vmem:[%s6 + $0x58] sm:$0xff]
  %v3199 = vld [vmem:[%s6 + $0x60] sm:$0xff]
  %v3200 = vld [vmem:[%s6 + $0x68] sm:$0xff]
  %v3201 = vld [vmem:[%s6 + $0x70] sm:$0xff]
  %v3202 = vld [vmem:[%s6 + $0x78] sm:$0xff]
  %v3219 = vunpack.c.l.b16 %v3187
  %v3220 = vunpack.c.h.b16 %v3187
  %v3221 = vunpack.c.l.b16 %v3188
  %v3222 = vunpack.c.h.b16 %v3188
  %v3223 = vunpack.c.l.b16 %v3189
  %v3224 = vunpack.c.h.b16 %v3189
  %v3225 = vunpack.c.l.b16 %v3190
  %v3226 = vunpack.c.h.b16 %v3190
  %v3227 = vunpack.c.l.b16 %v3191
  %v3228 = vunpack.c.h.b16 %v3191
  %v3229 = vunpack.c.l.b16 %v3192
  %v3230 = vunpack.c.h.b16 %v3192
  %v3231 = vunpack.c.l.b16 %v3193
  %v3232 = vunpack.c.h.b16 %v3193
  %v3233 = vunpack.c.l.b16 %v3194
  %v3234 = vunpack.c.h.b16 %v3194
  %v3235 = vunpack.c.l.b16 %v3195
  %v3236 = vunpack.c.h.b16 %v3195
  %v3237 = vunpack.c.l.b16 %v3196
  %v3238 = vunpack.c.h.b16 %v3196
  %v3239 = vunpack.c.l.b16 %v3197
  %v3240 = vunpack.c.h.b16 %v3197
  %v3241 = vunpack.c.l.b16 %v3198
  %v3242 = vunpack.c.h.b16 %v3198
  %v3243 = vunpack.c.l.b16 %v3199
  %v3244 = vunpack.c.h.b16 %v3199
  %v3245 = vunpack.c.l.b16 %v3200
  %v3246 = vunpack.c.h.b16 %v3200
  %v3247 = vunpack.c.l.b16 %v3201
  %v3248 = vunpack.c.h.b16 %v3201
  %v3249 = vunpack.c.l.b16 %v3202
  %v3250 = vunpack.c.h.b16 %v3202
  %v3251 = vpack.c.b16 %v3227, %v3219
  %v3252 = vpack.c.b16 %v3228, %v3220
  %v3253 = vpack.c.b16 %v3229, %v3221
  %v3254 = vpack.c.b16 %v3230, %v3222
  %v3255 = vpack.c.b16 %v3231, %v3223
  %v3256 = vpack.c.b16 %v3232, %v3224
  %v3257 = vpack.c.b16 %v3233, %v3225
  %v3258 = vpack.c.b16 %v3234, %v3226
  %v3259 = vpack.c.b16 %v3243, %v3235
  %v3260 = vpack.c.b16 %v3244, %v3236
  %v3261 = vpack.c.b16 %v3245, %v3237
  %v3262 = vpack.c.b16 %v3246, %v3238
  %v3263 = vpack.c.b16 %v3247, %v3239
  %v3264 = vpack.c.b16 %v3248, %v3240
  %v3265 = vpack.c.b16 %v3249, %v3241
  %v3266 = vpack.c.b16 %v3250, %v3242
  %v3284 = vsel %vm3031, %v3183, 0
  %v3287 = vsel %vm3031, %v3184, 0
  %v3290 = vsel %vm3031, %v3185, 0
  %v3293 = vsel %vm3031, %v3186, 0
  %3295 = vmatprep.subr.bf16.mxu0 %v3252
  %3296 = vmatpush1.bf16.msra.mxu0 %v3251
  %3297 = vmatprep.subr.bf16.mxu0 %v3260
  %3298 = vmatpush1.bf16.msra.mxu0 %v3259
  %3299 = vmatprep.subr.bf16.mxu0 0
  %3300 = vmatpush1.bf16.msra.mxu0 0
  %3301 = vmatprep.subr.bf16.mxu0 0
  %3302 = vmatpush1.bf16.msra.mxu0 0
  %3303 = vmatprep.subr.bf16.mxu0 0
  %3304 = vmatpush1.bf16.msra.mxu0 0
  %3305 = vmatprep.subr.bf16.mxu0 0
  %3306 = vmatpush1.bf16.msra.mxu0 0
  %3307 = vmatprep.subr.bf16.mxu0 0
  %3308 = vmatpush1.bf16.msra.mxu0 0
  %3309 = vmatprep.subr.bf16.mxu0 0
  %3310 = vmatpush1.bf16.msra.mxu0 0
  %3311 = vmatprep.subr.bf16.mxu0 0
  %3312 = vmatpush1.bf16.msra.mxu0 0
  %3313 = vmatprep.subr.bf16.mxu0 0
  %3314 = vmatpush1.bf16.msra.mxu0 0
  %3315 = vmatprep.subr.bf16.mxu0 0
  %3316 = vmatpush1.bf16.msra.mxu0 0
  %3317 = vmatprep.subr.bf16.mxu0 0
  %3318 = vmatpush1.bf16.msra.mxu0 0
  %3319 = vmatprep.subr.bf16.mxu0 0
  %3320 = vmatpush1.bf16.msra.mxu0 0
  %3321 = vmatprep.subr.bf16.mxu0 0
  %3322 = vmatpush1.bf16.msra.mxu0 0
  %3323 = vmatprep.subr.bf16.mxu0 0
  %3324 = vmatpush1.bf16.msra.mxu0 0
  %3325 = vmatprep.subr.bf16.mxu0 0
  %3326 = vmatpush1.bf16.msra.mxu0 0
  %3327 = vmatprep.mubr.bf16.mxu0 0
  %3328 = vmatmul.mubr.bf16.gmra.mrb[0].mxu0 %v3284
  %v3329 = vpop.f32.mrb[0].mxu0
  %v3330 = vadd.f32 0.0, %v3329
  %v3331 = vpop.f32.mrb[0].mxu0
  %v3332 = vadd.f32 0.0, %v3331
  %v3333 = vpop.f32.mrb[0].mxu0
  %v3334 = vadd.f32 0.0, %v3333
  %v3335 = vpop.f32.mrb[0].mxu0
  %v3336 = vadd.f32 0.0, %v3335
  %3337 = vmatprep.mubr.bf16.mxu0 0
  %3338 = vmatmul.mubr.bf16.gmra.mrb[0].mxu0 %v3287
  %v3339 = vpop.f32.mrb[0].mxu0
  %v3340 = vadd.f32 0.0, %v3339
  %v3341 = vpop.f32.mrb[0].mxu0
  %v3342 = vadd.f32 0.0, %v3341
  %v3343 = vpop.f32.mrb[0].mxu0
  %v3344 = vadd.f32 0.0, %v3343
  %v3345 = vpop.f32.mrb[0].mxu0
  %v3346 = vadd.f32 0.0, %v3345
  %3347 = vmatprep.mubr.bf16.mxu0 0
  %3348 = vmatmul.mubr.bf16.gmra.mrb[0].mxu0 %v3290
  %v3349 = vpop.f32.mrb[0].mxu0
  %v3350 = vadd.f32 0.0, %v3349
  %v3351 = vpop.f32.mrb[0].mxu0
  %v3352 = vadd.f32 0.0, %v3351
  %v3353 = vpop.f32.mrb[0].mxu0
  %v3354 = vadd.f32 0.0, %v3353
  %v3355 = vpop.f32.mrb[0].mxu0
  %v3356 = vadd.f32 0.0, %v3355
  %3357 = vmatprep.mubr.bf16.mxu0 0
  %3358 = vmatmul.mubr.bf16.gmra.mrb[0].mxu0 %v3293
  %v3359 = vpop.f32.mrb[0].mxu0
  %v3360 = vadd.f32 0.0, %v3359
  %v3361 = vpop.f32.mrb[0].mxu0
  %v3362 = vadd.f32 0.0, %v3361
  %v3363 = vpop.f32.mrb[0].mxu0
  %v3364 = vadd.f32 0.0, %v3363
  %v3365 = vpop.f32.mrb[0].mxu0
  %v3366 = vadd.f32 0.0, %v3365
  %3367 = vdwg.mxu0
  %3368 = vmatprep.subr.bf16.mxu0 %v3254
  %3369 = vmatpush1.bf16.msra.mxu0 %v3253
  %3370 = vmatprep.subr.bf16.mxu0 %v3262
  %3371 = vmatpush1.bf16.msra.mxu0 %v3261
  %3372 = vmatprep.subr.bf16.mxu0 0
  %3373 = vmatpush1.bf16.msra.mxu0 0
  %3374 = vmatprep.subr.bf16.mxu0 0
  %3375 = vmatpush1.bf16.msra.mxu0 0
  %3376 = vmatprep.subr.bf16.mxu0 0
  %3377 = vmatpush1.bf16.msra.mxu0 0
  %3378 = vmatprep.subr.bf16.mxu0 0
  %3379 = vmatpush1.bf16.msra.mxu0 0
  %3380 = vmatprep.subr.bf16.mxu0 0
  %3381 = vmatpush1.bf16.msra.mxu0 0
  %3382 = vmatprep.subr.bf16.mxu0 0
  %3383 = vmatpush1.bf16.msra.mxu0 0
  %3384 = vmatprep.subr.bf16.mxu0 0
  %3385 = vmatpush1.bf16.msra.mxu0 0
  %3386 = vmatprep.subr.bf16.mxu0 0
  %3387 = vmatpush1.bf16.msra.mxu0 0
  %3388 = vmatprep.subr.bf16.mxu0 0
  %3389 = vmatpush1.bf16.msra.mxu0 0
  %3390 = vmatprep.subr.bf16.mxu0 0
  %3391 = vmatpush1.bf16.msra.mxu0 0
  %3392 = vmatprep.subr.bf16.mxu0 0
  %3393 = vmatpush1.bf16.msra.mxu0 0
  %3394 = vmatprep.subr.bf16.mxu0 0
  %3395 = vmatpush1.bf16.msra.mxu0 0
  %3396 = vmatprep.subr.bf16.mxu0 0
  %3397 = vmatpush1.bf16.msra.mxu0 0
  %3398 = vmatprep.subr.bf16.mxu0 0
  %3399 = vmatpush1.bf16.msra.mxu0 0
  %3400 = vmatprep.mubr.bf16.mxu0 0
  %3401 = vmatmul.mubr.bf16.gmra.mrb[0].mxu0 %v3284
  %v3402 = vpop.f32.mrb[0].mxu0
  %v3403 = vadd.f32 0.0, %v3402
  %v3404 = vpop.f32.mrb[0].mxu0
  %v3405 = vadd.f32 0.0, %v3404
  %v3406 = vpop.f32.mrb[0].mxu0
  %v3407 = vadd.f32 0.0, %v3406
  %v3408 = vpop.f32.mrb[0].mxu0
  %v3409 = vadd.f32 0.0, %v3408
  %3410 = vmatprep.mubr.bf16.mxu0 0
  %3411 = vmatmul.mubr.bf16.gmra.mrb[0].mxu0 %v3287
  %v3412 = vpop.f32.mrb[0].mxu0
  %v3413 = vadd.f32 0.0, %v3412
  %v3414 = vpop.f32.mrb[0].mxu0
  %v3415 = vadd.f32 0.0, %v3414
  %v3416 = vpop.f32.mrb[0].mxu0
  %v3417 = vadd.f32 0.0, %v3416
  %v3418 = vpop.f32.mrb[0].mxu0
  %v3419 = vadd.f32 0.0, %v3418
  %3420 = vmatprep.mubr.bf16.mxu0 0
  %3421 = vmatmul.mubr.bf16.gmra.mrb[0].mxu0 %v3290
  %v3422 = vpop.f32.mrb[0].mxu0
  %v3423 = vadd.f32 0.0, %v3422
  %v3424 = vpop.f32.mrb[0].mxu0
  %v3425 = vadd.f32 0.0, %v3424
  %v3426 = vpop.f32.mrb[0].mxu0
  %v3427 = vadd.f32 0.0, %v3426
  %v3428 = vpop.f32.mrb[0].mxu0
  %v3429 = vadd.f32 0.0, %v3428
  %3430 = vmatprep.mubr.bf16.mxu0 0
  %3431 = vmatmul.mubr.bf16.gmra.mrb[0].mxu0 %v3293
  %v3432 = vpop.f32.mrb[0].mxu0
  %v3433 = vadd.f32 0.0, %v3432
  %v3434 = vpop.f32.mrb[0].mxu0
  %v3435 = vadd.f32 0.0, %v3434
  %v3436 = vpop.f32.mrb[0].mxu0
  %v3437 = vadd.f32 0.0, %v3436
  %v3438 = vpop.f32.mrb[0].mxu0
  %v3439 = vadd.f32 0.0, %v3438
  %3440 = vdwg.mxu0
  %3441 = vmatprep.subr.bf16.mxu0 %v3256
  %3442 = vmatpush1.bf16.msra.mxu0 %v3255
  %3443 = vmatprep.subr.bf16.mxu0 %v3264
  %3444 = vmatpush1.bf16.msra.mxu0 %v3263
  %3445 = vmatprep.subr.bf16.mxu0 0
  %3446 = vmatpush1.bf16.msra.mxu0 0
  %3447 = vmatprep.subr.bf16.mxu0 0
  %3448 = vmatpush1.bf16.msra.mxu0 0
  %3449 = vmatprep.subr.bf16.mxu0 0
  %3450 = vmatpush1.bf16.msra.mxu0 0
  %3451 = vmatprep.subr.bf16.mxu0 0
  %3452 = vmatpush1.bf16.msra.mxu0 0
  %3453 = vmatprep.subr.bf16.mxu0 0
  %3454 = vmatpush1.bf16.msra.mxu0 0
  %3455 = vmatprep.subr.bf16.mxu0 0
  %3456 = vmatpush1.bf16.msra.mxu0 0
  %3457 = vmatprep.subr.bf16.mxu0 0
  %3458 = vmatpush1.bf16.msra.mxu0 0
  %3459 = vmatprep.subr.bf16.mxu0 0
  %3460 = vmatpush1.bf16.msra.mxu0 0
  %3461 = vmatprep.subr.bf16.mxu0 0
  %3462 = vmatpush1.bf16.msra.mxu0 0
  %3463 = vmatprep.subr.bf16.mxu0 0
  %3464 = vmatpush1.bf16.msra.mxu0 0
  %3465 = vmatprep.subr.bf16.mxu0 0
  %3466 = vmatpush1.bf16.msra.mxu0 0
  %3467 = vmatprep.subr.bf16.mxu0 0
  %3468 = vmatpush1.bf16.msra.mxu0 0
  %3469 = vmatprep.subr.bf16.mxu0 0
  %3470 = vmatpush1.bf16.msra.mxu0 0
  %3471 = vmatprep.subr.bf16.mxu0 0
  %3472 = vmatpush1.bf16.msra.mxu0 0
  %3473 = vmatprep.mubr.bf16.mxu0 0
  %3474 = vmatmul.mubr.bf16.gmra.mrb[0].mxu0 %v3284
  %v3475 = vpop.f32.mrb[0].mxu0
  %v3476 = vadd.f32 0.0, %v3475
  %v3477 = vpop.f32.mrb[0].mxu0
  %v3478 = vadd.f32 0.0, %v3477
  %v3479 = vpop.f32.mrb[0].mxu0
  %v3480 = vadd.f32 0.0, %v3479
  %v3481 = vpop.f32.mrb[0].mxu0
  %v3482 = vadd.f32 0.0, %v3481
  %3483 = vmatprep.mubr.bf16.mxu0 0
  %3484 = vmatmul.mubr.bf16.gmra.mrb[0].mxu0 %v3287
  %v3485 = vpop.f32.mrb[0].mxu0
  %v3486 = vadd.f32 0.0, %v3485
  %v3487 = vpop.f32.mrb[0].mxu0
  %v3488 = vadd.f32 0.0, %v3487
  %v3489 = vpop.f32.mrb[0].mxu0
  %v3490 = vadd.f32 0.0, %v3489
  %v3491 = vpop.f32.mrb[0].mxu0
  %v3492 = vadd.f32 0.0, %v3491
  %3493 = vmatprep.mubr.bf16.mxu0 0
  %3494 = vmatmul.mubr.bf16.gmra.mrb[0].mxu0 %v3290
  %v3495 = vpop.f32.mrb[0].mxu0
  %v3496 = vadd.f32 0.0, %v3495
  %v3497 = vpop.f32.mrb[0].mxu0
  %v3498 = vadd.f32 0.0, %v3497
  %v3499 = vpop.f32.mrb[0].mxu0
  %v3500 = vadd.f32 0.0, %v3499
  %v3501 = vpop.f32.mrb[0].mxu0
  %v3502 = vadd.f32 0.0, %v3501
  %3503 = vmatprep.mubr.bf16.mxu0 0
  %3504 = vmatmul.mubr.bf16.gmra.mrb[0].mxu0 %v3293
  %v3505 = vpop.f32.mrb[0].mxu0
  %v3506 = vadd.f32 0.0, %v3505
  %v3507 = vpop.f32.mrb[0].mxu0
  %v3508 = vadd.f32 0.0, %v3507
  %v3509 = vpop.f32.mrb[0].mxu0
  %v3510 = vadd.f32 0.0, %v3509
  %v3511 = vpop.f32.mrb[0].mxu0
  %v3512 = vadd.f32 0.0, %v3511
  %3513 = vdwg.mxu0
  %3514 = vmatprep.subr.bf16.mxu0 %v3258
  %3515 = vmatpush1.bf16.msra.mxu0 %v3257
  %3516 = vmatprep.subr.bf16.mxu0 %v3266
  %3517 = vmatpush1.bf16.msra.mxu0 %v3265
  %3518 = vmatprep.subr.bf16.mxu0 0
  %3519 = vmatpush1.bf16.msra.mxu0 0
  %3520 = vmatprep.subr.bf16.mxu0 0
  %3521 = vmatpush1.bf16.msra.mxu0 0
  %3522 = vmatprep.subr.bf16.mxu0 0
  %3523 = vmatpush1.bf16.msra.mxu0 0
  %3524 = vmatprep.subr.bf16.mxu0 0
  %3525 = vmatpush1.bf16.msra.mxu0 0
  %3526 = vmatprep.subr.bf16.mxu0 0
  %3527 = vmatpush1.bf16.msra.mxu0 0
  %3528 = vmatprep.subr.bf16.mxu0 0
  %3529 = vmatpush1.bf16.msra.mxu0 0
  %3530 = vmatprep.subr.bf16.mxu0 0
  %3531 = vmatpush1.bf16.msra.mxu0 0
  %3532 = vmatprep.subr.bf16.mxu0 0
  %3533 = vmatpush1.bf16.msra.mxu0 0
  %3534 = vmatprep.subr.bf16.mxu0 0
  %3535 = vmatpush1.bf16.msra.mxu0 0
  %3536 = vmatprep.subr.bf16.mxu0 0
  %3537 = vmatpush1.bf16.msra.mxu0 0
  %3538 = vmatprep.subr.bf16.mxu0 0
  %3539 = vmatpush1.bf16.msra.mxu0 0
  %3540 = vmatprep.subr.bf16.mxu0 0
  %3541 = vmatpush1.bf16.msra.mxu0 0
  %3542 = vmatprep.subr.bf16.mxu0 0
  %3543 = vmatpush1.bf16.msra.mxu0 0
  %3544 = vmatprep.subr.bf16.mxu0 0
  %3545 = vmatpush1.bf16.msra.mxu0 0
  %3546 = vmatprep.mubr.bf16.mxu0 0
  %3547 = vmatmul.mubr.bf16.gmra.mrb[0].mxu0 %v3284
  %v3548 = vpop.f32.mrb[0].mxu0
  %v3549 = vadd.f32 0.0, %v3548
  %v3550 = vpop.f32.mrb[0].mxu0
  %v3551 = vadd.f32 0.0, %v3550
  %v3552 = vpop.f32.mrb[0].mxu0
  %v3553 = vadd.f32 0.0, %v3552
  %v3554 = vpop.f32.mrb[0].mxu0
  %v3555 = vadd.f32 0.0, %v3554
  %3556 = vmatprep.mubr.bf16.mxu0 0
  %3557 = vmatmul.mubr.bf16.gmra.mrb[0].mxu0 %v3287
  %v3558 = vpop.f32.mrb[0].mxu0
  %v3559 = vadd.f32 0.0, %v3558
  %v3560 = vpop.f32.mrb[0].mxu0
  %v3561 = vadd.f32 0.0, %v3560
  %v3562 = vpop.f32.mrb[0].mxu0
  %v3563 = vadd.f32 0.0, %v3562
  %v3564 = vpop.f32.mrb[0].mxu0
  %v3565 = vadd.f32 0.0, %v3564
  %3566 = vmatprep.mubr.bf16.mxu0 0
  %3567 = vmatmul.mubr.bf16.gmra.mrb[0].mxu0 %v3290
  %v3568 = vpop.f32.mrb[0].mxu0
  %v3569 = vadd.f32 0.0, %v3568
  %v3570 = vpop.f32.mrb[0].mxu0
  %v3571 = vadd.f32 0.0, %v3570
  %v3572 = vpop.f32.mrb[0].mxu0
  %v3573 = vadd.f32 0.0, %v3572
  %v3574 = vpop.f32.mrb[0].mxu0
  %v3575 = vadd.f32 0.0, %v3574
  %3576 = vmatprep.mubr.bf16.mxu0 0
  %3577 = vmatmul.mubr.bf16.gmra.mrb[0].mxu0 %v3293
  %v3578 = vpop.f32.mrb[0].mxu0
  %v3579 = vadd.f32 0.0, %v3578
  %v3580 = vpop.f32.mrb[0].mxu0
  %v3581 = vadd.f32 0.0, %v3580
  %v3582 = vpop.f32.mrb[0].mxu0
  %v3583 = vadd.f32 0.0, %v3582
  %v3584 = vpop.f32.mrb[0].mxu0
  %v3585 = vadd.f32 0.0, %v3584
  %3586 = vdwg.mxu0
  %v3587 = vpack.c.bf16 %v3334, %v3330
  %v3588 = vpack.c.bf16 %v3336, %v3332
  %v3589 = vpack.c.bf16 %v3407, %v3403
  %v3590 = vpack.c.bf16 %v3409, %v3405
  %v3591 = vpack.c.bf16 %v3480, %v3476
  %v3592 = vpack.c.bf16 %v3482, %v3478
  %v3593 = vpack.c.bf16 %v3553, %v3549
  %v3594 = vpack.c.bf16 %v3555, %v3551
  %v3595 = vpack.c.bf16 %v3344, %v3340
  %v3596 = vpack.c.bf16 %v3346, %v3342
  %v3597 = vpack.c.bf16 %v3417, %v3413
  %v3598 = vpack.c.bf16 %v3419, %v3415
  %v3599 = vpack.c.bf16 %v3490, %v3486
  %v3600 = vpack.c.bf16 %v3492, %v3488
  %v3601 = vpack.c.bf16 %v3563, %v3559
  %v3602 = vpack.c.bf16 %v3565, %v3561
  %v3603 = vpack.c.bf16 %v3354, %v3350
  %v3604 = vpack.c.bf16 %v3356, %v3352
  %v3605 = vpack.c.bf16 %v3427, %v3423
  %v3606 = vpack.c.bf16 %v3429, %v3425
  %v3607 = vpack.c.bf16 %v3500, %v3496
  %v3608 = vpack.c.bf16 %v3502, %v3498
  %v3609 = vpack.c.bf16 %v3573, %v3569
  %v3610 = vpack.c.bf16 %v3575, %v3571
  %v3611 = vpack.c.bf16 %v3364, %v3360
  %v3612 = vpack.c.bf16 %v3366, %v3362
  %v3613 = vpack.c.bf16 %v3437, %v3433
  %v3614 = vpack.c.bf16 %v3439, %v3435
  %v3615 = vpack.c.bf16 %v3510, %v3506
  %v3616 = vpack.c.bf16 %v3512, %v3508
  %v3617 = vpack.c.bf16 %v3583, %v3579
  %v3618 = vpack.c.bf16 %v3585, %v3581
  %v3619 = vld [vmem:[%s5] sm:$0xf]
  %v3620 = vld [vmem:[%s5 + $0x4] sm:$0xf]
  %s3621 = scalar_lea.vmem %s5, 8
  %v3622 = vld [vmem:[%s3621] sm:$0xf]
  %v3623 = vld [vmem:[%s3621 + $0x4] sm:$0xf]
  %v3626 = vunpack.c.l.b16 %v3622
  %v3627 = vunpack.c.l.b16 %v3623
  %v3628 = vpack.c.b16 %v3627, %v3626
  %3633 = vrot.lane.b32.xlu0 %v3587, 64
  %v3634 = vpop.permute.xlu0 %3633
  %3635 = vrot.lane.b32.xlu0 %v3595, 64
  %v3636 = vpop.permute.xlu0 %3635
  %3637 = vrot.lane.b32.xlu0 %v3603, 64
  %v3638 = vpop.permute.xlu0 %3637
  %3639 = vrot.lane.b32.xlu0 %v3611, 64
  %v3640 = vpop.permute.xlu0 %3639
  %vm3645 = vcmask 523264
  %v3647 = vsel %vm3645, %v3628, 0
  %3649 = vmatprep.subr.bf16.mxu0 0
  %3650 = vmatpush1.bf16.msra.mxu0 %v3634
  %3651 = vmatprep.subr.bf16.mxu0 0
  %3652 = vmatpush1.bf16.msra.mxu0 %v3636
  %3653 = vmatprep.subr.bf16.mxu0 0
  %3654 = vmatpush1.bf16.msra.mxu0 %v3638
  %3655 = vmatprep.subr.bf16.mxu0 0
  %3656 = vmatpush1.bf16.msra.mxu0 %v3640
  %3657 = vmatprep.subr.bf16.mxu0 0
  %3658 = vmatpush1.bf16.msra.mxu0 0
  %3659 = vmatprep.subr.bf16.mxu0 0
  %3660 = vmatpush1.bf16.msra.mxu0 0
  %3661 = vmatprep.subr.bf16.mxu0 0
  %3662 = vmatpush1.bf16.msra.mxu0 0
  %3663 = vmatprep.subr.bf16.mxu0 0
  %3664 = vmatpush1.bf16.msra.mxu0 0
  %3665 = vmatprep.subr.bf16.mxu0 0
  %3666 = vmatpush1.bf16.msra.mxu0 0
  %3667 = vmatprep.subr.bf16.mxu0 0
  %3668 = vmatpush1.bf16.msra.mxu0 0
  %3669 = vmatprep.subr.bf16.mxu0 0
  %3670 = vmatpush1.bf16.msra.mxu0 0
  %3671 = vmatprep.subr.bf16.mxu0 0
  %3672 = vmatpush1.bf16.msra.mxu0 0
  %3673 = vmatprep.subr.bf16.mxu0 0
  %3674 = vmatpush1.bf16.msra.mxu0 0
  %3675 = vmatprep.subr.bf16.mxu0 0
  %3676 = vmatpush1.bf16.msra.mxu0 0
  %3677 = vmatprep.subr.bf16.mxu0 0
  %3678 = vmatpush1.bf16.msra.mxu0 0
  %3679 = vmatprep.subr.bf16.mxu0 0
  %3680 = vmatpush1.bf16.msra.mxu0 0
  %3681 = vmatprep.mubr.bf16.mxu0 0
  %3682 = vmatmul.mubr.bf16.gmra.mrb[0].mxu0 %v3647
  %v3683 = vpop.f32.mrb[0].mxu0
  %v3684 = vadd.f32 0.0, %v3683
  %v3685 = vpop.f32.mrb[0].mxu0
  %v3686 = vpop.f32.mrb[0].mxu0
  %v3687 = vadd.f32 0.0, %v3686
  %v3688 = vpop.f32.mrb[0].mxu0
  %3689 = vdwg.mxu0
  %v3692 = vunpack.c.l.b16 %v3619
  %v3693 = vunpack.c.l.b16 %v3620
  %v3694 = vpack.c.b16 %v3693, %v3692
  %v3696 = vsel %vm3645, %v3694, 0
  %3698 = vmatprep.subr.bf16.mxu0 0
  %3699 = vmatpush1.bf16.msra.mxu0 %v3587
  %3700 = vmatprep.subr.bf16.mxu0 0
  %3701 = vmatpush1.bf16.msra.mxu0 %v3595
  %3702 = vmatprep.subr.bf16.mxu0 0
  %3703 = vmatpush1.bf16.msra.mxu0 %v3603
  %3704 = vmatprep.subr.bf16.mxu0 0
  %3705 = vmatpush1.bf16.msra.mxu0 %v3611
  %3706 = vmatprep.subr.bf16.mxu0 0
  %3707 = vmatpush1.bf16.msra.mxu0 0
  %3708 = vmatprep.subr.bf16.mxu0 0
  %3709 = vmatpush1.bf16.msra.mxu0 0
  %3710 = vmatprep.subr.bf16.mxu0 0
  %3711 = vmatpush1.bf16.msra.mxu0 0
  %3712 = vmatprep.subr.bf16.mxu0 0
  %3713 = vmatpush1.bf16.msra.mxu0 0
  %3714 = vmatprep.subr.bf16.mxu0 0
  %3715 = vmatpush1.bf16.msra.mxu0 0
  %3716 = vmatprep.subr.bf16.mxu0 0
  %3717 = vmatpush1.bf16.msra.mxu0 0
  %3718 = vmatprep.subr.bf16.mxu0 0
  %3719 = vmatpush1.bf16.msra.mxu0 0
  %3720 = vmatprep.subr.bf16.mxu0 0
  %3721 = vmatpush1.bf16.msra.mxu0 0
  %3722 = vmatprep.subr.bf16.mxu0 0
  %3723 = vmatpush1.bf16.msra.mxu0 0
  %3724 = vmatprep.subr.bf16.mxu0 0
  %3725 = vmatpush1.bf16.msra.mxu0 0
  %3726 = vmatprep.subr.bf16.mxu0 0
  %3727 = vmatpush1.bf16.msra.mxu0 0
  %3728 = vmatprep.subr.bf16.mxu0 0
  %3729 = vmatpush1.bf16.msra.mxu0 0
  %3730 = vmatprep.mubr.bf16.mxu0 0
  %3731 = vmatmul.mubr.bf16.gmra.mrb[0].mxu0 %v3696
  %v3732 = vpop.f32.mrb[0].mxu0
  %v3733 = vadd.f32 %v3684, %v3732
  %v3734 = vpop.f32.mrb[0].mxu0
  %v3735 = vpop.f32.mrb[0].mxu0
  %v3736 = vadd.f32 %v3687, %v3735
  %v3737 = vpop.f32.mrb[0].mxu0
  %3738 = vdwg.mxu0
  %s3739 = scalar_lea.vmem %s5, 16
  %v3740 = vld [vmem:[%s3739] sm:$0xf]
  %v3741 = vld [vmem:[%s3739 + $0x4] sm:$0xf]
  %v3744 = vunpack.c.l.b16 %v3740
  %v3745 = vunpack.c.l.b16 %v3741
  %v3746 = vpack.c.b16 %v3745, %v3744
  %v3748 = vsel %vm3645, %v3746, 0
  %3750 = vmatprep.subr.bf16.mxu0 0
  %3751 = vmatpush1.bf16.msra.mxu0 %v3588
  %3752 = vmatprep.subr.bf16.mxu0 0
  %3753 = vmatpush1.bf16.msra.mxu0 %v3596
  %3754 = vmatprep.subr.bf16.mxu0 0
  %3755 = vmatpush1.bf16.msra.mxu0 %v3604
  %3756 = vmatprep.subr.bf16.mxu0 0
  %3757 = vmatpush1.bf16.msra.mxu0 %v3612
  %3758 = vmatprep.subr.bf16.mxu0 0
  %3759 = vmatpush1.bf16.msra.mxu0 0
  %3760 = vmatprep.subr.bf16.mxu0 0
  %3761 = vmatpush1.bf16.msra.mxu0 0
  %3762 = vmatprep.subr.bf16.mxu0 0
  %3763 = vmatpush1.bf16.msra.mxu0 0
  %3764 = vmatprep.subr.bf16.mxu0 0
  %3765 = vmatpush1.bf16.msra.mxu0 0
  %3766 = vmatprep.subr.bf16.mxu0 0
  %3767 = vmatpush1.bf16.msra.mxu0 0
  %3768 = vmatprep.subr.bf16.mxu0 0
  %3769 = vmatpush1.bf16.msra.mxu0 0
  %3770 = vmatprep.subr.bf16.mxu0 0
  %3771 = vmatpush1.bf16.msra.mxu0 0
  %3772 = vmatprep.subr.bf16.mxu0 0
  %3773 = vmatpush1.bf16.msra.mxu0 0
  %3774 = vmatprep.subr.bf16.mxu0 0
  %3775 = vmatpush1.bf16.msra.mxu0 0
  %3776 = vmatprep.subr.bf16.mxu0 0
  %3777 = vmatpush1.bf16.msra.mxu0 0
  %3778 = vmatprep.subr.bf16.mxu0 0
  %3779 = vmatpush1.bf16.msra.mxu0 0
  %3780 = vmatprep.subr.bf16.mxu0 0
  %3781 = vmatpush1.bf16.msra.mxu0 0
  %3782 = vmatprep.mubr.bf16.mxu0 0
  %3783 = vmatmul.mubr.bf16.gmra.mrb[0].mxu0 %v3748
  %v3784 = vpop.f32.mrb[0].mxu0
  %v3785 = vadd.f32 0.0, %v3784
  %v3786 = vpop.f32.mrb[0].mxu0
  %v3787 = vpop.f32.mrb[0].mxu0
  %v3788 = vadd.f32 0.0, %v3787
  %v3789 = vpop.f32.mrb[0].mxu0
  %3790 = vdwg.mxu0
  %v3791 = vadd.f32 %v3733, %v3785
  %v3792 = vadd.f32 %v3736, %v3788
  %s3793 = scalar_lea.vmem %s5, 24
  %v3794 = vld [vmem:[%s3793] sm:$0xf]
  %v3795 = vld [vmem:[%s3793 + $0x4] sm:$0xf]
  %v3798 = vunpack.c.l.b16 %v3794
  %v3799 = vunpack.c.l.b16 %v3795
  %v3800 = vpack.c.b16 %v3799, %v3798
  %3805 = vrot.lane.b32.xlu0 %v3588, 64
  %v3806 = vpop.permute.xlu0 %3805
  %3807 = vrot.lane.b32.xlu0 %v3596, 64
  %v3808 = vpop.permute.xlu0 %3807
  %3809 = vrot.lane.b32.xlu0 %v3604, 64
  %v3810 = vpop.permute.xlu0 %3809
  %3811 = vrot.lane.b32.xlu0 %v3612, 64
  %v3812 = vpop.permute.xlu0 %3811
  %v3818 = vsel %vm3645, %v3800, 0
  %3820 = vmatprep.subr.bf16.mxu0 0
  %3821 = vmatpush1.bf16.msra.mxu0 %v3806
  %3822 = vmatprep.subr.bf16.mxu0 0
  %3823 = vmatpush1.bf16.msra.mxu0 %v3808
  %3824 = vmatprep.subr.bf16.mxu0 0
  %3825 = vmatpush1.bf16.msra.mxu0 %v3810
  %3826 = vmatprep.subr.bf16.mxu0 0
  %3827 = vmatpush1.bf16.msra.mxu0 %v3812
  %3828 = vmatprep.subr.bf16.mxu0 0
  %3829 = vmatpush1.bf16.msra.mxu0 0
  %3830 = vmatprep.subr.bf16.mxu0 0
  %3831 = vmatpush1.bf16.msra.mxu0 0
  %3832 = vmatprep.subr.bf16.mxu0 0
  %3833 = vmatpush1.bf16.msra.mxu0 0
  %3834 = vmatprep.subr.bf16.mxu0 0
  %3835 = vmatpush1.bf16.msra.mxu0 0
  %3836 = vmatprep.subr.bf16.mxu0 0
  %3837 = vmatpush1.bf16.msra.mxu0 0
  %3838 = vmatprep.subr.bf16.mxu0 0
  %3839 = vmatpush1.bf16.msra.mxu0 0
  %3840 = vmatprep.subr.bf16.mxu0 0
  %3841 = vmatpush1.bf16.msra.mxu0 0
  %3842 = vmatprep.subr.bf16.mxu0 0
  %3843 = vmatpush1.bf16.msra.mxu0 0
  %3844 = vmatprep.subr.bf16.mxu0 0
  %3845 = vmatpush1.bf16.msra.mxu0 0
  %3846 = vmatprep.subr.bf16.mxu0 0
  %3847 = vmatpush1.bf16.msra.mxu0 0
  %3848 = vmatprep.subr.bf16.mxu0 0
  %3849 = vmatpush1.bf16.msra.mxu0 0
  %3850 = vmatprep.subr.bf16.mxu0 0
  %3851 = vmatpush1.bf16.msra.mxu0 0
  %3852 = vmatprep.mubr.bf16.mxu0 0
  %3853 = vmatmul.mubr.bf16.gmra.mrb[0].mxu0 %v3818
  %v3854 = vpop.f32.mrb[0].mxu0
  %v3855 = vadd.f32 0.0, %v3854
  %v3856 = vpop.f32.mrb[0].mxu0
  %v3857 = vpop.f32.mrb[0].mxu0
  %v3858 = vadd.f32 0.0, %v3857
  %v3859 = vpop.f32.mrb[0].mxu0
  %3860 = vdwg.mxu0
  %v3861 = vadd.f32 %v3791, %v3855
  %v3862 = vadd.f32 %v3792, %v3858
  %s3863 = scalar_lea.vmem %s5, 32
  %v3864 = vld [vmem:[%s3863] sm:$0xf]
  %v3865 = vld [vmem:[%s3863 + $0x4] sm:$0xf]
  %v3868 = vunpack.c.l.b16 %v3864
  %v3869 = vunpack.c.l.b16 %v3865
  %v3870 = vpack.c.b16 %v3869, %v3868
  %v3872 = vsel %vm3645, %v3870, 0
  %3874 = vmatprep.subr.bf16.mxu0 0
  %3875 = vmatpush1.bf16.msra.mxu0 %v3589
  %3876 = vmatprep.subr.bf16.mxu0 0
  %3877 = vmatpush1.bf16.msra.mxu0 %v3597
  %3878 = vmatprep.subr.bf16.mxu0 0
  %3879 = vmatpush1.bf16.msra.mxu0 %v3605
  %3880 = vmatprep.subr.bf16.mxu0 0
  %3881 = vmatpush1.bf16.msra.mxu0 %v3613
  %3882 = vmatprep.subr.bf16.mxu0 0
  %3883 = vmatpush1.bf16.msra.mxu0 0
  %3884 = vmatprep.subr.bf16.mxu0 0
  %3885 = vmatpush1.bf16.msra.mxu0 0
  %3886 = vmatprep.subr.bf16.mxu0 0
  %3887 = vmatpush1.bf16.msra.mxu0 0
  %3888 = vmatprep.subr.bf16.mxu0 0
  %3889 = vmatpush1.bf16.msra.mxu0 0
  %3890 = vmatprep.subr.bf16.mxu0 0
  %3891 = vmatpush1.bf16.msra.mxu0 0
  %3892 = vmatprep.subr.bf16.mxu0 0
  %3893 = vmatpush1.bf16.msra.mxu0 0
  %3894 = vmatprep.subr.bf16.mxu0 0
  %3895 = vmatpush1.bf16.msra.mxu0 0
  %3896 = vmatprep.subr.bf16.mxu0 0
  %3897 = vmatpush1.bf16.msra.mxu0 0
  %3898 = vmatprep.subr.bf16.mxu0 0
  %3899 = vmatpush1.bf16.msra.mxu0 0
  %3900 = vmatprep.subr.bf16.mxu0 0
  %3901 = vmatpush1.bf16.msra.mxu0 0
  %3902 = vmatprep.subr.bf16.mxu0 0
  %3903 = vmatpush1.bf16.msra.mxu0 0
  %3904 = vmatprep.subr.bf16.mxu0 0
  %3905 = vmatpush1.bf16.msra.mxu0 0
  %3906 = vmatprep.mubr.bf16.mxu0 0
  %3907 = vmatmul.mubr.bf16.gmra.mrb[0].mxu0 %v3872
  %v3908 = vpop.f32.mrb[0].mxu0
  %v3909 = vadd.f32 0.0, %v3908
  %v3910 = vpop.f32.mrb[0].mxu0
  %v3911 = vpop.f32.mrb[0].mxu0
  %v3912 = vadd.f32 0.0, %v3911
  %v3913 = vpop.f32.mrb[0].mxu0
  %3914 = vdwg.mxu0
  %v3915 = vadd.f32 %v3861, %v3909
  %v3916 = vadd.f32 %v3862, %v3912
  %s3917 = scalar_lea.vmem %s5, 40
  %v3918 = vld [vmem:[%s3917] sm:$0xf]
  %v3919 = vld [vmem:[%s3917 + $0x4] sm:$0xf]
  %v3922 = vunpack.c.l.b16 %v3918
  %v3923 = vunpack.c.l.b16 %v3919
  %v3924 = vpack.c.b16 %v3923, %v3922
  %3929 = vrot.lane.b32.xlu0 %v3589, 64
  %v3930 = vpop.permute.xlu0 %3929
  %3931 = vrot.lane.b32.xlu0 %v3597, 64
  %v3932 = vpop.permute.xlu0 %3931
  %3933 = vrot.lane.b32.xlu0 %v3605, 64
  %v3934 = vpop.permute.xlu0 %3933
  %3935 = vrot.lane.b32.xlu0 %v3613, 64
  %v3936 = vpop.permute.xlu0 %3935
  %v3942 = vsel %vm3645, %v3924, 0
  %3944 = vmatprep.subr.bf16.mxu0 0
  %3945 = vmatpush1.bf16.msra.mxu0 %v3930
  %3946 = vmatprep.subr.bf16.mxu0 0
  %3947 = vmatpush1.bf16.msra.mxu0 %v3932
  %3948 = vmatprep.subr.bf16.mxu0 0
  %3949 = vmatpush1.bf16.msra.mxu0 %v3934
  %3950 = vmatprep.subr.bf16.mxu0 0
  %3951 = vmatpush1.bf16.msra.mxu0 %v3936
  %3952 = vmatprep.subr.bf16.mxu0 0
  %3953 = vmatpush1.bf16.msra.mxu0 0
  %3954 = vmatprep.subr.bf16.mxu0 0
  %3955 = vmatpush1.bf16.msra.mxu0 0
  %3956 = vmatprep.subr.bf16.mxu0 0
  %3957 = vmatpush1.bf16.msra.mxu0 0
  %3958 = vmatprep.subr.bf16.mxu0 0
  %3959 = vmatpush1.bf16.msra.mxu0 0
  %3960 = vmatprep.subr.bf16.mxu0 0
  %3961 = vmatpush1.bf16.msra.mxu0 0
  %3962 = vmatprep.subr.bf16.mxu0 0
  %3963 = vmatpush1.bf16.msra.mxu0 0
  %3964 = vmatprep.subr.bf16.mxu0 0
  %3965 = vmatpush1.bf16.msra.mxu0 0
  %3966 = vmatprep.subr.bf16.mxu0 0
  %3967 = vmatpush1.bf16.msra.mxu0 0
  %3968 = vmatprep.subr.bf16.mxu0 0
  %3969 = vmatpush1.bf16.msra.mxu0 0
  %3970 = vmatprep.subr.bf16.mxu0 0
  %3971 = vmatpush1.bf16.msra.mxu0 0
  %3972 = vmatprep.subr.bf16.mxu0 0
  %3973 = vmatpush1.bf16.msra.mxu0 0
  %3974 = vmatprep.subr.bf16.mxu0 0
  %3975 = vmatpush1.bf16.msra.mxu0 0
  %3976 = vmatprep.mubr.bf16.mxu0 0
  %3977 = vmatmul.mubr.bf16.gmra.mrb[0].mxu0 %v3942
  %v3978 = vpop.f32.mrb[0].mxu0
  %v3979 = vadd.f32 0.0, %v3978
  %v3980 = vpop.f32.mrb[0].mxu0
  %v3981 = vpop.f32.mrb[0].mxu0
  %v3982 = vadd.f32 0.0, %v3981
  %v3983 = vpop.f32.mrb[0].mxu0
  %3984 = vdwg.mxu0
  %v3985 = vadd.f32 %v3915, %v3979
  %v3986 = vadd.f32 %v3916, %v3982
  %s3987 = scalar_lea.vmem %s5, 48
  %v3988 = vld [vmem:[%s3987] sm:$0xf]
  %v3989 = vld [vmem:[%s3987 + $0x4] sm:$0xf]
  %v3992 = vunpack.c.l.b16 %v3988
  %v3993 = vunpack.c.l.b16 %v3989
  %v3994 = vpack.c.b16 %v3993, %v3992
  %v3996 = vsel %vm3645, %v3994, 0
  %3998 = vmatprep.subr.bf16.mxu0 0
  %3999 = vmatpush1.bf16.msra.mxu0 %v3590
  %4000 = vmatprep.subr.bf16.mxu0 0
  %4001 = vmatpush1.bf16.msra.mxu0 %v3598
  %4002 = vmatprep.subr.bf16.mxu0 0
  %4003 = vmatpush1.bf16.msra.mxu0 %v3606
  %4004 = vmatprep.subr.bf16.mxu0 0
  %4005 = vmatpush1.bf16.msra.mxu0 %v3614
  %4006 = vmatprep.subr.bf16.mxu0 0
  %4007 = vmatpush1.bf16.msra.mxu0 0
  %4008 = vmatprep.subr.bf16.mxu0 0
  %4009 = vmatpush1.bf16.msra.mxu0 0
  %4010 = vmatprep.subr.bf16.mxu0 0
  %4011 = vmatpush1.bf16.msra.mxu0 0
  %4012 = vmatprep.subr.bf16.mxu0 0
  %4013 = vmatpush1.bf16.msra.mxu0 0
  %4014 = vmatprep.subr.bf16.mxu0 0
  %4015 = vmatpush1.bf16.msra.mxu0 0
  %4016 = vmatprep.subr.bf16.mxu0 0
  %4017 = vmatpush1.bf16.msra.mxu0 0
  %4018 = vmatprep.subr.bf16.mxu0 0
  %4019 = vmatpush1.bf16.msra.mxu0 0
  %4020 = vmatprep.subr.bf16.mxu0 0
  %4021 = vmatpush1.bf16.msra.mxu0 0
  %4022 = vmatprep.subr.bf16.mxu0 0
  %4023 = vmatpush1.bf16.msra.mxu0 0
  %4024 = vmatprep.subr.bf16.mxu0 0
  %4025 = vmatpush1.bf16.msra.mxu0 0
  %4026 = vmatprep.subr.bf16.mxu0 0
  %4027 = vmatpush1.bf16.msra.mxu0 0
  %4028 = vmatprep.subr.bf16.mxu0 0
  %4029 = vmatpush1.bf16.msra.mxu0 0
  %4030 = vmatprep.mubr.bf16.mxu0 0
  %4031 = vmatmul.mubr.bf16.gmra.mrb[0].mxu0 %v3996
  %v4032 = vpop.f32.mrb[0].mxu0
  %v4033 = vadd.f32 0.0, %v4032
  %v4034 = vpop.f32.mrb[0].mxu0
  %v4035 = vpop.f32.mrb[0].mxu0
  %v4036 = vadd.f32 0.0, %v4035
  %v4037 = vpop.f32.mrb[0].mxu0
  %4038 = vdwg.mxu0
  %v4039 = vadd.f32 %v3985, %v4033
  %v4040 = vadd.f32 %v3986, %v4036
  %s4041 = scalar_lea.vmem %s5, 56
  %v4042 = vld [vmem:[%s4041] sm:$0xf]
  %v4043 = vld [vmem:[%s4041 + $0x4] sm:$0xf]
  %v4046 = vunpack.c.l.b16 %v4042
  %v4047 = vunpack.c.l.b16 %v4043
  %v4048 = vpack.c.b16 %v4047, %v4046
  %4053 = vrot.lane.b32.xlu0 %v3590, 64
  %v4054 = vpop.permute.xlu0 %4053
  %4055 = vrot.lane.b32.xlu0 %v3598, 64
  %v4056 = vpop.permute.xlu0 %4055
  %4057 = vrot.lane.b32.xlu0 %v3606, 64
  %v4058 = vpop.permute.xlu0 %4057
  %4059 = vrot.lane.b32.xlu0 %v3614, 64
  %v4060 = vpop.permute.xlu0 %4059
  %v4066 = vsel %vm3645, %v4048, 0
  %4068 = vmatprep.subr.bf16.mxu0 0
  %4069 = vmatpush1.bf16.msra.mxu0 %v4054
  %4070 = vmatprep.subr.bf16.mxu0 0
  %4071 = vmatpush1.bf16.msra.mxu0 %v4056
  %4072 = vmatprep.subr.bf16.mxu0 0
  %4073 = vmatpush1.bf16.msra.mxu0 %v4058
  %4074 = vmatprep.subr.bf16.mxu0 0
  %4075 = vmatpush1.bf16.msra.mxu0 %v4060
  %4076 = vmatprep.subr.bf16.mxu0 0
  %4077 = vmatpush1.bf16.msra.mxu0 0
  %4078 = vmatprep.subr.bf16.mxu0 0
  %4079 = vmatpush1.bf16.msra.mxu0 0
  %4080 = vmatprep.subr.bf16.mxu0 0
  %4081 = vmatpush1.bf16.msra.mxu0 0
  %4082 = vmatprep.subr.bf16.mxu0 0
  %4083 = vmatpush1.bf16.msra.mxu0 0
  %4084 = vmatprep.subr.bf16.mxu0 0
  %4085 = vmatpush1.bf16.msra.mxu0 0
  %4086 = vmatprep.subr.bf16.mxu0 0
  %4087 = vmatpush1.bf16.msra.mxu0 0
  %4088 = vmatprep.subr.bf16.mxu0 0
  %4089 = vmatpush1.bf16.msra.mxu0 0
  %4090 = vmatprep.subr.bf16.mxu0 0
  %4091 = vmatpush1.bf16.msra.mxu0 0
  %4092 = vmatprep.subr.bf16.mxu0 0
  %4093 = vmatpush1.bf16.msra.mxu0 0
  %4094 = vmatprep.subr.bf16.mxu0 0
  %4095 = vmatpush1.bf16.msra.mxu0 0
  %4096 = vmatprep.subr.bf16.mxu0 0
  %4097 = vmatpush1.bf16.msra.mxu0 0
  %4098 = vmatprep.subr.bf16.mxu0 0
  %4099 = vmatpush1.bf16.msra.mxu0 0
  %4100 = vmatprep.mubr.bf16.mxu0 0
  %4101 = vmatmul.mubr.bf16.gmra.mrb[0].mxu0 %v4066
  %v4102 = vpop.f32.mrb[0].mxu0
  %v4103 = vadd.f32 0.0, %v4102
  %v4104 = vpop.f32.mrb[0].mxu0
  %v4105 = vpop.f32.mrb[0].mxu0
  %v4106 = vadd.f32 0.0, %v4105
  %v4107 = vpop.f32.mrb[0].mxu0
  %4108 = vdwg.mxu0
  %v4109 = vadd.f32 %v4039, %v4103
  %v4110 = vadd.f32 %v4040, %v4106
  %s4111 = scalar_lea.vmem %s5, 64
  %v4112 = vld [vmem:[%s4111] sm:$0xf]
  %v4113 = vld [vmem:[%s4111 + $0x4] sm:$0xf]
  %v4116 = vunpack.c.l.b16 %v4112
  %v4117 = vunpack.c.l.b16 %v4113
  %v4118 = vpack.c.b16 %v4117, %v4116
  %v4120 = vsel %vm3645, %v4118, 0
  %4122 = vmatprep.subr.bf16.mxu0 0
  %4123 = vmatpush1.bf16.msra.mxu0 %v3591
  %4124 = vmatprep.subr.bf16.mxu0 0
  %4125 = vmatpush1.bf16.msra.mxu0 %v3599
  %4126 = vmatprep.subr.bf16.mxu0 0
  %4127 = vmatpush1.bf16.msra.mxu0 %v3607
  %4128 = vmatprep.subr.bf16.mxu0 0
  %4129 = vmatpush1.bf16.msra.mxu0 %v3615
  %4130 = vmatprep.subr.bf16.mxu0 0
  %4131 = vmatpush1.bf16.msra.mxu0 0
  %4132 = vmatprep.subr.bf16.mxu0 0
  %4133 = vmatpush1.bf16.msra.mxu0 0
  %4134 = vmatprep.subr.bf16.mxu0 0
  %4135 = vmatpush1.bf16.msra.mxu0 0
  %4136 = vmatprep.subr.bf16.mxu0 0
  %4137 = vmatpush1.bf16.msra.mxu0 0
  %4138 = vmatprep.subr.bf16.mxu0 0
  %4139 = vmatpush1.bf16.msra.mxu0 0
  %4140 = vmatprep.subr.bf16.mxu0 0
  %4141 = vmatpush1.bf16.msra.mxu0 0
  %4142 = vmatprep.subr.bf16.mxu0 0
  %4143 = vmatpush1.bf16.msra.mxu0 0
  %4144 = vmatprep.subr.bf16.mxu0 0
  %4145 = vmatpush1.bf16.msra.mxu0 0
  %4146 = vmatprep.subr.bf16.mxu0 0
  %4147 = vmatpush1.bf16.msra.mxu0 0
  %4148 = vmatprep.subr.bf16.mxu0 0
  %4149 = vmatpush1.bf16.msra.mxu0 0
  %4150 = vmatprep.subr.bf16.mxu0 0
  %4151 = vmatpush1.bf16.msra.mxu0 0
  %4152 = vmatprep.subr.bf16.mxu0 0
  %4153 = vmatpush1.bf16.msra.mxu0 0
  %4154 = vmatprep.mubr.bf16.mxu0 0
  %4155 = vmatmul.mubr.bf16.gmra.mrb[0].mxu0 %v4120
  %v4156 = vpop.f32.mrb[0].mxu0
  %v4157 = vadd.f32 0.0, %v4156
  %v4158 = vpop.f32.mrb[0].mxu0
  %v4159 = vpop.f32.mrb[0].mxu0
  %v4160 = vadd.f32 0.0, %v4159
  %v4161 = vpop.f32.mrb[0].mxu0
  %4162 = vdwg.mxu0
  %v4163 = vadd.f32 %v4109, %v4157
  %v4164 = vadd.f32 %v4110, %v4160
  %s4165 = scalar_lea.vmem %s5, 72
  %v4166 = vld [vmem:[%s4165] sm:$0xf]
  %v4167 = vld [vmem:[%s4165 + $0x4] sm:$0xf]
  %v4170 = vunpack.c.l.b16 %v4166
  %v4171 = vunpack.c.l.b16 %v4167
  %v4172 = vpack.c.b16 %v4171, %v4170
  %4177 = vrot.lane.b32.xlu0 %v3591, 64
  %v4178 = vpop.permute.xlu0 %4177
  %4179 = vrot.lane.b32.xlu0 %v3599, 64
  %v4180 = vpop.permute.xlu0 %4179
  %4181 = vrot.lane.b32.xlu0 %v3607, 64
  %v4182 = vpop.permute.xlu0 %4181
  %4183 = vrot.lane.b32.xlu0 %v3615, 64
  %v4184 = vpop.permute.xlu0 %4183
  %v4190 = vsel %vm3645, %v4172, 0
  %4192 = vmatprep.subr.bf16.mxu0 0
  %4193 = vmatpush1.bf16.msra.mxu0 %v4178
  %4194 = vmatprep.subr.bf16.mxu0 0
  %4195 = vmatpush1.bf16.msra.mxu0 %v4180
  %4196 = vmatprep.subr.bf16.mxu0 0
  %4197 = vmatpush1.bf16.msra.mxu0 %v4182
  %4198 = vmatprep.subr.bf16.mxu0 0
  %4199 = vmatpush1.bf16.msra.mxu0 %v4184
  %4200 = vmatprep.subr.bf16.mxu0 0
  %4201 = vmatpush1.bf16.msra.mxu0 0
  %4202 = vmatprep.subr.bf16.mxu0 0
  %4203 = vmatpush1.bf16.msra.mxu0 0
  %4204 = vmatprep.subr.bf16.mxu0 0
  %4205 = vmatpush1.bf16.msra.mxu0 0
  %4206 = vmatprep.subr.bf16.mxu0 0
  %4207 = vmatpush1.bf16.msra.mxu0 0
  %4208 = vmatprep.subr.bf16.mxu0 0
  %4209 = vmatpush1.bf16.msra.mxu0 0
  %4210 = vmatprep.subr.bf16.mxu0 0
  %4211 = vmatpush1.bf16.msra.mxu0 0
  %4212 = vmatprep.subr.bf16.mxu0 0
  %4213 = vmatpush1.bf16.msra.mxu0 0
  %4214 = vmatprep.subr.bf16.mxu0 0
  %4215 = vmatpush1.bf16.msra.mxu0 0
  %4216 = vmatprep.subr.bf16.mxu0 0
  %4217 = vmatpush1.bf16.msra.mxu0 0
  %4218 = vmatprep.subr.bf16.mxu0 0
  %4219 = vmatpush1.bf16.msra.mxu0 0
  %4220 = vmatprep.subr.bf16.mxu0 0
  %4221 = vmatpush1.bf16.msra.mxu0 0
  %4222 = vmatprep.subr.bf16.mxu0 0
  %4223 = vmatpush1.bf16.msra.mxu0 0
  %4224 = vmatprep.mubr.bf16.mxu0 0
  %4225 = vmatmul.mubr.bf16.gmra.mrb[0].mxu0 %v4190
  %v4226 = vpop.f32.mrb[0].mxu0
  %v4227 = vadd.f32 0.0, %v4226
  %v4228 = vpop.f32.mrb[0].mxu0
  %v4229 = vpop.f32.mrb[0].mxu0
  %v4230 = vadd.f32 0.0, %v4229
  %v4231 = vpop.f32.mrb[0].mxu0
  %4232 = vdwg.mxu0
  %v4233 = vadd.f32 %v4163, %v4227
  %v4234 = vadd.f32 %v4164, %v4230
  %s4235 = scalar_lea.vmem %s5, 80
  %v4236 = vld [vmem:[%s4235] sm:$0xf]
  %v4237 = vld [vmem:[%s4235 + $0x4] sm:$0xf]
  %v4240 = vunpack.c.l.b16 %v4236
  %v4241 = vunpack.c.l.b16 %v4237
  %v4242 = vpack.c.b16 %v4241, %v4240
  %v4244 = vsel %vm3645, %v4242, 0
  %4246 = vmatprep.subr.bf16.mxu0 0
  %4247 = vmatpush1.bf16.msra.mxu0 %v3592
  %4248 = vmatprep.subr.bf16.mxu0 0
  %4249 = vmatpush1.bf16.msra.mxu0 %v3600
  %4250 = vmatprep.subr.bf16.mxu0 0
  %4251 = vmatpush1.bf16.msra.mxu0 %v3608
  %4252 = vmatprep.subr.bf16.mxu0 0
  %4253 = vmatpush1.bf16.msra.mxu0 %v3616
  %4254 = vmatprep.subr.bf16.mxu0 0
  %4255 = vmatpush1.bf16.msra.mxu0 0
  %4256 = vmatprep.subr.bf16.mxu0 0
  %4257 = vmatpush1.bf16.msra.mxu0 0
  %4258 = vmatprep.subr.bf16.mxu0 0
  %4259 = vmatpush1.bf16.msra.mxu0 0
  %4260 = vmatprep.subr.bf16.mxu0 0
  %4261 = vmatpush1.bf16.msra.mxu0 0
  %4262 = vmatprep.subr.bf16.mxu0 0
  %4263 = vmatpush1.bf16.msra.mxu0 0
  %4264 = vmatprep.subr.bf16.mxu0 0
  %4265 = vmatpush1.bf16.msra.mxu0 0
  %4266 = vmatprep.subr.bf16.mxu0 0
  %4267 = vmatpush1.bf16.msra.mxu0 0
  %4268 = vmatprep.subr.bf16.mxu0 0
  %4269 = vmatpush1.bf16.msra.mxu0 0
  %4270 = vmatprep.subr.bf16.mxu0 0
  %4271 = vmatpush1.bf16.msra.mxu0 0
  %4272 = vmatprep.subr.bf16.mxu0 0
  %4273 = vmatpush1.bf16.msra.mxu0 0
  %4274 = vmatprep.subr.bf16.mxu0 0
  %4275 = vmatpush1.bf16.msra.mxu0 0
  %4276 = vmatprep.subr.bf16.mxu0 0
  %4277 = vmatpush1.bf16.msra.mxu0 0
  %4278 = vmatprep.mubr.bf16.mxu0 0
  %4279 = vmatmul.mubr.bf16.gmra.mrb[0].mxu0 %v4244
  %v4280 = vpop.f32.mrb[0].mxu0
  %v4281 = vadd.f32 0.0, %v4280
  %v4282 = vpop.f32.mrb[0].mxu0
  %v4283 = vpop.f32.mrb[0].mxu0
  %v4284 = vadd.f32 0.0, %v4283
  %v4285 = vpop.f32.mrb[0].mxu0
  %4286 = vdwg.mxu0
  %v4287 = vadd.f32 %v4233, %v4281
  %v4288 = vadd.f32 %v4234, %v4284
  %s4289 = scalar_lea.vmem %s5, 88
  %v4290 = vld [vmem:[%s4289] sm:$0xf]
  %v4291 = vld [vmem:[%s4289 + $0x4] sm:$0xf]
  %v4294 = vunpack.c.l.b16 %v4290
  %v4295 = vunpack.c.l.b16 %v4291
  %v4296 = vpack.c.b16 %v4295, %v4294
  %4301 = vrot.lane.b32.xlu0 %v3592, 64
  %v4302 = vpop.permute.xlu0 %4301
  %4303 = vrot.lane.b32.xlu0 %v3600, 64
  %v4304 = vpop.permute.xlu0 %4303
  %4305 = vrot.lane.b32.xlu0 %v3608, 64
  %v4306 = vpop.permute.xlu0 %4305
  %4307 = vrot.lane.b32.xlu0 %v3616, 64
  %v4308 = vpop.permute.xlu0 %4307
  %v4314 = vsel %vm3645, %v4296, 0
  %4316 = vmatprep.subr.bf16.mxu0 0
  %4317 = vmatpush1.bf16.msra.mxu0 %v4302
  %4318 = vmatprep.subr.bf16.mxu0 0
  %4319 = vmatpush1.bf16.msra.mxu0 %v4304
  %4320 = vmatprep.subr.bf16.mxu0 0
  %4321 = vmatpush1.bf16.msra.mxu0 %v4306
  %4322 = vmatprep.subr.bf16.mxu0 0
  %4323 = vmatpush1.bf16.msra.mxu0 %v4308
  %4324 = vmatprep.subr.bf16.mxu0 0
  %4325 = vmatpush1.bf16.msra.mxu0 0
  %4326 = vmatprep.subr.bf16.mxu0 0
  %4327 = vmatpush1.bf16.msra.mxu0 0
  %4328 = vmatprep.subr.bf16.mxu0 0
  %4329 = vmatpush1.bf16.msra.mxu0 0
  %4330 = vmatprep.subr.bf16.mxu0 0
  %4331 = vmatpush1.bf16.msra.mxu0 0
  %4332 = vmatprep.subr.bf16.mxu0 0
  %4333 = vmatpush1.bf16.msra.mxu0 0
  %4334 = vmatprep.subr.bf16.mxu0 0
  %4335 = vmatpush1.bf16.msra.mxu0 0
  %4336 = vmatprep.subr.bf16.mxu0 0
  %4337 = vmatpush1.bf16.msra.mxu0 0
  %4338 = vmatprep.subr.bf16.mxu0 0
  %4339 = vmatpush1.bf16.msra.mxu0 0
  %4340 = vmatprep.subr.bf16.mxu0 0
  %4341 = vmatpush1.bf16.msra.mxu0 0
  %4342 = vmatprep.subr.bf16.mxu0 0
  %4343 = vmatpush1.bf16.msra.mxu0 0
  %4344 = vmatprep.subr.bf16.mxu0 0
  %4345 = vmatpush1.bf16.msra.mxu0 0
  %4346 = vmatprep.subr.bf16.mxu0 0
  %4347 = vmatpush1.bf16.msra.mxu0 0
  %4348 = vmatprep.mubr.bf16.mxu0 0
  %4349 = vmatmul.mubr.bf16.gmra.mrb[0].mxu0 %v4314
  %v4350 = vpop.f32.mrb[0].mxu0
  %v4351 = vadd.f32 0.0, %v4350
  %v4352 = vpop.f32.mrb[0].mxu0
  %v4353 = vpop.f32.mrb[0].mxu0
  %v4354 = vadd.f32 0.0, %v4353
  %v4355 = vpop.f32.mrb[0].mxu0
  %4356 = vdwg.mxu0
  %v4357 = vadd.f32 %v4287, %v4351
  %v4358 = vadd.f32 %v4288, %v4354
  %s4359 = scalar_lea.vmem %s5, 96
  %v4360 = vld [vmem:[%s4359] sm:$0xf]
  %v4361 = vld [vmem:[%s4359 + $0x4] sm:$0xf]
  %v4364 = vunpack.c.l.b16 %v4360
  %v4365 = vunpack.c.l.b16 %v4361
  %v4366 = vpack.c.b16 %v4365, %v4364
  %v4368 = vsel %vm3645, %v4366, 0
  %4370 = vmatprep.subr.bf16.mxu0 0
  %4371 = vmatpush1.bf16.msra.mxu0 %v3593
  %4372 = vmatprep.subr.bf16.mxu0 0
  %4373 = vmatpush1.bf16.msra.mxu0 %v3601
  %4374 = vmatprep.subr.bf16.mxu0 0
  %4375 = vmatpush1.bf16.msra.mxu0 %v3609
  %4376 = vmatprep.subr.bf16.mxu0 0
  %4377 = vmatpush1.bf16.msra.mxu0 %v3617
  %4378 = vmatprep.subr.bf16.mxu0 0
  %4379 = vmatpush1.bf16.msra.mxu0 0
  %4380 = vmatprep.subr.bf16.mxu0 0
  %4381 = vmatpush1.bf16.msra.mxu0 0
  %4382 = vmatprep.subr.bf16.mxu0 0
  %4383 = vmatpush1.bf16.msra.mxu0 0
  %4384 = vmatprep.subr.bf16.mxu0 0
  %4385 = vmatpush1.bf16.msra.mxu0 0
  %4386 = vmatprep.subr.bf16.mxu0 0
  %4387 = vmatpush1.bf16.msra.mxu0 0
  %4388 = vmatprep.subr.bf16.mxu0 0
  %4389 = vmatpush1.bf16.msra.mxu0 0
  %4390 = vmatprep.subr.bf16.mxu0 0
  %4391 = vmatpush1.bf16.msra.mxu0 0
  %4392 = vmatprep.subr.bf16.mxu0 0
  %4393 = vmatpush1.bf16.msra.mxu0 0
  %4394 = vmatprep.subr.bf16.mxu0 0
  %4395 = vmatpush1.bf16.msra.mxu0 0
  %4396 = vmatprep.subr.bf16.mxu0 0
  %4397 = vmatpush1.bf16.msra.mxu0 0
  %4398 = vmatprep.subr.bf16.mxu0 0
  %4399 = vmatpush1.bf16.msra.mxu0 0
  %4400 = vmatprep.subr.bf16.mxu0 0
  %4401 = vmatpush1.bf16.msra.mxu0 0
  %4402 = vmatprep.mubr.bf16.mxu0 0
  %4403 = vmatmul.mubr.bf16.gmra.mrb[0].mxu0 %v4368
  %v4404 = vpop.f32.mrb[0].mxu0
  %v4405 = vadd.f32 0.0, %v4404
  %v4406 = vpop.f32.mrb[0].mxu0
  %v4407 = vpop.f32.mrb[0].mxu0
  %v4408 = vadd.f32 0.0, %v4407
  %v4409 = vpop.f32.mrb[0].mxu0
  %4410 = vdwg.mxu0
  %v4411 = vadd.f32 %v4357, %v4405
  %v4412 = vadd.f32 %v4358, %v4408
  %s4413 = scalar_lea.vmem %s5, 104
  %v4414 = vld [vmem:[%s4413] sm:$0xf]
  %v4415 = vld [vmem:[%s4413 + $0x4] sm:$0xf]
  %v4418 = vunpack.c.l.b16 %v4414
  %v4419 = vunpack.c.l.b16 %v4415
  %v4420 = vpack.c.b16 %v4419, %v4418
  %4425 = vrot.lane.b32.xlu0 %v3593, 64
  %v4426 = vpop.permute.xlu0 %4425
  %4427 = vrot.lane.b32.xlu0 %v3601, 64
  %v4428 = vpop.permute.xlu0 %4427
  %4429 = vrot.lane.b32.xlu0 %v3609, 64
  %v4430 = vpop.permute.xlu0 %4429
  %4431 = vrot.lane.b32.xlu0 %v3617, 64
  %v4432 = vpop.permute.xlu0 %4431
  %v4438 = vsel %vm3645, %v4420, 0
  %4440 = vmatprep.subr.bf16.mxu0 0
  %4441 = vmatpush1.bf16.msra.mxu0 %v4426
  %4442 = vmatprep.subr.bf16.mxu0 0
  %4443 = vmatpush1.bf16.msra.mxu0 %v4428
  %4444 = vmatprep.subr.bf16.mxu0 0
  %4445 = vmatpush1.bf16.msra.mxu0 %v4430
  %4446 = vmatprep.subr.bf16.mxu0 0
  %4447 = vmatpush1.bf16.msra.mxu0 %v4432
  %4448 = vmatprep.subr.bf16.mxu0 0
  %4449 = vmatpush1.bf16.msra.mxu0 0
  %4450 = vmatprep.subr.bf16.mxu0 0
  %4451 = vmatpush1.bf16.msra.mxu0 0
  %4452 = vmatprep.subr.bf16.mxu0 0
  %4453 = vmatpush1.bf16.msra.mxu0 0
  %4454 = vmatprep.subr.bf16.mxu0 0
  %4455 = vmatpush1.bf16.msra.mxu0 0
  %4456 = vmatprep.subr.bf16.mxu0 0
  %4457 = vmatpush1.bf16.msra.mxu0 0
  %4458 = vmatprep.subr.bf16.mxu0 0
  %4459 = vmatpush1.bf16.msra.mxu0 0
  %4460 = vmatprep.subr.bf16.mxu0 0
  %4461 = vmatpush1.bf16.msra.mxu0 0
  %4462 = vmatprep.subr.bf16.mxu0 0
  %4463 = vmatpush1.bf16.msra.mxu0 0
  %4464 = vmatprep.subr.bf16.mxu0 0
  %4465 = vmatpush1.bf16.msra.mxu0 0
  %4466 = vmatprep.subr.bf16.mxu0 0
  %4467 = vmatpush1.bf16.msra.mxu0 0
  %4468 = vmatprep.subr.bf16.mxu0 0
  %4469 = vmatpush1.bf16.msra.mxu0 0
  %4470 = vmatprep.subr.bf16.mxu0 0
  %4471 = vmatpush1.bf16.msra.mxu0 0
  %4472 = vmatprep.mubr.bf16.mxu0 0
  %4473 = vmatmul.mubr.bf16.gmra.mrb[0].mxu0 %v4438
  %v4474 = vpop.f32.mrb[0].mxu0
  %v4475 = vadd.f32 0.0, %v4474
  %v4476 = vpop.f32.mrb[0].mxu0
  %v4477 = vpop.f32.mrb[0].mxu0
  %v4478 = vadd.f32 0.0, %v4477
  %v4479 = vpop.f32.mrb[0].mxu0
  %4480 = vdwg.mxu0
  %v4481 = vadd.f32 %v4411, %v4475
  %v4482 = vadd.f32 %v4412, %v4478
  %s4483 = scalar_lea.vmem %s5, 112
  %v4484 = vld [vmem:[%s4483] sm:$0xf]
  %v4485 = vld [vmem:[%s4483 + $0x4] sm:$0xf]
  %v4488 = vunpack.c.l.b16 %v4484
  %v4489 = vunpack.c.l.b16 %v4485
  %v4490 = vpack.c.b16 %v4489, %v4488
  %v4492 = vsel %vm3645, %v4490, 0
  %4494 = vmatprep.subr.bf16.mxu0 0
  %4495 = vmatpush1.bf16.msra.mxu0 %v3594
  %4496 = vmatprep.subr.bf16.mxu0 0
  %4497 = vmatpush1.bf16.msra.mxu0 %v3602
  %4498 = vmatprep.subr.bf16.mxu0 0
  %4499 = vmatpush1.bf16.msra.mxu0 %v3610
  %4500 = vmatprep.subr.bf16.mxu0 0
  %4501 = vmatpush1.bf16.msra.mxu0 %v3618
  %4502 = vmatprep.subr.bf16.mxu0 0
  %4503 = vmatpush1.bf16.msra.mxu0 0
  %4504 = vmatprep.subr.bf16.mxu0 0
  %4505 = vmatpush1.bf16.msra.mxu0 0
  %4506 = vmatprep.subr.bf16.mxu0 0
  %4507 = vmatpush1.bf16.msra.mxu0 0
  %4508 = vmatprep.subr.bf16.mxu0 0
  %4509 = vmatpush1.bf16.msra.mxu0 0
  %4510 = vmatprep.subr.bf16.mxu0 0
  %4511 = vmatpush1.bf16.msra.mxu0 0
  %4512 = vmatprep.subr.bf16.mxu0 0
  %4513 = vmatpush1.bf16.msra.mxu0 0
  %4514 = vmatprep.subr.bf16.mxu0 0
  %4515 = vmatpush1.bf16.msra.mxu0 0
  %4516 = vmatprep.subr.bf16.mxu0 0
  %4517 = vmatpush1.bf16.msra.mxu0 0
  %4518 = vmatprep.subr.bf16.mxu0 0
  %4519 = vmatpush1.bf16.msra.mxu0 0
  %4520 = vmatprep.subr.bf16.mxu0 0
  %4521 = vmatpush1.bf16.msra.mxu0 0
  %4522 = vmatprep.subr.bf16.mxu0 0
  %4523 = vmatpush1.bf16.msra.mxu0 0
  %4524 = vmatprep.subr.bf16.mxu0 0
  %4525 = vmatpush1.bf16.msra.mxu0 0
  %4526 = vmatprep.mubr.bf16.mxu0 0
  %4527 = vmatmul.mubr.bf16.gmra.mrb[0].mxu0 %v4492
  %v4528 = vpop.f32.mrb[0].mxu0
  %v4529 = vadd.f32 0.0, %v4528
  %v4530 = vpop.f32.mrb[0].mxu0
  %v4531 = vpop.f32.mrb[0].mxu0
  %v4532 = vadd.f32 0.0, %v4531
  %v4533 = vpop.f32.mrb[0].mxu0
  %4534 = vdwg.mxu0
  %v4535 = vadd.f32 %v4481, %v4529
  %v4536 = vadd.f32 %v4482, %v4532
  %s4537 = scalar_lea.vmem %s5, 120
  %v4538 = vld [vmem:[%s4537] sm:$0xf]
  %v4539 = vld [vmem:[%s4537 + $0x4] sm:$0xf]
  %v4542 = vunpack.c.l.b16 %v4538
  %v4543 = vunpack.c.l.b16 %v4539
  %v4544 = vpack.c.b16 %v4543, %v4542
  %4549 = vrot.lane.b32.xlu0 %v3594, 64
  %v4550 = vpop.permute.xlu0 %4549
  %4551 = vrot.lane.b32.xlu0 %v3602, 64
  %v4552 = vpop.permute.xlu0 %4551
  %4553 = vrot.lane.b32.xlu0 %v3610, 64
  %v4554 = vpop.permute.xlu0 %4553
  %4555 = vrot.lane.b32.xlu0 %v3618, 64
  %v4556 = vpop.permute.xlu0 %4555
  %v4562 = vsel %vm3645, %v4544, 0
  %4564 = vmatprep.subr.bf16.mxu0 0
  %4565 = vmatpush1.bf16.msra.mxu0 %v4550
  %4566 = vmatprep.subr.bf16.mxu0 0
  %4567 = vmatpush1.bf16.msra.mxu0 %v4552
  %4568 = vmatprep.subr.bf16.mxu0 0
  %4569 = vmatpush1.bf16.msra.mxu0 %v4554
  %4570 = vmatprep.subr.bf16.mxu0 0
  %4571 = vmatpush1.bf16.msra.mxu0 %v4556
  %4572 = vmatprep.subr.bf16.mxu0 0
  %4573 = vmatpush1.bf16.msra.mxu0 0
  %4574 = vmatprep.subr.bf16.mxu0 0
  %4575 = vmatpush1.bf16.msra.mxu0 0
  %4576 = vmatprep.subr.bf16.mxu0 0
  %4577 = vmatpush1.bf16.msra.mxu0 0
  %4578 = vmatprep.subr.bf16.mxu0 0
  %4579 = vmatpush1.bf16.msra.mxu0 0
  %4580 = vmatprep.subr.bf16.mxu0 0
  %4581 = vmatpush1.bf16.msra.mxu0 0
  %4582 = vmatprep.subr.bf16.mxu0 0
  %4583 = vmatpush1.bf16.msra.mxu0 0
  %4584 = vmatprep.subr.bf16.mxu0 0
  %4585 = vmatpush1.bf16.msra.mxu0 0
  %4586 = vmatprep.subr.bf16.mxu0 0
  %4587 = vmatpush1.bf16.msra.mxu0 0
  %4588 = vmatprep.subr.bf16.mxu0 0
  %4589 = vmatpush1.bf16.msra.mxu0 0
  %4590 = vmatprep.subr.bf16.mxu0 0
  %4591 = vmatpush1.bf16.msra.mxu0 0
  %4592 = vmatprep.subr.bf16.mxu0 0
  %4593 = vmatpush1.bf16.msra.mxu0 0
  %4594 = vmatprep.subr.bf16.mxu0 0
  %4595 = vmatpush1.bf16.msra.mxu0 0
  %4596 = vmatprep.mubr.bf16.mxu0 0
  %4597 = vmatmul.mubr.bf16.gmra.mrb[0].mxu0 %v4562
  %v4598 = vpop.f32.mrb[0].mxu0
  %v4599 = vadd.f32 0.0, %v4598
  %v4600 = vpop.f32.mrb[0].mxu0
  %v4601 = vpop.f32.mrb[0].mxu0
  %v4602 = vadd.f32 0.0, %v4601
  %v4603 = vpop.f32.mrb[0].mxu0
  %4604 = vdwg.mxu0
  %v4605 = vadd.f32 %v4535, %v4599
  %v4606 = vadd.f32 %v4536, %v4602
  %v4607 = vsel %vm3645, %v4605, 0.0
  %v4608 = vsel %vm3645, %v4606, 0.0
  %v4609 = vadd.f32 %v4607, %v4608
  %v4610 = vrot.slane %v4609, 4
  %v4611 = vadd.f32 %v4609, %v4610
  %v4612 = vrot.slane %v4611, 2
  %v4613 = vadd.f32 %v4611, %v4612
  %v4614 = vrot.slane %v4613, 1
  %v4615 = vadd.f32 %v4613, %v4614
  %4617 = vrot.lane.b32.xlu0 %v4615, 96
  %v4618 = vpop.permute.xlu0 %4617
  %v4620 = vadd.f32 %v4615, %v4618
  %v4621 = vrcp.pop 32.0
  %v4622 = vmul.f32 %v4620, %v4621
  %4624 = vrot.lane.b32.xlu0 %v4622, 32
  %v4625 = vpop.permute.xlu0 %4624
  %v4627 = vsel %vm3031, %v4622, %v4625
  %v4628 = vlaneseq
  %v4629 = vshrl.u32 %v4628, 7
  %v4630 = vsub.s32 0, %v4629
  %v4631 = vrot.slane %v4627, %v4630
  %v4632 = vsub.f32 %v4605, %v4631
  %v4633 = vsub.f32 %v4606, %v4631
  %v4634 = vmul.f32 %v4632, %v4632
  %v4635 = vmul.f32 %v4633, %v4633
  %v4636 = vsel %vm3645, %v4634, 0.0
  %v4637 = vsel %vm3645, %v4635, 0.0
  %v4638 = vadd.f32 %v4636, %v4637
  %v4639 = vrot.slane %v4638, 4
  %v4640 = vadd.f32 %v4638, %v4639
  %v4641 = vrot.slane %v4640, 2
  %v4642 = vadd.f32 %v4640, %v4641
  %v4643 = vrot.slane %v4642, 1
  %v4644 = vadd.f32 %v4642, %v4643
  %4646 = vrot.lane.b32.xlu0 %v4644, 96
  %v4647 = vpop.permute.xlu0 %4646
  %v4649 = vadd.f32 %v4644, %v4647
  %v4650 = vmul.f32 %v4649, %v4621
  %v4651 = vadd.f32 %v4650, 1e-05
  %v4652 = vrsqrt.pop %v4651
  %v4654 = vrot.slane %v4652, 5
  %v4656 = vmul.f32 %v39, %v4654
  %v4658 = vrot.slane %v4656, 3
  %v4660 = vmul.f32 %v4622, %v4658
  %v4662 = vrot.slane %v4660, 4
  %v4664 = vsub.f32 %v39, %v4662
  %4665 = vrot.lane.b32.xlu0 %v4656, 32
  %v4666 = vpop.permute.xlu0 %4665
  %v4668 = vsel %vm3031, %v4656, %v4666
  %4670 = vrot.lane.b32.xlu0 %v4664, 32
  %v4671 = vpop.permute.xlu0 %4670
  %v4673 = vsel %vm3031, %v4664, %v4671
  %v4674 = vlaneseq
  %v4675 = vshrl.u32 %v4674, 7
  %v4676 = vsub.s32 3, %v4675
  %v4677 = vrot.slane %v4668, %v4676
  %v4678 = vmul.f32 %v4605, %v4677
  %v4679 = vmul.f32 %v4606, %v4677
  %v4680 = vlaneseq
  %v4681 = vshrl.u32 %v4680, 7
  %v4682 = vsub.s32 4, %v4681
  %v4683 = vrot.slane %v4673, %v4682
  %v4684 = vadd.f32 %v4678, %v4683
  %v4685 = vadd.f32 %v4679, %v4683
  %vm4686 = vcmp.ge.f32.partialorder %v4684, 0.0
  %vm4687 = vcmp.ge.f32.partialorder %v4685, 0.0
  %v4688 = vmul.f32 %v4684, 0.2
  %v4689 = vmul.f32 %v4685, 0.2
  %v4690 = vsel %vm4686, %v4684, %v4688
  %v4691 = vsel %vm4687, %v4685, %v4689
  %v4692 = vpack.c.bf16 %v4691, %v4690
  %v4693 = vld [vmem:[%s8] sm:$0xff]
  %v4694 = vld [vmem:[%s8 + $0x8] sm:$0xff]
  %v4695 = vld [vmem:[%s8 + $0x10] sm:$0xff]
  %v4696 = vld [vmem:[%s8 + $0x18] sm:$0xff]
  %v4697 = vld [vmem:[%s8 + $0x20] sm:$0xff]
  %v4698 = vld [vmem:[%s8 + $0x28] sm:$0xff]
  %v4699 = vld [vmem:[%s8 + $0x30] sm:$0xff]
  %v4700 = vld [vmem:[%s8 + $0x38] sm:$0xff]
  %v4701 = vld [vmem:[%s8 + $0x40] sm:$0xff]
  %v4702 = vld [vmem:[%s8 + $0x48] sm:$0xff]
  %v4703 = vld [vmem:[%s8 + $0x50] sm:$0xff]
  %v4704 = vld [vmem:[%s8 + $0x58] sm:$0xff]
  %v4705 = vld [vmem:[%s8 + $0x60] sm:$0xff]
  %v4706 = vld [vmem:[%s8 + $0x68] sm:$0xff]
  %v4707 = vld [vmem:[%s8 + $0x70] sm:$0xff]
  %v4708 = vld [vmem:[%s8 + $0x78] sm:$0xff]
  %v4709 = vld [vmem:[%s8 + $0x80] sm:$0xff]
  %v4710 = vld [vmem:[%s8 + $0x88] sm:$0xff]
  %v4711 = vld [vmem:[%s8 + $0x90] sm:$0xff]
  %v4712 = vld [vmem:[%s8 + $0x98] sm:$0xff]
  %v4713 = vld [vmem:[%s8 + $0xa0] sm:$0xff]
  %v4714 = vld [vmem:[%s8 + $0xa8] sm:$0xff]
  %v4715 = vld [vmem:[%s8 + $0xb0] sm:$0xff]
  %v4716 = vld [vmem:[%s8 + $0xb8] sm:$0xff]
  %v4717 = vld [vmem:[%s8 + $0xc0] sm:$0xff]
  %v4718 = vld [vmem:[%s8 + $0xc8] sm:$0xff]
  %v4719 = vld [vmem:[%s8 + $0xd0] sm:$0xff]
  %v4720 = vld [vmem:[%s8 + $0xd8] sm:$0xff]
  %v4721 = vld [vmem:[%s8 + $0xe0] sm:$0xff]
  %v4722 = vld [vmem:[%s8 + $0xe8] sm:$0xff]
  %v4723 = vld [vmem:[%s8 + $0xf0] sm:$0xff]
  %v4724 = vld [vmem:[%s8 + $0xf8] sm:$0xff]
  %v4725 = vld [vmem:[%s8 + $0x100] sm:$0xff]
  %v4726 = vld [vmem:[%s8 + $0x108] sm:$0xff]
  %v4727 = vld [vmem:[%s8 + $0x110] sm:$0xff]
  %v4728 = vld [vmem:[%s8 + $0x118] sm:$0xff]
  %v4729 = vld [vmem:[%s8 + $0x120] sm:$0xff]
  %v4730 = vld [vmem:[%s8 + $0x128] sm:$0xff]
  %v4731 = vld [vmem:[%s8 + $0x130] sm:$0xff]
  %v4732 = vld [vmem:[%s8 + $0x138] sm:$0xff]
  %v4733 = vld [vmem:[%s8 + $0x140] sm:$0xff]
  %v4734 = vld [vmem:[%s8 + $0x148] sm:$0xff]
  %v4735 = vld [vmem:[%s8 + $0x150] sm:$0xff]
  %v4736 = vld [vmem:[%s8 + $0x158] sm:$0xff]
  %v4737 = vld [vmem:[%s8 + $0x160] sm:$0xff]
  %v4738 = vld [vmem:[%s8 + $0x168] sm:$0xff]
  %v4739 = vld [vmem:[%s8 + $0x170] sm:$0xff]
  %v4740 = vld [vmem:[%s8 + $0x178] sm:$0xff]
  %v4741 = vld [vmem:[%s8 + $0x180] sm:$0xff]
  %v4742 = vld [vmem:[%s8 + $0x188] sm:$0xff]
  %v4743 = vld [vmem:[%s8 + $0x190] sm:$0xff]
  %v4744 = vld [vmem:[%s8 + $0x198] sm:$0xff]
  %v4745 = vld [vmem:[%s8 + $0x1a0] sm:$0xff]
  %v4746 = vld [vmem:[%s8 + $0x1a8] sm:$0xff]
  %v4747 = vld [vmem:[%s8 + $0x1b0] sm:$0xff]
  %v4748 = vld [vmem:[%s8 + $0x1b8] sm:$0xff]
  %v4749 = vld [vmem:[%s8 + $0x1c0] sm:$0xff]
  %v4750 = vld [vmem:[%s8 + $0x1c8] sm:$0xff]
  %v4751 = vld [vmem:[%s8 + $0x1d0] sm:$0xff]
  %v4752 = vld [vmem:[%s8 + $0x1d8] sm:$0xff]
  %v4753 = vld [vmem:[%s8 + $0x1e0] sm:$0xff]
  %v4754 = vld [vmem:[%s8 + $0x1e8] sm:$0xff]
  %v4755 = vld [vmem:[%s8 + $0x1f0] sm:$0xff]
  %v4756 = vld [vmem:[%s8 + $0x1f8] sm:$0xff]
  %v4821 = vunpack.c.l.b16 %v4693
  %v4822 = vunpack.c.h.b16 %v4693
  %v4823 = vunpack.c.l.b16 %v4694
  %v4824 = vunpack.c.h.b16 %v4694
  %v4825 = vunpack.c.l.b16 %v4695
  %v4826 = vunpack.c.h.b16 %v4695
  %v4827 = vunpack.c.l.b16 %v4696
  %v4828 = vunpack.c.h.b16 %v4696
  %v4829 = vunpack.c.l.b16 %v4697
  %v4830 = vunpack.c.h.b16 %v4697
  %v4831 = vunpack.c.l.b16 %v4698
  %v4832 = vunpack.c.h.b16 %v4698
  %v4833 = vunpack.c.l.b16 %v4699
  %v4834 = vunpack.c.h.b16 %v4699
  %v4835 = vunpack.c.l.b16 %v4700
  %v4836 = vunpack.c.h.b16 %v4700
  %v4837 = vunpack.c.l.b16 %v4701
  %v4838 = vunpack.c.h.b16 %v4701
  %v4839 = vunpack.c.l.b16 %v4702
  %v4840 = vunpack.c.h.b16 %v4702
  %v4841 = vunpack.c.l.b16 %v4703
  %v4842 = vunpack.c.h.b16 %v4703
  %v4843 = vunpack.c.l.b16 %v4704
  %v4844 = vunpack.c.h.b16 %v4704
  %v4845 = vunpack.c.l.b16 %v4705
  %v4846 = vunpack.c.h.b16 %v4705
  %v4847 = vunpack.c.l.b16 %v4706
  %v4848 = vunpack.c.h.b16 %v4706
  %v4849 = vunpack.c.l.b16 %v4707
  %v4850 = vunpack.c.h.b16 %v4707
  %v4851 = vunpack.c.l.b16 %v4708
  %v4852 = vunpack.c.h.b16 %v4708
  %v4853 = vunpack.c.l.b16 %v4709
  %v4854 = vunpack.c.h.b16 %v4709
  %v4855 = vunpack.c.l.b16 %v4710
  %v4856 = vunpack.c.h.b16 %v4710
  %v4857 = vunpack.c.l.b16 %v4711
  %v4858 = vunpack.c.h.b16 %v4711
  %v4859 = vunpack.c.l.b16 %v4712
  %v4860 = vunpack.c.h.b16 %v4712
  %v4861 = vunpack.c.l.b16 %v4713
  %v4862 = vunpack.c.h.b16 %v4713
  %v4863 = vunpack.c.l.b16 %v4714
  %v4864 = vunpack.c.h.b16 %v4714
  %v4865 = vunpack.c.l.b16 %v4715
  %v4866 = vunpack.c.h.b16 %v4715
  %v4867 = vunpack.c.l.b16 %v4716
  %v4868 = vunpack.c.h.b16 %v4716
  %v4869 = vunpack.c.l.b16 %v4717
  %v4870 = vunpack.c.h.b16 %v4717
  %v4871 = vunpack.c.l.b16 %v4718
  %v4872 = vunpack.c.h.b16 %v4718
  %v4873 = vunpack.c.l.b16 %v4719
  %v4874 = vunpack.c.h.b16 %v4719
  %v4875 = vunpack.c.l.b16 %v4720
  %v4876 = vunpack.c.h.b16 %v4720
  %v4877 = vunpack.c.l.b16 %v4721
  %v4878 = vunpack.c.h.b16 %v4721
  %v4879 = vunpack.c.l.b16 %v4722
  %v4880 = vunpack.c.h.b16 %v4722
  %v4881 = vunpack.c.l.b16 %v4723
  %v4882 = vunpack.c.h.b16 %v4723
  %v4883 = vunpack.c.l.b16 %v4724
  %v4884 = vunpack.c.h.b16 %v4724
  %v4885 = vunpack.c.l.b16 %v4725
  %v4886 = vunpack.c.h.b16 %v4725
  %v4887 = vunpack.c.l.b16 %v4726
  %v4888 = vunpack.c.h.b16 %v4726
  %v4889 = vunpack.c.l.b16 %v4727
  %v4890 = vunpack.c.h.b16 %v4727
  %v4891 = vunpack.c.l.b16 %v4728
  %v4892 = vunpack.c.h.b16 %v4728
  %v4893 = vunpack.c.l.b16 %v4729
  %v4894 = vunpack.c.h.b16 %v4729
  %v4895 = vunpack.c.l.b16 %v4730
  %v4896 = vunpack.c.h.b16 %v4730
  %v4897 = vunpack.c.l.b16 %v4731
  %v4898 = vunpack.c.h.b16 %v4731
  %v4899 = vunpack.c.l.b16 %v4732
  %v4900 = vunpack.c.h.b16 %v4732
  %v4901 = vunpack.c.l.b16 %v4733
  %v4902 = vunpack.c.h.b16 %v4733
  %v4903 = vunpack.c.l.b16 %v4734
  %v4904 = vunpack.c.h.b16 %v4734
  %v4905 = vunpack.c.l.b16 %v4735
  %v4906 = vunpack.c.h.b16 %v4735
  %v4907 = vunpack.c.l.b16 %v4736
  %v4908 = vunpack.c.h.b16 %v4736
  %v4909 = vunpack.c.l.b16 %v4737
  %v4910 = vunpack.c.h.b16 %v4737
  %v4911 = vunpack.c.l.b16 %v4738
  %v4912 = vunpack.c.h.b16 %v4738
  %v4913 = vunpack.c.l.b16 %v4739
  %v4914 = vunpack.c.h.b16 %v4739
  %v4915 = vunpack.c.l.b16 %v4740
  %v4916 = vunpack.c.h.b16 %v4740
  %v4917 = vunpack.c.l.b16 %v4741
  %v4918 = vunpack.c.h.b16 %v4741
  %v4919 = vunpack.c.l.b16 %v4742
  %v4920 = vunpack.c.h.b16 %v4742
  %v4921 = vunpack.c.l.b16 %v4743
  %v4922 = vunpack.c.h.b16 %v4743
  %v4923 = vunpack.c.l.b16 %v4744
  %v4924 = vunpack.c.h.b16 %v4744
  %v4925 = vunpack.c.l.b16 %v4745
  %v4926 = vunpack.c.h.b16 %v4745
  %v4927 = vunpack.c.l.b16 %v4746
  %v4928 = vunpack.c.h.b16 %v4746
  %v4929 = vunpack.c.l.b16 %v4747
  %v4930 = vunpack.c.h.b16 %v4747
  %v4931 = vunpack.c.l.b16 %v4748
  %v4932 = vunpack.c.h.b16 %v4748
  %v4933 = vunpack.c.l.b16 %v4749
  %v4934 = vunpack.c.h.b16 %v4749
  %v4935 = vunpack.c.l.b16 %v4750
  %v4936 = vunpack.c.h.b16 %v4750
  %v4937 = vunpack.c.l.b16 %v4751
  %v4938 = vunpack.c.h.b16 %v4751
  %v4939 = vunpack.c.l.b16 %v4752
  %v4940 = vunpack.c.h.b16 %v4752
  %v4941 = vunpack.c.l.b16 %v4753
  %v4942 = vunpack.c.h.b16 %v4753
  %v4943 = vunpack.c.l.b16 %v4754
  %v4944 = vunpack.c.h.b16 %v4754
  %v4945 = vunpack.c.l.b16 %v4755
  %v4946 = vunpack.c.h.b16 %v4755
  %v4947 = vunpack.c.l.b16 %v4756
  %v4948 = vunpack.c.h.b16 %v4756
  %v4949 = vpack.c.b16 %v4837, %v4821
  %v4950 = vpack.c.b16 %v4838, %v4822
  %v4951 = vpack.c.b16 %v4839, %v4823
  %v4952 = vpack.c.b16 %v4840, %v4824
  %v4953 = vpack.c.b16 %v4841, %v4825
  %v4954 = vpack.c.b16 %v4842, %v4826
  %v4955 = vpack.c.b16 %v4843, %v4827
  %v4956 = vpack.c.b16 %v4844, %v4828
  %v4957 = vpack.c.b16 %v4845, %v4829
  %v4958 = vpack.c.b16 %v4846, %v4830
  %v4959 = vpack.c.b16 %v4847, %v4831
  %v4960 = vpack.c.b16 %v4848, %v4832
  %v4961 = vpack.c.b16 %v4849, %v4833
  %v4962 = vpack.c.b16 %v4850, %v4834
  %v4963 = vpack.c.b16 %v4851, %v4835
  %v4964 = vpack.c.b16 %v4852, %v4836
  %v4965 = vpack.c.b16 %v4869, %v4853
  %v4966 = vpack.c.b16 %v4870, %v4854
  %v4967 = vpack.c.b16 %v4871, %v4855
  %v4968 = vpack.c.b16 %v4872, %v4856
  %v4969 = vpack.c.b16 %v4873, %v4857
  %v4970 = vpack.c.b16 %v4874, %v4858
  %v4971 = vpack.c.b16 %v4875, %v4859
  %v4972 = vpack.c.b16 %v4876, %v4860
  %v4973 = vpack.c.b16 %v4877, %v4861
  %v4974 = vpack.c.b16 %v4878, %v4862
  %v4975 = vpack.c.b16 %v4879, %v4863
  %v4976 = vpack.c.b16 %v4880, %v4864
  %v4977 = vpack.c.b16 %v4881, %v4865
  %v4978 = vpack.c.b16 %v4882, %v4866
  %v4979 = vpack.c.b16 %v4883, %v4867
  %v4980 = vpack.c.b16 %v4884, %v4868
  %v4981 = vpack.c.b16 %v4901, %v4885
  %v4982 = vpack.c.b16 %v4902, %v4886
  %v4983 = vpack.c.b16 %v4903, %v4887
  %v4984 = vpack.c.b16 %v4904, %v4888
  %v4985 = vpack.c.b16 %v4905, %v4889
  %v4986 = vpack.c.b16 %v4906, %v4890
  %v4987 = vpack.c.b16 %v4907, %v4891
  %v4988 = vpack.c.b16 %v4908, %v4892
  %v4989 = vpack.c.b16 %v4909, %v4893
  %v4990 = vpack.c.b16 %v4910, %v4894
  %v4991 = vpack.c.b16 %v4911, %v4895
  %v4992 = vpack.c.b16 %v4912, %v4896
  %v4993 = vpack.c.b16 %v4913, %v4897
  %v4994 = vpack.c.b16 %v4914, %v4898
  %v4995 = vpack.c.b16 %v4915, %v4899
  %v4996 = vpack.c.b16 %v4916, %v4900
  %v4997 = vpack.c.b16 %v4933, %v4917
  %v4998 = vpack.c.b16 %v4934, %v4918
  %v4999 = vpack.c.b16 %v4935, %v4919
  %v5000 = vpack.c.b16 %v4936, %v4920
  %v5001 = vpack.c.b16 %v4937, %v4921
  %v5002 = vpack.c.b16 %v4938, %v4922
  %v5003 = vpack.c.b16 %v4939, %v4923
  %v5004 = vpack.c.b16 %v4940, %v4924
  %v5005 = vpack.c.b16 %v4941, %v4925
  %v5006 = vpack.c.b16 %v4942, %v4926
  %v5007 = vpack.c.b16 %v4943, %v4927
  %v5008 = vpack.c.b16 %v4944, %v4928
  %v5009 = vpack.c.b16 %v4945, %v4929
  %v5010 = vpack.c.b16 %v4946, %v4930
  %v5011 = vpack.c.b16 %v4947, %v4931
  %v5012 = vpack.c.b16 %v4948, %v4932
  %v5078 = vsel %vm3645, %v4692, 0
  %5080 = vmatprep.subr.bf16.mxu0 %v4950
  %5081 = vmatpush1.bf16.msra.mxu0 %v4949
  %5082 = vmatprep.subr.bf16.mxu0 %v4966
  %5083 = vmatpush1.bf16.msra.mxu0 %v4965
  %5084 = vmatprep.subr.bf16.mxu0 %v4982
  %5085 = vmatpush1.bf16.msra.mxu0 %v4981
  %5086 = vmatprep.subr.bf16.mxu0 %v4998
  %5087 = vmatpush1.bf16.msra.mxu0 %v4997
  %5088 = vmatprep.subr.bf16.mxu0 0
  %5089 = vmatpush1.bf16.msra.mxu0 0
  %5090 = vmatprep.subr.bf16.mxu0 0
  %5091 = vmatpush1.bf16.msra.mxu0 0
  %5092 = vmatprep.subr.bf16.mxu0 0
  %5093 = vmatpush1.bf16.msra.mxu0 0
  %5094 = vmatprep.subr.bf16.mxu0 0
  %5095 = vmatpush1.bf16.msra.mxu0 0
  %5096 = vmatprep.subr.bf16.mxu0 0
  %5097 = vmatpush1.bf16.msra.mxu0 0
  %5098 = vmatprep.subr.bf16.mxu0 0
  %5099 = vmatpush1.bf16.msra.mxu0 0
  %5100 = vmatprep.subr.bf16.mxu0 0
  %5101 = vmatpush1.bf16.msra.mxu0 0
  %5102 = vmatprep.subr.bf16.mxu0 0
  %5103 = vmatpush1.bf16.msra.mxu0 0
  %5104 = vmatprep.subr.bf16.mxu0 0
  %5105 = vmatpush1.bf16.msra.mxu0 0
  %5106 = vmatprep.subr.bf16.mxu0 0
  %5107 = vmatpush1.bf16.msra.mxu0 0
  %5108 = vmatprep.subr.bf16.mxu0 0
  %5109 = vmatpush1.bf16.msra.mxu0 0
  %5110 = vmatprep.subr.bf16.mxu0 0
  %5111 = vmatpush1.bf16.msra.mxu0 0
  %5112 = vmatprep.mubr.bf16.mxu0 0
  %5113 = vmatmul.mubr.bf16.gmra.mrb[0].mxu0 %v5078
  %v5114 = vpop.f32.mrb[0].mxu0
  %v5115 = vadd.f32 0.0, %v5114
  %v5116 = vpop.f32.mrb[0].mxu0
  %v5117 = vadd.f32 0.0, %v5116
  %v5118 = vpop.f32.mrb[0].mxu0
  %v5119 = vadd.f32 0.0, %v5118
  %v5120 = vpop.f32.mrb[0].mxu0
  %v5121 = vadd.f32 0.0, %v5120
  %5122 = vdwg.mxu0
  %5123 = vmatprep.subr.bf16.mxu0 %v4952
  %5124 = vmatpush1.bf16.msra.mxu0 %v4951
  %5125 = vmatprep.subr.bf16.mxu0 %v4968
  %5126 = vmatpush1.bf16.msra.mxu0 %v4967
  %5127 = vmatprep.subr.bf16.mxu0 %v4984
  %5128 = vmatpush1.bf16.msra.mxu0 %v4983
  %5129 = vmatprep.subr.bf16.mxu0 %v5000
  %5130 = vmatpush1.bf16.msra.mxu0 %v4999
  %5131 = vmatprep.subr.bf16.mxu0 0
  %5132 = vmatpush1.bf16.msra.mxu0 0
  %5133 = vmatprep.subr.bf16.mxu0 0
  %5134 = vmatpush1.bf16.msra.mxu0 0
  %5135 = vmatprep.subr.bf16.mxu0 0
  %5136 = vmatpush1.bf16.msra.mxu0 0
  %5137 = vmatprep.subr.bf16.mxu0 0
  %5138 = vmatpush1.bf16.msra.mxu0 0
  %5139 = vmatprep.subr.bf16.mxu0 0
  %5140 = vmatpush1.bf16.msra.mxu0 0
  %5141 = vmatprep.subr.bf16.mxu0 0
  %5142 = vmatpush1.bf16.msra.mxu0 0
  %5143 = vmatprep.subr.bf16.mxu0 0
  %5144 = vmatpush1.bf16.msra.mxu0 0
  %5145 = vmatprep.subr.bf16.mxu0 0
  %5146 = vmatpush1.bf16.msra.mxu0 0
  %5147 = vmatprep.subr.bf16.mxu0 0
  %5148 = vmatpush1.bf16.msra.mxu0 0
  %5149 = vmatprep.subr.bf16.mxu0 0
  %5150 = vmatpush1.bf16.msra.mxu0 0
  %5151 = vmatprep.subr.bf16.mxu0 0
  %5152 = vmatpush1.bf16.msra.mxu0 0
  %5153 = vmatprep.subr.bf16.mxu0 0
  %5154 = vmatpush1.bf16.msra.mxu0 0
  %5155 = vmatprep.mubr.bf16.mxu0 0
  %5156 = vmatmul.mubr.bf16.gmra.mrb[0].mxu0 %v5078
  %v5157 = vpop.f32.mrb[0].mxu0
  %v5158 = vadd.f32 0.0, %v5157
  %v5159 = vpop.f32.mrb[0].mxu0
  %v5160 = vadd.f32 0.0, %v5159
  %v5161 = vpop.f32.mrb[0].mxu0
  %v5162 = vadd.f32 0.0, %v5161
  %v5163 = vpop.f32.mrb[0].mxu0
  %v5164 = vadd.f32 0.0, %v5163
  %5165 = vdwg.mxu0
  %5166 = vmatprep.subr.bf16.mxu0 %v4954
  %5167 = vmatpush1.bf16.msra.mxu0 %v4953
  %5168 = vmatprep.subr.bf16.mxu0 %v4970
  %5169 = vmatpush1.bf16.msra.mxu0 %v4969
  %5170 = vmatprep.subr.bf16.mxu0 %v4986
  %5171 = vmatpush1.bf16.msra.mxu0 %v4985
  %5172 = vmatprep.subr.bf16.mxu0 %v5002
  %5173 = vmatpush1.bf16.msra.mxu0 %v5001
  %5174 = vmatprep.subr.bf16.mxu0 0
  %5175 = vmatpush1.bf16.msra.mxu0 0
  %5176 = vmatprep.subr.bf16.mxu0 0
  %5177 = vmatpush1.bf16.msra.mxu0 0
  %5178 = vmatprep.subr.bf16.mxu0 0
  %5179 = vmatpush1.bf16.msra.mxu0 0
  %5180 = vmatprep.subr.bf16.mxu0 0
  %5181 = vmatpush1.bf16.msra.mxu0 0
  %5182 = vmatprep.subr.bf16.mxu0 0
  %5183 = vmatpush1.bf16.msra.mxu0 0
  %5184 = vmatprep.subr.bf16.mxu0 0
  %5185 = vmatpush1.bf16.msra.mxu0 0
  %5186 = vmatprep.subr.bf16.mxu0 0
  %5187 = vmatpush1.bf16.msra.mxu0 0
  %5188 = vmatprep.subr.bf16.mxu0 0
  %5189 = vmatpush1.bf16.msra.mxu0 0
  %5190 = vmatprep.subr.bf16.mxu0 0
  %5191 = vmatpush1.bf16.msra.mxu0 0
  %5192 = vmatprep.subr.bf16.mxu0 0
  %5193 = vmatpush1.bf16.msra.mxu0 0
  %5194 = vmatprep.subr.bf16.mxu0 0
  %5195 = vmatpush1.bf16.msra.mxu0 0
  %5196 = vmatprep.subr.bf16.mxu0 0
  %5197 = vmatpush1.bf16.msra.mxu0 0
  %5198 = vmatprep.mubr.bf16.mxu0 0
  %5199 = vmatmul.mubr.bf16.gmra.mrb[0].mxu0 %v5078
  %v5200 = vpop.f32.mrb[0].mxu0
  %v5201 = vadd.f32 0.0, %v5200
  %v5202 = vpop.f32.mrb[0].mxu0
  %v5203 = vadd.f32 0.0, %v5202
  %v5204 = vpop.f32.mrb[0].mxu0
  %v5205 = vadd.f32 0.0, %v5204
  %v5206 = vpop.f32.mrb[0].mxu0
  %v5207 = vadd.f32 0.0, %v5206
  %5208 = vdwg.mxu0
  %5209 = vmatprep.subr.bf16.mxu0 %v4956
  %5210 = vmatpush1.bf16.msra.mxu0 %v4955
  %5211 = vmatprep.subr.bf16.mxu0 %v4972
  %5212 = vmatpush1.bf16.msra.mxu0 %v4971
  %5213 = vmatprep.subr.bf16.mxu0 %v4988
  %5214 = vmatpush1.bf16.msra.mxu0 %v4987
  %5215 = vmatprep.subr.bf16.mxu0 %v5004
  %5216 = vmatpush1.bf16.msra.mxu0 %v5003
  %5217 = vmatprep.subr.bf16.mxu0 0
  %5218 = vmatpush1.bf16.msra.mxu0 0
  %5219 = vmatprep.subr.bf16.mxu0 0
  %5220 = vmatpush1.bf16.msra.mxu0 0
  %5221 = vmatprep.subr.bf16.mxu0 0
  %5222 = vmatpush1.bf16.msra.mxu0 0
  %5223 = vmatprep.subr.bf16.mxu0 0
  %5224 = vmatpush1.bf16.msra.mxu0 0
  %5225 = vmatprep.subr.bf16.mxu0 0
  %5226 = vmatpush1.bf16.msra.mxu0 0
  %5227 = vmatprep.subr.bf16.mxu0 0
  %5228 = vmatpush1.bf16.msra.mxu0 0
  %5229 = vmatprep.subr.bf16.mxu0 0
  %5230 = vmatpush1.bf16.msra.mxu0 0
  %5231 = vmatprep.subr.bf16.mxu0 0
  %5232 = vmatpush1.bf16.msra.mxu0 0
  %5233 = vmatprep.subr.bf16.mxu0 0
  %5234 = vmatpush1.bf16.msra.mxu0 0
  %5235 = vmatprep.subr.bf16.mxu0 0
  %5236 = vmatpush1.bf16.msra.mxu0 0
  %5237 = vmatprep.subr.bf16.mxu0 0
  %5238 = vmatpush1.bf16.msra.mxu0 0
  %5239 = vmatprep.subr.bf16.mxu0 0
  %5240 = vmatpush1.bf16.msra.mxu0 0
  %5241 = vmatprep.mubr.bf16.mxu0 0
  %5242 = vmatmul.mubr.bf16.gmra.mrb[0].mxu0 %v5078
  %v5243 = vpop.f32.mrb[0].mxu0
  %v5244 = vadd.f32 0.0, %v5243
  %v5245 = vpop.f32.mrb[0].mxu0
  %v5246 = vadd.f32 0.0, %v5245
  %v5247 = vpop.f32.mrb[0].mxu0
  %v5248 = vadd.f32 0.0, %v5247
  %v5249 = vpop.f32.mrb[0].mxu0
  %v5250 = vadd.f32 0.0, %v5249
  %5251 = vdwg.mxu0
  %5252 = vmatprep.subr.bf16.mxu0 %v4958
  %5253 = vmatpush1.bf16.msra.mxu0 %v4957
  %5254 = vmatprep.subr.bf16.mxu0 %v4974
  %5255 = vmatpush1.bf16.msra.mxu0 %v4973
  %5256 = vmatprep.subr.bf16.mxu0 %v4990
  %5257 = vmatpush1.bf16.msra.mxu0 %v4989
  %5258 = vmatprep.subr.bf16.mxu0 %v5006
  %5259 = vmatpush1.bf16.msra.mxu0 %v5005
  %5260 = vmatprep.subr.bf16.mxu0 0
  %5261 = vmatpush1.bf16.msra.mxu0 0
  %5262 = vmatprep.subr.bf16.mxu0 0
  %5263 = vmatpush1.bf16.msra.mxu0 0
  %5264 = vmatprep.subr.bf16.mxu0 0
  %5265 = vmatpush1.bf16.msra.mxu0 0
  %5266 = vmatprep.subr.bf16.mxu0 0
  %5267 = vmatpush1.bf16.msra.mxu0 0
  %5268 = vmatprep.subr.bf16.mxu0 0
  %5269 = vmatpush1.bf16.msra.mxu0 0
  %5270 = vmatprep.subr.bf16.mxu0 0
  %5271 = vmatpush1.bf16.msra.mxu0 0
  %5272 = vmatprep.subr.bf16.mxu0 0
  %5273 = vmatpush1.bf16.msra.mxu0 0
  %5274 = vmatprep.subr.bf16.mxu0 0
  %5275 = vmatpush1.bf16.msra.mxu0 0
  %5276 = vmatprep.subr.bf16.mxu0 0
  %5277 = vmatpush1.bf16.msra.mxu0 0
  %5278 = vmatprep.subr.bf16.mxu0 0
  %5279 = vmatpush1.bf16.msra.mxu0 0
  %5280 = vmatprep.subr.bf16.mxu0 0
  %5281 = vmatpush1.bf16.msra.mxu0 0
  %5282 = vmatprep.subr.bf16.mxu0 0
  %5283 = vmatpush1.bf16.msra.mxu0 0
  %5284 = vmatprep.mubr.bf16.mxu0 0
  %5285 = vmatmul.mubr.bf16.gmra.mrb[0].mxu0 %v5078
  %v5286 = vpop.f32.mrb[0].mxu0
  %v5287 = vadd.f32 0.0, %v5286
  %v5288 = vpop.f32.mrb[0].mxu0
  %v5289 = vadd.f32 0.0, %v5288
  %v5290 = vpop.f32.mrb[0].mxu0
  %v5291 = vadd.f32 0.0, %v5290
  %v5292 = vpop.f32.mrb[0].mxu0
  %v5293 = vadd.f32 0.0, %v5292
  %5294 = vdwg.mxu0
  %5295 = vmatprep.subr.bf16.mxu0 %v4960
  %5296 = vmatpush1.bf16.msra.mxu0 %v4959
  %5297 = vmatprep.subr.bf16.mxu0 %v4976
  %5298 = vmatpush1.bf16.msra.mxu0 %v4975
  %5299 = vmatprep.subr.bf16.mxu0 %v4992
  %5300 = vmatpush1.bf16.msra.mxu0 %v4991
  %5301 = vmatprep.subr.bf16.mxu0 %v5008
  %5302 = vmatpush1.bf16.msra.mxu0 %v5007
  %5303 = vmatprep.subr.bf16.mxu0 0
  %5304 = vmatpush1.bf16.msra.mxu0 0
  %5305 = vmatprep.subr.bf16.mxu0 0
  %5306 = vmatpush1.bf16.msra.mxu0 0
  %5307 = vmatprep.subr.bf16.mxu0 0
  %5308 = vmatpush1.bf16.msra.mxu0 0
  %5309 = vmatprep.subr.bf16.mxu0 0
  %5310 = vmatpush1.bf16.msra.mxu0 0
  %5311 = vmatprep.subr.bf16.mxu0 0
  %5312 = vmatpush1.bf16.msra.mxu0 0
  %5313 = vmatprep.subr.bf16.mxu0 0
  %5314 = vmatpush1.bf16.msra.mxu0 0
  %5315 = vmatprep.subr.bf16.mxu0 0
  %5316 = vmatpush1.bf16.msra.mxu0 0
  %5317 = vmatprep.subr.bf16.mxu0 0
  %5318 = vmatpush1.bf16.msra.mxu0 0
  %5319 = vmatprep.subr.bf16.mxu0 0
  %5320 = vmatpush1.bf16.msra.mxu0 0
  %5321 = vmatprep.subr.bf16.mxu0 0
  %5322 = vmatpush1.bf16.msra.mxu0 0
  %5323 = vmatprep.subr.bf16.mxu0 0
  %5324 = vmatpush1.bf16.msra.mxu0 0
  %5325 = vmatprep.subr.bf16.mxu0 0
  %5326 = vmatpush1.bf16.msra.mxu0 0
  %5327 = vmatprep.mubr.bf16.mxu0 0
  %5328 = vmatmul.mubr.bf16.gmra.mrb[0].mxu0 %v5078
  %v5329 = vpop.f32.mrb[0].mxu0
  %v5330 = vadd.f32 0.0, %v5329
  %v5331 = vpop.f32.mrb[0].mxu0
  %v5332 = vadd.f32 0.0, %v5331
  %v5333 = vpop.f32.mrb[0].mxu0
  %v5334 = vadd.f32 0.0, %v5333
  %v5335 = vpop.f32.mrb[0].mxu0
  %v5336 = vadd.f32 0.0, %v5335
  %5337 = vdwg.mxu0
  %5338 = vmatprep.subr.bf16.mxu0 %v4962
  %5339 = vmatpush1.bf16.msra.mxu0 %v4961
  %5340 = vmatprep.subr.bf16.mxu0 %v4978
  %5341 = vmatpush1.bf16.msra.mxu0 %v4977
  %5342 = vmatprep.subr.bf16.mxu0 %v4994
  %5343 = vmatpush1.bf16.msra.mxu0 %v4993
  %5344 = vmatprep.subr.bf16.mxu0 %v5010
  %5345 = vmatpush1.bf16.msra.mxu0 %v5009
  %5346 = vmatprep.subr.bf16.mxu0 0
  %5347 = vmatpush1.bf16.msra.mxu0 0
  %5348 = vmatprep.subr.bf16.mxu0 0
  %5349 = vmatpush1.bf16.msra.mxu0 0
  %5350 = vmatprep.subr.bf16.mxu0 0
  %5351 = vmatpush1.bf16.msra.mxu0 0
  %5352 = vmatprep.subr.bf16.mxu0 0
  %5353 = vmatpush1.bf16.msra.mxu0 0
  %5354 = vmatprep.subr.bf16.mxu0 0
  %5355 = vmatpush1.bf16.msra.mxu0 0
  %5356 = vmatprep.subr.bf16.mxu0 0
  %5357 = vmatpush1.bf16.msra.mxu0 0
  %5358 = vmatprep.subr.bf16.mxu0 0
  %5359 = vmatpush1.bf16.msra.mxu0 0
  %5360 = vmatprep.subr.bf16.mxu0 0
  %5361 = vmatpush1.bf16.msra.mxu0 0
  %5362 = vmatprep.subr.bf16.mxu0 0
  %5363 = vmatpush1.bf16.msra.mxu0 0
  %5364 = vmatprep.subr.bf16.mxu0 0
  %5365 = vmatpush1.bf16.msra.mxu0 0
  %5366 = vmatprep.subr.bf16.mxu0 0
  %5367 = vmatpush1.bf16.msra.mxu0 0
  %5368 = vmatprep.subr.bf16.mxu0 0
  %5369 = vmatpush1.bf16.msra.mxu0 0
  %5370 = vmatprep.mubr.bf16.mxu0 0
  %5371 = vmatmul.mubr.bf16.gmra.mrb[0].mxu0 %v5078
  %v5372 = vpop.f32.mrb[0].mxu0
  %v5373 = vadd.f32 0.0, %v5372
  %v5374 = vpop.f32.mrb[0].mxu0
  %v5375 = vadd.f32 0.0, %v5374
  %v5376 = vpop.f32.mrb[0].mxu0
  %v5377 = vadd.f32 0.0, %v5376
  %v5378 = vpop.f32.mrb[0].mxu0
  %v5379 = vadd.f32 0.0, %v5378
  %5380 = vdwg.mxu0
  %5381 = vmatprep.subr.bf16.mxu0 %v4964
  %5382 = vmatpush1.bf16.msra.mxu0 %v4963
  %5383 = vmatprep.subr.bf16.mxu0 %v4980
  %5384 = vmatpush1.bf16.msra.mxu0 %v4979
  %5385 = vmatprep.subr.bf16.mxu0 %v4996
  %5386 = vmatpush1.bf16.msra.mxu0 %v4995
  %5387 = vmatprep.subr.bf16.mxu0 %v5012
  %5388 = vmatpush1.bf16.msra.mxu0 %v5011
  %5389 = vmatprep.subr.bf16.mxu0 0
  %5390 = vmatpush1.bf16.msra.mxu0 0
  %5391 = vmatprep.subr.bf16.mxu0 0
  %5392 = vmatpush1.bf16.msra.mxu0 0
  %5393 = vmatprep.subr.bf16.mxu0 0
  %5394 = vmatpush1.bf16.msra.mxu0 0
  %5395 = vmatprep.subr.bf16.mxu0 0
  %5396 = vmatpush1.bf16.msra.mxu0 0
  %5397 = vmatprep.subr.bf16.mxu0 0
  %5398 = vmatpush1.bf16.msra.mxu0 0
  %5399 = vmatprep.subr.bf16.mxu0 0
  %5400 = vmatpush1.bf16.msra.mxu0 0
  %5401 = vmatprep.subr.bf16.mxu0 0
  %5402 = vmatpush1.bf16.msra.mxu0 0
  %5403 = vmatprep.subr.bf16.mxu0 0
  %5404 = vmatpush1.bf16.msra.mxu0 0
  %5405 = vmatprep.subr.bf16.mxu0 0
  %5406 = vmatpush1.bf16.msra.mxu0 0
  %5407 = vmatprep.subr.bf16.mxu0 0
  %5408 = vmatpush1.bf16.msra.mxu0 0
  %5409 = vmatprep.subr.bf16.mxu0 0
  %5410 = vmatpush1.bf16.msra.mxu0 0
  %5411 = vmatprep.subr.bf16.mxu0 0
  %5412 = vmatpush1.bf16.msra.mxu0 0
  %5413 = vmatprep.mubr.bf16.mxu0 0
  %5414 = vmatmul.mubr.bf16.gmra.mrb[0].mxu0 %v5078
  %v5415 = vpop.f32.mrb[0].mxu0
  %v5416 = vadd.f32 0.0, %v5415
  %v5417 = vpop.f32.mrb[0].mxu0
  %v5418 = vadd.f32 0.0, %v5417
  %v5419 = vpop.f32.mrb[0].mxu0
  %v5420 = vadd.f32 0.0, %v5419
  %v5421 = vpop.f32.mrb[0].mxu0
  %v5422 = vadd.f32 0.0, %v5421
  %5423 = vdwg.mxu0
  %v5424 = vpack.c.bf16 %v5119, %v5115
  %v5425 = vpack.c.bf16 %v5121, %v5117
  %v5426 = vpack.c.bf16 %v5162, %v5158
  %v5427 = vpack.c.bf16 %v5164, %v5160
  %v5428 = vpack.c.bf16 %v5205, %v5201
  %v5429 = vpack.c.bf16 %v5207, %v5203
  %v5430 = vpack.c.bf16 %v5248, %v5244
  %v5431 = vpack.c.bf16 %v5250, %v5246
  %v5432 = vpack.c.bf16 %v5291, %v5287
  %v5433 = vpack.c.bf16 %v5293, %v5289
  %v5434 = vpack.c.bf16 %v5334, %v5330
  %v5435 = vpack.c.bf16 %v5336, %v5332
  %v5436 = vpack.c.bf16 %v5377, %v5373
  %v5437 = vpack.c.bf16 %v5379, %v5375
  %v5438 = vpack.c.bf16 %v5420, %v5416
  %v5439 = vpack.c.bf16 %v5422, %v5418
  %v5440 = vld [vmem:[%s7] sm:$0xf]
  %v5441 = vld [vmem:[%s7 + $0x4] sm:$0x1]
  %s5442 = scalar_lea.vmem %s7, 8
  %v5443 = vld [vmem:[%s5442] sm:$0xf]
  %v5444 = vld [vmem:[%s5442 + $0x4] sm:$0x1]
  %v5447 = vunpack.c.l.b16 %v5443
  %v5448 = vunpack.c.l.b16 %v5444
  %v5449 = vpack.c.b16 %v5448, %v5447
  %v5451 = vsel %vm533, %v5449, 0
  %5453 = vmatprep.subr.bf16.mxu0 0
  %5454 = vmatpush1.bf16.msra.mxu0 %v5425
  %5455 = vmatprep.subr.bf16.mxu0 0
  %5456 = vmatpush1.bf16.msra.mxu0 0
  %5457 = vmatprep.subr.bf16.mxu0 0
  %5458 = vmatpush1.bf16.msra.mxu0 0
  %5459 = vmatprep.subr.bf16.mxu0 0
  %5460 = vmatpush1.bf16.msra.mxu0 0
  %5461 = vmatprep.subr.bf16.mxu0 0
  %5462 = vmatpush1.bf16.msra.mxu0 0
  %5463 = vmatprep.subr.bf16.mxu0 0
  %5464 = vmatpush1.bf16.msra.mxu0 0
  %5465 = vmatprep.subr.bf16.mxu0 0
  %5466 = vmatpush1.bf16.msra.mxu0 0
  %5467 = vmatprep.subr.bf16.mxu0 0
  %5468 = vmatpush1.bf16.msra.mxu0 0
  %5469 = vmatprep.subr.bf16.mxu0 0
  %5470 = vmatpush1.bf16.msra.mxu0 0
  %5471 = vmatprep.subr.bf16.mxu0 0
  %5472 = vmatpush1.bf16.msra.mxu0 0
  %5473 = vmatprep.subr.bf16.mxu0 0
  %5474 = vmatpush1.bf16.msra.mxu0 0
  %5475 = vmatprep.subr.bf16.mxu0 0
  %5476 = vmatpush1.bf16.msra.mxu0 0
  %5477 = vmatprep.subr.bf16.mxu0 0
  %5478 = vmatpush1.bf16.msra.mxu0 0
  %5479 = vmatprep.subr.bf16.mxu0 0
  %5480 = vmatpush1.bf16.msra.mxu0 0
  %5481 = vmatprep.subr.bf16.mxu0 0
  %5482 = vmatpush1.bf16.msra.mxu0 0
  %5483 = vmatprep.subr.bf16.mxu0 0
  %5484 = vmatpush1.bf16.msra.mxu0 0
  %5485 = vmatprep.mubr.bf16.mxu0 0
  %5486 = vmatmul.mubr.bf16.gmra.mrb[0].mxu0 %v5451
  %v5487 = vpop.f32.mrb[0].mxu0
  %v5488 = vadd.f32 0.0, %v5487
  %v5489 = vpop.f32.mrb[0].mxu0
  %v5490 = vpop.f32.mrb[0].mxu0
  %v5491 = vadd.f32 0.0, %v5490
  %v5492 = vpop.f32.mrb[0].mxu0
  %5493 = vdwg.mxu0
  %v5496 = vunpack.c.l.b16 %v5440
  %v5497 = vunpack.c.l.b16 %v5441
  %v5498 = vpack.c.b16 %v5497, %v5496
  %v5500 = vsel %vm533, %v5498, 0
  %5502 = vmatprep.subr.bf16.mxu0 0
  %5503 = vmatpush1.bf16.msra.mxu0 %v5424
  %5504 = vmatprep.subr.bf16.mxu0 0
  %5505 = vmatpush1.bf16.msra.mxu0 0
  %5506 = vmatprep.subr.bf16.mxu0 0
  %5507 = vmatpush1.bf16.msra.mxu0 0
  %5508 = vmatprep.subr.bf16.mxu0 0
  %5509 = vmatpush1.bf16.msra.mxu0 0
  %5510 = vmatprep.subr.bf16.mxu0 0
  %5511 = vmatpush1.bf16.msra.mxu0 0
  %5512 = vmatprep.subr.bf16.mxu0 0
  %5513 = vmatpush1.bf16.msra.mxu0 0
  %5514 = vmatprep.subr.bf16.mxu0 0
  %5515 = vmatpush1.bf16.msra.mxu0 0
  %5516 = vmatprep.subr.bf16.mxu0 0
  %5517 = vmatpush1.bf16.msra.mxu0 0
  %5518 = vmatprep.subr.bf16.mxu0 0
  %5519 = vmatpush1.bf16.msra.mxu0 0
  %5520 = vmatprep.subr.bf16.mxu0 0
  %5521 = vmatpush1.bf16.msra.mxu0 0
  %5522 = vmatprep.subr.bf16.mxu0 0
  %5523 = vmatpush1.bf16.msra.mxu0 0
  %5524 = vmatprep.subr.bf16.mxu0 0
  %5525 = vmatpush1.bf16.msra.mxu0 0
  %5526 = vmatprep.subr.bf16.mxu0 0
  %5527 = vmatpush1.bf16.msra.mxu0 0
  %5528 = vmatprep.subr.bf16.mxu0 0
  %5529 = vmatpush1.bf16.msra.mxu0 0
  %5530 = vmatprep.subr.bf16.mxu0 0
  %5531 = vmatpush1.bf16.msra.mxu0 0
  %5532 = vmatprep.subr.bf16.mxu0 0
  %5533 = vmatpush1.bf16.msra.mxu0 0
  %5534 = vmatprep.mubr.bf16.mxu0 0
  %5535 = vmatmul.mubr.bf16.gmra.mrb[0].mxu0 %v5500
  %v5536 = vpop.f32.mrb[0].mxu0
  %v5537 = vadd.f32 %v5488, %v5536
  %v5538 = vpop.f32.mrb[0].mxu0
  %v5539 = vpop.f32.mrb[0].mxu0
  %v5540 = vadd.f32 %v5491, %v5539
  %v5541 = vpop.f32.mrb[0].mxu0
  %5542 = vdwg.mxu0
  %s5543 = scalar_lea.vmem %s7, 16
  %v5544 = vld [vmem:[%s5543] sm:$0xf]
  %v5545 = vld [vmem:[%s5543 + $0x4] sm:$0x1]
  %v5548 = vunpack.c.l.b16 %v5544
  %v5549 = vunpack.c.l.b16 %v5545
  %v5550 = vpack.c.b16 %v5549, %v5548
  %v5552 = vsel %vm533, %v5550, 0
  %5554 = vmatprep.subr.bf16.mxu0 0
  %5555 = vmatpush1.bf16.msra.mxu0 %v5426
  %5556 = vmatprep.subr.bf16.mxu0 0
  %5557 = vmatpush1.bf16.msra.mxu0 0
  %5558 = vmatprep.subr.bf16.mxu0 0
  %5559 = vmatpush1.bf16.msra.mxu0 0
  %5560 = vmatprep.subr.bf16.mxu0 0
  %5561 = vmatpush1.bf16.msra.mxu0 0
  %5562 = vmatprep.subr.bf16.mxu0 0
  %5563 = vmatpush1.bf16.msra.mxu0 0
  %5564 = vmatprep.subr.bf16.mxu0 0
  %5565 = vmatpush1.bf16.msra.mxu0 0
  %5566 = vmatprep.subr.bf16.mxu0 0
  %5567 = vmatpush1.bf16.msra.mxu0 0
  %5568 = vmatprep.subr.bf16.mxu0 0
  %5569 = vmatpush1.bf16.msra.mxu0 0
  %5570 = vmatprep.subr.bf16.mxu0 0
  %5571 = vmatpush1.bf16.msra.mxu0 0
  %5572 = vmatprep.subr.bf16.mxu0 0
  %5573 = vmatpush1.bf16.msra.mxu0 0
  %5574 = vmatprep.subr.bf16.mxu0 0
  %5575 = vmatpush1.bf16.msra.mxu0 0
  %5576 = vmatprep.subr.bf16.mxu0 0
  %5577 = vmatpush1.bf16.msra.mxu0 0
  %5578 = vmatprep.subr.bf16.mxu0 0
  %5579 = vmatpush1.bf16.msra.mxu0 0
  %5580 = vmatprep.subr.bf16.mxu0 0
  %5581 = vmatpush1.bf16.msra.mxu0 0
  %5582 = vmatprep.subr.bf16.mxu0 0
  %5583 = vmatpush1.bf16.msra.mxu0 0
  %5584 = vmatprep.subr.bf16.mxu0 0
  %5585 = vmatpush1.bf16.msra.mxu0 0
  %5586 = vmatprep.mubr.bf16.mxu0 0
  %5587 = vmatmul.mubr.bf16.gmra.mrb[0].mxu0 %v5552
  %v5588 = vpop.f32.mrb[0].mxu0
  %v5589 = vadd.f32 0.0, %v5588
  %v5590 = vpop.f32.mrb[0].mxu0
  %v5591 = vpop.f32.mrb[0].mxu0
  %v5592 = vadd.f32 0.0, %v5591
  %v5593 = vpop.f32.mrb[0].mxu0
  %5594 = vdwg.mxu0
  %v5595 = vadd.f32 %v5537, %v5589
  %v5596 = vadd.f32 %v5540, %v5592
  %s5597 = scalar_lea.vmem %s7, 24
  %v5598 = vld [vmem:[%s5597] sm:$0xf]
  %v5599 = vld [vmem:[%s5597 + $0x4] sm:$0x1]
  %v5602 = vunpack.c.l.b16 %v5598
  %v5603 = vunpack.c.l.b16 %v5599
  %v5604 = vpack.c.b16 %v5603, %v5602
  %v5606 = vsel %vm533, %v5604, 0
  %5608 = vmatprep.subr.bf16.mxu0 0
  %5609 = vmatpush1.bf16.msra.mxu0 %v5427
  %5610 = vmatprep.subr.bf16.mxu0 0
  %5611 = vmatpush1.bf16.msra.mxu0 0
  %5612 = vmatprep.subr.bf16.mxu0 0
  %5613 = vmatpush1.bf16.msra.mxu0 0
  %5614 = vmatprep.subr.bf16.mxu0 0
  %5615 = vmatpush1.bf16.msra.mxu0 0
  %5616 = vmatprep.subr.bf16.mxu0 0
  %5617 = vmatpush1.bf16.msra.mxu0 0
  %5618 = vmatprep.subr.bf16.mxu0 0
  %5619 = vmatpush1.bf16.msra.mxu0 0
  %5620 = vmatprep.subr.bf16.mxu0 0
  %5621 = vmatpush1.bf16.msra.mxu0 0
  %5622 = vmatprep.subr.bf16.mxu0 0
  %5623 = vmatpush1.bf16.msra.mxu0 0
  %5624 = vmatprep.subr.bf16.mxu0 0
  %5625 = vmatpush1.bf16.msra.mxu0 0
  %5626 = vmatprep.subr.bf16.mxu0 0
  %5627 = vmatpush1.bf16.msra.mxu0 0
  %5628 = vmatprep.subr.bf16.mxu0 0
  %5629 = vmatpush1.bf16.msra.mxu0 0
  %5630 = vmatprep.subr.bf16.mxu0 0
  %5631 = vmatpush1.bf16.msra.mxu0 0
  %5632 = vmatprep.subr.bf16.mxu0 0
  %5633 = vmatpush1.bf16.msra.mxu0 0
  %5634 = vmatprep.subr.bf16.mxu0 0
  %5635 = vmatpush1.bf16.msra.mxu0 0
  %5636 = vmatprep.subr.bf16.mxu0 0
  %5637 = vmatpush1.bf16.msra.mxu0 0
  %5638 = vmatprep.subr.bf16.mxu0 0
  %5639 = vmatpush1.bf16.msra.mxu0 0
  %5640 = vmatprep.mubr.bf16.mxu0 0
  %5641 = vmatmul.mubr.bf16.gmra.mrb[0].mxu0 %v5606
  %v5642 = vpop.f32.mrb[0].mxu0
  %v5643 = vadd.f32 0.0, %v5642
  %v5644 = vpop.f32.mrb[0].mxu0
  %v5645 = vpop.f32.mrb[0].mxu0
  %v5646 = vadd.f32 0.0, %v5645
  %v5647 = vpop.f32.mrb[0].mxu0
  %5648 = vdwg.mxu0
  %v5649 = vadd.f32 %v5595, %v5643
  %v5650 = vadd.f32 %v5596, %v5646
  %s5651 = scalar_lea.vmem %s7, 32
  %v5652 = vld [vmem:[%s5651] sm:$0xf]
  %v5653 = vld [vmem:[%s5651 + $0x4] sm:$0x1]
  %v5656 = vunpack.c.l.b16 %v5652
  %v5657 = vunpack.c.l.b16 %v5653
  %v5658 = vpack.c.b16 %v5657, %v5656
  %v5660 = vsel %vm533, %v5658, 0
  %5662 = vmatprep.subr.bf16.mxu0 0
  %5663 = vmatpush1.bf16.msra.mxu0 %v5428
  %5664 = vmatprep.subr.bf16.mxu0 0
  %5665 = vmatpush1.bf16.msra.mxu0 0
  %5666 = vmatprep.subr.bf16.mxu0 0
  %5667 = vmatpush1.bf16.msra.mxu0 0
  %5668 = vmatprep.subr.bf16.mxu0 0
  %5669 = vmatpush1.bf16.msra.mxu0 0
  %5670 = vmatprep.subr.bf16.mxu0 0
  %5671 = vmatpush1.bf16.msra.mxu0 0
  %5672 = vmatprep.subr.bf16.mxu0 0
  %5673 = vmatpush1.bf16.msra.mxu0 0
  %5674 = vmatprep.subr.bf16.mxu0 0
  %5675 = vmatpush1.bf16.msra.mxu0 0
  %5676 = vmatprep.subr.bf16.mxu0 0
  %5677 = vmatpush1.bf16.msra.mxu0 0
  %5678 = vmatprep.subr.bf16.mxu0 0
  %5679 = vmatpush1.bf16.msra.mxu0 0
  %5680 = vmatprep.subr.bf16.mxu0 0
  %5681 = vmatpush1.bf16.msra.mxu0 0
  %5682 = vmatprep.subr.bf16.mxu0 0
  %5683 = vmatpush1.bf16.msra.mxu0 0
  %5684 = vmatprep.subr.bf16.mxu0 0
  %5685 = vmatpush1.bf16.msra.mxu0 0
  %5686 = vmatprep.subr.bf16.mxu0 0
  %5687 = vmatpush1.bf16.msra.mxu0 0
  %5688 = vmatprep.subr.bf16.mxu0 0
  %5689 = vmatpush1.bf16.msra.mxu0 0
  %5690 = vmatprep.subr.bf16.mxu0 0
  %5691 = vmatpush1.bf16.msra.mxu0 0
  %5692 = vmatprep.subr.bf16.mxu0 0
  %5693 = vmatpush1.bf16.msra.mxu0 0
  %5694 = vmatprep.mubr.bf16.mxu0 0
  %5695 = vmatmul.mubr.bf16.gmra.mrb[0].mxu0 %v5660
  %v5696 = vpop.f32.mrb[0].mxu0
  %v5697 = vadd.f32 0.0, %v5696
  %v5698 = vpop.f32.mrb[0].mxu0
  %v5699 = vpop.f32.mrb[0].mxu0
  %v5700 = vadd.f32 0.0, %v5699
  %v5701 = vpop.f32.mrb[0].mxu0
  %5702 = vdwg.mxu0
  %v5703 = vadd.f32 %v5649, %v5697
  %v5704 = vadd.f32 %v5650, %v5700
  %s5705 = scalar_lea.vmem %s7, 40
  %v5706 = vld [vmem:[%s5705] sm:$0xf]
  %v5707 = vld [vmem:[%s5705 + $0x4] sm:$0x1]
  %v5710 = vunpack.c.l.b16 %v5706
  %v5711 = vunpack.c.l.b16 %v5707
  %v5712 = vpack.c.b16 %v5711, %v5710
  %v5714 = vsel %vm533, %v5712, 0
  %5716 = vmatprep.subr.bf16.mxu0 0
  %5717 = vmatpush1.bf16.msra.mxu0 %v5429
  %5718 = vmatprep.subr.bf16.mxu0 0
  %5719 = vmatpush1.bf16.msra.mxu0 0
  %5720 = vmatprep.subr.bf16.mxu0 0
  %5721 = vmatpush1.bf16.msra.mxu0 0
  %5722 = vmatprep.subr.bf16.mxu0 0
  %5723 = vmatpush1.bf16.msra.mxu0 0
  %5724 = vmatprep.subr.bf16.mxu0 0
  %5725 = vmatpush1.bf16.msra.mxu0 0
  %5726 = vmatprep.subr.bf16.mxu0 0
  %5727 = vmatpush1.bf16.msra.mxu0 0
  %5728 = vmatprep.subr.bf16.mxu0 0
  %5729 = vmatpush1.bf16.msra.mxu0 0
  %5730 = vmatprep.subr.bf16.mxu0 0
  %5731 = vmatpush1.bf16.msra.mxu0 0
  %5732 = vmatprep.subr.bf16.mxu0 0
  %5733 = vmatpush1.bf16.msra.mxu0 0
  %5734 = vmatprep.subr.bf16.mxu0 0
  %5735 = vmatpush1.bf16.msra.mxu0 0
  %5736 = vmatprep.subr.bf16.mxu0 0
  %5737 = vmatpush1.bf16.msra.mxu0 0
  %5738 = vmatprep.subr.bf16.mxu0 0
  %5739 = vmatpush1.bf16.msra.mxu0 0
  %5740 = vmatprep.subr.bf16.mxu0 0
  %5741 = vmatpush1.bf16.msra.mxu0 0
  %5742 = vmatprep.subr.bf16.mxu0 0
  %5743 = vmatpush1.bf16.msra.mxu0 0
  %5744 = vmatprep.subr.bf16.mxu0 0
  %5745 = vmatpush1.bf16.msra.mxu0 0
  %5746 = vmatprep.subr.bf16.mxu0 0
  %5747 = vmatpush1.bf16.msra.mxu0 0
  %5748 = vmatprep.mubr.bf16.mxu0 0
  %5749 = vmatmul.mubr.bf16.gmra.mrb[0].mxu0 %v5714
  %v5750 = vpop.f32.mrb[0].mxu0
  %v5751 = vadd.f32 0.0, %v5750
  %v5752 = vpop.f32.mrb[0].mxu0
  %v5753 = vpop.f32.mrb[0].mxu0
  %v5754 = vadd.f32 0.0, %v5753
  %v5755 = vpop.f32.mrb[0].mxu0
  %5756 = vdwg.mxu0
  %v5757 = vadd.f32 %v5703, %v5751
  %v5758 = vadd.f32 %v5704, %v5754
  %s5759 = scalar_lea.vmem %s7, 48
  %v5760 = vld [vmem:[%s5759] sm:$0xf]
  %v5761 = vld [vmem:[%s5759 + $0x4] sm:$0x1]
  %v5764 = vunpack.c.l.b16 %v5760
  %v5765 = vunpack.c.l.b16 %v5761
  %v5766 = vpack.c.b16 %v5765, %v5764
  %v5768 = vsel %vm533, %v5766, 0
  %5770 = vmatprep.subr.bf16.mxu0 0
  %5771 = vmatpush1.bf16.msra.mxu0 %v5430
  %5772 = vmatprep.subr.bf16.mxu0 0
  %5773 = vmatpush1.bf16.msra.mxu0 0
  %5774 = vmatprep.subr.bf16.mxu0 0
  %5775 = vmatpush1.bf16.msra.mxu0 0
  %5776 = vmatprep.subr.bf16.mxu0 0
  %5777 = vmatpush1.bf16.msra.mxu0 0
  %5778 = vmatprep.subr.bf16.mxu0 0
  %5779 = vmatpush1.bf16.msra.mxu0 0
  %5780 = vmatprep.subr.bf16.mxu0 0
  %5781 = vmatpush1.bf16.msra.mxu0 0
  %5782 = vmatprep.subr.bf16.mxu0 0
  %5783 = vmatpush1.bf16.msra.mxu0 0
  %5784 = vmatprep.subr.bf16.mxu0 0
  %5785 = vmatpush1.bf16.msra.mxu0 0
  %5786 = vmatprep.subr.bf16.mxu0 0
  %5787 = vmatpush1.bf16.msra.mxu0 0
  %5788 = vmatprep.subr.bf16.mxu0 0
  %5789 = vmatpush1.bf16.msra.mxu0 0
  %5790 = vmatprep.subr.bf16.mxu0 0
  %5791 = vmatpush1.bf16.msra.mxu0 0
  %5792 = vmatprep.subr.bf16.mxu0 0
  %5793 = vmatpush1.bf16.msra.mxu0 0
  %5794 = vmatprep.subr.bf16.mxu0 0
  %5795 = vmatpush1.bf16.msra.mxu0 0
  %5796 = vmatprep.subr.bf16.mxu0 0
  %5797 = vmatpush1.bf16.msra.mxu0 0
  %5798 = vmatprep.subr.bf16.mxu0 0
  %5799 = vmatpush1.bf16.msra.mxu0 0
  %5800 = vmatprep.subr.bf16.mxu0 0
  %5801 = vmatpush1.bf16.msra.mxu0 0
  %5802 = vmatprep.mubr.bf16.mxu0 0
  %5803 = vmatmul.mubr.bf16.gmra.mrb[0].mxu0 %v5768
  %v5804 = vpop.f32.mrb[0].mxu0
  %v5805 = vadd.f32 0.0, %v5804
  %v5806 = vpop.f32.mrb[0].mxu0
  %v5807 = vpop.f32.mrb[0].mxu0
  %v5808 = vadd.f32 0.0, %v5807
  %v5809 = vpop.f32.mrb[0].mxu0
  %5810 = vdwg.mxu0
  %v5811 = vadd.f32 %v5757, %v5805
  %v5812 = vadd.f32 %v5758, %v5808
  %s5813 = scalar_lea.vmem %s7, 56
  %v5814 = vld [vmem:[%s5813] sm:$0xf]
  %v5815 = vld [vmem:[%s5813 + $0x4] sm:$0x1]
  %v5818 = vunpack.c.l.b16 %v5814
  %v5819 = vunpack.c.l.b16 %v5815
  %v5820 = vpack.c.b16 %v5819, %v5818
  %v5822 = vsel %vm533, %v5820, 0
  %5824 = vmatprep.subr.bf16.mxu0 0
  %5825 = vmatpush1.bf16.msra.mxu0 %v5431
  %5826 = vmatprep.subr.bf16.mxu0 0
  %5827 = vmatpush1.bf16.msra.mxu0 0
  %5828 = vmatprep.subr.bf16.mxu0 0
  %5829 = vmatpush1.bf16.msra.mxu0 0
  %5830 = vmatprep.subr.bf16.mxu0 0
  %5831 = vmatpush1.bf16.msra.mxu0 0
  %5832 = vmatprep.subr.bf16.mxu0 0
  %5833 = vmatpush1.bf16.msra.mxu0 0
  %5834 = vmatprep.subr.bf16.mxu0 0
  %5835 = vmatpush1.bf16.msra.mxu0 0
  %5836 = vmatprep.subr.bf16.mxu0 0
  %5837 = vmatpush1.bf16.msra.mxu0 0
  %5838 = vmatprep.subr.bf16.mxu0 0
  %5839 = vmatpush1.bf16.msra.mxu0 0
  %5840 = vmatprep.subr.bf16.mxu0 0
  %5841 = vmatpush1.bf16.msra.mxu0 0
  %5842 = vmatprep.subr.bf16.mxu0 0
  %5843 = vmatpush1.bf16.msra.mxu0 0
  %5844 = vmatprep.subr.bf16.mxu0 0
  %5845 = vmatpush1.bf16.msra.mxu0 0
  %5846 = vmatprep.subr.bf16.mxu0 0
  %5847 = vmatpush1.bf16.msra.mxu0 0
  %5848 = vmatprep.subr.bf16.mxu0 0
  %5849 = vmatpush1.bf16.msra.mxu0 0
  %5850 = vmatprep.subr.bf16.mxu0 0
  %5851 = vmatpush1.bf16.msra.mxu0 0
  %5852 = vmatprep.subr.bf16.mxu0 0
  %5853 = vmatpush1.bf16.msra.mxu0 0
  %5854 = vmatprep.subr.bf16.mxu0 0
  %5855 = vmatpush1.bf16.msra.mxu0 0
  %5856 = vmatprep.mubr.bf16.mxu0 0
  %5857 = vmatmul.mubr.bf16.gmra.mrb[0].mxu0 %v5822
  %v5858 = vpop.f32.mrb[0].mxu0
  %v5859 = vadd.f32 0.0, %v5858
  %v5860 = vpop.f32.mrb[0].mxu0
  %v5861 = vpop.f32.mrb[0].mxu0
  %v5862 = vadd.f32 0.0, %v5861
  %v5863 = vpop.f32.mrb[0].mxu0
  %5864 = vdwg.mxu0
  %v5865 = vadd.f32 %v5811, %v5859
  %v5866 = vadd.f32 %v5812, %v5862
  %s5867 = scalar_lea.vmem %s7, 64
  %v5868 = vld [vmem:[%s5867] sm:$0xf]
  %v5869 = vld [vmem:[%s5867 + $0x4] sm:$0x1]
  %v5872 = vunpack.c.l.b16 %v5868
  %v5873 = vunpack.c.l.b16 %v5869
  %v5874 = vpack.c.b16 %v5873, %v5872
  %v5876 = vsel %vm533, %v5874, 0
  %5878 = vmatprep.subr.bf16.mxu0 0
  %5879 = vmatpush1.bf16.msra.mxu0 %v5432
  %5880 = vmatprep.subr.bf16.mxu0 0
  %5881 = vmatpush1.bf16.msra.mxu0 0
  %5882 = vmatprep.subr.bf16.mxu0 0
  %5883 = vmatpush1.bf16.msra.mxu0 0
  %5884 = vmatprep.subr.bf16.mxu0 0
  %5885 = vmatpush1.bf16.msra.mxu0 0
  %5886 = vmatprep.subr.bf16.mxu0 0
  %5887 = vmatpush1.bf16.msra.mxu0 0
  %5888 = vmatprep.subr.bf16.mxu0 0
  %5889 = vmatpush1.bf16.msra.mxu0 0
  %5890 = vmatprep.subr.bf16.mxu0 0
  %5891 = vmatpush1.bf16.msra.mxu0 0
  %5892 = vmatprep.subr.bf16.mxu0 0
  %5893 = vmatpush1.bf16.msra.mxu0 0
  %5894 = vmatprep.subr.bf16.mxu0 0
  %5895 = vmatpush1.bf16.msra.mxu0 0
  %5896 = vmatprep.subr.bf16.mxu0 0
  %5897 = vmatpush1.bf16.msra.mxu0 0
  %5898 = vmatprep.subr.bf16.mxu0 0
  %5899 = vmatpush1.bf16.msra.mxu0 0
  %5900 = vmatprep.subr.bf16.mxu0 0
  %5901 = vmatpush1.bf16.msra.mxu0 0
  %5902 = vmatprep.subr.bf16.mxu0 0
  %5903 = vmatpush1.bf16.msra.mxu0 0
  %5904 = vmatprep.subr.bf16.mxu0 0
  %5905 = vmatpush1.bf16.msra.mxu0 0
  %5906 = vmatprep.subr.bf16.mxu0 0
  %5907 = vmatpush1.bf16.msra.mxu0 0
  %5908 = vmatprep.subr.bf16.mxu0 0
  %5909 = vmatpush1.bf16.msra.mxu0 0
  %5910 = vmatprep.mubr.bf16.mxu0 0
  %5911 = vmatmul.mubr.bf16.gmra.mrb[0].mxu0 %v5876
  %v5912 = vpop.f32.mrb[0].mxu0
  %v5913 = vadd.f32 0.0, %v5912
  %v5914 = vpop.f32.mrb[0].mxu0
  %v5915 = vpop.f32.mrb[0].mxu0
  %v5916 = vadd.f32 0.0, %v5915
  %v5917 = vpop.f32.mrb[0].mxu0
  %5918 = vdwg.mxu0
  %v5919 = vadd.f32 %v5865, %v5913
  %v5920 = vadd.f32 %v5866, %v5916
  %s5921 = scalar_lea.vmem %s7, 72
  %v5922 = vld [vmem:[%s5921] sm:$0xf]
  %v5923 = vld [vmem:[%s5921 + $0x4] sm:$0x1]
  %v5926 = vunpack.c.l.b16 %v5922
  %v5927 = vunpack.c.l.b16 %v5923
  %v5928 = vpack.c.b16 %v5927, %v5926
  %v5930 = vsel %vm533, %v5928, 0
  %5932 = vmatprep.subr.bf16.mxu0 0
  %5933 = vmatpush1.bf16.msra.mxu0 %v5433
  %5934 = vmatprep.subr.bf16.mxu0 0
  %5935 = vmatpush1.bf16.msra.mxu0 0
  %5936 = vmatprep.subr.bf16.mxu0 0
  %5937 = vmatpush1.bf16.msra.mxu0 0
  %5938 = vmatprep.subr.bf16.mxu0 0
  %5939 = vmatpush1.bf16.msra.mxu0 0
  %5940 = vmatprep.subr.bf16.mxu0 0
  %5941 = vmatpush1.bf16.msra.mxu0 0
  %5942 = vmatprep.subr.bf16.mxu0 0
  %5943 = vmatpush1.bf16.msra.mxu0 0
  %5944 = vmatprep.subr.bf16.mxu0 0
  %5945 = vmatpush1.bf16.msra.mxu0 0
  %5946 = vmatprep.subr.bf16.mxu0 0
  %5947 = vmatpush1.bf16.msra.mxu0 0
  %5948 = vmatprep.subr.bf16.mxu0 0
  %5949 = vmatpush1.bf16.msra.mxu0 0
  %5950 = vmatprep.subr.bf16.mxu0 0
  %5951 = vmatpush1.bf16.msra.mxu0 0
  %5952 = vmatprep.subr.bf16.mxu0 0
  %5953 = vmatpush1.bf16.msra.mxu0 0
  %5954 = vmatprep.subr.bf16.mxu0 0
  %5955 = vmatpush1.bf16.msra.mxu0 0
  %5956 = vmatprep.subr.bf16.mxu0 0
  %5957 = vmatpush1.bf16.msra.mxu0 0
  %5958 = vmatprep.subr.bf16.mxu0 0
  %5959 = vmatpush1.bf16.msra.mxu0 0
  %5960 = vmatprep.subr.bf16.mxu0 0
  %5961 = vmatpush1.bf16.msra.mxu0 0
  %5962 = vmatprep.subr.bf16.mxu0 0
  %5963 = vmatpush1.bf16.msra.mxu0 0
  %5964 = vmatprep.mubr.bf16.mxu0 0
  %5965 = vmatmul.mubr.bf16.gmra.mrb[0].mxu0 %v5930
  %v5966 = vpop.f32.mrb[0].mxu0
  %v5967 = vadd.f32 0.0, %v5966
  %v5968 = vpop.f32.mrb[0].mxu0
  %v5969 = vpop.f32.mrb[0].mxu0
  %v5970 = vadd.f32 0.0, %v5969
  %v5971 = vpop.f32.mrb[0].mxu0
  %5972 = vdwg.mxu0
  %v5973 = vadd.f32 %v5919, %v5967
  %v5974 = vadd.f32 %v5920, %v5970
  %s5975 = scalar_lea.vmem %s7, 80
  %v5976 = vld [vmem:[%s5975] sm:$0xf]
  %v5977 = vld [vmem:[%s5975 + $0x4] sm:$0x1]
  %v5980 = vunpack.c.l.b16 %v5976
  %v5981 = vunpack.c.l.b16 %v5977
  %v5982 = vpack.c.b16 %v5981, %v5980
  %v5984 = vsel %vm533, %v5982, 0
  %5986 = vmatprep.subr.bf16.mxu0 0
  %5987 = vmatpush1.bf16.msra.mxu0 %v5434
  %5988 = vmatprep.subr.bf16.mxu0 0
  %5989 = vmatpush1.bf16.msra.mxu0 0
  %5990 = vmatprep.subr.bf16.mxu0 0
  %5991 = vmatpush1.bf16.msra.mxu0 0
  %5992 = vmatprep.subr.bf16.mxu0 0
  %5993 = vmatpush1.bf16.msra.mxu0 0
  %5994 = vmatprep.subr.bf16.mxu0 0
  %5995 = vmatpush1.bf16.msra.mxu0 0
  %5996 = vmatprep.subr.bf16.mxu0 0
  %5997 = vmatpush1.bf16.msra.mxu0 0
  %5998 = vmatprep.subr.bf16.mxu0 0
  %5999 = vmatpush1.bf16.msra.mxu0 0
  %6000 = vmatprep.subr.bf16.mxu0 0
  %6001 = vmatpush1.bf16.msra.mxu0 0
  %6002 = vmatprep.subr.bf16.mxu0 0
  %6003 = vmatpush1.bf16.msra.mxu0 0
  %6004 = vmatprep.subr.bf16.mxu0 0
  %6005 = vmatpush1.bf16.msra.mxu0 0
  %6006 = vmatprep.subr.bf16.mxu0 0
  %6007 = vmatpush1.bf16.msra.mxu0 0
  %6008 = vmatprep.subr.bf16.mxu0 0
  %6009 = vmatpush1.bf16.msra.mxu0 0
  %6010 = vmatprep.subr.bf16.mxu0 0
  %6011 = vmatpush1.bf16.msra.mxu0 0
  %6012 = vmatprep.subr.bf16.mxu0 0
  %6013 = vmatpush1.bf16.msra.mxu0 0
  %6014 = vmatprep.subr.bf16.mxu0 0
  %6015 = vmatpush1.bf16.msra.mxu0 0
  %6016 = vmatprep.subr.bf16.mxu0 0
  %6017 = vmatpush1.bf16.msra.mxu0 0
  %6018 = vmatprep.mubr.bf16.mxu0 0
  %6019 = vmatmul.mubr.bf16.gmra.mrb[0].mxu0 %v5984
  %v6020 = vpop.f32.mrb[0].mxu0
  %v6021 = vadd.f32 0.0, %v6020
  %v6022 = vpop.f32.mrb[0].mxu0
  %v6023 = vpop.f32.mrb[0].mxu0
  %v6024 = vadd.f32 0.0, %v6023
  %v6025 = vpop.f32.mrb[0].mxu0
  %6026 = vdwg.mxu0
  %v6027 = vadd.f32 %v5973, %v6021
  %v6028 = vadd.f32 %v5974, %v6024
  %s6029 = scalar_lea.vmem %s7, 88
  %v6030 = vld [vmem:[%s6029] sm:$0xf]
  %v6031 = vld [vmem:[%s6029 + $0x4] sm:$0x1]
  %v6034 = vunpack.c.l.b16 %v6030
  %v6035 = vunpack.c.l.b16 %v6031
  %v6036 = vpack.c.b16 %v6035, %v6034
  %v6038 = vsel %vm533, %v6036, 0
  %6040 = vmatprep.subr.bf16.mxu0 0
  %6041 = vmatpush1.bf16.msra.mxu0 %v5435
  %6042 = vmatprep.subr.bf16.mxu0 0
  %6043 = vmatpush1.bf16.msra.mxu0 0
  %6044 = vmatprep.subr.bf16.mxu0 0
  %6045 = vmatpush1.bf16.msra.mxu0 0
  %6046 = vmatprep.subr.bf16.mxu0 0
  %6047 = vmatpush1.bf16.msra.mxu0 0
  %6048 = vmatprep.subr.bf16.mxu0 0
  %6049 = vmatpush1.bf16.msra.mxu0 0
  %6050 = vmatprep.subr.bf16.mxu0 0
  %6051 = vmatpush1.bf16.msra.mxu0 0
  %6052 = vmatprep.subr.bf16.mxu0 0
  %6053 = vmatpush1.bf16.msra.mxu0 0
  %6054 = vmatprep.subr.bf16.mxu0 0
  %6055 = vmatpush1.bf16.msra.mxu0 0
  %6056 = vmatprep.subr.bf16.mxu0 0
  %6057 = vmatpush1.bf16.msra.mxu0 0
  %6058 = vmatprep.subr.bf16.mxu0 0
  %6059 = vmatpush1.bf16.msra.mxu0 0
  %6060 = vmatprep.subr.bf16.mxu0 0
  %6061 = vmatpush1.bf16.msra.mxu0 0
  %6062 = vmatprep.subr.bf16.mxu0 0
  %6063 = vmatpush1.bf16.msra.mxu0 0
  %6064 = vmatprep.subr.bf16.mxu0 0
  %6065 = vmatpush1.bf16.msra.mxu0 0
  %6066 = vmatprep.subr.bf16.mxu0 0
  %6067 = vmatpush1.bf16.msra.mxu0 0
  %6068 = vmatprep.subr.bf16.mxu0 0
  %6069 = vmatpush1.bf16.msra.mxu0 0
  %6070 = vmatprep.subr.bf16.mxu0 0
  %6071 = vmatpush1.bf16.msra.mxu0 0
  %6072 = vmatprep.mubr.bf16.mxu0 0
  %6073 = vmatmul.mubr.bf16.gmra.mrb[0].mxu0 %v6038
  %v6074 = vpop.f32.mrb[0].mxu0
  %v6075 = vadd.f32 0.0, %v6074
  %v6076 = vpop.f32.mrb[0].mxu0
  %v6077 = vpop.f32.mrb[0].mxu0
  %v6078 = vadd.f32 0.0, %v6077
  %v6079 = vpop.f32.mrb[0].mxu0
  %6080 = vdwg.mxu0
  %v6081 = vadd.f32 %v6027, %v6075
  %v6082 = vadd.f32 %v6028, %v6078
  %s6083 = scalar_lea.vmem %s7, 96
  %v6084 = vld [vmem:[%s6083] sm:$0xf]
  %v6085 = vld [vmem:[%s6083 + $0x4] sm:$0x1]
  %v6088 = vunpack.c.l.b16 %v6084
  %v6089 = vunpack.c.l.b16 %v6085
  %v6090 = vpack.c.b16 %v6089, %v6088
  %v6092 = vsel %vm533, %v6090, 0
  %6094 = vmatprep.subr.bf16.mxu0 0
  %6095 = vmatpush1.bf16.msra.mxu0 %v5436
  %6096 = vmatprep.subr.bf16.mxu0 0
  %6097 = vmatpush1.bf16.msra.mxu0 0
  %6098 = vmatprep.subr.bf16.mxu0 0
  %6099 = vmatpush1.bf16.msra.mxu0 0
  %6100 = vmatprep.subr.bf16.mxu0 0
  %6101 = vmatpush1.bf16.msra.mxu0 0
  %6102 = vmatprep.subr.bf16.mxu0 0
  %6103 = vmatpush1.bf16.msra.mxu0 0
  %6104 = vmatprep.subr.bf16.mxu0 0
  %6105 = vmatpush1.bf16.msra.mxu0 0
  %6106 = vmatprep.subr.bf16.mxu0 0
  %6107 = vmatpush1.bf16.msra.mxu0 0
  %6108 = vmatprep.subr.bf16.mxu0 0
  %6109 = vmatpush1.bf16.msra.mxu0 0
  %6110 = vmatprep.subr.bf16.mxu0 0
  %6111 = vmatpush1.bf16.msra.mxu0 0
  %6112 = vmatprep.subr.bf16.mxu0 0
  %6113 = vmatpush1.bf16.msra.mxu0 0
  %6114 = vmatprep.subr.bf16.mxu0 0
  %6115 = vmatpush1.bf16.msra.mxu0 0
  %6116 = vmatprep.subr.bf16.mxu0 0
  %6117 = vmatpush1.bf16.msra.mxu0 0
  %6118 = vmatprep.subr.bf16.mxu0 0
  %6119 = vmatpush1.bf16.msra.mxu0 0
  %6120 = vmatprep.subr.bf16.mxu0 0
  %6121 = vmatpush1.bf16.msra.mxu0 0
  %6122 = vmatprep.subr.bf16.mxu0 0
  %6123 = vmatpush1.bf16.msra.mxu0 0
  %6124 = vmatprep.subr.bf16.mxu0 0
  %6125 = vmatpush1.bf16.msra.mxu0 0
  %6126 = vmatprep.mubr.bf16.mxu0 0
  %6127 = vmatmul.mubr.bf16.gmra.mrb[0].mxu0 %v6092
  %v6128 = vpop.f32.mrb[0].mxu0
  %v6129 = vadd.f32 0.0, %v6128
  %v6130 = vpop.f32.mrb[0].mxu0
  %v6131 = vpop.f32.mrb[0].mxu0
  %v6132 = vadd.f32 0.0, %v6131
  %v6133 = vpop.f32.mrb[0].mxu0
  %6134 = vdwg.mxu0
  %v6135 = vadd.f32 %v6081, %v6129
  %v6136 = vadd.f32 %v6082, %v6132
  %s6137 = scalar_lea.vmem %s7, 104
  %v6138 = vld [vmem:[%s6137] sm:$0xf]
  %v6139 = vld [vmem:[%s6137 + $0x4] sm:$0x1]
  %v6142 = vunpack.c.l.b16 %v6138
  %v6143 = vunpack.c.l.b16 %v6139
  %v6144 = vpack.c.b16 %v6143, %v6142
  %v6146 = vsel %vm533, %v6144, 0
  %6148 = vmatprep.subr.bf16.mxu0 0
  %6149 = vmatpush1.bf16.msra.mxu0 %v5437
  %6150 = vmatprep.subr.bf16.mxu0 0
  %6151 = vmatpush1.bf16.msra.mxu0 0
  %6152 = vmatprep.subr.bf16.mxu0 0
  %6153 = vmatpush1.bf16.msra.mxu0 0
  %6154 = vmatprep.subr.bf16.mxu0 0
  %6155 = vmatpush1.bf16.msra.mxu0 0
  %6156 = vmatprep.subr.bf16.mxu0 0
  %6157 = vmatpush1.bf16.msra.mxu0 0
  %6158 = vmatprep.subr.bf16.mxu0 0
  %6159 = vmatpush1.bf16.msra.mxu0 0
  %6160 = vmatprep.subr.bf16.mxu0 0
  %6161 = vmatpush1.bf16.msra.mxu0 0
  %6162 = vmatprep.subr.bf16.mxu0 0
  %6163 = vmatpush1.bf16.msra.mxu0 0
  %6164 = vmatprep.subr.bf16.mxu0 0
  %6165 = vmatpush1.bf16.msra.mxu0 0
  %6166 = vmatprep.subr.bf16.mxu0 0
  %6167 = vmatpush1.bf16.msra.mxu0 0
  %6168 = vmatprep.subr.bf16.mxu0 0
  %6169 = vmatpush1.bf16.msra.mxu0 0
  %6170 = vmatprep.subr.bf16.mxu0 0
  %6171 = vmatpush1.bf16.msra.mxu0 0
  %6172 = vmatprep.subr.bf16.mxu0 0
  %6173 = vmatpush1.bf16.msra.mxu0 0
  %6174 = vmatprep.subr.bf16.mxu0 0
  %6175 = vmatpush1.bf16.msra.mxu0 0
  %6176 = vmatprep.subr.bf16.mxu0 0
  %6177 = vmatpush1.bf16.msra.mxu0 0
  %6178 = vmatprep.subr.bf16.mxu0 0
  %6179 = vmatpush1.bf16.msra.mxu0 0
  %6180 = vmatprep.mubr.bf16.mxu0 0
  %6181 = vmatmul.mubr.bf16.gmra.mrb[0].mxu0 %v6146
  %v6182 = vpop.f32.mrb[0].mxu0
  %v6183 = vadd.f32 0.0, %v6182
  %v6184 = vpop.f32.mrb[0].mxu0
  %v6185 = vpop.f32.mrb[0].mxu0
  %v6186 = vadd.f32 0.0, %v6185
  %v6187 = vpop.f32.mrb[0].mxu0
  %6188 = vdwg.mxu0
  %v6189 = vadd.f32 %v6135, %v6183
  %v6190 = vadd.f32 %v6136, %v6186
  %s6191 = scalar_lea.vmem %s7, 112
  %v6192 = vld [vmem:[%s6191] sm:$0xf]
  %v6193 = vld [vmem:[%s6191 + $0x4] sm:$0x1]
  %v6196 = vunpack.c.l.b16 %v6192
  %v6197 = vunpack.c.l.b16 %v6193
  %v6198 = vpack.c.b16 %v6197, %v6196
  %v6200 = vsel %vm533, %v6198, 0
  %6202 = vmatprep.subr.bf16.mxu0 0
  %6203 = vmatpush1.bf16.msra.mxu0 %v5438
  %6204 = vmatprep.subr.bf16.mxu0 0
  %6205 = vmatpush1.bf16.msra.mxu0 0
  %6206 = vmatprep.subr.bf16.mxu0 0
  %6207 = vmatpush1.bf16.msra.mxu0 0
  %6208 = vmatprep.subr.bf16.mxu0 0
  %6209 = vmatpush1.bf16.msra.mxu0 0
  %6210 = vmatprep.subr.bf16.mxu0 0
  %6211 = vmatpush1.bf16.msra.mxu0 0
  %6212 = vmatprep.subr.bf16.mxu0 0
  %6213 = vmatpush1.bf16.msra.mxu0 0
  %6214 = vmatprep.subr.bf16.mxu0 0
  %6215 = vmatpush1.bf16.msra.mxu0 0
  %6216 = vmatprep.subr.bf16.mxu0 0
  %6217 = vmatpush1.bf16.msra.mxu0 0
  %6218 = vmatprep.subr.bf16.mxu0 0
  %6219 = vmatpush1.bf16.msra.mxu0 0
  %6220 = vmatprep.subr.bf16.mxu0 0
  %6221 = vmatpush1.bf16.msra.mxu0 0
  %6222 = vmatprep.subr.bf16.mxu0 0
  %6223 = vmatpush1.bf16.msra.mxu0 0
  %6224 = vmatprep.subr.bf16.mxu0 0
  %6225 = vmatpush1.bf16.msra.mxu0 0
  %6226 = vmatprep.subr.bf16.mxu0 0
  %6227 = vmatpush1.bf16.msra.mxu0 0
  %6228 = vmatprep.subr.bf16.mxu0 0
  %6229 = vmatpush1.bf16.msra.mxu0 0
  %6230 = vmatprep.subr.bf16.mxu0 0
  %6231 = vmatpush1.bf16.msra.mxu0 0
  %6232 = vmatprep.subr.bf16.mxu0 0
  %6233 = vmatpush1.bf16.msra.mxu0 0
  %6234 = vmatprep.mubr.bf16.mxu0 0
  %6235 = vmatmul.mubr.bf16.gmra.mrb[0].mxu0 %v6200
  %v6236 = vpop.f32.mrb[0].mxu0
  %v6237 = vadd.f32 0.0, %v6236
  %v6238 = vpop.f32.mrb[0].mxu0
  %v6239 = vpop.f32.mrb[0].mxu0
  %v6240 = vadd.f32 0.0, %v6239
  %v6241 = vpop.f32.mrb[0].mxu0
  %6242 = vdwg.mxu0
  %v6243 = vadd.f32 %v6189, %v6237
  %v6244 = vadd.f32 %v6190, %v6240
  %s6245 = scalar_lea.vmem %s7, 120
  %v6246 = vld [vmem:[%s6245] sm:$0xf]
  %v6247 = vld [vmem:[%s6245 + $0x4] sm:$0x1]
  %v6250 = vunpack.c.l.b16 %v6246
  %v6251 = vunpack.c.l.b16 %v6247
  %v6252 = vpack.c.b16 %v6251, %v6250
  %v6254 = vsel %vm533, %v6252, 0
  %6256 = vmatprep.subr.bf16.mxu0 0
  %6257 = vmatpush1.bf16.msra.mxu0 %v5439
  %6258 = vmatprep.subr.bf16.mxu0 0
  %6259 = vmatpush1.bf16.msra.mxu0 0
  %6260 = vmatprep.subr.bf16.mxu0 0
  %6261 = vmatpush1.bf16.msra.mxu0 0
  %6262 = vmatprep.subr.bf16.mxu0 0
  %6263 = vmatpush1.bf16.msra.mxu0 0
  %6264 = vmatprep.subr.bf16.mxu0 0
  %6265 = vmatpush1.bf16.msra.mxu0 0
  %6266 = vmatprep.subr.bf16.mxu0 0
  %6267 = vmatpush1.bf16.msra.mxu0 0
  %6268 = vmatprep.subr.bf16.mxu0 0
  %6269 = vmatpush1.bf16.msra.mxu0 0
  %6270 = vmatprep.subr.bf16.mxu0 0
  %6271 = vmatpush1.bf16.msra.mxu0 0
  %6272 = vmatprep.subr.bf16.mxu0 0
  %6273 = vmatpush1.bf16.msra.mxu0 0
  %6274 = vmatprep.subr.bf16.mxu0 0
  %6275 = vmatpush1.bf16.msra.mxu0 0
  %6276 = vmatprep.subr.bf16.mxu0 0
  %6277 = vmatpush1.bf16.msra.mxu0 0
  %6278 = vmatprep.subr.bf16.mxu0 0
  %6279 = vmatpush1.bf16.msra.mxu0 0
  %6280 = vmatprep.subr.bf16.mxu0 0
  %6281 = vmatpush1.bf16.msra.mxu0 0
  %6282 = vmatprep.subr.bf16.mxu0 0
  %6283 = vmatpush1.bf16.msra.mxu0 0
  %6284 = vmatprep.subr.bf16.mxu0 0
  %6285 = vmatpush1.bf16.msra.mxu0 0
  %6286 = vmatprep.subr.bf16.mxu0 0
  %6287 = vmatpush1.bf16.msra.mxu0 0
  %6288 = vmatprep.mubr.bf16.mxu0 0
  %6289 = vmatmul.mubr.bf16.gmra.mrb[0].mxu0 %v6254
  %v6290 = vpop.f32.mrb[0].mxu0
  %v6291 = vadd.f32 0.0, %v6290
  %v6292 = vpop.f32.mrb[0].mxu0
  %v6293 = vpop.f32.mrb[0].mxu0
  %v6294 = vadd.f32 0.0, %v6293
  %v6295 = vpop.f32.mrb[0].mxu0
  %6296 = vdwg.mxu0
  %v6297 = vadd.f32 %v6243, %v6291
  %v6298 = vadd.f32 %v6244, %v6294
  %vm6299 = vcmask 1040384
  %v6300 = vsel %vm6299, %v6298, 0.0
  %v6301 = vadd.f32 %v6297, %v6300
  %v6302 = vrot.slane %v6301, 4
  %v6303 = vadd.f32 %v6301, %v6302
  %v6304 = vrot.slane %v6303, 2
  %v6305 = vadd.f32 %v6303, %v6304
  %v6306 = vrot.slane %v6305, 1
  %v6307 = vadd.f32 %v6305, %v6306
  %6309 = vrot.lane.b32.xlu0 %v6307, 64
  %v6310 = vpop.permute.xlu0 %6309
  %v6312 = vadd.f32 %v6307, %v6310
  %v6313 = vrcp.pop 18.0
  %v6314 = vmul.f32 %v6312, %v6313
  %6316 = vrot.lane.b32.xlu0 %v6314, 64
  %v6317 = vpop.permute.xlu0 %6316
  %v6319 = vsel %vm3645, %v6314, %v6317
  %v6320 = vlaneseq
  %v6321 = vshrl.u32 %v6320, 7
  %v6322 = vsub.s32 0, %v6321
  %v6323 = vrot.slane %v6319, %v6322
  %v6324 = vsub.f32 %v6297, %v6323
  %v6325 = vsub.f32 %v6298, %v6323
  %v6326 = vmul.f32 %v6324, %v6324
  %v6327 = vmul.f32 %v6325, %v6325
  %v6328 = vsel %vm6299, %v6327, 0.0
  %v6329 = vadd.f32 %v6326, %v6328
  %v6330 = vrot.slane %v6329, 4
  %v6331 = vadd.f32 %v6329, %v6330
  %v6332 = vrot.slane %v6331, 2
  %v6333 = vadd.f32 %v6331, %v6332
  %v6334 = vrot.slane %v6333, 1
  %v6335 = vadd.f32 %v6333, %v6334
  %6337 = vrot.lane.b32.xlu0 %v6335, 64
  %v6338 = vpop.permute.xlu0 %6337
  %v6340 = vadd.f32 %v6335, %v6338
  %v6341 = vmul.f32 %v6340, %v6313
  %v6342 = vadd.f32 %v6341, 1e-05
  %v6343 = vrsqrt.pop %v6342
  %v6345 = vrot.slane %v6343, 3
  %v6347 = vmul.f32 %v39, %v6345
  %v6349 = vrot.slane %v6347, 5
  %v6351 = vmul.f32 %v6314, %v6349
  %v6353 = vrot.slane %v6351, 2
  %v6355 = vsub.f32 %v39, %v6353
  %6356 = vrot.lane.b32.xlu0 %v6347, 64
  %v6357 = vpop.permute.xlu0 %6356
  %v6359 = vsel %vm3645, %v6347, %v6357
  %6361 = vrot.lane.b32.xlu0 %v6355, 64
  %v6362 = vpop.permute.xlu0 %6361
  %v6364 = vsel %vm3645, %v6355, %v6362
  %v6365 = vlaneseq
  %v6366 = vshrl.u32 %v6365, 7
  %v6367 = vsub.s32 5, %v6366
  %v6368 = vrot.slane %v6359, %v6367
  %v6369 = vmul.f32 %v6297, %v6368
  %v6370 = vmul.f32 %v6298, %v6368
  %v6371 = vlaneseq
  %v6372 = vshrl.u32 %v6371, 7
  %v6373 = vsub.s32 6, %v6372
  %v6374 = vrot.slane %v6364, %v6373
  %v6375 = vadd.f32 %v6369, %v6374
  %v6376 = vadd.f32 %v6370, %v6374
  %vm6377 = vcmp.ge.f32.partialorder %v6375, 0.0
  %vm6378 = vcmp.ge.f32.partialorder %v6376, 0.0
  %v6379 = vmul.f32 %v6375, 0.2
  %v6380 = vmul.f32 %v6376, 0.2
  %v6381 = vsel %vm6377, %v6375, %v6379
  %v6382 = vsel %vm6378, %v6376, %v6380
  %v6383 = vpack.c.bf16 %v6382, %v6381
  %v6384 = vld [vmem:[%s10] sm:$0xf]
  %v6385 = vld [vmem:[%s10 + $0x4] sm:$0xf]
  %v6386 = vld [vmem:[%s10 + $0x8] sm:$0xf]
  %v6387 = vld [vmem:[%s10 + $0xc] sm:$0xf]
  %v6388 = vld [vmem:[%s10 + $0x10] sm:$0xf]
  %v6389 = vld [vmem:[%s10 + $0x14] sm:$0xf]
  %v6390 = vld [vmem:[%s10 + $0x18] sm:$0xf]
  %v6391 = vld [vmem:[%s10 + $0x1c] sm:$0xf]
  %v6392 = vld [vmem:[%s10 + $0x20] sm:$0xf]
  %v6393 = vld [vmem:[%s10 + $0x24] sm:$0xf]
  %v6394 = vld [vmem:[%s10 + $0x28] sm:$0xf]
  %v6395 = vld [vmem:[%s10 + $0x2c] sm:$0xf]
  %v6396 = vld [vmem:[%s10 + $0x30] sm:$0xf]
  %v6397 = vld [vmem:[%s10 + $0x34] sm:$0xf]
  %v6398 = vld [vmem:[%s10 + $0x38] sm:$0xf]
  %v6399 = vld [vmem:[%s10 + $0x3c] sm:$0xf]
  %v6416 = vunpack.c.l.b16 %v6384
  %v6417 = vunpack.c.l.b16 %v6385
  %v6418 = vunpack.c.l.b16 %v6386
  %v6419 = vunpack.c.l.b16 %v6387
  %v6420 = vunpack.c.l.b16 %v6388
  %v6421 = vunpack.c.l.b16 %v6389
  %v6422 = vunpack.c.l.b16 %v6390
  %v6423 = vunpack.c.l.b16 %v6391
  %v6424 = vunpack.c.l.b16 %v6392
  %v6425 = vunpack.c.l.b16 %v6393
  %v6426 = vunpack.c.l.b16 %v6394
  %v6427 = vunpack.c.l.b16 %v6395
  %v6428 = vunpack.c.l.b16 %v6396
  %v6429 = vunpack.c.l.b16 %v6397
  %v6430 = vunpack.c.l.b16 %v6398
  %v6431 = vunpack.c.l.b16 %v6399
  %v6432 = vpack.c.b16 %v6417, %v6416
  %v6433 = vpack.c.b16 %v6419, %v6418
  %v6434 = vpack.c.b16 %v6421, %v6420
  %v6435 = vpack.c.b16 %v6423, %v6422
  %v6436 = vpack.c.b16 %v6425, %v6424
  %v6437 = vpack.c.b16 %v6427, %v6426
  %v6438 = vpack.c.b16 %v6429, %v6428
  %v6439 = vpack.c.b16 %v6431, %v6430
  %6448 = vmatprep.subr.bf16.mxu0 0
  %6449 = vmatpush1.bf16.msra.mxu0 %v6432
  %6450 = vmatprep.subr.bf16.mxu0 0
  %6451 = vmatpush1.bf16.msra.mxu0 %v6433
  %6452 = vmatprep.subr.bf16.mxu0 0
  %6453 = vmatpush1.bf16.msra.mxu0 %v6434
  %6454 = vmatprep.subr.bf16.mxu0 0
  %6455 = vmatpush1.bf16.msra.mxu0 %v6435
  %6456 = vmatprep.subr.bf16.mxu0 0
  %6457 = vmatpush1.bf16.msra.mxu0 %v6436
  %6458 = vmatprep.subr.bf16.mxu0 0
  %6459 = vmatpush1.bf16.msra.mxu0 %v6437
  %6460 = vmatprep.subr.bf16.mxu0 0
  %6461 = vmatpush1.bf16.msra.mxu0 %v6438
  %6462 = vmatprep.subr.bf16.mxu0 0
  %6463 = vmatpush1.bf16.msra.mxu0 %v6439
  %6464 = vmatprep.subr.bf16.mxu0 0
  %6465 = vmatpush1.bf16.msra.mxu0 0
  %6466 = vmatprep.subr.bf16.mxu0 0
  %6467 = vmatpush1.bf16.msra.mxu0 0
  %6468 = vmatprep.subr.bf16.mxu0 0
  %6469 = vmatpush1.bf16.msra.mxu0 0
  %6470 = vmatprep.subr.bf16.mxu0 0
  %6471 = vmatpush1.bf16.msra.mxu0 0
  %6472 = vmatprep.subr.bf16.mxu0 0
  %6473 = vmatpush1.bf16.msra.mxu0 0
  %6474 = vmatprep.subr.bf16.mxu0 0
  %6475 = vmatpush1.bf16.msra.mxu0 0
  %6476 = vmatprep.subr.bf16.mxu0 0
  %6477 = vmatpush1.bf16.msra.mxu0 0
  %6478 = vmatprep.subr.bf16.mxu0 0
  %6479 = vmatpush1.bf16.msra.mxu0 0
  %6480 = vmatprep.mubr.bf16.mxu0 0
  %6481 = vmatmul.mubr.bf16.gmra.mrb[0].mxu0 %v6383
  %v6482 = vpop.f32.mrb[0].mxu0
  %v6483 = vadd.f32 0.0, %v6482
  %v6484 = vpop.f32.mrb[0].mxu0
  %v6485 = vpop.f32.mrb[0].mxu0
  %v6486 = vadd.f32 0.0, %v6485
  %v6487 = vpop.f32.mrb[0].mxu0
  %6488 = vdwg.mxu0
  %v6489 = vpack.c.bf16 %v6486, %v6483
  %v6490 = vld [vmem:[%s9] sm:$0x3]
  %s6491 = scalar_lea.vmem %s9, 2
  %v6492 = vld [vmem:[%s6491] sm:$0x3]
  %6494 = vrot.lane.b32.xlu0 %v6489, 126
  %v6495 = vpop.permute.xlu0 %6494
  %vm6496 = vcmask 72704
  %v6498 = vsel %vm6496, %v6492, 0
  %vm6500 = vcmask 1043456
  %vm6501 = vcmask 1044480
  %v6502 = vsel %vm6500, 4294967295, 65535
  %v6503 = vsel %vm6501, %v6502, 0
  %v6505 = vand.u32 %v6495, %v6503
  %6507 = vmatprep.subr.bf16.mxu0 0
  %6508 = vmatpush1.bf16.msra.mxu0 %v6505
  %6509 = vmatprep.subr.bf16.mxu0 0
  %6510 = vmatpush1.bf16.msra.mxu0 0
  %6511 = vmatprep.subr.bf16.mxu0 0
  %6512 = vmatpush1.bf16.msra.mxu0 0
  %6513 = vmatprep.subr.bf16.mxu0 0
  %6514 = vmatpush1.bf16.msra.mxu0 0
  %6515 = vmatprep.subr.bf16.mxu0 0
  %6516 = vmatpush1.bf16.msra.mxu0 0
  %6517 = vmatprep.subr.bf16.mxu0 0
  %6518 = vmatpush1.bf16.msra.mxu0 0
  %6519 = vmatprep.subr.bf16.mxu0 0
  %6520 = vmatpush1.bf16.msra.mxu0 0
  %6521 = vmatprep.subr.bf16.mxu0 0
  %6522 = vmatpush1.bf16.msra.mxu0 0
  %6523 = vmatprep.subr.bf16.mxu0 0
  %6524 = vmatpush1.bf16.msra.mxu0 0
  %6525 = vmatprep.subr.bf16.mxu0 0
  %6526 = vmatpush1.bf16.msra.mxu0 0
  %6527 = vmatprep.subr.bf16.mxu0 0
  %6528 = vmatpush1.bf16.msra.mxu0 0
  %6529 = vmatprep.subr.bf16.mxu0 0
  %6530 = vmatpush1.bf16.msra.mxu0 0
  %6531 = vmatprep.subr.bf16.mxu0 0
  %6532 = vmatpush1.bf16.msra.mxu0 0
  %6533 = vmatprep.subr.bf16.mxu0 0
  %6534 = vmatpush1.bf16.msra.mxu0 0
  %6535 = vmatprep.subr.bf16.mxu0 0
  %6536 = vmatpush1.bf16.msra.mxu0 0
  %6537 = vmatprep.subr.bf16.mxu0 0
  %6538 = vmatpush1.bf16.msra.mxu0 0
  %6539 = vmatprep.mubr.bf16.mxu0 0
  %6540 = vmatmul.mubr.bf16.gmra.mrb[0].mxu0 %v6498
  %v6541 = vpop.f32.mrb[0].mxu0
  %v6542 = vadd.f32 0.0, %v6541
  %v6543 = vpop.f32.mrb[0].mxu0
  %v6544 = vpop.f32.mrb[0].mxu0
  %v6545 = vpop.f32.mrb[0].mxu0
  %6546 = vdwg.mxu0
  %v6548 = vsel %vm6496, %v6490, 0
  %v6551 = vand.u32 %v6489, %v6503
  %6553 = vmatprep.subr.bf16.mxu0 0
  %6554 = vmatpush1.bf16.msra.mxu0 %v6551
  %6555 = vmatprep.subr.bf16.mxu0 0
  %6556 = vmatpush1.bf16.msra.mxu0 0
  %6557 = vmatprep.subr.bf16.mxu0 0
  %6558 = vmatpush1.bf16.msra.mxu0 0
  %6559 = vmatprep.subr.bf16.mxu0 0
  %6560 = vmatpush1.bf16.msra.mxu0 0
  %6561 = vmatprep.subr.bf16.mxu0 0
  %6562 = vmatpush1.bf16.msra.mxu0 0
  %6563 = vmatprep.subr.bf16.mxu0 0
  %6564 = vmatpush1.bf16.msra.mxu0 0
  %6565 = vmatprep.subr.bf16.mxu0 0
  %6566 = vmatpush1.bf16.msra.mxu0 0
  %6567 = vmatprep.subr.bf16.mxu0 0
  %6568 = vmatpush1.bf16.msra.mxu0 0
  %6569 = vmatprep.subr.bf16.mxu0 0
  %6570 = vmatpush1.bf16.msra.mxu0 0
  %6571 = vmatprep.subr.bf16.mxu0 0
  %6572 = vmatpush1.bf16.msra.mxu0 0
  %6573 = vmatprep.subr.bf16.mxu0 0
  %6574 = vmatpush1.bf16.msra.mxu0 0
  %6575 = vmatprep.subr.bf16.mxu0 0
  %6576 = vmatpush1.bf16.msra.mxu0 0
  %6577 = vmatprep.subr.bf16.mxu0 0
  %6578 = vmatpush1.bf16.msra.mxu0 0
  %6579 = vmatprep.subr.bf16.mxu0 0
  %6580 = vmatpush1.bf16.msra.mxu0 0
  %6581 = vmatprep.subr.bf16.mxu0 0
  %6582 = vmatpush1.bf16.msra.mxu0 0
  %6583 = vmatprep.subr.bf16.mxu0 0
  %6584 = vmatpush1.bf16.msra.mxu0 0
  %6585 = vmatprep.mubr.bf16.mxu0 0
  %6586 = vmatmul.mubr.bf16.gmra.mrb[0].mxu0 %v6548
  %v6587 = vpop.f32.mrb[0].mxu0
  %v6588 = vadd.f32 %v6542, %v6587
  %v6589 = vpop.f32.mrb[0].mxu0
  %v6590 = vpop.f32.mrb[0].mxu0
  %v6591 = vpop.f32.mrb[0].mxu0
  %6592 = vdwg.mxu0
  %s6593 = scalar_lea.vmem %s9, 4
  %v6594 = vld [vmem:[%s6593] sm:$0x3]
  %6595 = vrot.lane.b32.xlu0 %v6489, 124
  %v6596 = vpop.permute.xlu0 %6595
  %v6598 = vsel %vm6496, %v6594, 0
  %v6601 = vand.u32 %v6596, %v6503
  %6603 = vmatprep.subr.bf16.mxu0 0
  %6604 = vmatpush1.bf16.msra.mxu0 %v6601
  %6605 = vmatprep.subr.bf16.mxu0 0
  %6606 = vmatpush1.bf16.msra.mxu0 0
  %6607 = vmatprep.subr.bf16.mxu0 0
  %6608 = vmatpush1.bf16.msra.mxu0 0
  %6609 = vmatprep.subr.bf16.mxu0 0
  %6610 = vmatpush1.bf16.msra.mxu0 0
  %6611 = vmatprep.subr.bf16.mxu0 0
  %6612 = vmatpush1.bf16.msra.mxu0 0
  %6613 = vmatprep.subr.bf16.mxu0 0
  %6614 = vmatpush1.bf16.msra.mxu0 0
  %6615 = vmatprep.subr.bf16.mxu0 0
  %6616 = vmatpush1.bf16.msra.mxu0 0
  %6617 = vmatprep.subr.bf16.mxu0 0
  %6618 = vmatpush1.bf16.msra.mxu0 0
  %6619 = vmatprep.subr.bf16.mxu0 0
  %6620 = vmatpush1.bf16.msra.mxu0 0
  %6621 = vmatprep.subr.bf16.mxu0 0
  %6622 = vmatpush1.bf16.msra.mxu0 0
  %6623 = vmatprep.subr.bf16.mxu0 0
  %6624 = vmatpush1.bf16.msra.mxu0 0
  %6625 = vmatprep.subr.bf16.mxu0 0
  %6626 = vmatpush1.bf16.msra.mxu0 0
  %6627 = vmatprep.subr.bf16.mxu0 0
  %6628 = vmatpush1.bf16.msra.mxu0 0
  %6629 = vmatprep.subr.bf16.mxu0 0
  %6630 = vmatpush1.bf16.msra.mxu0 0
  %6631 = vmatprep.subr.bf16.mxu0 0
  %6632 = vmatpush1.bf16.msra.mxu0 0
  %6633 = vmatprep.subr.bf16.mxu0 0
  %6634 = vmatpush1.bf16.msra.mxu0 0
  %6635 = vmatprep.mubr.bf16.mxu0 0
  %6636 = vmatmul.mubr.bf16.gmra.mrb[0].mxu0 %v6598
  %v6637 = vpop.f32.mrb[0].mxu0
  %v6638 = vadd.f32 0.0, %v6637
  %v6639 = vpop.f32.mrb[0].mxu0
  %v6640 = vpop.f32.mrb[0].mxu0
  %v6641 = vpop.f32.mrb[0].mxu0
  %6642 = vdwg.mxu0
  %v6643 = vadd.f32 %v6588, %v6638
  %s6644 = scalar_lea.vmem %s9, 6
  %v6645 = vld [vmem:[%s6644] sm:$0x3]
  %6646 = vrot.lane.b32.xlu0 %v6489, 122
  %v6647 = vpop.permute.xlu0 %6646
  %v6649 = vsel %vm6496, %v6645, 0
  %v6652 = vand.u32 %v6647, %v6503
  %6654 = vmatprep.subr.bf16.mxu0 0
  %6655 = vmatpush1.bf16.msra.mxu0 %v6652
  %6656 = vmatprep.subr.bf16.mxu0 0
  %6657 = vmatpush1.bf16.msra.mxu0 0
  %6658 = vmatprep.subr.bf16.mxu0 0
  %6659 = vmatpush1.bf16.msra.mxu0 0
  %6660 = vmatprep.subr.bf16.mxu0 0
  %6661 = vmatpush1.bf16.msra.mxu0 0
  %6662 = vmatprep.subr.bf16.mxu0 0
  %6663 = vmatpush1.bf16.msra.mxu0 0
  %6664 = vmatprep.subr.bf16.mxu0 0
  %6665 = vmatpush1.bf16.msra.mxu0 0
  %6666 = vmatprep.subr.bf16.mxu0 0
  %6667 = vmatpush1.bf16.msra.mxu0 0
  %6668 = vmatprep.subr.bf16.mxu0 0
  %6669 = vmatpush1.bf16.msra.mxu0 0
  %6670 = vmatprep.subr.bf16.mxu0 0
  %6671 = vmatpush1.bf16.msra.mxu0 0
  %6672 = vmatprep.subr.bf16.mxu0 0
  %6673 = vmatpush1.bf16.msra.mxu0 0
  %6674 = vmatprep.subr.bf16.mxu0 0
  %6675 = vmatpush1.bf16.msra.mxu0 0
  %6676 = vmatprep.subr.bf16.mxu0 0
  %6677 = vmatpush1.bf16.msra.mxu0 0
  %6678 = vmatprep.subr.bf16.mxu0 0
  %6679 = vmatpush1.bf16.msra.mxu0 0
  %6680 = vmatprep.subr.bf16.mxu0 0
  %6681 = vmatpush1.bf16.msra.mxu0 0
  %6682 = vmatprep.subr.bf16.mxu0 0
  %6683 = vmatpush1.bf16.msra.mxu0 0
  %6684 = vmatprep.subr.bf16.mxu0 0
  %6685 = vmatpush1.bf16.msra.mxu0 0
  %6686 = vmatprep.mubr.bf16.mxu0 0
  %6687 = vmatmul.mubr.bf16.gmra.mrb[0].mxu0 %v6649
  %v6688 = vpop.f32.mrb[0].mxu0
  %v6689 = vadd.f32 0.0, %v6688
  %v6690 = vpop.f32.mrb[0].mxu0
  %v6691 = vpop.f32.mrb[0].mxu0
  %v6692 = vpop.f32.mrb[0].mxu0
  %6693 = vdwg.mxu0
  %v6694 = vadd.f32 %v6643, %v6689
  %s6695 = scalar_lea.vmem %s9, 8
  %v6696 = vld [vmem:[%s6695] sm:$0x3]
  %6697 = vrot.lane.b32.xlu0 %v6489, 120
  %v6698 = vpop.permute.xlu0 %6697
  %v6700 = vsel %vm6496, %v6696, 0
  %v6703 = vand.u32 %v6698, %v6503
  %6705 = vmatprep.subr.bf16.mxu0 0
  %6706 = vmatpush1.bf16.msra.mxu0 %v6703
  %6707 = vmatprep.subr.bf16.mxu0 0
  %6708 = vmatpush1.bf16.msra.mxu0 0
  %6709 = vmatprep.subr.bf16.mxu0 0
  %6710 = vmatpush1.bf16.msra.mxu0 0
  %6711 = vmatprep.subr.bf16.mxu0 0
  %6712 = vmatpush1.bf16.msra.mxu0 0
  %6713 = vmatprep.subr.bf16.mxu0 0
  %6714 = vmatpush1.bf16.msra.mxu0 0
  %6715 = vmatprep.subr.bf16.mxu0 0
  %6716 = vmatpush1.bf16.msra.mxu0 0
  %6717 = vmatprep.subr.bf16.mxu0 0
  %6718 = vmatpush1.bf16.msra.mxu0 0
  %6719 = vmatprep.subr.bf16.mxu0 0
  %6720 = vmatpush1.bf16.msra.mxu0 0
  %6721 = vmatprep.subr.bf16.mxu0 0
  %6722 = vmatpush1.bf16.msra.mxu0 0
  %6723 = vmatprep.subr.bf16.mxu0 0
  %6724 = vmatpush1.bf16.msra.mxu0 0
  %6725 = vmatprep.subr.bf16.mxu0 0
  %6726 = vmatpush1.bf16.msra.mxu0 0
  %6727 = vmatprep.subr.bf16.mxu0 0
  %6728 = vmatpush1.bf16.msra.mxu0 0
  %6729 = vmatprep.subr.bf16.mxu0 0
  %6730 = vmatpush1.bf16.msra.mxu0 0
  %6731 = vmatprep.subr.bf16.mxu0 0
  %6732 = vmatpush1.bf16.msra.mxu0 0
  %6733 = vmatprep.subr.bf16.mxu0 0
  %6734 = vmatpush1.bf16.msra.mxu0 0
  %6735 = vmatprep.subr.bf16.mxu0 0
  %6736 = vmatpush1.bf16.msra.mxu0 0
  %6737 = vmatprep.mubr.bf16.mxu0 0
  %6738 = vmatmul.mubr.bf16.gmra.mrb[0].mxu0 %v6700
  %v6739 = vpop.f32.mrb[0].mxu0
  %v6740 = vadd.f32 0.0, %v6739
  %v6741 = vpop.f32.mrb[0].mxu0
  %v6742 = vpop.f32.mrb[0].mxu0
  %v6743 = vpop.f32.mrb[0].mxu0
  %6744 = vdwg.mxu0
  %v6745 = vadd.f32 %v6694, %v6740
  %s6746 = scalar_lea.vmem %s9, 10
  %v6747 = vld [vmem:[%s6746] sm:$0x3]
  %6748 = vrot.lane.b32.xlu0 %v6489, 118
  %v6749 = vpop.permute.xlu0 %6748
  %v6751 = vsel %vm6496, %v6747, 0
  %v6754 = vand.u32 %v6749, %v6503
  %6756 = vmatprep.subr.bf16.mxu0 0
  %6757 = vmatpush1.bf16.msra.mxu0 %v6754
  %6758 = vmatprep.subr.bf16.mxu0 0
  %6759 = vmatpush1.bf16.msra.mxu0 0
  %6760 = vmatprep.subr.bf16.mxu0 0
  %6761 = vmatpush1.bf16.msra.mxu0 0
  %6762 = vmatprep.subr.bf16.mxu0 0
  %6763 = vmatpush1.bf16.msra.mxu0 0
  %6764 = vmatprep.subr.bf16.mxu0 0
  %6765 = vmatpush1.bf16.msra.mxu0 0
  %6766 = vmatprep.subr.bf16.mxu0 0
  %6767 = vmatpush1.bf16.msra.mxu0 0
  %6768 = vmatprep.subr.bf16.mxu0 0
  %6769 = vmatpush1.bf16.msra.mxu0 0
  %6770 = vmatprep.subr.bf16.mxu0 0
  %6771 = vmatpush1.bf16.msra.mxu0 0
  %6772 = vmatprep.subr.bf16.mxu0 0
  %6773 = vmatpush1.bf16.msra.mxu0 0
  %6774 = vmatprep.subr.bf16.mxu0 0
  %6775 = vmatpush1.bf16.msra.mxu0 0
  %6776 = vmatprep.subr.bf16.mxu0 0
  %6777 = vmatpush1.bf16.msra.mxu0 0
  %6778 = vmatprep.subr.bf16.mxu0 0
  %6779 = vmatpush1.bf16.msra.mxu0 0
  %6780 = vmatprep.subr.bf16.mxu0 0
  %6781 = vmatpush1.bf16.msra.mxu0 0
  %6782 = vmatprep.subr.bf16.mxu0 0
  %6783 = vmatpush1.bf16.msra.mxu0 0
  %6784 = vmatprep.subr.bf16.mxu0 0
  %6785 = vmatpush1.bf16.msra.mxu0 0
  %6786 = vmatprep.subr.bf16.mxu0 0
  %6787 = vmatpush1.bf16.msra.mxu0 0
  %6788 = vmatprep.mubr.bf16.mxu0 0
  %6789 = vmatmul.mubr.bf16.gmra.mrb[0].mxu0 %v6751
  %v6790 = vpop.f32.mrb[0].mxu0
  %v6791 = vadd.f32 0.0, %v6790
  %v6792 = vpop.f32.mrb[0].mxu0
  %v6793 = vpop.f32.mrb[0].mxu0
  %v6794 = vpop.f32.mrb[0].mxu0
  %6795 = vdwg.mxu0
  %v6796 = vadd.f32 %v6745, %v6791
  %s6797 = scalar_lea.vmem %s9, 12
  %v6798 = vld [vmem:[%s6797] sm:$0x3]
  %6799 = vrot.lane.b32.xlu0 %v6489, 116
  %v6800 = vpop.permute.xlu0 %6799
  %v6802 = vsel %vm6496, %v6798, 0
  %v6805 = vand.u32 %v6800, %v6503
  %6807 = vmatprep.subr.bf16.mxu0 0
  %6808 = vmatpush1.bf16.msra.mxu0 %v6805
  %6809 = vmatprep.subr.bf16.mxu0 0
  %6810 = vmatpush1.bf16.msra.mxu0 0
  %6811 = vmatprep.subr.bf16.mxu0 0
  %6812 = vmatpush1.bf16.msra.mxu0 0
  %6813 = vmatprep.subr.bf16.mxu0 0
  %6814 = vmatpush1.bf16.msra.mxu0 0
  %6815 = vmatprep.subr.bf16.mxu0 0
  %6816 = vmatpush1.bf16.msra.mxu0 0
  %6817 = vmatprep.subr.bf16.mxu0 0
  %6818 = vmatpush1.bf16.msra.mxu0 0
  %6819 = vmatprep.subr.bf16.mxu0 0
  %6820 = vmatpush1.bf16.msra.mxu0 0
  %6821 = vmatprep.subr.bf16.mxu0 0
  %6822 = vmatpush1.bf16.msra.mxu0 0
  %6823 = vmatprep.subr.bf16.mxu0 0
  %6824 = vmatpush1.bf16.msra.mxu0 0
  %6825 = vmatprep.subr.bf16.mxu0 0
  %6826 = vmatpush1.bf16.msra.mxu0 0
  %6827 = vmatprep.subr.bf16.mxu0 0
  %6828 = vmatpush1.bf16.msra.mxu0 0
  %6829 = vmatprep.subr.bf16.mxu0 0
  %6830 = vmatpush1.bf16.msra.mxu0 0
  %6831 = vmatprep.subr.bf16.mxu0 0
  %6832 = vmatpush1.bf16.msra.mxu0 0
  %6833 = vmatprep.subr.bf16.mxu0 0
  %6834 = vmatpush1.bf16.msra.mxu0 0
  %6835 = vmatprep.subr.bf16.mxu0 0
  %6836 = vmatpush1.bf16.msra.mxu0 0
  %6837 = vmatprep.subr.bf16.mxu0 0
  %6838 = vmatpush1.bf16.msra.mxu0 0
  %6839 = vmatprep.mubr.bf16.mxu0 0
  %6840 = vmatmul.mubr.bf16.gmra.mrb[0].mxu0 %v6802
  %v6841 = vpop.f32.mrb[0].mxu0
  %v6842 = vadd.f32 0.0, %v6841
  %v6843 = vpop.f32.mrb[0].mxu0
  %v6844 = vpop.f32.mrb[0].mxu0
  %v6845 = vpop.f32.mrb[0].mxu0
  %6846 = vdwg.mxu0
  %v6847 = vadd.f32 %v6796, %v6842
  %s6848 = scalar_lea.vmem %s9, 14
  %v6849 = vld [vmem:[%s6848] sm:$0x3]
  %6850 = vrot.lane.b32.xlu0 %v6489, 114
  %v6851 = vpop.permute.xlu0 %6850
  %v6853 = vsel %vm6496, %v6849, 0
  %v6856 = vand.u32 %v6851, %v6503
  %6858 = vmatprep.subr.bf16.mxu0 0
  %6859 = vmatpush1.bf16.msra.mxu0 %v6856
  %6860 = vmatprep.subr.bf16.mxu0 0
  %6861 = vmatpush1.bf16.msra.mxu0 0
  %6862 = vmatprep.subr.bf16.mxu0 0
  %6863 = vmatpush1.bf16.msra.mxu0 0
  %6864 = vmatprep.subr.bf16.mxu0 0
  %6865 = vmatpush1.bf16.msra.mxu0 0
  %6866 = vmatprep.subr.bf16.mxu0 0
  %6867 = vmatpush1.bf16.msra.mxu0 0
  %6868 = vmatprep.subr.bf16.mxu0 0
  %6869 = vmatpush1.bf16.msra.mxu0 0
  %6870 = vmatprep.subr.bf16.mxu0 0
  %6871 = vmatpush1.bf16.msra.mxu0 0
  %6872 = vmatprep.subr.bf16.mxu0 0
  %6873 = vmatpush1.bf16.msra.mxu0 0
  %6874 = vmatprep.subr.bf16.mxu0 0
  %6875 = vmatpush1.bf16.msra.mxu0 0
  %6876 = vmatprep.subr.bf16.mxu0 0
  %6877 = vmatpush1.bf16.msra.mxu0 0
  %6878 = vmatprep.subr.bf16.mxu0 0
  %6879 = vmatpush1.bf16.msra.mxu0 0
  %6880 = vmatprep.subr.bf16.mxu0 0
  %6881 = vmatpush1.bf16.msra.mxu0 0
  %6882 = vmatprep.subr.bf16.mxu0 0
  %6883 = vmatpush1.bf16.msra.mxu0 0
  %6884 = vmatprep.subr.bf16.mxu0 0
  %6885 = vmatpush1.bf16.msra.mxu0 0
  %6886 = vmatprep.subr.bf16.mxu0 0
  %6887 = vmatpush1.bf16.msra.mxu0 0
  %6888 = vmatprep.subr.bf16.mxu0 0
  %6889 = vmatpush1.bf16.msra.mxu0 0
  %6890 = vmatprep.mubr.bf16.mxu0 0
  %6891 = vmatmul.mubr.bf16.gmra.mrb[0].mxu0 %v6853
  %v6892 = vpop.f32.mrb[0].mxu0
  %v6893 = vadd.f32 0.0, %v6892
  %v6894 = vpop.f32.mrb[0].mxu0
  %v6895 = vpop.f32.mrb[0].mxu0
  %v6896 = vpop.f32.mrb[0].mxu0
  %6897 = vdwg.mxu0
  %v6898 = vadd.f32 %v6847, %v6893
  %s6899 = scalar_lea.vmem %s9, 16
  %v6900 = vld [vmem:[%s6899] sm:$0x3]
  %6901 = vrot.lane.b32.xlu0 %v6489, 112
  %v6902 = vpop.permute.xlu0 %6901
  %v6904 = vsel %vm6496, %v6900, 0
  %v6907 = vand.u32 %v6902, %v6503
  %6909 = vmatprep.subr.bf16.mxu0 0
  %6910 = vmatpush1.bf16.msra.mxu0 %v6907
  %6911 = vmatprep.subr.bf16.mxu0 0
  %6912 = vmatpush1.bf16.msra.mxu0 0
  %6913 = vmatprep.subr.bf16.mxu0 0
  %6914 = vmatpush1.bf16.msra.mxu0 0
  %6915 = vmatprep.subr.bf16.mxu0 0
  %6916 = vmatpush1.bf16.msra.mxu0 0
  %6917 = vmatprep.subr.bf16.mxu0 0
  %6918 = vmatpush1.bf16.msra.mxu0 0
  %6919 = vmatprep.subr.bf16.mxu0 0
  %6920 = vmatpush1.bf16.msra.mxu0 0
  %6921 = vmatprep.subr.bf16.mxu0 0
  %6922 = vmatpush1.bf16.msra.mxu0 0
  %6923 = vmatprep.subr.bf16.mxu0 0
  %6924 = vmatpush1.bf16.msra.mxu0 0
  %6925 = vmatprep.subr.bf16.mxu0 0
  %6926 = vmatpush1.bf16.msra.mxu0 0
  %6927 = vmatprep.subr.bf16.mxu0 0
  %6928 = vmatpush1.bf16.msra.mxu0 0
  %6929 = vmatprep.subr.bf16.mxu0 0
  %6930 = vmatpush1.bf16.msra.mxu0 0
  %6931 = vmatprep.subr.bf16.mxu0 0
  %6932 = vmatpush1.bf16.msra.mxu0 0
  %6933 = vmatprep.subr.bf16.mxu0 0
  %6934 = vmatpush1.bf16.msra.mxu0 0
  %6935 = vmatprep.subr.bf16.mxu0 0
  %6936 = vmatpush1.bf16.msra.mxu0 0
  %6937 = vmatprep.subr.bf16.mxu0 0
  %6938 = vmatpush1.bf16.msra.mxu0 0
  %6939 = vmatprep.subr.bf16.mxu0 0
  %6940 = vmatpush1.bf16.msra.mxu0 0
  %6941 = vmatprep.mubr.bf16.mxu0 0
  %6942 = vmatmul.mubr.bf16.gmra.mrb[0].mxu0 %v6904
  %v6943 = vpop.f32.mrb[0].mxu0
  %v6944 = vadd.f32 0.0, %v6943
  %v6945 = vpop.f32.mrb[0].mxu0
  %v6946 = vpop.f32.mrb[0].mxu0
  %v6947 = vpop.f32.mrb[0].mxu0
  %6948 = vdwg.mxu0
  %v6949 = vadd.f32 %v6898, %v6944
  %s6950 = scalar_lea.vmem %s9, 18
  %v6951 = vld [vmem:[%s6950] sm:$0x3]
  %6952 = vrot.lane.b32.xlu0 %v6489, 110
  %v6953 = vpop.permute.xlu0 %6952
  %v6955 = vsel %vm6496, %v6951, 0
  %v6958 = vand.u32 %v6953, %v6503
  %6960 = vmatprep.subr.bf16.mxu0 0
  %6961 = vmatpush1.bf16.msra.mxu0 %v6958
  %6962 = vmatprep.subr.bf16.mxu0 0
  %6963 = vmatpush1.bf16.msra.mxu0 0
  %6964 = vmatprep.subr.bf16.mxu0 0
  %6965 = vmatpush1.bf16.msra.mxu0 0
  %6966 = vmatprep.subr.bf16.mxu0 0
  %6967 = vmatpush1.bf16.msra.mxu0 0
  %6968 = vmatprep.subr.bf16.mxu0 0
  %6969 = vmatpush1.bf16.msra.mxu0 0
  %6970 = vmatprep.subr.bf16.mxu0 0
  %6971 = vmatpush1.bf16.msra.mxu0 0
  %6972 = vmatprep.subr.bf16.mxu0 0
  %6973 = vmatpush1.bf16.msra.mxu0 0
  %6974 = vmatprep.subr.bf16.mxu0 0
  %6975 = vmatpush1.bf16.msra.mxu0 0
  %6976 = vmatprep.subr.bf16.mxu0 0
  %6977 = vmatpush1.bf16.msra.mxu0 0
  %6978 = vmatprep.subr.bf16.mxu0 0
  %6979 = vmatpush1.bf16.msra.mxu0 0
  %6980 = vmatprep.subr.bf16.mxu0 0
  %6981 = vmatpush1.bf16.msra.mxu0 0
  %6982 = vmatprep.subr.bf16.mxu0 0
  %6983 = vmatpush1.bf16.msra.mxu0 0
  %6984 = vmatprep.subr.bf16.mxu0 0
  %6985 = vmatpush1.bf16.msra.mxu0 0
  %6986 = vmatprep.subr.bf16.mxu0 0
  %6987 = vmatpush1.bf16.msra.mxu0 0
  %6988 = vmatprep.subr.bf16.mxu0 0
  %6989 = vmatpush1.bf16.msra.mxu0 0
  %6990 = vmatprep.subr.bf16.mxu0 0
  %6991 = vmatpush1.bf16.msra.mxu0 0
  %6992 = vmatprep.mubr.bf16.mxu0 0
  %6993 = vmatmul.mubr.bf16.gmra.mrb[0].mxu0 %v6955
  %v6994 = vpop.f32.mrb[0].mxu0
  %v6995 = vadd.f32 0.0, %v6994
  %v6996 = vpop.f32.mrb[0].mxu0
  %v6997 = vpop.f32.mrb[0].mxu0
  %v6998 = vpop.f32.mrb[0].mxu0
  %6999 = vdwg.mxu0
  %v7000 = vadd.f32 %v6949, %v6995
  %s7001 = scalar_lea.vmem %s9, 20
  %v7002 = vld [vmem:[%s7001] sm:$0x3]
  %7003 = vrot.lane.b32.xlu0 %v6489, 108
  %v7004 = vpop.permute.xlu0 %7003
  %v7006 = vsel %vm6496, %v7002, 0
  %v7009 = vand.u32 %v7004, %v6503
  %7011 = vmatprep.subr.bf16.mxu0 0
  %7012 = vmatpush1.bf16.msra.mxu0 %v7009
  %7013 = vmatprep.subr.bf16.mxu0 0
  %7014 = vmatpush1.bf16.msra.mxu0 0
  %7015 = vmatprep.subr.bf16.mxu0 0
  %7016 = vmatpush1.bf16.msra.mxu0 0
  %7017 = vmatprep.subr.bf16.mxu0 0
  %7018 = vmatpush1.bf16.msra.mxu0 0
  %7019 = vmatprep.subr.bf16.mxu0 0
  %7020 = vmatpush1.bf16.msra.mxu0 0
  %7021 = vmatprep.subr.bf16.mxu0 0
  %7022 = vmatpush1.bf16.msra.mxu0 0
  %7023 = vmatprep.subr.bf16.mxu0 0
  %7024 = vmatpush1.bf16.msra.mxu0 0
  %7025 = vmatprep.subr.bf16.mxu0 0
  %7026 = vmatpush1.bf16.msra.mxu0 0
  %7027 = vmatprep.subr.bf16.mxu0 0
  %7028 = vmatpush1.bf16.msra.mxu0 0
  %7029 = vmatprep.subr.bf16.mxu0 0
  %7030 = vmatpush1.bf16.msra.mxu0 0
  %7031 = vmatprep.subr.bf16.mxu0 0
  %7032 = vmatpush1.bf16.msra.mxu0 0
  %7033 = vmatprep.subr.bf16.mxu0 0
  %7034 = vmatpush1.bf16.msra.mxu0 0
  %7035 = vmatprep.subr.bf16.mxu0 0
  %7036 = vmatpush1.bf16.msra.mxu0 0
  %7037 = vmatprep.subr.bf16.mxu0 0
  %7038 = vmatpush1.bf16.msra.mxu0 0
  %7039 = vmatprep.subr.bf16.mxu0 0
  %7040 = vmatpush1.bf16.msra.mxu0 0
  %7041 = vmatprep.subr.bf16.mxu0 0
  %7042 = vmatpush1.bf16.msra.mxu0 0
  %7043 = vmatprep.mubr.bf16.mxu0 0
  %7044 = vmatmul.mubr.bf16.gmra.mrb[0].mxu0 %v7006
  %v7045 = vpop.f32.mrb[0].mxu0
  %v7046 = vadd.f32 0.0, %v7045
  %v7047 = vpop.f32.mrb[0].mxu0
  %v7048 = vpop.f32.mrb[0].mxu0
  %v7049 = vpop.f32.mrb[0].mxu0
  %7050 = vdwg.mxu0
  %v7051 = vadd.f32 %v7000, %v7046
  %s7052 = scalar_lea.vmem %s9, 22
  %v7053 = vld [vmem:[%s7052] sm:$0x3]
  %7054 = vrot.lane.b32.xlu0 %v6489, 106
  %v7055 = vpop.permute.xlu0 %7054
  %v7057 = vsel %vm6496, %v7053, 0
  %v7060 = vand.u32 %v7055, %v6503
  %7062 = vmatprep.subr.bf16.mxu0 0
  %7063 = vmatpush1.bf16.msra.mxu0 %v7060
  %7064 = vmatprep.subr.bf16.mxu0 0
  %7065 = vmatpush1.bf16.msra.mxu0 0
  %7066 = vmatprep.subr.bf16.mxu0 0
  %7067 = vmatpush1.bf16.msra.mxu0 0
  %7068 = vmatprep.subr.bf16.mxu0 0
  %7069 = vmatpush1.bf16.msra.mxu0 0
  %7070 = vmatprep.subr.bf16.mxu0 0
  %7071 = vmatpush1.bf16.msra.mxu0 0
  %7072 = vmatprep.subr.bf16.mxu0 0
  %7073 = vmatpush1.bf16.msra.mxu0 0
  %7074 = vmatprep.subr.bf16.mxu0 0
  %7075 = vmatpush1.bf16.msra.mxu0 0
  %7076 = vmatprep.subr.bf16.mxu0 0
  %7077 = vmatpush1.bf16.msra.mxu0 0
  %7078 = vmatprep.subr.bf16.mxu0 0
  %7079 = vmatpush1.bf16.msra.mxu0 0
  %7080 = vmatprep.subr.bf16.mxu0 0
  %7081 = vmatpush1.bf16.msra.mxu0 0
  %7082 = vmatprep.subr.bf16.mxu0 0
  %7083 = vmatpush1.bf16.msra.mxu0 0
  %7084 = vmatprep.subr.bf16.mxu0 0
  %7085 = vmatpush1.bf16.msra.mxu0 0
  %7086 = vmatprep.subr.bf16.mxu0 0
  %7087 = vmatpush1.bf16.msra.mxu0 0
  %7088 = vmatprep.subr.bf16.mxu0 0
  %7089 = vmatpush1.bf16.msra.mxu0 0
  %7090 = vmatprep.subr.bf16.mxu0 0
  %7091 = vmatpush1.bf16.msra.mxu0 0
  %7092 = vmatprep.subr.bf16.mxu0 0
  %7093 = vmatpush1.bf16.msra.mxu0 0
  %7094 = vmatprep.mubr.bf16.mxu0 0
  %7095 = vmatmul.mubr.bf16.gmra.mrb[0].mxu0 %v7057
  %v7096 = vpop.f32.mrb[0].mxu0
  %v7097 = vadd.f32 0.0, %v7096
  %v7098 = vpop.f32.mrb[0].mxu0
  %v7099 = vpop.f32.mrb[0].mxu0
  %v7100 = vpop.f32.mrb[0].mxu0
  %7101 = vdwg.mxu0
  %v7102 = vadd.f32 %v7051, %v7097
  %s7103 = scalar_lea.vmem %s9, 24
  %v7104 = vld [vmem:[%s7103] sm:$0x3]
  %7105 = vrot.lane.b32.xlu0 %v6489, 104
  %v7106 = vpop.permute.xlu0 %7105
  %v7108 = vsel %vm6496, %v7104, 0
  %v7111 = vand.u32 %v7106, %v6503
  %7113 = vmatprep.subr.bf16.mxu0 0
  %7114 = vmatpush1.bf16.msra.mxu0 %v7111
  %7115 = vmatprep.subr.bf16.mxu0 0
  %7116 = vmatpush1.bf16.msra.mxu0 0
  %7117 = vmatprep.subr.bf16.mxu0 0
  %7118 = vmatpush1.bf16.msra.mxu0 0
  %7119 = vmatprep.subr.bf16.mxu0 0
  %7120 = vmatpush1.bf16.msra.mxu0 0
  %7121 = vmatprep.subr.bf16.mxu0 0
  %7122 = vmatpush1.bf16.msra.mxu0 0
  %7123 = vmatprep.subr.bf16.mxu0 0
  %7124 = vmatpush1.bf16.msra.mxu0 0
  %7125 = vmatprep.subr.bf16.mxu0 0
  %7126 = vmatpush1.bf16.msra.mxu0 0
  %7127 = vmatprep.subr.bf16.mxu0 0
  %7128 = vmatpush1.bf16.msra.mxu0 0
  %7129 = vmatprep.subr.bf16.mxu0 0
  %7130 = vmatpush1.bf16.msra.mxu0 0
  %7131 = vmatprep.subr.bf16.mxu0 0
  %7132 = vmatpush1.bf16.msra.mxu0 0
  %7133 = vmatprep.subr.bf16.mxu0 0
  %7134 = vmatpush1.bf16.msra.mxu0 0
  %7135 = vmatprep.subr.bf16.mxu0 0
  %7136 = vmatpush1.bf16.msra.mxu0 0
  %7137 = vmatprep.subr.bf16.mxu0 0
  %7138 = vmatpush1.bf16.msra.mxu0 0
  %7139 = vmatprep.subr.bf16.mxu0 0
  %7140 = vmatpush1.bf16.msra.mxu0 0
  %7141 = vmatprep.subr.bf16.mxu0 0
  %7142 = vmatpush1.bf16.msra.mxu0 0
  %7143 = vmatprep.subr.bf16.mxu0 0
  %7144 = vmatpush1.bf16.msra.mxu0 0
  %7145 = vmatprep.mubr.bf16.mxu0 0
  %7146 = vmatmul.mubr.bf16.gmra.mrb[0].mxu0 %v7108
  %v7147 = vpop.f32.mrb[0].mxu0
  %v7148 = vadd.f32 0.0, %v7147
  %v7149 = vpop.f32.mrb[0].mxu0
  %v7150 = vpop.f32.mrb[0].mxu0
  %v7151 = vpop.f32.mrb[0].mxu0
  %7152 = vdwg.mxu0
  %v7153 = vadd.f32 %v7102, %v7148
  %s7154 = scalar_lea.vmem %s9, 26
  %v7155 = vld [vmem:[%s7154] sm:$0x3]
  %7156 = vrot.lane.b32.xlu0 %v6489, 102
  %v7157 = vpop.permute.xlu0 %7156
  %v7159 = vsel %vm6496, %v7155, 0
  %v7162 = vand.u32 %v7157, %v6503
  %7164 = vmatprep.subr.bf16.mxu0 0
  %7165 = vmatpush1.bf16.msra.mxu0 %v7162
  %7166 = vmatprep.subr.bf16.mxu0 0
  %7167 = vmatpush1.bf16.msra.mxu0 0
  %7168 = vmatprep.subr.bf16.mxu0 0
  %7169 = vmatpush1.bf16.msra.mxu0 0
  %7170 = vmatprep.subr.bf16.mxu0 0
  %7171 = vmatpush1.bf16.msra.mxu0 0
  %7172 = vmatprep.subr.bf16.mxu0 0
  %7173 = vmatpush1.bf16.msra.mxu0 0
  %7174 = vmatprep.subr.bf16.mxu0 0
  %7175 = vmatpush1.bf16.msra.mxu0 0
  %7176 = vmatprep.subr.bf16.mxu0 0
  %7177 = vmatpush1.bf16.msra.mxu0 0
  %7178 = vmatprep.subr.bf16.mxu0 0
  %7179 = vmatpush1.bf16.msra.mxu0 0
  %7180 = vmatprep.subr.bf16.mxu0 0
  %7181 = vmatpush1.bf16.msra.mxu0 0
  %7182 = vmatprep.subr.bf16.mxu0 0
  %7183 = vmatpush1.bf16.msra.mxu0 0
  %7184 = vmatprep.subr.bf16.mxu0 0
  %7185 = vmatpush1.bf16.msra.mxu0 0
  %7186 = vmatprep.subr.bf16.mxu0 0
  %7187 = vmatpush1.bf16.msra.mxu0 0
  %7188 = vmatprep.subr.bf16.mxu0 0
  %7189 = vmatpush1.bf16.msra.mxu0 0
  %7190 = vmatprep.subr.bf16.mxu0 0
  %7191 = vmatpush1.bf16.msra.mxu0 0
  %7192 = vmatprep.subr.bf16.mxu0 0
  %7193 = vmatpush1.bf16.msra.mxu0 0
  %7194 = vmatprep.subr.bf16.mxu0 0
  %7195 = vmatpush1.bf16.msra.mxu0 0
  %7196 = vmatprep.mubr.bf16.mxu0 0
  %7197 = vmatmul.mubr.bf16.gmra.mrb[0].mxu0 %v7159
  %v7198 = vpop.f32.mrb[0].mxu0
  %v7199 = vadd.f32 0.0, %v7198
  %v7200 = vpop.f32.mrb[0].mxu0
  %v7201 = vpop.f32.mrb[0].mxu0
  %v7202 = vpop.f32.mrb[0].mxu0
  %7203 = vdwg.mxu0
  %v7204 = vadd.f32 %v7153, %v7199
  %s7205 = scalar_lea.vmem %s9, 28
  %v7206 = vld [vmem:[%s7205] sm:$0x3]
  %7207 = vrot.lane.b32.xlu0 %v6489, 100
  %v7208 = vpop.permute.xlu0 %7207
  %v7210 = vsel %vm6496, %v7206, 0
  %v7213 = vand.u32 %v7208, %v6503
  %7215 = vmatprep.subr.bf16.mxu0 0
  %7216 = vmatpush1.bf16.msra.mxu0 %v7213
  %7217 = vmatprep.subr.bf16.mxu0 0
  %7218 = vmatpush1.bf16.msra.mxu0 0
  %7219 = vmatprep.subr.bf16.mxu0 0
  %7220 = vmatpush1.bf16.msra.mxu0 0
  %7221 = vmatprep.subr.bf16.mxu0 0
  %7222 = vmatpush1.bf16.msra.mxu0 0
  %7223 = vmatprep.subr.bf16.mxu0 0
  %7224 = vmatpush1.bf16.msra.mxu0 0
  %7225 = vmatprep.subr.bf16.mxu0 0
  %7226 = vmatpush1.bf16.msra.mxu0 0
  %7227 = vmatprep.subr.bf16.mxu0 0
  %7228 = vmatpush1.bf16.msra.mxu0 0
  %7229 = vmatprep.subr.bf16.mxu0 0
  %7230 = vmatpush1.bf16.msra.mxu0 0
  %7231 = vmatprep.subr.bf16.mxu0 0
  %7232 = vmatpush1.bf16.msra.mxu0 0
  %7233 = vmatprep.subr.bf16.mxu0 0
  %7234 = vmatpush1.bf16.msra.mxu0 0
  %7235 = vmatprep.subr.bf16.mxu0 0
  %7236 = vmatpush1.bf16.msra.mxu0 0
  %7237 = vmatprep.subr.bf16.mxu0 0
  %7238 = vmatpush1.bf16.msra.mxu0 0
  %7239 = vmatprep.subr.bf16.mxu0 0
  %7240 = vmatpush1.bf16.msra.mxu0 0
  %7241 = vmatprep.subr.bf16.mxu0 0
  %7242 = vmatpush1.bf16.msra.mxu0 0
  %7243 = vmatprep.subr.bf16.mxu0 0
  %7244 = vmatpush1.bf16.msra.mxu0 0
  %7245 = vmatprep.subr.bf16.mxu0 0
  %7246 = vmatpush1.bf16.msra.mxu0 0
  %7247 = vmatprep.mubr.bf16.mxu0 0
  %7248 = vmatmul.mubr.bf16.gmra.mrb[0].mxu0 %v7210
  %v7249 = vpop.f32.mrb[0].mxu0
  %v7250 = vadd.f32 0.0, %v7249
  %v7251 = vpop.f32.mrb[0].mxu0
  %v7252 = vpop.f32.mrb[0].mxu0
  %v7253 = vpop.f32.mrb[0].mxu0
  %7254 = vdwg.mxu0
  %v7255 = vadd.f32 %v7204, %v7250
  %s7256 = scalar_lea.vmem %s9, 30
  %v7257 = vld [vmem:[%s7256] sm:$0x3]
  %7258 = vrot.lane.b32.xlu0 %v6489, 98
  %v7259 = vpop.permute.xlu0 %7258
  %v7261 = vsel %vm6496, %v7257, 0
  %v7264 = vand.u32 %v7259, %v6503
  %7266 = vmatprep.subr.bf16.mxu0 0
  %7267 = vmatpush1.bf16.msra.mxu0 %v7264
  %7268 = vmatprep.subr.bf16.mxu0 0
  %7269 = vmatpush1.bf16.msra.mxu0 0
  %7270 = vmatprep.subr.bf16.mxu0 0
  %7271 = vmatpush1.bf16.msra.mxu0 0
  %7272 = vmatprep.subr.bf16.mxu0 0
  %7273 = vmatpush1.bf16.msra.mxu0 0
  %7274 = vmatprep.subr.bf16.mxu0 0
  %7275 = vmatpush1.bf16.msra.mxu0 0
  %7276 = vmatprep.subr.bf16.mxu0 0
  %7277 = vmatpush1.bf16.msra.mxu0 0
  %7278 = vmatprep.subr.bf16.mxu0 0
  %7279 = vmatpush1.bf16.msra.mxu0 0
  %7280 = vmatprep.subr.bf16.mxu0 0
  %7281 = vmatpush1.bf16.msra.mxu0 0
  %7282 = vmatprep.subr.bf16.mxu0 0
  %7283 = vmatpush1.bf16.msra.mxu0 0
  %7284 = vmatprep.subr.bf16.mxu0 0
  %7285 = vmatpush1.bf16.msra.mxu0 0
  %7286 = vmatprep.subr.bf16.mxu0 0
  %7287 = vmatpush1.bf16.msra.mxu0 0
  %7288 = vmatprep.subr.bf16.mxu0 0
  %7289 = vmatpush1.bf16.msra.mxu0 0
  %7290 = vmatprep.subr.bf16.mxu0 0
  %7291 = vmatpush1.bf16.msra.mxu0 0
  %7292 = vmatprep.subr.bf16.mxu0 0
  %7293 = vmatpush1.bf16.msra.mxu0 0
  %7294 = vmatprep.subr.bf16.mxu0 0
  %7295 = vmatpush1.bf16.msra.mxu0 0
  %7296 = vmatprep.subr.bf16.mxu0 0
  %7297 = vmatpush1.bf16.msra.mxu0 0
  %7298 = vmatprep.mubr.bf16.mxu0 0
  %7299 = vmatmul.mubr.bf16.gmra.mrb[0].mxu0 %v7261
  %v7300 = vpop.f32.mrb[0].mxu0
  %v7301 = vadd.f32 0.0, %v7300
  %v7302 = vpop.f32.mrb[0].mxu0
  %v7303 = vpop.f32.mrb[0].mxu0
  %v7304 = vpop.f32.mrb[0].mxu0
  %7305 = vdwg.mxu0
  %v7306 = vadd.f32 %v7255, %v7301
  %v7307 = vlaneseq
  %v7308 = vshrl.u32 %v7307, 7
  %v7309 = vsub.s32 7, %v7308
  %v7310 = vrot.slane %v39, %v7309
  %v7311 = vadd.f32 %v7306, %v7310
  %vm7312 = vcmask 15360
  %v7313 = vsel %vm7312, %v7311, 0.0
  %v7314 = vsel %vm6500, %v7313, 0.0
  %7315 = vst [vmem:[%s11] sm:$0xff] %v7314
  // Predicated region
  $region46: #{_lambda_.1} parent=0 // pred_check
    _
  $region47: #{_lambda_.1} parent=0 // pred_check_branch
    %7317 = sbr.rel (0) target = $region49
  $region48: #{_lambda_.1} parent=0 // pred_region
    _
  $region49: #{_lambda_.1} parent=0 // pred_fallthru
    _
  // Predicated region
  $region50: #{_lambda_.1} parent=0 // pred_check
    _
  $region51: #{_lambda_.1} parent=0 // pred_check_branch
    %7319 = sbr.rel (0) target = $region53
  $region52: #{_lambda_.1} parent=0 // pred_region
    _
  $region53: #{_lambda_.1} parent=0 // pred_fallthru
    _

</llo_original>
